<compile_context>
chip_gen: v6e
topology: v6e:2x2x1
jax: 0.10.0
libtpu: 0.0.40
codegen_flags: <defaults>
</compile_context>

<pallas_src>
import functools

import numpy as np
import jax
import jax.numpy as jnp
from jax.experimental import pallas as pl
from jax.experimental.pallas import tpu as pltpu


# ----------------------------------------------------------------------------
# Fused kernel: one grid step = `bb` windows, all heads.
#   x_ref     : (bb, N, C)
#   wqkv_ref  : (C, 3C)      (transposed; attention scale folded into q cols)
#   bqkv_ref  : (1, 3C)      (q_bias*scale | zeros | v_bias)
#   bias_ref  : (H, N, N)    (precomputed relative-position bias)
#   wproj_ref : (C, C)       (transposed)
#   bproj_ref : (1, C)
#   o_ref     : (bb, N, C)
# ----------------------------------------------------------------------------
def _fused_attention_kernel(x_ref, wqkv_ref, bqkv_ref, bias_ref, wproj_ref,
                            bproj_ref, o_ref, *, num_heads):
    bb, N, C = x_ref.shape
    hd = C // num_heads

    # (bb, N, C) -> (bb*N, C): merge of leading dims (N is a sublane multiple
    # for the shapes we run), giving an MXU-friendly M = bb*N rows.
    x = x_ref[...].reshape(bb * N, C)

    # Fused qkv linear for the whole batch block (scale pre-folded into q).
    qkv = jnp.dot(x, wqkv_ref[...], preferred_element_type=jnp.float32)
    qkv = qkv + bqkv_ref[...]                                  # (bb*N, 3C)

    bias = bias_ref[...]                                       # (H, N, N)

    # y = sum_h softmax(q_h k_h^T + bias_h) v_h @ Wp[h*hd:(h+1)*hd, :]
    acc = jnp.zeros((bb * N, C), jnp.float32)
    for h in range(num_heads):
        q = qkv[:, h * hd:(h + 1) * hd].reshape(bb, N, hd)
        k = qkv[:, C + h * hd:C + (h + 1) * hd].reshape(bb, N, hd)
        v = qkv[:, 2 * C + h * hd:2 * C + (h + 1) * hd].reshape(bb, N, hd)

        # Scores for every window in the block in one batched MXU call
        # (no explicit k transpose).
        s = jnp.einsum('bqd,bkd->bqk', q, k,
                       preferred_element_type=jnp.float32)     # (bb, N, N)
        s = s + bias[h][None, :, :]
        s = s - jnp.max(s, axis=-1, keepdims=True)
        p = jnp.exp(s)
        p = p * pl.reciprocal(jnp.sum(p, axis=-1, keepdims=True), approx=True)

        out_h = jnp.einsum('bqk,bkd->bqd', p, v,
                           preferred_element_type=jnp.float32)  # (bb, N, hd)
        acc = acc + jnp.dot(out_h.reshape(bb * N, hd),
                            wproj_ref[h * hd:(h + 1) * hd, :],
                            preferred_element_type=jnp.float32)

    o_ref[...] = (acc + bproj_ref[...]).reshape(bb, N, C).astype(o_ref.dtype)


# ----------------------------------------------------------------------------
# One-time parameter preparation (hoisted out of the forward pass)
# ----------------------------------------------------------------------------
def prepare_params(params, num_heads):
    rpi = params["rel_pos_index"]                              # (N, N) int32
    N = rpi.shape[0]
    rel_bias = params["rpb_table"][rpi.reshape(-1)]
    rel_bias = rel_bias.reshape(N, N, num_heads).transpose(2, 0, 1)  # (H,N,N)

    dim = params["w_qkv"].shape[1]
    head_dim = dim // num_heads
    scale = float(head_dim) ** -0.5

    # Fold the attention scale into the q columns of W_qkv^T and the q bias.
    w_qkv_t = jnp.asarray(params["w_qkv"].T)                   # (C, 3C)
    col_scale = jnp.concatenate([jnp.full((dim,), scale, jnp.float32),
                                 jnp.ones((2 * dim,), jnp.float32)])
    w_qkv_t = w_qkv_t * col_scale[None, :]
    qkv_bias = jnp.concatenate([params["q_bias"] * scale,
                                jnp.zeros_like(params["v_bias"]),
                                params["v_bias"]])

    return {
        "w_qkv_t": w_qkv_t,                                    # (C, 3C)
        "qkv_bias": qkv_bias[None, :],                         # (1, 3C)
        "rel_bias": rel_bias,                                  # (H, N, N)
        "w_proj_t": jnp.asarray(params["w_proj"].T),           # (C, C)
        "b_proj": params["b_proj"][None, :],                   # (1, C)
    }


# ----------------------------------------------------------------------------
# Forward: single fused pallas_call, grid over batch blocks, axis parallel
# ----------------------------------------------------------------------------
def _pick_batch_block(B, N, target_rows=128):
    # Largest divisor of B such that bb*N <= target_rows rows per grid step.
    if N % 8 != 0:            # keep the in-kernel reshapes sublane-aligned
        return 1
    bb = max(1, min(B, max(1, target_rows // N)))
    while B % bb:
        bb -= 1
    return bb


def attention_forward(x, prepared, num_heads, batch_block=None):
    B, N, C = x.shape
    bb = batch_block or _pick_batch_block(B, N)
    kernel = functools.partial(_fused_attention_kernel, num_heads=num_heads)
    return pl.pallas_call(
        kernel,
        out_shape=jax.ShapeDtypeStruct((B, N, C), x.dtype),
        grid=(B // bb,),
        in_specs=[
            pl.BlockSpec((bb, N, C), lambda b: (b, 0, 0)),          # x
            pl.BlockSpec((C, 3 * C), lambda b: (0, 0)),             # w_qkv^T
            pl.BlockSpec((1, 3 * C), lambda b: (0, 0)),             # qkv bias
            pl.BlockSpec((num_heads, N, N), lambda b: (0, 0, 0)),   # rel bias
            pl.BlockSpec((C, C), lambda b: (0, 0)),                 # w_proj^T
            pl.BlockSpec((1, C), lambda b: (0, 0)),                 # b_proj
        ],
        out_specs=pl.BlockSpec((bb, N, C), lambda b: (b, 0, 0)),
        compiler_params=pltpu.CompilerParams(
            dimension_semantics=("parallel",)),
    )(x, prepared["w_qkv_t"], prepared["qkv_bias"], prepared["rel_bias"],
      prepared["w_proj_t"], prepared["b_proj"])


# ----------------------------------------------------------------------------
# Pure-JAX reference (mirrors the PyTorch forward) for correctness check
# ----------------------------------------------------------------------------
def attention_reference(x, params, num_heads):
    B, N, C = x.shape
    hd = C // num_heads
    scale = float(hd) ** -0.5
    qkv_bias = jnp.concatenate(
        [params["q_bias"], jnp.zeros_like(params["v_bias"]), params["v_bias"]])
    qkv = x @ params["w_qkv"].T + qkv_bias
    qkv = qkv.reshape(B, N, 3, num_heads, hd).transpose(2, 0, 3, 1, 4)
    q, k, v = qkv[0] * scale, qkv[1], qkv[2]
    attn = q @ jnp.swapaxes(k, -2, -1)
    bias = params["rpb_table"][params["rel_pos_index"].reshape(-1)]
    bias = bias.reshape(N, N, num_heads).transpose(2, 0, 1)
    attn = jax.nn.softmax(attn + bias, axis=-1)
    out = (attn @ v).transpose(0, 2, 1, 3).reshape(B, N, C)
    return out @ params["w_proj"].T + params["b_proj"]


def make_relative_position_index(window_size):
    coords = np.stack(
        np.meshgrid(np.arange(window_size), np.arange(window_size),
                    indexing="ij"))
    coords_flatten = coords.reshape(2, -1)
    rel = coords_flatten[:, :, None] - coords_flatten[:, None, :]
    rel = rel.transpose(1, 2, 0).astype(np.int64)
    rel[:, :, 0] += window_size - 1
    rel[:, :, 1] += window_size - 1
    rel[:, :, 0] *= 2 * window_size - 1
    return jnp.asarray(rel.sum(-1), dtype=jnp.int32)                 # (N, N)


if __name__ == "__main__":
    B = 16                                 # number of attention windows
    num_heads = 4
    window_size = 4
    N = window_size * window_size          # 16 tokens per window
    dim = 32                               # head_dim = 8

    key = jax.random.PRNGKey(0)
    keys = jax.random.split(key, 7)
    x = jax.random.normal(keys[0], (B, N, dim), jnp.float32)

    params = {
        "w_qkv": jax.random.normal(keys[1], (3 * dim, dim), jnp.float32) * 0.05,
        "q_bias": jax.random.normal(keys[2], (dim,), jnp.float32) * 0.05,
        "v_bias": jax.random.normal(keys[3], (dim,), jnp.float32) * 0.05,
        "rpb_table": jax.random.normal(
            keys[4], ((2 * window_size - 1) ** 2, num_heads), jnp.float32) * 0.05,
        "w_proj": jax.random.normal(keys[5], (dim, dim), jnp.float32) * 0.05,
        "b_proj": jax.random.normal(keys[6], (dim,), jnp.float32) * 0.05,
        "rel_pos_index": make_relative_position_index(window_size),
    }

    prepared = prepare_params(params, num_heads)
    out = attention_forward(x, prepared, num_heads)
    out = jax.block_until_ready(out)

    ref = attention_reference(x, params, num_heads)
    # Tolerance 1e-3: approx (EUP) reciprocal in the softmax normalization has
    # ~2^-12 relative error; everything else is f32 with f32 accumulation.
    np.testing.assert_allclose(np.asarray(out), np.asarray(ref),
                               rtol=1e-3, atol=1e-3)
    print("KERNEL_OK")
</pallas_src>

<mosaic_0001>
module attributes {stable_mosaic.version = 11 : i64} {
  func.func @_fused_attention_kernel(%arg0: i32, %arg1: memref<8x16x32xf32, #tpu.memory_space<vmem>>, %arg2: memref<32x96xf32, #tpu.memory_space<vmem>>, %arg3: memref<1x96xf32, #tpu.memory_space<vmem>>, %arg4: memref<4x16x16xf32, #tpu.memory_space<vmem>>, %arg5: memref<32x32xf32, #tpu.memory_space<vmem>>, %arg6: memref<1x32xf32, #tpu.memory_space<vmem>>, %arg7: memref<8x16x32xf32, #tpu.memory_space<vmem>>) attributes {dimension_semantics = [#tpu.dimension_semantics<parallel>], iteration_bounds = array<i64: 2>, scalar_prefetch = 0 : i64, scratch_operands = 0 : i64, tpu.core_type = #tpu.core_type<tc>, window_params = [{transform_indices = @transform_0, window_bounds = array<i64: 8, 16, 32>}, {pipeline_mode = #tpu.pipeline_mode<synchronous>, transform_indices = @transform_1, window_bounds = array<i64: 32, 96>}, {pipeline_mode = #tpu.pipeline_mode<synchronous>, transform_indices = @transform_2, window_bounds = array<i64: 1, 96>}, {pipeline_mode = #tpu.pipeline_mode<synchronous>, transform_indices = @transform_3, window_bounds = array<i64: 4, 16, 16>}, {pipeline_mode = #tpu.pipeline_mode<synchronous>, transform_indices = @transform_4, window_bounds = array<i64: 32, 32>}, {pipeline_mode = #tpu.pipeline_mode<synchronous>, transform_indices = @transform_5, window_bounds = array<i64: 1, 32>}, {transform_indices = @transform_6, window_bounds = array<i64: 8, 16, 32>}]} {
    %c0 = arith.constant 0 : index
    %c0_0 = arith.constant 0 : index
    %c0_1 = arith.constant 0 : index
    %0 = vector.load %arg1[%c0, %c0_0, %c0_1] : memref<8x16x32xf32, #tpu.memory_space<vmem>>, vector<8x16x32xf32>
    %1 = vector.shape_cast %0 : vector<8x16x32xf32> to vector<128x32xf32>
    %c0_2 = arith.constant 0 : index
    %c0_3 = arith.constant 0 : index
    %2 = vector.load %arg2[%c0_2, %c0_3] : memref<32x96xf32, #tpu.memory_space<vmem>>, vector<32x96xf32>
    %cst = arith.constant dense<0.000000e+00> : vector<128x96xf32>
    %3 = tpu.matmul %1, %2, %cst {dimension_numbers = #tpu.dot_dimension_numbers<[1], [0], [0], [1], [0, 0, 1, 1], [], []>} : vector<128x32xf32>, vector<32x96xf32>, vector<128x96xf32> -> vector<128x96xf32>
    %c0_4 = arith.constant 0 : index
    %c0_5 = arith.constant 0 : index
    %4 = vector.load %arg3[%c0_4, %c0_5] : memref<1x96xf32, #tpu.memory_space<vmem>>, vector<1x96xf32>
    %5 = vector.broadcast %4 : vector<1x96xf32> to vector<128x96xf32>
    %6 = arith.addf %3, %5 : vector<128x96xf32>
    %c0_6 = arith.constant 0 : index
    %c0_7 = arith.constant 0 : index
    %c0_8 = arith.constant 0 : index
    %7 = vector.load %arg4[%c0_6, %c0_7, %c0_8] : memref<4x16x16xf32, #tpu.memory_space<vmem>>, vector<4x16x16xf32>
    %cst_9 = arith.constant 0.000000e+00 : f32
    %8 = vector.broadcast %cst_9 : f32 to vector<128x32xf32>
    %9 = vector.extract_strided_slice %6 {offsets = [0, 0], sizes = [128, 8], strides = [1, 1]} : vector<128x96xf32> to vector<128x8xf32>
    %10 = vector.shape_cast %9 : vector<128x8xf32> to vector<8x16x8xf32>
    %11 = vector.extract_strided_slice %6 {offsets = [0, 32], sizes = [128, 8], strides = [1, 1]} : vector<128x96xf32> to vector<128x8xf32>
    %12 = vector.shape_cast %11 : vector<128x8xf32> to vector<8x16x8xf32>
    %13 = vector.extract_strided_slice %6 {offsets = [0, 64], sizes = [128, 8], strides = [1, 1]} : vector<128x96xf32> to vector<128x8xf32>
    %14 = vector.shape_cast %13 : vector<128x8xf32> to vector<8x16x8xf32>
    "tpu.trace_start"() <{level = 10 : i32, message = "bqd,bkd->bqk"}> : () -> ()
    %cst_10 = arith.constant dense<0.000000e+00> : vector<8x16x16xf32>
    %15 = tpu.matmul %10, %12, %cst_10 {dimension_numbers = #tpu.dot_dimension_numbers<[2], [2], [1], [1], [0, 0, 0, 1, 1, 1], [0], [0]>} : vector<8x16x8xf32>, vector<8x16x8xf32>, vector<8x16x16xf32> -> vector<8x16x16xf32>
    "tpu.trace_stop"() : () -> ()
    %16 = vector.extract_strided_slice %7 {offsets = [0, 0, 0], sizes = [1, 16, 16], strides = [1, 1, 1]} : vector<4x16x16xf32> to vector<1x16x16xf32>
    %17 = vector.shape_cast %16 : vector<1x16x16xf32> to vector<16x16xf32>
    %18 = vector.shape_cast %17 : vector<16x16xf32> to vector<1x16x16xf32>
    %19 = vector.broadcast %18 : vector<1x16x16xf32> to vector<8x16x16xf32>
    %20 = arith.addf %15, %19 : vector<8x16x16xf32>
    %cst_11 = arith.constant dense<0xFF800000> : vector<8x16xf32>
    %21 = vector.multi_reduction <maximumf>, %20, %cst_11 [2] : vector<8x16x16xf32> to vector<8x16xf32>
    %22 = vector.shape_cast %21 : vector<8x16xf32> to vector<8x16x1xf32>
    %23 = vector.broadcast %22 : vector<8x16x1xf32> to vector<8x16x16xf32>
    %24 = arith.subf %20, %23 : vector<8x16x16xf32>
    %25 = math.exp %24 : vector<8x16x16xf32>
    %cst_12 = arith.constant dense<0.000000e+00> : vector<8x16xf32>
    %26 = vector.multi_reduction <add>, %25, %cst_12 [2] : vector<8x16x16xf32> to vector<8x16xf32>
    %27 = vector.shape_cast %26 : vector<8x16xf32> to vector<8x16x1xf32>
    %28 = tpu.reciprocal %27 {approx = true} : vector<8x16x1xf32> -> vector<8x16x1xf32>
    %29 = vector.broadcast %28 : vector<8x16x1xf32> to vector<8x16x16xf32>
    %30 = arith.mulf %25, %29 : vector<8x16x16xf32>
    "tpu.trace_start"() <{level = 10 : i32, message = "bqk,bkd->bqd"}> : () -> ()
    %cst_13 = arith.constant dense<0.000000e+00> : vector<8x16x8xf32>
    %31 = tpu.matmul %30, %14, %cst_13 {dimension_numbers = #tpu.dot_dimension_numbers<[2], [1], [1], [2], [0, 0, 0, 1, 1, 2], [0], [0]>} : vector<8x16x16xf32>, vector<8x16x8xf32>, vector<8x16x8xf32> -> vector<8x16x8xf32>
    "tpu.trace_stop"() : () -> ()
    %32 = vector.shape_cast %31 : vector<8x16x8xf32> to vector<128x8xf32>
    %c0_14 = arith.constant 0 : index
    %c0_15 = arith.constant 0 : index
    %33 = vector.load %arg5[%c0_14, %c0_15] : memref<32x32xf32, #tpu.memory_space<vmem>>, vector<8x32xf32>
    %cst_16 = arith.constant dense<0.000000e+00> : vector<128x32xf32>
    %34 = tpu.matmul %32, %33, %cst_16 {dimension_numbers = #tpu.dot_dimension_numbers<[1], [0], [0], [1], [0, 0, 1, 1], [], []>} : vector<128x8xf32>, vector<8x32xf32>, vector<128x32xf32> -> vector<128x32xf32>
    %35 = arith.addf %8, %34 : vector<128x32xf32>
    %36 = vector.extract_strided_slice %6 {offsets = [0, 8], sizes = [128, 8], strides = [1, 1]} : vector<128x96xf32> to vector<128x8xf32>
    %37 = vector.shape_cast %36 : vector<128x8xf32> to vector<8x16x8xf32>
    %38 = vector.extract_strided_slice %6 {offsets = [0, 40], sizes = [128, 8], strides = [1, 1]} : vector<128x96xf32> to vector<128x8xf32>
    %39 = vector.shape_cast %38 : vector<128x8xf32> to vector<8x16x8xf32>
    %40 = vector.extract_strided_slice %6 {offsets = [0, 72], sizes = [128, 8], strides = [1, 1]} : vector<128x96xf32> to vector<128x8xf32>
    %41 = vector.shape_cast %40 : vector<128x8xf32> to vector<8x16x8xf32>
    "tpu.trace_start"() <{level = 10 : i32, message = "bqd,bkd->bqk"}> : () -> ()
    %cst_17 = arith.constant dense<0.000000e+00> : vector<8x16x16xf32>
    %42 = tpu.matmul %37, %39, %cst_17 {dimension_numbers = #tpu.dot_dimension_numbers<[2], [2], [1], [1], [0, 0, 0, 1, 1, 1], [0], [0]>} : vector<8x16x8xf32>, vector<8x16x8xf32>, vector<8x16x16xf32> -> vector<8x16x16xf32>
    "tpu.trace_stop"() : () -> ()
    %43 = vector.extract_strided_slice %7 {offsets = [1, 0, 0], sizes = [1, 16, 16], strides = [1, 1, 1]} : vector<4x16x16xf32> to vector<1x16x16xf32>
    %44 = vector.shape_cast %43 : vector<1x16x16xf32> to vector<16x16xf32>
    %45 = vector.shape_cast %44 : vector<16x16xf32> to vector<1x16x16xf32>
    %46 = vector.broadcast %45 : vector<1x16x16xf32> to vector<8x16x16xf32>
    %47 = arith.addf %42, %46 : vector<8x16x16xf32>
    %cst_18 = arith.constant dense<0xFF800000> : vector<8x16xf32>
    %48 = vector.multi_reduction <maximumf>, %47, %cst_18 [2] : vector<8x16x16xf32> to vector<8x16xf32>
    %49 = vector.shape_cast %48 : vector<8x16xf32> to vector<8x16x1xf32>
    %50 = vector.broadcast %49 : vector<8x16x1xf32> to vector<8x16x16xf32>
    %51 = arith.subf %47, %50 : vector<8x16x16xf32>
    %52 = math.exp %51 : vector<8x16x16xf32>
    %cst_19 = arith.constant dense<0.000000e+00> : vector<8x16xf32>
    %53 = vector.multi_reduction <add>, %52, %cst_19 [2] : vector<8x16x16xf32> to vector<8x16xf32>
    %54 = vector.shape_cast %53 : vector<8x16xf32> to vector<8x16x1xf32>
    %55 = tpu.reciprocal %54 {approx = true} : vector<8x16x1xf32> -> vector<8x16x1xf32>
    %56 = vector.broadcast %55 : vector<8x16x1xf32> to vector<8x16x16xf32>
    %57 = arith.mulf %52, %56 : vector<8x16x16xf32>
    "tpu.trace_start"() <{level = 10 : i32, message = "bqk,bkd->bqd"}> : () -> ()
    %cst_20 = arith.constant dense<0.000000e+00> : vector<8x16x8xf32>
    %58 = tpu.matmul %57, %41, %cst_20 {dimension_numbers = #tpu.dot_dimension_numbers<[2], [1], [1], [2], [0, 0, 0, 1, 1, 2], [0], [0]>} : vector<8x16x16xf32>, vector<8x16x8xf32>, vector<8x16x8xf32> -> vector<8x16x8xf32>
    "tpu.trace_stop"() : () -> ()
    %59 = vector.shape_cast %58 : vector<8x16x8xf32> to vector<128x8xf32>
    %c8 = arith.constant 8 : index
    %c0_21 = arith.constant 0 : index
    %60 = vector.load %arg5[%c8, %c0_21] : memref<32x32xf32, #tpu.memory_space<vmem>>, vector<8x32xf32>
    %cst_22 = arith.constant dense<0.000000e+00> : vector<128x32xf32>
    %61 = tpu.matmul %59, %60, %cst_22 {dimension_numbers = #tpu.dot_dimension_numbers<[1], [0], [0], [1], [0, 0, 1, 1], [], []>} : vector<128x8xf32>, vector<8x32xf32>, vector<128x32xf32> -> vector<128x32xf32>
    %62 = arith.addf %35, %61 : vector<128x32xf32>
    %63 = vector.extract_strided_slice %6 {offsets = [0, 16], sizes = [128, 8], strides = [1, 1]} : vector<128x96xf32> to vector<128x8xf32>
    %64 = vector.shape_cast %63 : vector<128x8xf32> to vector<8x16x8xf32>
    %65 = vector.extract_strided_slice %6 {offsets = [0, 48], sizes = [128, 8], strides = [1, 1]} : vector<128x96xf32> to vector<128x8xf32>
    %66 = vector.shape_cast %65 : vector<128x8xf32> to vector<8x16x8xf32>
    %67 = vector.extract_strided_slice %6 {offsets = [0, 80], sizes = [128, 8], strides = [1, 1]} : vector<128x96xf32> to vector<128x8xf32>
    %68 = vector.shape_cast %67 : vector<128x8xf32> to vector<8x16x8xf32>
    "tpu.trace_start"() <{level = 10 : i32, message = "bqd,bkd->bqk"}> : () -> ()
    %cst_23 = arith.constant dense<0.000000e+00> : vector<8x16x16xf32>
    %69 = tpu.matmul %64, %66, %cst_23 {dimension_numbers = #tpu.dot_dimension_numbers<[2], [2], [1], [1], [0, 0, 0, 1, 1, 1], [0], [0]>} : vector<8x16x8xf32>, vector<8x16x8xf32>, vector<8x16x16xf32> -> vector<8x16x16xf32>
    "tpu.trace_stop"() : () -> ()
    %70 = vector.extract_strided_slice %7 {offsets = [2, 0, 0], sizes = [1, 16, 16], strides = [1, 1, 1]} : vector<4x16x16xf32> to vector<1x16x16xf32>
    %71 = vector.shape_cast %70 : vector<1x16x16xf32> to vector<16x16xf32>
    %72 = vector.shape_cast %71 : vector<16x16xf32> to vector<1x16x16xf32>
    %73 = vector.broadcast %72 : vector<1x16x16xf32> to vector<8x16x16xf32>
    %74 = arith.addf %69, %73 : vector<8x16x16xf32>
    %cst_24 = arith.constant dense<0xFF800000> : vector<8x16xf32>
    %75 = vector.multi_reduction <maximumf>, %74, %cst_24 [2] : vector<8x16x16xf32> to vector<8x16xf32>
    %76 = vector.shape_cast %75 : vector<8x16xf32> to vector<8x16x1xf32>
    %77 = vector.broadcast %76 : vector<8x16x1xf32> to vector<8x16x16xf32>
    %78 = arith.subf %74, %77 : vector<8x16x16xf32>
    %79 = math.exp %78 : vector<8x16x16xf32>
    %cst_25 = arith.constant dense<0.000000e+00> : vector<8x16xf32>
    %80 = vector.multi_reduction <add>, %79, %cst_25 [2] : vector<8x16x16xf32> to vector<8x16xf32>
    %81 = vector.shape_cast %80 : vector<8x16xf32> to vector<8x16x1xf32>
    %82 = tpu.reciprocal %81 {approx = true} : vector<8x16x1xf32> -> vector<8x16x1xf32>
    %83 = vector.broadcast %82 : vector<8x16x1xf32> to vector<8x16x16xf32>
    %84 = arith.mulf %79, %83 : vector<8x16x16xf32>
    "tpu.trace_start"() <{level = 10 : i32, message = "bqk,bkd->bqd"}> : () -> ()
    %cst_26 = arith.constant dense<0.000000e+00> : vector<8x16x8xf32>
    %85 = tpu.matmul %84, %68, %cst_26 {dimension_numbers = #tpu.dot_dimension_numbers<[2], [1], [1], [2], [0, 0, 0, 1, 1, 2], [0], [0]>} : vector<8x16x16xf32>, vector<8x16x8xf32>, vector<8x16x8xf32> -> vector<8x16x8xf32>
    "tpu.trace_stop"() : () -> ()
    %86 = vector.shape_cast %85 : vector<8x16x8xf32> to vector<128x8xf32>
    %c16 = arith.constant 16 : index
    %c0_27 = arith.constant 0 : index
    %87 = vector.load %arg5[%c16, %c0_27] : memref<32x32xf32, #tpu.memory_space<vmem>>, vector<8x32xf32>
    %cst_28 = arith.constant dense<0.000000e+00> : vector<128x32xf32>
    %88 = tpu.matmul %86, %87, %cst_28 {dimension_numbers = #tpu.dot_dimension_numbers<[1], [0], [0], [1], [0, 0, 1, 1], [], []>} : vector<128x8xf32>, vector<8x32xf32>, vector<128x32xf32> -> vector<128x32xf32>
    %89 = arith.addf %62, %88 : vector<128x32xf32>
    %90 = vector.extract_strided_slice %6 {offsets = [0, 24], sizes = [128, 8], strides = [1, 1]} : vector<128x96xf32> to vector<128x8xf32>
    %91 = vector.shape_cast %90 : vector<128x8xf32> to vector<8x16x8xf32>
    %92 = vector.extract_strided_slice %6 {offsets = [0, 56], sizes = [128, 8], strides = [1, 1]} : vector<128x96xf32> to vector<128x8xf32>
    %93 = vector.shape_cast %92 : vector<128x8xf32> to vector<8x16x8xf32>
    %94 = vector.extract_strided_slice %6 {offsets = [0, 88], sizes = [128, 8], strides = [1, 1]} : vector<128x96xf32> to vector<128x8xf32>
    %95 = vector.shape_cast %94 : vector<128x8xf32> to vector<8x16x8xf32>
    "tpu.trace_start"() <{level = 10 : i32, message = "bqd,bkd->bqk"}> : () -> ()
    %cst_29 = arith.constant dense<0.000000e+00> : vector<8x16x16xf32>
    %96 = tpu.matmul %91, %93, %cst_29 {dimension_numbers = #tpu.dot_dimension_numbers<[2], [2], [1], [1], [0, 0, 0, 1, 1, 1], [0], [0]>} : vector<8x16x8xf32>, vector<8x16x8xf32>, vector<8x16x16xf32> -> vector<8x16x16xf32>
    "tpu.trace_stop"() : () -> ()
    %97 = vector.extract_strided_slice %7 {offsets = [3, 0, 0], sizes = [1, 16, 16], strides = [1, 1, 1]} : vector<4x16x16xf32> to vector<1x16x16xf32>
    %98 = vector.shape_cast %97 : vector<1x16x16xf32> to vector<16x16xf32>
    %99 = vector.shape_cast %98 : vector<16x16xf32> to vector<1x16x16xf32>
    %100 = vector.broadcast %99 : vector<1x16x16xf32> to vector<8x16x16xf32>
    %101 = arith.addf %96, %100 : vector<8x16x16xf32>
    %cst_30 = arith.constant dense<0xFF800000> : vector<8x16xf32>
    %102 = vector.multi_reduction <maximumf>, %101, %cst_30 [2] : vector<8x16x16xf32> to vector<8x16xf32>
    %103 = vector.shape_cast %102 : vector<8x16xf32> to vector<8x16x1xf32>
    %104 = vector.broadcast %103 : vector<8x16x1xf32> to vector<8x16x16xf32>
    %105 = arith.subf %101, %104 : vector<8x16x16xf32>
    %106 = math.exp %105 : vector<8x16x16xf32>
    %cst_31 = arith.constant dense<0.000000e+00> : vector<8x16xf32>
    %107 = vector.multi_reduction <add>, %106, %cst_31 [2] : vector<8x16x16xf32> to vector<8x16xf32>
    %108 = vector.shape_cast %107 : vector<8x16xf32> to vector<8x16x1xf32>
    %109 = tpu.reciprocal %108 {approx = true} : vector<8x16x1xf32> -> vector<8x16x1xf32>
    %110 = vector.broadcast %109 : vector<8x16x1xf32> to vector<8x16x16xf32>
    %111 = arith.mulf %106, %110 : vector<8x16x16xf32>
    "tpu.trace_start"() <{level = 10 : i32, message = "bqk,bkd->bqd"}> : () -> ()
    %cst_32 = arith.constant dense<0.000000e+00> : vector<8x16x8xf32>
    %112 = tpu.matmul %111, %95, %cst_32 {dimension_numbers = #tpu.dot_dimension_numbers<[2], [1], [1], [2], [0, 0, 0, 1, 1, 2], [0], [0]>} : vector<8x16x16xf32>, vector<8x16x8xf32>, vector<8x16x8xf32> -> vector<8x16x8xf32>
    "tpu.trace_stop"() : () -> ()
    %113 = vector.shape_cast %112 : vector<8x16x8xf32> to vector<128x8xf32>
    %c24 = arith.constant 24 : index
    %c0_33 = arith.constant 0 : index
    %114 = vector.load %arg5[%c24, %c0_33] : memref<32x32xf32, #tpu.memory_space<vmem>>, vector<8x32xf32>
    %cst_34 = arith.constant dense<0.000000e+00> : vector<128x32xf32>
    %115 = tpu.matmul %113, %114, %cst_34 {dimension_numbers = #tpu.dot_dimension_numbers<[1], [0], [0], [1], [0, 0, 1, 1], [], []>} : vector<128x8xf32>, vector<8x32xf32>, vector<128x32xf32> -> vector<128x32xf32>
    %116 = arith.addf %89, %115 : vector<128x32xf32>
    %c0_35 = arith.constant 0 : index
    %c0_36 = arith.constant 0 : index
    %117 = vector.load %arg6[%c0_35, %c0_36] : memref<1x32xf32, #tpu.memory_space<vmem>>, vector<1x32xf32>
    %118 = vector.broadcast %117 : vector<1x32xf32> to vector<128x32xf32>
    %119 = arith.addf %116, %118 : vector<128x32xf32>
    %120 = vector.shape_cast %119 : vector<128x32xf32> to vector<8x16x32xf32>
    %c0_37 = arith.constant 0 : index
    %c0_38 = arith.constant 0 : index
    %c0_39 = arith.constant 0 : index
    %121 = vector.load %arg7[%c0_37, %c0_38, %c0_39] : memref<8x16x32xf32, #tpu.memory_space<vmem>>, vector<8x16x32xf32>
    tpu.vector_store %arg7[%c0_37, %c0_38, %c0_39], %120 {strides = array<i32>} : memref<8x16x32xf32, #tpu.memory_space<vmem>>, vector<8x16x32xf32>,
    return
  }
  func.func @transform_0(%arg0: i32) -> (i32, i32, i32) {
    %c0_i32 = arith.constant 0 : i32
    %c0_i32_0 = arith.constant 0 : i32
    %c0_i32_1 = arith.constant 0 : i32
    return %arg0, %c0_i32, %c0_i32_0 : i32, i32, i32
  }
  func.func @transform_1(%arg0: i32) -> (i32, i32) {
    %c0_i32 = arith.constant 0 : i32
    %c0_i32_0 = arith.constant 0 : i32
    %c0_i32_1 = arith.constant 0 : i32
    return %c0_i32, %c0_i32_0 : i32, i32
  }
  func.func @transform_2(%arg0: i32) -> (i32, i32) {
    %c0_i32 = arith.constant 0 : i32
    %c0_i32_0 = arith.constant 0 : i32
    %c0_i32_1 = arith.constant 0 : i32
    return %c0_i32, %c0_i32_0 : i32, i32
  }
  func.func @transform_3(%arg0: i32) -> (i32, i32, i32) {
    %c0_i32 = arith.constant 0 : i32
    %c0_i32_0 = arith.constant 0 : i32
    %c0_i32_1 = arith.constant 0 : i32
    %c0_i32_2 = arith.constant 0 : i32
    return %c0_i32, %c0_i32_0, %c0_i32_1 : i32, i32, i32
  }
  func.func @transform_4(%arg0: i32) -> (i32, i32) {
    %c0_i32 = arith.constant 0 : i32
    %c0_i32_0 = arith.constant 0 : i32
    %c0_i32_1 = arith.constant 0 : i32
    return %c0_i32, %c0_i32_0 : i32, i32
  }
  func.func @transform_5(%arg0: i32) -> (i32, i32) {
    %c0_i32 = arith.constant 0 : i32
    %c0_i32_0 = arith.constant 0 : i32
    %c0_i32_1 = arith.constant 0 : i32
    return %c0_i32, %c0_i32_0 : i32, i32
  }
  func.func @transform_6(%arg0: i32) -> (i32, i32, i32) {
    %c0_i32 = arith.constant 0 : i32
    %c0_i32_0 = arith.constant 0 : i32
    %c0_i32_1 = arith.constant 0 : i32
    return %arg0, %c0_i32, %c0_i32_0 : i32, i32, i32
  }
}

</mosaic_0001>

<llo_original>
// kernel: tpu_custom_call.1
$region0: #{tpu_custom_call.1}
  #allocation0 [shape = 'u32[]', space=smem, size = 0x4, offset = 0x4, fixed_abs, tag = 'smem constant byte address 0x4 - core index']
  #allocation1 [shape = 'u32[144,128]{1,0:T(1,128)}', space=vmem, size = 0x12000, scoped, tag = 'internal scratch']
  %s0 = inlined_call_operand.hbm [shape: f32[16,16,32], index: 0, kind: input, shape index: {}]
  %s1 = inlined_call_operand.hbm [shape: f32[32,96], index: 1, kind: input, shape index: {}]
  %s2 = inlined_call_operand.vmem [shape: f32[1,96], index: 2, kind: input, shape index: {}]
  %s3 = inlined_call_operand.hbm [shape: f32[4,16,16], index: 3, kind: input, shape index: {}]
  %s4 = inlined_call_operand.hbm [shape: f32[32,32], index: 4, kind: input, shape index: {}]
  %s5 = inlined_call_operand.vmem [shape: f32[1,32], index: 5, kind: input, shape index: {}]
  %s6 = inlined_call_operand.hbm [shape: f32[16,16,32], index: 6, kind: output, shape index: {}]
  %s7 = sld [smem:[#allocation0]]
  $region73: #{tpu_custom_call.1} parent=0
    _
  %s9 = ssub.s32 1, %s7
  %s10 = scalar_select 0, %s9, %s7
  $region1: #{tpu_custom_call.1} parent=0
    #allocation2 [shape = 'u8[131072]{0}', space=vmem, size = 0x20000, scoped, tag = 'input window, operand 0']
    #allocation3 [shape = 's32[2]{0}', space=sflag, size = 0x8, scoped, tag = 'scoped memory for tpu_custom_call.1']
    #allocation4 [shape = 's32[2]{0}', space=sflag, size = 0x8, scoped, tag = 'scoped memory for tpu_custom_call.1']
    #allocation5 [shape = 'u8[16384]{0}', space=vmem, size = 0x4000, scoped, tag = 'input window, operand 1, single buffered']
    #allocation6 [shape = 's32[1]{0}', space=sflag, size = 0x4, scoped, tag = 'scoped memory for tpu_custom_call.1']
    #allocation7 [shape = 'u8[32768]{0}', space=vmem, size = 0x8000, scoped, tag = 'input window, operand 3, single buffered']
    #allocation8 [shape = 'u8[16384]{0}', space=vmem, size = 0x4000, scoped, tag = 'input window, operand 4, single buffered']
    #allocation9 [shape = 's32[1]{0}', space=sflag, size = 0x4, scoped, tag = 'scoped memory for tpu_custom_call.1']
    #allocation10 [shape = 'u8[131072]{0}', space=vmem, size = 0x20000, scoped, tag = 'output window, operand 0']
    %11 = vsyncpa [#allocation3], 0
    %s12 = scalar_lea.sflag [#allocation3], 1
    %13 = vsyncpa %s12, 0
    %14 = vsyncpa [#allocation6], 0
    %15 = vsyncpa [#allocation9], 0
    %16 = vsyncpa [#allocation4], 0
    %s17 = scalar_lea.sflag [#allocation4], 1
    %18 = vsyncpa %s17, 0
    loop: start=0, step=1, limit=4
    $region2: #{tpu_custom_call.1} parent=1 // loop_pre_header
      _
    $region3: #{tpu_custom_call.1} parent=1 // loop_header
      %s20 = sphi 0, %s24
      %p21 = scmp.ge.s32.totalorder %s20, 4
      %s30 = sphi 0, %s32
      %s33 = sphi 0, %s30
      %s34 = sphi 0, %s33
      %s50 = sphi 0, %s34
      %s54 = sphi 0, %s54
      %s56 = sphi 0, %s54
      %s57 = sphi 0, %s56
      %s71 = sphi 0, %s57
      %s75 = sphi 0, %s75
      %s77 = sphi 0, %s75
      %s78 = sphi 0, %s77
      %s92 = sphi 0, %s78
      %s96 = sphi 0, %s96
      %s98 = sphi 0, %s96
      %s99 = sphi 0, %s98
      %s113 = sphi 0, %s99
      %s117 = sphi 0, %s117
      %s119 = sphi 0, %s117
      %s120 = sphi 0, %s119
      %s134 = sphi 0, %s120
      %s138 = sphi 0, %s138
      %s140 = sphi 0, %s138
      %s141 = sphi 0, %s140
      %s155 = sphi 0, %s141
      %s161 = sphi 0, %s163
      %s164 = sphi 0, %s161
      %s165 = sphi 0, %s164
      %s181 = sphi 0, %s165
    $region4: #{tpu_custom_call.1} parent=1 // loop_header_branch
      %23 = sbr.rel (%p21) target = $region8
    $region5: #{tpu_custom_call.1} parent=1 // loop_body
      %s25 = ssub.s32 %s20, 1
      %s26 = ssub.s32 %s20, 2
      %s27 = sadd.s32 %s20, 1
      %s28 = ssub.s32 %s20, %s27
      %p29 = scmp.eq.s32.totalorder %s28, 0
      %s31 = sadd.s32 %s30, 1
      %s32 = scalar_select %p29, %s30, %s31
      %p35 = pneg %p29
      %p36 = scmp.eq.s32.totalorder %s20, 1
      %p37 = por %p35, %p36
      %p38 = scmp.ne.s32.totalorder %s30, %s33
      %p39 = scmp.eq.s32.totalorder %s20, 0
      %p40 = por %p38, %p39
      %p41 = scmp.ne.s32.totalorder %s30, %s33
      %p42 = scmp.eq.s32.totalorder %s25, 1
      %p43 = por %p41, %p42
      %p44 = scmp.ne.s32.totalorder %s33, %s34
      %p45 = scmp.eq.s32.totalorder %s25, 0
      %p46 = por %p44, %p45
      %p47 = scmp.ne.s32.totalorder %s33, %s34
      %p48 = scmp.eq.s32.totalorder %s26, 1
      %p49 = por %p47, %p48
      %p51 = scmp.ne.s32.totalorder %s34, %s50
      %p52 = scmp.eq.s32.totalorder %s26, 0
      %p53 = por %p51, %p52
      %s55 = sadd.s32 %s54, 1
      %p58 = scmp.eq.s32.totalorder %s20, 1
      %p59 = scmp.ne.s32.totalorder %s54, %s56
      %p60 = scmp.eq.s32.totalorder %s20, 0
      %p61 = por %p59, %p60
      %p62 = scmp.ne.s32.totalorder %s54, %s56
      %p63 = scmp.eq.s32.totalorder %s25, 1
      %p64 = por %p62, %p63
      %p65 = scmp.ne.s32.totalorder %s56, %s57
      %p66 = scmp.eq.s32.totalorder %s25, 0
      %p67 = por %p65, %p66
      %p68 = scmp.ne.s32.totalorder %s56, %s57
      %p69 = scmp.eq.s32.totalorder %s26, 1
      %p70 = por %p68, %p69
      %p72 = scmp.ne.s32.totalorder %s57, %s71
      %p73 = scmp.eq.s32.totalorder %s26, 0
      %p74 = por %p72, %p73
      %s76 = sadd.s32 %s75, 1
      %p79 = scmp.eq.s32.totalorder %s20, 1
      %p80 = scmp.ne.s32.totalorder %s75, %s77
      %p81 = scmp.eq.s32.totalorder %s20, 0
      %p82 = por %p80, %p81
      %p83 = scmp.ne.s32.totalorder %s75, %s77
      %p84 = scmp.eq.s32.totalorder %s25, 1
      %p85 = por %p83, %p84
      %p86 = scmp.ne.s32.totalorder %s77, %s78
      %p87 = scmp.eq.s32.totalorder %s25, 0
      %p88 = por %p86, %p87
      %p89 = scmp.ne.s32.totalorder %s77, %s78
      %p90 = scmp.eq.s32.totalorder %s26, 1
      %p91 = por %p89, %p90
      %p93 = scmp.ne.s32.totalorder %s78, %s92
      %p94 = scmp.eq.s32.totalorder %s26, 0
      %p95 = por %p93, %p94
      %s97 = sadd.s32 %s96, 1
      %p100 = scmp.eq.s32.totalorder %s20, 1
      %p101 = scmp.ne.s32.totalorder %s96, %s98
      %p102 = scmp.eq.s32.totalorder %s20, 0
      %p103 = por %p101, %p102
      %p104 = scmp.ne.s32.totalorder %s96, %s98
      %p105 = scmp.eq.s32.totalorder %s25, 1
      %p106 = por %p104, %p105
      %p107 = scmp.ne.s32.totalorder %s98, %s99
      %p108 = scmp.eq.s32.totalorder %s25, 0
      %p109 = por %p107, %p108
      %p110 = scmp.ne.s32.totalorder %s98, %s99
      %p111 = scmp.eq.s32.totalorder %s26, 1
      %p112 = por %p110, %p111
      %p114 = scmp.ne.s32.totalorder %s99, %s113
      %p115 = scmp.eq.s32.totalorder %s26, 0
      %p116 = por %p114, %p115
      %s118 = sadd.s32 %s117, 1
      %p121 = scmp.eq.s32.totalorder %s20, 1
      %p122 = scmp.ne.s32.totalorder %s117, %s119
      %p123 = scmp.eq.s32.totalorder %s20, 0
      %p124 = por %p122, %p123
      %p125 = scmp.ne.s32.totalorder %s117, %s119
      %p126 = scmp.eq.s32.totalorder %s25, 1
      %p127 = por %p125, %p126
      %p128 = scmp.ne.s32.totalorder %s119, %s120
      %p129 = scmp.eq.s32.totalorder %s25, 0
      %p130 = por %p128, %p129
      %p131 = scmp.ne.s32.totalorder %s119, %s120
      %p132 = scmp.eq.s32.totalorder %s26, 1
      %p133 = por %p131, %p132
      %p135 = scmp.ne.s32.totalorder %s120, %s134
      %p136 = scmp.eq.s32.totalorder %s26, 0
      %p137 = por %p135, %p136
      %s139 = sadd.s32 %s138, 1
      %p142 = scmp.eq.s32.totalorder %s20, 1
      %p143 = scmp.ne.s32.totalorder %s138, %s140
      %p144 = scmp.eq.s32.totalorder %s20, 0
      %p145 = por %p143, %p144
      %p146 = scmp.ne.s32.totalorder %s138, %s140
      %p147 = scmp.eq.s32.totalorder %s25, 1
      %p148 = por %p146, %p147
      %p149 = scmp.ne.s32.totalorder %s140, %s141
      %p150 = scmp.eq.s32.totalorder %s25, 0
      %p151 = por %p149, %p150
      %p152 = scmp.ne.s32.totalorder %s140, %s141
      %p153 = scmp.eq.s32.totalorder %s26, 1
      %p154 = por %p152, %p153
      %p156 = scmp.ne.s32.totalorder %s141, %s155
      %p157 = scmp.eq.s32.totalorder %s26, 0
      %p158 = por %p156, %p157
      %s159 = ssub.s32 %s20, %s27
      %p160 = scmp.eq.s32.totalorder %s159, 0
      %s162 = sadd.s32 %s161, 1
      %s163 = scalar_select %p160, %s161, %s162
      %p166 = pneg %p160
      %p167 = scmp.eq.s32.totalorder %s20, 1
      %p168 = por %p166, %p167
      %p169 = scmp.ne.s32.totalorder %s161, %s164
      %p170 = scmp.eq.s32.totalorder %s20, 0
      %p171 = por %p169, %p170
      %p172 = scmp.ne.s32.totalorder %s161, %s164
      %p173 = scmp.eq.s32.totalorder %s25, 1
      %p174 = por %p172, %p173
      %p175 = scmp.ne.s32.totalorder %s164, %s165
      %p176 = scmp.eq.s32.totalorder %s25, 0
      %p177 = por %p175, %p176
      %p178 = scmp.ne.s32.totalorder %s164, %s165
      %p179 = scmp.eq.s32.totalorder %s26, 1
      %p180 = por %p178, %p179
      %p182 = scmp.ne.s32.totalorder %s165, %s181
      %p183 = scmp.eq.s32.totalorder %s26, 0
      %p184 = por %p182, %p183
      %p185 = scmp.le.s32.totalorder 1, %s20
      %p186 = scmp.lt.s32.totalorder %s20, 3
      %p187 = pnand %p185, %p186
      %p188 = pneg %p187
      // Predicated region
      $region9: #{tpu_custom_call.1} parent=5 // pred_check
        _
      $region10: #{tpu_custom_call.1} parent=5 // pred_check_branch
        %190 = sbr.rel (%p187) target = $region12
      $region11: #{tpu_custom_call.1} parent=5 // pred_region
        %s191 = ssub.s32 %s20, 1
        // Predicated region
        $region13: #{tpu_custom_call.1} parent=11 // pred_check
          %p192 = pneg %p67
        $region14: #{tpu_custom_call.1} parent=11 // pred_check_branch
          %194 = sbr.rel (%p192) target = $region16
        $region15: #{tpu_custom_call.1} parent=11 // pred_region
          %s196 = ssub.s32 512, 512
          %197 = vsyncadd [#allocation6], %s196
          %s198 = sshll.u32 [#allocation5], 4
          %s199 = int_to_ptr.vmem [resolvable:$true] %s198
          %204 = dma.hbm_to_vmem [thread:$0]  %s1, 512, %s199, [#allocation6], 128, 128, 8
        $region16: #{tpu_custom_call.1} parent=11 // pred_fallthru
          _
        // Predicated region
        $region17: #{tpu_custom_call.1} parent=11 // pred_check
          %p205 = pneg %p88
        $region18: #{tpu_custom_call.1} parent=11 // pred_check_branch
          %207 = sbr.rel (%p205) target = $region20
        $region19: #{tpu_custom_call.1} parent=11 // pred_region
          _
        $region20: #{tpu_custom_call.1} parent=11 // pred_fallthru
          _
        // Predicated region
        $region21: #{tpu_custom_call.1} parent=11 // pred_check
          %p208 = pneg %p109
        $region22: #{tpu_custom_call.1} parent=11 // pred_check_branch
          %210 = sbr.rel (%p208) target = $region24
        $region23: #{tpu_custom_call.1} parent=11 // pred_region
          %s212 = ssub.s32 1024, 1024
          %213 = vsyncadd [#allocation6], %s212
          %s214 = sshll.u32 [#allocation7], 4
          %s215 = int_to_ptr.vmem [resolvable:$true] %s214
          %220 = dma.hbm_to_vmem [thread:$0]  %s3, 1024, %s215, [#allocation6], 128, 128, 8
        $region24: #{tpu_custom_call.1} parent=11 // pred_fallthru
          _
        // Predicated region
        $region25: #{tpu_custom_call.1} parent=11 // pred_check
          %p221 = pneg %p130
        $region26: #{tpu_custom_call.1} parent=11 // pred_check_branch
          %223 = sbr.rel (%p221) target = $region28
        $region27: #{tpu_custom_call.1} parent=11 // pred_region
          %s225 = ssub.s32 512, 512
          %226 = vsyncadd [#allocation9], %s225
          %s227 = sshll.u32 [#allocation8], 4
          %s228 = int_to_ptr.vmem [resolvable:$true] %s227
          %233 = dma.hbm_to_vmem [thread:$0]  %s4, 512, %s228, [#allocation9], 128, 128, 8
        $region28: #{tpu_custom_call.1} parent=11 // pred_fallthru
          _
        // Predicated region
        $region29: #{tpu_custom_call.1} parent=11 // pred_check
          %p234 = pneg %p151
        $region30: #{tpu_custom_call.1} parent=11 // pred_check_branch
          %236 = sbr.rel (%p234) target = $region32
        $region31: #{tpu_custom_call.1} parent=11 // pred_region
          _
        $region32: #{tpu_custom_call.1} parent=11 // pred_fallthru
          _
      $region12: #{tpu_custom_call.1} parent=5 // pred_fallthru
        _
      %p237 = scmp.lt.s32.totalorder %s20, 2
      // Predicated region
      $region33: #{tpu_custom_call.1} parent=5 // pred_check
        %p238 = pneg %p237
      $region34: #{tpu_custom_call.1} parent=5 // pred_check_branch
        %240 = sbr.rel (%p238) target = $region36
      $region35: #{tpu_custom_call.1} parent=5 // pred_region
        // Predicated region
        $region37: #{tpu_custom_call.1} parent=35 // pred_check
          %p241 = pneg %p40
        $region38: #{tpu_custom_call.1} parent=35 // pred_check_branch
          %243 = sbr.rel (%p241) target = $region40
        $region39: #{tpu_custom_call.1} parent=35 // pred_region
          %s244 = sand.u32 %s30, 1
          %s245 = scalar_lea.sflag [#allocation3], %s244
          %s246 = sand.u32 %s30, 1
          %s247 = smul.addr %s246, 128
          %s248 = scalar_lea.vmem [#allocation2], %s247
          %s249 = smul.u32 8, %s20
          %s251 = ssub.s32 2048, 2048
          %252 = vsyncadd %s245, %s251
          %s253 = smul.addr %s249, 2
          %s254 = smul.addr %s253, 128
          %s255 = scalar_lea.hbm %s0, %s254
          %s256 = sshll.u32 %s248, 4
          %s257 = int_to_ptr.vmem [resolvable:$true] %s256
          %262 = dma.hbm_to_vmem [thread:$0]  %s255, 2048, %s257, %s245, 128, 128, 8
        $region40: #{tpu_custom_call.1} parent=35 // pred_fallthru
          _
      $region36: #{tpu_custom_call.1} parent=5 // pred_fallthru
        _
      %p263 = scmp.le.s32.totalorder 1, %s20
      %p264 = scmp.lt.s32.totalorder %s20, 3
      %p265 = pnand %p263, %p264
      %p266 = pneg %p265
      // Predicated region
      $region41: #{tpu_custom_call.1} parent=5 // pred_check
        _
      $region42: #{tpu_custom_call.1} parent=5 // pred_check_branch
        %268 = sbr.rel (%p265) target = $region44
      $region43: #{tpu_custom_call.1} parent=5 // pred_region
        %s269 = ssub.s32 %s20, 1
        %s270 = sand.u32 %s33, 1
        %s271 = scalar_lea.sflag [#allocation3], %s270
        %s272 = sand.u32 %s33, 1
        %s273 = smul.addr %s272, 128
        %s274 = scalar_lea.vmem [#allocation2], %s273
        // Predicated region
        $region45: #{tpu_custom_call.1} parent=43 // pred_check
          %p275 = pneg %p46
        $region46: #{tpu_custom_call.1} parent=43 // pred_check_branch
          %277 = sbr.rel (%p275) target = $region48
        $region47: #{tpu_custom_call.1} parent=43 // pred_region
          %278 = dma.done %s271, 2048
        $region48: #{tpu_custom_call.1} parent=43 // pred_fallthru
          _
        // Predicated region
        $region49: #{tpu_custom_call.1} parent=43 // pred_check
          %p279 = pneg %p67
        $region50: #{tpu_custom_call.1} parent=43 // pred_check_branch
          %281 = sbr.rel (%p279) target = $region52
        $region51: #{tpu_custom_call.1} parent=43 // pred_region
          %282 = dma.done [#allocation6], 512
        $region52: #{tpu_custom_call.1} parent=43 // pred_fallthru
          _
        // Predicated region
        $region53: #{tpu_custom_call.1} parent=43 // pred_check
          %p283 = pneg %p109
        $region54: #{tpu_custom_call.1} parent=43 // pred_check_branch
          %285 = sbr.rel (%p283) target = $region56
        $region55: #{tpu_custom_call.1} parent=43 // pred_region
          %286 = dma.done [#allocation6], 1024
        $region56: #{tpu_custom_call.1} parent=43 // pred_fallthru
          _
        // Predicated region
        $region57: #{tpu_custom_call.1} parent=43 // pred_check
          %p287 = pneg %p130
        $region58: #{tpu_custom_call.1} parent=43 // pred_check_branch
          %289 = sbr.rel (%p287) target = $region60
        $region59: #{tpu_custom_call.1} parent=43 // pred_region
          %290 = dma.done [#allocation9], 512
        $region60: #{tpu_custom_call.1} parent=43 // pred_fallthru
          _
        %s291 = sand.u32 %s33, 1
        %s292 = scalar_lea.sflag [#allocation3], %s291
        %s293 = sand.u32 %s33, 1
        %s294 = smul.addr %s293, 128
        %s295 = scalar_lea.vmem [#allocation2], %s294
        %p296 = pneg %p46
        %p297 = pneg %p43
        %p298 = pneg %p67
        %p299 = pneg %p64
        %p300 = pneg %p88
        %p301 = pneg %p85
        %p302 = pneg %p109
        %p303 = pneg %p106
        %p304 = pneg %p130
        %p305 = pneg %p127
        %p306 = pneg %p151
        %p307 = pneg %p148
        %p308 = pneg %p177
        %p309 = pneg %p174
        %s310 = sand.u32 %s164, 1
        %s311 = scalar_lea.sflag [#allocation4], %s310
        %s312 = sand.u32 %s164, 1
        %s313 = smul.addr %s312, 128
        %s314 = scalar_lea.vmem [#allocation10], %s313
        %s315 = smul.u32 8, %s25
        %s316 = smul.u32 8, %s25
        %v317 = vld [vmem:[%s274] sm:$0xff]
        %v318 = vld [vmem:[%s274 + $0x8] sm:$0xff]
        %v319 = vld [vmem:[%s274 + $0x10] sm:$0xff]
        %v320 = vld [vmem:[%s274 + $0x18] sm:$0xff]
        %v321 = vld [vmem:[%s274 + $0x20] sm:$0xff]
        %v322 = vld [vmem:[%s274 + $0x28] sm:$0xff]
        %v323 = vld [vmem:[%s274 + $0x30] sm:$0xff]
        %v324 = vld [vmem:[%s274 + $0x38] sm:$0xff]
        %v325 = vld [vmem:[%s274 + $0x40] sm:$0xff]
        %v326 = vld [vmem:[%s274 + $0x48] sm:$0xff]
        %v327 = vld [vmem:[%s274 + $0x50] sm:$0xff]
        %v328 = vld [vmem:[%s274 + $0x58] sm:$0xff]
        %v329 = vld [vmem:[%s274 + $0x60] sm:$0xff]
        %v330 = vld [vmem:[%s274 + $0x68] sm:$0xff]
        %v331 = vld [vmem:[%s274 + $0x70] sm:$0xff]
        %v332 = vld [vmem:[%s274 + $0x78] sm:$0xff]
        %v333 = vld [vmem:[#allocation5] sm:$0xff]
        %v334 = vld [vmem:[#allocation5 + $0x8] sm:$0xff]
        %v335 = vld [vmem:[#allocation5 + $0x10] sm:$0xff]
        %v336 = vld [vmem:[#allocation5 + $0x18] sm:$0xff]
        %v337 = vld [vmem:[%s2] sm:$0x1]
        %v339 = vlaneseq
        %v340 = vshrl.u32 %v339, 7
        %v341 = vsub.s32 0, %v340
        %v342 = vrot.slane %v337, %v341
        %vm344 = vcmask 261120
        %v346 = vsel %vm344, %v317, 0
        %v349 = vsel %vm344, %v318, 0
        %v352 = vsel %vm344, %v319, 0
        %v355 = vsel %vm344, %v320, 0
        %v358 = vsel %vm344, %v321, 0
        %v361 = vsel %vm344, %v322, 0
        %v364 = vsel %vm344, %v323, 0
        %v367 = vsel %vm344, %v324, 0
        %v370 = vsel %vm344, %v325, 0
        %v373 = vsel %vm344, %v326, 0
        %v376 = vsel %vm344, %v327, 0
        %v379 = vsel %vm344, %v328, 0
        %v382 = vsel %vm344, %v329, 0
        %v385 = vsel %vm344, %v330, 0
        %v388 = vsel %vm344, %v331, 0
        %v391 = vsel %vm344, %v332, 0
        %393 = vmatprep.subr.mxu0 0.0
        %394 = vmatpush1.msra.mxu0 0.0
        %395 = vmatprep.subr.mxu0 0.0
        %396 = vmatpush1.msra.mxu0 0.0
        %397 = vmatprep.subr.mxu0 0.0
        %398 = vmatpush1.msra.mxu0 0.0
        %399 = vmatprep.subr.mxu0 0.0
        %400 = vmatpush1.msra.mxu0 0.0
        %401 = vmatprep.subr.mxu0 0.0
        %402 = vmatpush1.msra.mxu0 0.0
        %403 = vmatprep.subr.mxu0 0.0
        %404 = vmatpush1.msra.mxu0 0.0
        %405 = vmatprep.subr.mxu0 0.0
        %406 = vmatpush1.msra.mxu0 0.0
        %407 = vmatprep.subr.mxu0 0.0
        %408 = vmatpush1.msra.mxu0 0.0
        %409 = vmatprep.subr.mxu0 0.0
        %410 = vmatpush1.msra.mxu0 0.0
        %411 = vmatprep.subr.mxu0 0.0
        %412 = vmatpush1.msra.mxu0 0.0
        %413 = vmatprep.subr.mxu0 0.0
        %414 = vmatpush1.msra.mxu0 0.0
        %415 = vmatprep.subr.mxu0 0.0
        %416 = vmatpush1.msra.mxu0 0.0
        %417 = vmatprep.subr.mxu0 0.0
        %418 = vmatpush1.msra.mxu0 %v336
        %419 = vmatprep.subr.mxu0 0.0
        %420 = vmatpush1.msra.mxu0 %v335
        %421 = vmatprep.subr.mxu0 0.0
        %422 = vmatpush1.msra.mxu0 %v334
        %423 = vmatprep.subr.mxu0 0.0
        %424 = vmatpush1.msra.mxu0 %v333
        %425 = vmatprep.subr.mxu0 0.0
        %426 = vmatpush2.msra.mxu0 0.0
        %427 = vmatprep.subr.mxu0 0.0
        %428 = vmatpush2.msra.mxu0 0.0
        %429 = vmatprep.subr.mxu0 0.0
        %430 = vmatpush2.msra.mxu0 0.0
        %431 = vmatprep.subr.mxu0 0.0
        %432 = vmatpush2.msra.mxu0 0.0
        %433 = vmatprep.subr.mxu0 0.0
        %434 = vmatpush2.msra.mxu0 0.0
        %435 = vmatprep.subr.mxu0 0.0
        %436 = vmatpush2.msra.mxu0 0.0
        %437 = vmatprep.subr.mxu0 0.0
        %438 = vmatpush2.msra.mxu0 0.0
        %439 = vmatprep.subr.mxu0 0.0
        %440 = vmatpush2.msra.mxu0 0.0
        %441 = vmatprep.subr.mxu0 0.0
        %442 = vmatpush2.msra.mxu0 0.0
        %443 = vmatprep.subr.mxu0 0.0
        %444 = vmatpush2.msra.mxu0 0.0
        %445 = vmatprep.subr.mxu0 0.0
        %446 = vmatpush2.msra.mxu0 0.0
        %447 = vmatprep.subr.mxu0 0.0
        %448 = vmatpush2.msra.mxu0 0.0
        %449 = vmatprep.subr.mxu0 0.0
        %450 = vmatpush2.msra.mxu0 0.0
        %451 = vmatprep.subr.mxu0 0.0
        %452 = vmatpush2.msra.mxu0 0.0
        %453 = vmatprep.subr.mxu0 0.0
        %454 = vmatpush2.msra.mxu0 0.0
        %455 = vmatprep.subr.mxu0 0.0
        %456 = vmatpush2.msra.mxu0 0.0
        %457 = vmatprep.mubr.f32.mxu0 0.0
        %458 = vmatmul.mubr.f32.gmra.mxu0 %v346
        %v459 = vpop.f32.mrf.mxu0
        %v460 = vadd.f32 %v342, %v459
        %v461 = vpop.f32.mrf.mxu0
        %462 = vmatprep.mubr.f32.mxu0 0.0
        %463 = vmatmul.mubr.f32.gmra.mxu0 %v349
        %v464 = vpop.f32.mrf.mxu0
        %v465 = vadd.f32 %v342, %v464
        %v466 = vpop.f32.mrf.mxu0
        %467 = vmatprep.mubr.f32.mxu0 0.0
        %468 = vmatmul.mubr.f32.gmra.mxu0 %v352
        %v469 = vpop.f32.mrf.mxu0
        %v470 = vadd.f32 %v342, %v469
        %v471 = vpop.f32.mrf.mxu0
        %472 = vmatprep.mubr.f32.mxu0 0.0
        %473 = vmatmul.mubr.f32.gmra.mxu0 %v355
        %v474 = vpop.f32.mrf.mxu0
        %v475 = vadd.f32 %v342, %v474
        %v476 = vpop.f32.mrf.mxu0
        %477 = vmatprep.mubr.f32.mxu0 0.0
        %478 = vmatmul.mubr.f32.gmra.mxu0 %v358
        %v479 = vpop.f32.mrf.mxu0
        %v480 = vadd.f32 %v342, %v479
        %v481 = vpop.f32.mrf.mxu0
        %482 = vmatprep.mubr.f32.mxu0 0.0
        %483 = vmatmul.mubr.f32.gmra.mxu0 %v361
        %v484 = vpop.f32.mrf.mxu0
        %v485 = vadd.f32 %v342, %v484
        %v486 = vpop.f32.mrf.mxu0
        %487 = vmatprep.mubr.f32.mxu0 0.0
        %488 = vmatmul.mubr.f32.gmra.mxu0 %v364
        %v489 = vpop.f32.mrf.mxu0
        %v490 = vadd.f32 %v342, %v489
        %v491 = vpop.f32.mrf.mxu0
        %492 = vmatprep.mubr.f32.mxu0 0.0
        %493 = vmatmul.mubr.f32.gmra.mxu0 %v367
        %v494 = vpop.f32.mrf.mxu0
        %v495 = vadd.f32 %v342, %v494
        %v496 = vpop.f32.mrf.mxu0
        %497 = vmatprep.mubr.f32.mxu0 0.0
        %498 = vmatmul.mubr.f32.gmra.mxu0 %v370
        %v499 = vpop.f32.mrf.mxu0
        %v500 = vadd.f32 %v342, %v499
        %v501 = vpop.f32.mrf.mxu0
        %502 = vmatprep.mubr.f32.mxu0 0.0
        %503 = vmatmul.mubr.f32.gmra.mxu0 %v373
        %v504 = vpop.f32.mrf.mxu0
        %v505 = vadd.f32 %v342, %v504
        %v506 = vpop.f32.mrf.mxu0
        %507 = vmatprep.mubr.f32.mxu0 0.0
        %508 = vmatmul.mubr.f32.gmra.mxu0 %v376
        %v509 = vpop.f32.mrf.mxu0
        %v510 = vadd.f32 %v342, %v509
        %v511 = vpop.f32.mrf.mxu0
        %512 = vmatprep.mubr.f32.mxu0 0.0
        %513 = vmatmul.mubr.f32.gmra.mxu0 %v379
        %v514 = vpop.f32.mrf.mxu0
        %v515 = vadd.f32 %v342, %v514
        %v516 = vpop.f32.mrf.mxu0
        %517 = vmatprep.mubr.f32.mxu0 0.0
        %518 = vmatmul.mubr.f32.gmra.mxu0 %v382
        %v519 = vpop.f32.mrf.mxu0
        %v520 = vadd.f32 %v342, %v519
        %v521 = vpop.f32.mrf.mxu0
        %522 = vmatprep.mubr.f32.mxu0 0.0
        %523 = vmatmul.mubr.f32.gmra.mxu0 %v385
        %v524 = vpop.f32.mrf.mxu0
        %v525 = vadd.f32 %v342, %v524
        %v526 = vpop.f32.mrf.mxu0
        %527 = vmatprep.mubr.f32.mxu0 0.0
        %528 = vmatmul.mubr.f32.gmra.mxu0 %v388
        %v529 = vpop.f32.mrf.mxu0
        %v530 = vadd.f32 %v342, %v529
        %v531 = vpop.f32.mrf.mxu0
        %532 = vmatprep.mubr.f32.mxu0 0.0
        %533 = vmatmul.mubr.f32.gmra.mxu0 %v391
        %v534 = vpop.f32.mrf.mxu0
        %v535 = vadd.f32 %v342, %v534
        %v536 = vpop.f32.mrf.mxu0
        %537 = vdwg.mxu0
        %v538 = vld [vmem:[#allocation7] sm:$0xff]
        %v539 = vld [vmem:[#allocation7 + $0x8] sm:$0xff]
        %v540 = vld [vmem:[#allocation7 + $0x10] sm:$0xff]
        %v541 = vld [vmem:[#allocation7 + $0x18] sm:$0xff]
        %v542 = vld [vmem:[#allocation7 + $0x20] sm:$0xff]
        %v543 = vld [vmem:[#allocation7 + $0x28] sm:$0xff]
        %v544 = vld [vmem:[#allocation7 + $0x30] sm:$0xff]
        %v545 = vld [vmem:[#allocation7 + $0x38] sm:$0xff]
        %548 = vrot.lane.b32.xlu0 %v460, 96
        %v549 = vpop.permute.xlu0 %548
        %550 = vrot.lane.b32.xlu0 %v465, 96
        %v551 = vpop.permute.xlu0 %550
        %vm552 = vcmask 64512
        %v553 = vsel %vm552, %v460, 0
        %v555 = vsel %vm552, %v465, 0
        %v557 = vsel %vm552, %v549, 0
        %v559 = vsel %vm552, %v551, 0
        %561 = vmatprep.subr.mxu0 0.0
        %562 = vmatpush1.xpose.msra.mxu0 0.0
        %563 = vmatprep.subr.mxu0 0.0
        %564 = vmatpush1.xpose.msra.mxu0 0.0
        %565 = vmatprep.subr.mxu0 0.0
        %566 = vmatpush1.xpose.msra.mxu0 0.0
        %567 = vmatprep.subr.mxu0 0.0
        %568 = vmatpush1.xpose.msra.mxu0 0.0
        %569 = vmatprep.subr.mxu0 0.0
        %570 = vmatpush1.xpose.msra.mxu0 0.0
        %571 = vmatprep.subr.mxu0 0.0
        %572 = vmatpush1.xpose.msra.mxu0 0.0
        %573 = vmatprep.subr.mxu0 0.0
        %574 = vmatpush1.xpose.msra.mxu0 0.0
        %575 = vmatprep.subr.mxu0 0.0
        %576 = vmatpush1.xpose.msra.mxu0 0.0
        %577 = vmatprep.subr.mxu0 0.0
        %578 = vmatpush1.xpose.msra.mxu0 0.0
        %579 = vmatprep.subr.mxu0 0.0
        %580 = vmatpush1.xpose.msra.mxu0 0.0
        %581 = vmatprep.subr.mxu0 0.0
        %582 = vmatpush1.xpose.msra.mxu0 0.0
        %583 = vmatprep.subr.mxu0 0.0
        %584 = vmatpush1.xpose.msra.mxu0 0.0
        %585 = vmatprep.subr.mxu0 0.0
        %586 = vmatpush1.xpose.msra.mxu0 0.0
        %587 = vmatprep.subr.mxu0 0.0
        %588 = vmatpush1.xpose.msra.mxu0 0.0
        %589 = vmatprep.subr.mxu0 0.0
        %590 = vmatpush1.xpose.msra.mxu0 %v559
        %591 = vmatprep.subr.mxu0 0.0
        %592 = vmatpush1.xpose.msra.mxu0 %v557
        %593 = vmatprep.subr.mxu0 0.0
        %594 = vmatpush2.xpose.msra.mxu0 0.0
        %595 = vmatprep.subr.mxu0 0.0
        %596 = vmatpush2.xpose.msra.mxu0 0.0
        %597 = vmatprep.subr.mxu0 0.0
        %598 = vmatpush2.xpose.msra.mxu0 0.0
        %599 = vmatprep.subr.mxu0 0.0
        %600 = vmatpush2.xpose.msra.mxu0 0.0
        %601 = vmatprep.subr.mxu0 0.0
        %602 = vmatpush2.xpose.msra.mxu0 0.0
        %603 = vmatprep.subr.mxu0 0.0
        %604 = vmatpush2.xpose.msra.mxu0 0.0
        %605 = vmatprep.subr.mxu0 0.0
        %606 = vmatpush2.xpose.msra.mxu0 0.0
        %607 = vmatprep.subr.mxu0 0.0
        %608 = vmatpush2.xpose.msra.mxu0 0.0
        %609 = vmatprep.subr.mxu0 0.0
        %610 = vmatpush2.xpose.msra.mxu0 0.0
        %611 = vmatprep.subr.mxu0 0.0
        %612 = vmatpush2.xpose.msra.mxu0 0.0
        %613 = vmatprep.subr.mxu0 0.0
        %614 = vmatpush2.xpose.msra.mxu0 0.0
        %615 = vmatprep.subr.mxu0 0.0
        %616 = vmatpush2.xpose.msra.mxu0 0.0
        %617 = vmatprep.subr.mxu0 0.0
        %618 = vmatpush2.xpose.msra.mxu0 0.0
        %619 = vmatprep.subr.mxu0 0.0
        %620 = vmatpush2.xpose.msra.mxu0 0.0
        %621 = vmatprep.subr.mxu0 0.0
        %622 = vmatpush2.xpose.msra.mxu0 0.0
        %623 = vmatprep.subr.mxu0 0.0
        %624 = vmatpush2.xpose.msra.mxu0 0.0
        %625 = vmatprep.mubr.f32.mxu0 0.0
        %626 = vmatmul.mubr.f32.gmra.mxu0 %v553
        %v627 = vpop.f32.mrf.mxu0
        %v628 = vadd.f32 %v538, %v627
        %v629 = vpop.f32.mrf.mxu0
        %630 = vmatprep.mubr.f32.mxu0 0.0
        %631 = vmatmul.mubr.f32.gmra.mxu0 %v555
        %v632 = vpop.f32.mrf.mxu0
        %v633 = vadd.f32 %v539, %v632
        %v634 = vpop.f32.mrf.mxu0
        %635 = vdwg.mxu0
        %638 = vrot.lane.b32.xlu0 %v470, 96
        %v639 = vpop.permute.xlu0 %638
        %640 = vrot.lane.b32.xlu0 %v475, 96
        %v641 = vpop.permute.xlu0 %640
        %v642 = vsel %vm552, %v470, 0
        %v644 = vsel %vm552, %v475, 0
        %v646 = vsel %vm552, %v639, 0
        %v648 = vsel %vm552, %v641, 0
        %650 = vmatprep.subr.mxu0 0.0
        %651 = vmatpush1.xpose.msra.mxu0 0.0
        %652 = vmatprep.subr.mxu0 0.0
        %653 = vmatpush1.xpose.msra.mxu0 0.0
        %654 = vmatprep.subr.mxu0 0.0
        %655 = vmatpush1.xpose.msra.mxu0 0.0
        %656 = vmatprep.subr.mxu0 0.0
        %657 = vmatpush1.xpose.msra.mxu0 0.0
        %658 = vmatprep.subr.mxu0 0.0
        %659 = vmatpush1.xpose.msra.mxu0 0.0
        %660 = vmatprep.subr.mxu0 0.0
        %661 = vmatpush1.xpose.msra.mxu0 0.0
        %662 = vmatprep.subr.mxu0 0.0
        %663 = vmatpush1.xpose.msra.mxu0 0.0
        %664 = vmatprep.subr.mxu0 0.0
        %665 = vmatpush1.xpose.msra.mxu0 0.0
        %666 = vmatprep.subr.mxu0 0.0
        %667 = vmatpush1.xpose.msra.mxu0 0.0
        %668 = vmatprep.subr.mxu0 0.0
        %669 = vmatpush1.xpose.msra.mxu0 0.0
        %670 = vmatprep.subr.mxu0 0.0
        %671 = vmatpush1.xpose.msra.mxu0 0.0
        %672 = vmatprep.subr.mxu0 0.0
        %673 = vmatpush1.xpose.msra.mxu0 0.0
        %674 = vmatprep.subr.mxu0 0.0
        %675 = vmatpush1.xpose.msra.mxu0 0.0
        %676 = vmatprep.subr.mxu0 0.0
        %677 = vmatpush1.xpose.msra.mxu0 0.0
        %678 = vmatprep.subr.mxu0 0.0
        %679 = vmatpush1.xpose.msra.mxu0 %v648
        %680 = vmatprep.subr.mxu0 0.0
        %681 = vmatpush1.xpose.msra.mxu0 %v646
        %682 = vmatprep.subr.mxu0 0.0
        %683 = vmatpush2.xpose.msra.mxu0 0.0
        %684 = vmatprep.subr.mxu0 0.0
        %685 = vmatpush2.xpose.msra.mxu0 0.0
        %686 = vmatprep.subr.mxu0 0.0
        %687 = vmatpush2.xpose.msra.mxu0 0.0
        %688 = vmatprep.subr.mxu0 0.0
        %689 = vmatpush2.xpose.msra.mxu0 0.0
        %690 = vmatprep.subr.mxu0 0.0
        %691 = vmatpush2.xpose.msra.mxu0 0.0
        %692 = vmatprep.subr.mxu0 0.0
        %693 = vmatpush2.xpose.msra.mxu0 0.0
        %694 = vmatprep.subr.mxu0 0.0
        %695 = vmatpush2.xpose.msra.mxu0 0.0
        %696 = vmatprep.subr.mxu0 0.0
        %697 = vmatpush2.xpose.msra.mxu0 0.0
        %698 = vmatprep.subr.mxu0 0.0
        %699 = vmatpush2.xpose.msra.mxu0 0.0
        %700 = vmatprep.subr.mxu0 0.0
        %701 = vmatpush2.xpose.msra.mxu0 0.0
        %702 = vmatprep.subr.mxu0 0.0
        %703 = vmatpush2.xpose.msra.mxu0 0.0
        %704 = vmatprep.subr.mxu0 0.0
        %705 = vmatpush2.xpose.msra.mxu0 0.0
        %706 = vmatprep.subr.mxu0 0.0
        %707 = vmatpush2.xpose.msra.mxu0 0.0
        %708 = vmatprep.subr.mxu0 0.0
        %709 = vmatpush2.xpose.msra.mxu0 0.0
        %710 = vmatprep.subr.mxu0 0.0
        %711 = vmatpush2.xpose.msra.mxu0 0.0
        %712 = vmatprep.subr.mxu0 0.0
        %713 = vmatpush2.xpose.msra.mxu0 0.0
        %714 = vmatprep.mubr.f32.mxu0 0.0
        %715 = vmatmul.mubr.f32.gmra.mxu0 %v642
        %v716 = vpop.f32.mrf.mxu0
        %v717 = vadd.f32 %v538, %v716
        %v718 = vpop.f32.mrf.mxu0
        %719 = vmatprep.mubr.f32.mxu0 0.0
        %720 = vmatmul.mubr.f32.gmra.mxu0 %v644
        %v721 = vpop.f32.mrf.mxu0
        %v722 = vadd.f32 %v539, %v721
        %v723 = vpop.f32.mrf.mxu0
        %724 = vdwg.mxu0
        %727 = vrot.lane.b32.xlu0 %v480, 96
        %v728 = vpop.permute.xlu0 %727
        %729 = vrot.lane.b32.xlu0 %v485, 96
        %v730 = vpop.permute.xlu0 %729
        %v731 = vsel %vm552, %v480, 0
        %v733 = vsel %vm552, %v485, 0
        %v735 = vsel %vm552, %v728, 0
        %v737 = vsel %vm552, %v730, 0
        %739 = vmatprep.subr.mxu0 0.0
        %740 = vmatpush1.xpose.msra.mxu0 0.0
        %741 = vmatprep.subr.mxu0 0.0
        %742 = vmatpush1.xpose.msra.mxu0 0.0
        %743 = vmatprep.subr.mxu0 0.0
        %744 = vmatpush1.xpose.msra.mxu0 0.0
        %745 = vmatprep.subr.mxu0 0.0
        %746 = vmatpush1.xpose.msra.mxu0 0.0
        %747 = vmatprep.subr.mxu0 0.0
        %748 = vmatpush1.xpose.msra.mxu0 0.0
        %749 = vmatprep.subr.mxu0 0.0
        %750 = vmatpush1.xpose.msra.mxu0 0.0
        %751 = vmatprep.subr.mxu0 0.0
        %752 = vmatpush1.xpose.msra.mxu0 0.0
        %753 = vmatprep.subr.mxu0 0.0
        %754 = vmatpush1.xpose.msra.mxu0 0.0
        %755 = vmatprep.subr.mxu0 0.0
        %756 = vmatpush1.xpose.msra.mxu0 0.0
        %757 = vmatprep.subr.mxu0 0.0
        %758 = vmatpush1.xpose.msra.mxu0 0.0
        %759 = vmatprep.subr.mxu0 0.0
        %760 = vmatpush1.xpose.msra.mxu0 0.0
        %761 = vmatprep.subr.mxu0 0.0
        %762 = vmatpush1.xpose.msra.mxu0 0.0
        %763 = vmatprep.subr.mxu0 0.0
        %764 = vmatpush1.xpose.msra.mxu0 0.0
        %765 = vmatprep.subr.mxu0 0.0
        %766 = vmatpush1.xpose.msra.mxu0 0.0
        %767 = vmatprep.subr.mxu0 0.0
        %768 = vmatpush1.xpose.msra.mxu0 %v737
        %769 = vmatprep.subr.mxu0 0.0
        %770 = vmatpush1.xpose.msra.mxu0 %v735
        %771 = vmatprep.subr.mxu0 0.0
        %772 = vmatpush2.xpose.msra.mxu0 0.0
        %773 = vmatprep.subr.mxu0 0.0
        %774 = vmatpush2.xpose.msra.mxu0 0.0
        %775 = vmatprep.subr.mxu0 0.0
        %776 = vmatpush2.xpose.msra.mxu0 0.0
        %777 = vmatprep.subr.mxu0 0.0
        %778 = vmatpush2.xpose.msra.mxu0 0.0
        %779 = vmatprep.subr.mxu0 0.0
        %780 = vmatpush2.xpose.msra.mxu0 0.0
        %781 = vmatprep.subr.mxu0 0.0
        %782 = vmatpush2.xpose.msra.mxu0 0.0
        %783 = vmatprep.subr.mxu0 0.0
        %784 = vmatpush2.xpose.msra.mxu0 0.0
        %785 = vmatprep.subr.mxu0 0.0
        %786 = vmatpush2.xpose.msra.mxu0 0.0
        %787 = vmatprep.subr.mxu0 0.0
        %788 = vmatpush2.xpose.msra.mxu0 0.0
        %789 = vmatprep.subr.mxu0 0.0
        %790 = vmatpush2.xpose.msra.mxu0 0.0
        %791 = vmatprep.subr.mxu0 0.0
        %792 = vmatpush2.xpose.msra.mxu0 0.0
        %793 = vmatprep.subr.mxu0 0.0
        %794 = vmatpush2.xpose.msra.mxu0 0.0
        %795 = vmatprep.subr.mxu0 0.0
        %796 = vmatpush2.xpose.msra.mxu0 0.0
        %797 = vmatprep.subr.mxu0 0.0
        %798 = vmatpush2.xpose.msra.mxu0 0.0
        %799 = vmatprep.subr.mxu0 0.0
        %800 = vmatpush2.xpose.msra.mxu0 0.0
        %801 = vmatprep.subr.mxu0 0.0
        %802 = vmatpush2.xpose.msra.mxu0 0.0
        %803 = vmatprep.mubr.f32.mxu0 0.0
        %804 = vmatmul.mubr.f32.gmra.mxu0 %v731
        %v805 = vpop.f32.mrf.mxu0
        %v806 = vadd.f32 %v538, %v805
        %v807 = vpop.f32.mrf.mxu0
        %808 = vmatprep.mubr.f32.mxu0 0.0
        %809 = vmatmul.mubr.f32.gmra.mxu0 %v733
        %v810 = vpop.f32.mrf.mxu0
        %v811 = vadd.f32 %v539, %v810
        %v812 = vpop.f32.mrf.mxu0
        %813 = vdwg.mxu0
        %816 = vrot.lane.b32.xlu0 %v490, 96
        %v817 = vpop.permute.xlu0 %816
        %818 = vrot.lane.b32.xlu0 %v495, 96
        %v819 = vpop.permute.xlu0 %818
        %v820 = vsel %vm552, %v490, 0
        %v822 = vsel %vm552, %v495, 0
        %v824 = vsel %vm552, %v817, 0
        %v826 = vsel %vm552, %v819, 0
        %828 = vmatprep.subr.mxu0 0.0
        %829 = vmatpush1.xpose.msra.mxu0 0.0
        %830 = vmatprep.subr.mxu0 0.0
        %831 = vmatpush1.xpose.msra.mxu0 0.0
        %832 = vmatprep.subr.mxu0 0.0
        %833 = vmatpush1.xpose.msra.mxu0 0.0
        %834 = vmatprep.subr.mxu0 0.0
        %835 = vmatpush1.xpose.msra.mxu0 0.0
        %836 = vmatprep.subr.mxu0 0.0
        %837 = vmatpush1.xpose.msra.mxu0 0.0
        %838 = vmatprep.subr.mxu0 0.0
        %839 = vmatpush1.xpose.msra.mxu0 0.0
        %840 = vmatprep.subr.mxu0 0.0
        %841 = vmatpush1.xpose.msra.mxu0 0.0
        %842 = vmatprep.subr.mxu0 0.0
        %843 = vmatpush1.xpose.msra.mxu0 0.0
        %844 = vmatprep.subr.mxu0 0.0
        %845 = vmatpush1.xpose.msra.mxu0 0.0
        %846 = vmatprep.subr.mxu0 0.0
        %847 = vmatpush1.xpose.msra.mxu0 0.0
        %848 = vmatprep.subr.mxu0 0.0
        %849 = vmatpush1.xpose.msra.mxu0 0.0
        %850 = vmatprep.subr.mxu0 0.0
        %851 = vmatpush1.xpose.msra.mxu0 0.0
        %852 = vmatprep.subr.mxu0 0.0
        %853 = vmatpush1.xpose.msra.mxu0 0.0
        %854 = vmatprep.subr.mxu0 0.0
        %855 = vmatpush1.xpose.msra.mxu0 0.0
        %856 = vmatprep.subr.mxu0 0.0
        %857 = vmatpush1.xpose.msra.mxu0 %v826
        %858 = vmatprep.subr.mxu0 0.0
        %859 = vmatpush1.xpose.msra.mxu0 %v824
        %860 = vmatprep.subr.mxu0 0.0
        %861 = vmatpush2.xpose.msra.mxu0 0.0
        %862 = vmatprep.subr.mxu0 0.0
        %863 = vmatpush2.xpose.msra.mxu0 0.0
        %864 = vmatprep.subr.mxu0 0.0
        %865 = vmatpush2.xpose.msra.mxu0 0.0
        %866 = vmatprep.subr.mxu0 0.0
        %867 = vmatpush2.xpose.msra.mxu0 0.0
        %868 = vmatprep.subr.mxu0 0.0
        %869 = vmatpush2.xpose.msra.mxu0 0.0
        %870 = vmatprep.subr.mxu0 0.0
        %871 = vmatpush2.xpose.msra.mxu0 0.0
        %872 = vmatprep.subr.mxu0 0.0
        %873 = vmatpush2.xpose.msra.mxu0 0.0
        %874 = vmatprep.subr.mxu0 0.0
        %875 = vmatpush2.xpose.msra.mxu0 0.0
        %876 = vmatprep.subr.mxu0 0.0
        %877 = vmatpush2.xpose.msra.mxu0 0.0
        %878 = vmatprep.subr.mxu0 0.0
        %879 = vmatpush2.xpose.msra.mxu0 0.0
        %880 = vmatprep.subr.mxu0 0.0
        %881 = vmatpush2.xpose.msra.mxu0 0.0
        %882 = vmatprep.subr.mxu0 0.0
        %883 = vmatpush2.xpose.msra.mxu0 0.0
        %884 = vmatprep.subr.mxu0 0.0
        %885 = vmatpush2.xpose.msra.mxu0 0.0
        %886 = vmatprep.subr.mxu0 0.0
        %887 = vmatpush2.xpose.msra.mxu0 0.0
        %888 = vmatprep.subr.mxu0 0.0
        %889 = vmatpush2.xpose.msra.mxu0 0.0
        %890 = vmatprep.subr.mxu0 0.0
        %891 = vmatpush2.xpose.msra.mxu0 0.0
        %892 = vmatprep.mubr.f32.mxu0 0.0
        %893 = vmatmul.mubr.f32.gmra.mxu0 %v820
        %v894 = vpop.f32.mrf.mxu0
        %v895 = vadd.f32 %v538, %v894
        %v896 = vpop.f32.mrf.mxu0
        %897 = vmatprep.mubr.f32.mxu0 0.0
        %898 = vmatmul.mubr.f32.gmra.mxu0 %v822
        %v899 = vpop.f32.mrf.mxu0
        %v900 = vadd.f32 %v539, %v899
        %v901 = vpop.f32.mrf.mxu0
        %902 = vdwg.mxu0
        %905 = vrot.lane.b32.xlu0 %v500, 96
        %v906 = vpop.permute.xlu0 %905
        %907 = vrot.lane.b32.xlu0 %v505, 96
        %v908 = vpop.permute.xlu0 %907
        %v909 = vsel %vm552, %v500, 0
        %v911 = vsel %vm552, %v505, 0
        %v913 = vsel %vm552, %v906, 0
        %v915 = vsel %vm552, %v908, 0
        %917 = vmatprep.subr.mxu0 0.0
        %918 = vmatpush1.xpose.msra.mxu0 0.0
        %919 = vmatprep.subr.mxu0 0.0
        %920 = vmatpush1.xpose.msra.mxu0 0.0
        %921 = vmatprep.subr.mxu0 0.0
        %922 = vmatpush1.xpose.msra.mxu0 0.0
        %923 = vmatprep.subr.mxu0 0.0
        %924 = vmatpush1.xpose.msra.mxu0 0.0
        %925 = vmatprep.subr.mxu0 0.0
        %926 = vmatpush1.xpose.msra.mxu0 0.0
        %927 = vmatprep.subr.mxu0 0.0
        %928 = vmatpush1.xpose.msra.mxu0 0.0
        %929 = vmatprep.subr.mxu0 0.0
        %930 = vmatpush1.xpose.msra.mxu0 0.0
        %931 = vmatprep.subr.mxu0 0.0
        %932 = vmatpush1.xpose.msra.mxu0 0.0
        %933 = vmatprep.subr.mxu0 0.0
        %934 = vmatpush1.xpose.msra.mxu0 0.0
        %935 = vmatprep.subr.mxu0 0.0
        %936 = vmatpush1.xpose.msra.mxu0 0.0
        %937 = vmatprep.subr.mxu0 0.0
        %938 = vmatpush1.xpose.msra.mxu0 0.0
        %939 = vmatprep.subr.mxu0 0.0
        %940 = vmatpush1.xpose.msra.mxu0 0.0
        %941 = vmatprep.subr.mxu0 0.0
        %942 = vmatpush1.xpose.msra.mxu0 0.0
        %943 = vmatprep.subr.mxu0 0.0
        %944 = vmatpush1.xpose.msra.mxu0 0.0
        %945 = vmatprep.subr.mxu0 0.0
        %946 = vmatpush1.xpose.msra.mxu0 %v915
        %947 = vmatprep.subr.mxu0 0.0
        %948 = vmatpush1.xpose.msra.mxu0 %v913
        %949 = vmatprep.subr.mxu0 0.0
        %950 = vmatpush2.xpose.msra.mxu0 0.0
        %951 = vmatprep.subr.mxu0 0.0
        %952 = vmatpush2.xpose.msra.mxu0 0.0
        %953 = vmatprep.subr.mxu0 0.0
        %954 = vmatpush2.xpose.msra.mxu0 0.0
        %955 = vmatprep.subr.mxu0 0.0
        %956 = vmatpush2.xpose.msra.mxu0 0.0
        %957 = vmatprep.subr.mxu0 0.0
        %958 = vmatpush2.xpose.msra.mxu0 0.0
        %959 = vmatprep.subr.mxu0 0.0
        %960 = vmatpush2.xpose.msra.mxu0 0.0
        %961 = vmatprep.subr.mxu0 0.0
        %962 = vmatpush2.xpose.msra.mxu0 0.0
        %963 = vmatprep.subr.mxu0 0.0
        %964 = vmatpush2.xpose.msra.mxu0 0.0
        %965 = vmatprep.subr.mxu0 0.0
        %966 = vmatpush2.xpose.msra.mxu0 0.0
        %967 = vmatprep.subr.mxu0 0.0
        %968 = vmatpush2.xpose.msra.mxu0 0.0
        %969 = vmatprep.subr.mxu0 0.0
        %970 = vmatpush2.xpose.msra.mxu0 0.0
        %971 = vmatprep.subr.mxu0 0.0
        %972 = vmatpush2.xpose.msra.mxu0 0.0
        %973 = vmatprep.subr.mxu0 0.0
        %974 = vmatpush2.xpose.msra.mxu0 0.0
        %975 = vmatprep.subr.mxu0 0.0
        %976 = vmatpush2.xpose.msra.mxu0 0.0
        %977 = vmatprep.subr.mxu0 0.0
        %978 = vmatpush2.xpose.msra.mxu0 0.0
        %979 = vmatprep.subr.mxu0 0.0
        %980 = vmatpush2.xpose.msra.mxu0 0.0
        %981 = vmatprep.mubr.f32.mxu0 0.0
        %982 = vmatmul.mubr.f32.gmra.mxu0 %v909
        %v983 = vpop.f32.mrf.mxu0
        %v984 = vadd.f32 %v538, %v983
        %v985 = vpop.f32.mrf.mxu0
        %986 = vmatprep.mubr.f32.mxu0 0.0
        %987 = vmatmul.mubr.f32.gmra.mxu0 %v911
        %v988 = vpop.f32.mrf.mxu0
        %v989 = vadd.f32 %v539, %v988
        %v990 = vpop.f32.mrf.mxu0
        %991 = vdwg.mxu0
        %994 = vrot.lane.b32.xlu0 %v510, 96
        %v995 = vpop.permute.xlu0 %994
        %996 = vrot.lane.b32.xlu0 %v515, 96
        %v997 = vpop.permute.xlu0 %996
        %v998 = vsel %vm552, %v510, 0
        %v1000 = vsel %vm552, %v515, 0
        %v1002 = vsel %vm552, %v995, 0
        %v1004 = vsel %vm552, %v997, 0
        %1006 = vmatprep.subr.mxu0 0.0
        %1007 = vmatpush1.xpose.msra.mxu0 0.0
        %1008 = vmatprep.subr.mxu0 0.0
        %1009 = vmatpush1.xpose.msra.mxu0 0.0
        %1010 = vmatprep.subr.mxu0 0.0
        %1011 = vmatpush1.xpose.msra.mxu0 0.0
        %1012 = vmatprep.subr.mxu0 0.0
        %1013 = vmatpush1.xpose.msra.mxu0 0.0
        %1014 = vmatprep.subr.mxu0 0.0
        %1015 = vmatpush1.xpose.msra.mxu0 0.0
        %1016 = vmatprep.subr.mxu0 0.0
        %1017 = vmatpush1.xpose.msra.mxu0 0.0
        %1018 = vmatprep.subr.mxu0 0.0
        %1019 = vmatpush1.xpose.msra.mxu0 0.0
        %1020 = vmatprep.subr.mxu0 0.0
        %1021 = vmatpush1.xpose.msra.mxu0 0.0
        %1022 = vmatprep.subr.mxu0 0.0
        %1023 = vmatpush1.xpose.msra.mxu0 0.0
        %1024 = vmatprep.subr.mxu0 0.0
        %1025 = vmatpush1.xpose.msra.mxu0 0.0
        %1026 = vmatprep.subr.mxu0 0.0
        %1027 = vmatpush1.xpose.msra.mxu0 0.0
        %1028 = vmatprep.subr.mxu0 0.0
        %1029 = vmatpush1.xpose.msra.mxu0 0.0
        %1030 = vmatprep.subr.mxu0 0.0
        %1031 = vmatpush1.xpose.msra.mxu0 0.0
        %1032 = vmatprep.subr.mxu0 0.0
        %1033 = vmatpush1.xpose.msra.mxu0 0.0
        %1034 = vmatprep.subr.mxu0 0.0
        %1035 = vmatpush1.xpose.msra.mxu0 %v1004
        %1036 = vmatprep.subr.mxu0 0.0
        %1037 = vmatpush1.xpose.msra.mxu0 %v1002
        %1038 = vmatprep.subr.mxu0 0.0
        %1039 = vmatpush2.xpose.msra.mxu0 0.0
        %1040 = vmatprep.subr.mxu0 0.0
        %1041 = vmatpush2.xpose.msra.mxu0 0.0
        %1042 = vmatprep.subr.mxu0 0.0
        %1043 = vmatpush2.xpose.msra.mxu0 0.0
        %1044 = vmatprep.subr.mxu0 0.0
        %1045 = vmatpush2.xpose.msra.mxu0 0.0
        %1046 = vmatprep.subr.mxu0 0.0
        %1047 = vmatpush2.xpose.msra.mxu0 0.0
        %1048 = vmatprep.subr.mxu0 0.0
        %1049 = vmatpush2.xpose.msra.mxu0 0.0
        %1050 = vmatprep.subr.mxu0 0.0
        %1051 = vmatpush2.xpose.msra.mxu0 0.0
        %1052 = vmatprep.subr.mxu0 0.0
        %1053 = vmatpush2.xpose.msra.mxu0 0.0
        %1054 = vmatprep.subr.mxu0 0.0
        %1055 = vmatpush2.xpose.msra.mxu0 0.0
        %1056 = vmatprep.subr.mxu0 0.0
        %1057 = vmatpush2.xpose.msra.mxu0 0.0
        %1058 = vmatprep.subr.mxu0 0.0
        %1059 = vmatpush2.xpose.msra.mxu0 0.0
        %1060 = vmatprep.subr.mxu0 0.0
        %1061 = vmatpush2.xpose.msra.mxu0 0.0
        %1062 = vmatprep.subr.mxu0 0.0
        %1063 = vmatpush2.xpose.msra.mxu0 0.0
        %1064 = vmatprep.subr.mxu0 0.0
        %1065 = vmatpush2.xpose.msra.mxu0 0.0
        %1066 = vmatprep.subr.mxu0 0.0
        %1067 = vmatpush2.xpose.msra.mxu0 0.0
        %1068 = vmatprep.subr.mxu0 0.0
        %1069 = vmatpush2.xpose.msra.mxu0 0.0
        %1070 = vmatprep.mubr.f32.mxu0 0.0
        %1071 = vmatmul.mubr.f32.gmra.mxu0 %v998
        %v1072 = vpop.f32.mrf.mxu0
        %v1073 = vadd.f32 %v538, %v1072
        %v1074 = vpop.f32.mrf.mxu0
        %1075 = vmatprep.mubr.f32.mxu0 0.0
        %1076 = vmatmul.mubr.f32.gmra.mxu0 %v1000
        %v1077 = vpop.f32.mrf.mxu0
        %v1078 = vadd.f32 %v539, %v1077
        %v1079 = vpop.f32.mrf.mxu0
        %1080 = vdwg.mxu0
        %1083 = vrot.lane.b32.xlu0 %v520, 96
        %v1084 = vpop.permute.xlu0 %1083
        %1085 = vrot.lane.b32.xlu0 %v525, 96
        %v1086 = vpop.permute.xlu0 %1085
        %v1087 = vsel %vm552, %v520, 0
        %v1089 = vsel %vm552, %v525, 0
        %v1091 = vsel %vm552, %v1084, 0
        %v1093 = vsel %vm552, %v1086, 0
        %1095 = vmatprep.subr.mxu0 0.0
        %1096 = vmatpush1.xpose.msra.mxu0 0.0
        %1097 = vmatprep.subr.mxu0 0.0
        %1098 = vmatpush1.xpose.msra.mxu0 0.0
        %1099 = vmatprep.subr.mxu0 0.0
        %1100 = vmatpush1.xpose.msra.mxu0 0.0
        %1101 = vmatprep.subr.mxu0 0.0
        %1102 = vmatpush1.xpose.msra.mxu0 0.0
        %1103 = vmatprep.subr.mxu0 0.0
        %1104 = vmatpush1.xpose.msra.mxu0 0.0
        %1105 = vmatprep.subr.mxu0 0.0
        %1106 = vmatpush1.xpose.msra.mxu0 0.0
        %1107 = vmatprep.subr.mxu0 0.0
        %1108 = vmatpush1.xpose.msra.mxu0 0.0
        %1109 = vmatprep.subr.mxu0 0.0
        %1110 = vmatpush1.xpose.msra.mxu0 0.0
        %1111 = vmatprep.subr.mxu0 0.0
        %1112 = vmatpush1.xpose.msra.mxu0 0.0
        %1113 = vmatprep.subr.mxu0 0.0
        %1114 = vmatpush1.xpose.msra.mxu0 0.0
        %1115 = vmatprep.subr.mxu0 0.0
        %1116 = vmatpush1.xpose.msra.mxu0 0.0
        %1117 = vmatprep.subr.mxu0 0.0
        %1118 = vmatpush1.xpose.msra.mxu0 0.0
        %1119 = vmatprep.subr.mxu0 0.0
        %1120 = vmatpush1.xpose.msra.mxu0 0.0
        %1121 = vmatprep.subr.mxu0 0.0
        %1122 = vmatpush1.xpose.msra.mxu0 0.0
        %1123 = vmatprep.subr.mxu0 0.0
        %1124 = vmatpush1.xpose.msra.mxu0 %v1093
        %1125 = vmatprep.subr.mxu0 0.0
        %1126 = vmatpush1.xpose.msra.mxu0 %v1091
        %1127 = vmatprep.subr.mxu0 0.0
        %1128 = vmatpush2.xpose.msra.mxu0 0.0
        %1129 = vmatprep.subr.mxu0 0.0
        %1130 = vmatpush2.xpose.msra.mxu0 0.0
        %1131 = vmatprep.subr.mxu0 0.0
        %1132 = vmatpush2.xpose.msra.mxu0 0.0
        %1133 = vmatprep.subr.mxu0 0.0
        %1134 = vmatpush2.xpose.msra.mxu0 0.0
        %1135 = vmatprep.subr.mxu0 0.0
        %1136 = vmatpush2.xpose.msra.mxu0 0.0
        %1137 = vmatprep.subr.mxu0 0.0
        %1138 = vmatpush2.xpose.msra.mxu0 0.0
        %1139 = vmatprep.subr.mxu0 0.0
        %1140 = vmatpush2.xpose.msra.mxu0 0.0
        %1141 = vmatprep.subr.mxu0 0.0
        %1142 = vmatpush2.xpose.msra.mxu0 0.0
        %1143 = vmatprep.subr.mxu0 0.0
        %1144 = vmatpush2.xpose.msra.mxu0 0.0
        %1145 = vmatprep.subr.mxu0 0.0
        %1146 = vmatpush2.xpose.msra.mxu0 0.0
        %1147 = vmatprep.subr.mxu0 0.0
        %1148 = vmatpush2.xpose.msra.mxu0 0.0
        %1149 = vmatprep.subr.mxu0 0.0
        %1150 = vmatpush2.xpose.msra.mxu0 0.0
        %1151 = vmatprep.subr.mxu0 0.0
        %1152 = vmatpush2.xpose.msra.mxu0 0.0
        %1153 = vmatprep.subr.mxu0 0.0
        %1154 = vmatpush2.xpose.msra.mxu0 0.0
        %1155 = vmatprep.subr.mxu0 0.0
        %1156 = vmatpush2.xpose.msra.mxu0 0.0
        %1157 = vmatprep.subr.mxu0 0.0
        %1158 = vmatpush2.xpose.msra.mxu0 0.0
        %1159 = vmatprep.mubr.f32.mxu0 0.0
        %1160 = vmatmul.mubr.f32.gmra.mxu0 %v1087
        %v1161 = vpop.f32.mrf.mxu0
        %v1162 = vadd.f32 %v538, %v1161
        %v1163 = vpop.f32.mrf.mxu0
        %1164 = vmatprep.mubr.f32.mxu0 0.0
        %1165 = vmatmul.mubr.f32.gmra.mxu0 %v1089
        %v1166 = vpop.f32.mrf.mxu0
        %v1167 = vadd.f32 %v539, %v1166
        %v1168 = vpop.f32.mrf.mxu0
        %1169 = vdwg.mxu0
        %1172 = vrot.lane.b32.xlu0 %v530, 96
        %v1173 = vpop.permute.xlu0 %1172
        %1174 = vrot.lane.b32.xlu0 %v535, 96
        %v1175 = vpop.permute.xlu0 %1174
        %v1176 = vsel %vm552, %v530, 0
        %v1178 = vsel %vm552, %v535, 0
        %v1180 = vsel %vm552, %v1173, 0
        %v1182 = vsel %vm552, %v1175, 0
        %1184 = vmatprep.subr.mxu0 0.0
        %1185 = vmatpush1.xpose.msra.mxu0 0.0
        %1186 = vmatprep.subr.mxu0 0.0
        %1187 = vmatpush1.xpose.msra.mxu0 0.0
        %1188 = vmatprep.subr.mxu0 0.0
        %1189 = vmatpush1.xpose.msra.mxu0 0.0
        %1190 = vmatprep.subr.mxu0 0.0
        %1191 = vmatpush1.xpose.msra.mxu0 0.0
        %1192 = vmatprep.subr.mxu0 0.0
        %1193 = vmatpush1.xpose.msra.mxu0 0.0
        %1194 = vmatprep.subr.mxu0 0.0
        %1195 = vmatpush1.xpose.msra.mxu0 0.0
        %1196 = vmatprep.subr.mxu0 0.0
        %1197 = vmatpush1.xpose.msra.mxu0 0.0
        %1198 = vmatprep.subr.mxu0 0.0
        %1199 = vmatpush1.xpose.msra.mxu0 0.0
        %1200 = vmatprep.subr.mxu0 0.0
        %1201 = vmatpush1.xpose.msra.mxu0 0.0
        %1202 = vmatprep.subr.mxu0 0.0
        %1203 = vmatpush1.xpose.msra.mxu0 0.0
        %1204 = vmatprep.subr.mxu0 0.0
        %1205 = vmatpush1.xpose.msra.mxu0 0.0
        %1206 = vmatprep.subr.mxu0 0.0
        %1207 = vmatpush1.xpose.msra.mxu0 0.0
        %1208 = vmatprep.subr.mxu0 0.0
        %1209 = vmatpush1.xpose.msra.mxu0 0.0
        %1210 = vmatprep.subr.mxu0 0.0
        %1211 = vmatpush1.xpose.msra.mxu0 0.0
        %1212 = vmatprep.subr.mxu0 0.0
        %1213 = vmatpush1.xpose.msra.mxu0 %v1182
        %1214 = vmatprep.subr.mxu0 0.0
        %1215 = vmatpush1.xpose.msra.mxu0 %v1180
        %1216 = vmatprep.subr.mxu0 0.0
        %1217 = vmatpush2.xpose.msra.mxu0 0.0
        %1218 = vmatprep.subr.mxu0 0.0
        %1219 = vmatpush2.xpose.msra.mxu0 0.0
        %1220 = vmatprep.subr.mxu0 0.0
        %1221 = vmatpush2.xpose.msra.mxu0 0.0
        %1222 = vmatprep.subr.mxu0 0.0
        %1223 = vmatpush2.xpose.msra.mxu0 0.0
        %1224 = vmatprep.subr.mxu0 0.0
        %1225 = vmatpush2.xpose.msra.mxu0 0.0
        %1226 = vmatprep.subr.mxu0 0.0
        %1227 = vmatpush2.xpose.msra.mxu0 0.0
        %1228 = vmatprep.subr.mxu0 0.0
        %1229 = vmatpush2.xpose.msra.mxu0 0.0
        %1230 = vmatprep.subr.mxu0 0.0
        %1231 = vmatpush2.xpose.msra.mxu0 0.0
        %1232 = vmatprep.subr.mxu0 0.0
        %1233 = vmatpush2.xpose.msra.mxu0 0.0
        %1234 = vmatprep.subr.mxu0 0.0
        %1235 = vmatpush2.xpose.msra.mxu0 0.0
        %1236 = vmatprep.subr.mxu0 0.0
        %1237 = vmatpush2.xpose.msra.mxu0 0.0
        %1238 = vmatprep.subr.mxu0 0.0
        %1239 = vmatpush2.xpose.msra.mxu0 0.0
        %1240 = vmatprep.subr.mxu0 0.0
        %1241 = vmatpush2.xpose.msra.mxu0 0.0
        %1242 = vmatprep.subr.mxu0 0.0
        %1243 = vmatpush2.xpose.msra.mxu0 0.0
        %1244 = vmatprep.subr.mxu0 0.0
        %1245 = vmatpush2.xpose.msra.mxu0 0.0
        %1246 = vmatprep.subr.mxu0 0.0
        %1247 = vmatpush2.xpose.msra.mxu0 0.0
        %1248 = vmatprep.mubr.f32.mxu0 0.0
        %1249 = vmatmul.mubr.f32.gmra.mxu0 %v1176
        %v1250 = vpop.f32.mrf.mxu0
        %v1251 = vadd.f32 %v538, %v1250
        %v1252 = vpop.f32.mrf.mxu0
        %1253 = vmatprep.mubr.f32.mxu0 0.0
        %1254 = vmatmul.mubr.f32.gmra.mxu0 %v1178
        %v1255 = vpop.f32.mrf.mxu0
        %v1256 = vadd.f32 %v539, %v1255
        %v1257 = vpop.f32.mrf.mxu0
        %1258 = vdwg.mxu0
        %vm1259 = vcmask 130048
        %v1260 = vsel %vm1259, %v628, -inf
        %1261 = vmax.xlane.f32.xlu0 %v1260
        %v1262 = vpop.xlane.xlu0 %1261
        %v1263 = vsel %vm1259, %v633, -inf
        %1264 = vmax.xlane.f32.xlu0 %v1263
        %v1265 = vpop.xlane.xlu0 %1264
        %v1266 = vsel %vm1259, %v717, -inf
        %1267 = vmax.xlane.f32.xlu0 %v1266
        %v1268 = vpop.xlane.xlu0 %1267
        %v1269 = vsel %vm1259, %v722, -inf
        %1270 = vmax.xlane.f32.xlu0 %v1269
        %v1271 = vpop.xlane.xlu0 %1270
        %v1272 = vsel %vm1259, %v806, -inf
        %1273 = vmax.xlane.f32.xlu0 %v1272
        %v1274 = vpop.xlane.xlu0 %1273
        %v1275 = vsel %vm1259, %v811, -inf
        %1276 = vmax.xlane.f32.xlu0 %v1275
        %v1277 = vpop.xlane.xlu0 %1276
        %v1278 = vsel %vm1259, %v895, -inf
        %1279 = vmax.xlane.f32.xlu0 %v1278
        %v1280 = vpop.xlane.xlu0 %1279
        %v1281 = vsel %vm1259, %v900, -inf
        %1282 = vmax.xlane.f32.xlu0 %v1281
        %v1283 = vpop.xlane.xlu0 %1282
        %v1284 = vsel %vm1259, %v984, -inf
        %1285 = vmax.xlane.f32.xlu0 %v1284
        %v1286 = vpop.xlane.xlu0 %1285
        %v1287 = vsel %vm1259, %v989, -inf
        %1288 = vmax.xlane.f32.xlu0 %v1287
        %v1289 = vpop.xlane.xlu0 %1288
        %v1290 = vsel %vm1259, %v1073, -inf
        %1291 = vmax.xlane.f32.xlu0 %v1290
        %v1292 = vpop.xlane.xlu0 %1291
        %v1293 = vsel %vm1259, %v1078, -inf
        %1294 = vmax.xlane.f32.xlu0 %v1293
        %v1295 = vpop.xlane.xlu0 %1294
        %v1296 = vsel %vm1259, %v1162, -inf
        %1297 = vmax.xlane.f32.xlu0 %v1296
        %v1298 = vpop.xlane.xlu0 %1297
        %v1299 = vsel %vm1259, %v1167, -inf
        %1300 = vmax.xlane.f32.xlu0 %v1299
        %v1301 = vpop.xlane.xlu0 %1300
        %v1302 = vsel %vm1259, %v1251, -inf
        %1303 = vmax.xlane.f32.xlu0 %v1302
        %v1304 = vpop.xlane.xlu0 %1303
        %v1305 = vsel %vm1259, %v1256, -inf
        %1306 = vmax.xlane.f32.xlu0 %v1305
        %v1307 = vpop.xlane.xlu0 %1306
        %v1308 = vsub.f32 %v628, %v1262
        %v1309 = vsub.f32 %v633, %v1265
        %v1310 = vsub.f32 %v717, %v1268
        %v1311 = vsub.f32 %v722, %v1271
        %v1312 = vsub.f32 %v806, %v1274
        %v1313 = vsub.f32 %v811, %v1277
        %v1314 = vsub.f32 %v895, %v1280
        %v1315 = vsub.f32 %v900, %v1283
        %v1316 = vsub.f32 %v984, %v1286
        %v1317 = vsub.f32 %v989, %v1289
        %v1318 = vsub.f32 %v1073, %v1292
        %v1319 = vsub.f32 %v1078, %v1295
        %v1320 = vsub.f32 %v1162, %v1298
        %v1321 = vsub.f32 %v1167, %v1301
        %v1322 = vsub.f32 %v1251, %v1304
        %v1323 = vsub.f32 %v1256, %v1307
        %v1324 = vmul.f32 %v1308, 1.442695
        %v1325 = vpow.pop %v1324
        %v1326 = vmul.f32 %v1309, 1.442695
        %v1327 = vpow.pop %v1326
        %v1328 = vmul.f32 %v1310, 1.442695
        %v1329 = vpow.pop %v1328
        %v1330 = vmul.f32 %v1311, 1.442695
        %v1331 = vpow.pop %v1330
        %v1332 = vmul.f32 %v1312, 1.442695
        %v1333 = vpow.pop %v1332
        %v1334 = vmul.f32 %v1313, 1.442695
        %v1335 = vpow.pop %v1334
        %v1336 = vmul.f32 %v1314, 1.442695
        %v1337 = vpow.pop %v1336
        %v1338 = vmul.f32 %v1315, 1.442695
        %v1339 = vpow.pop %v1338
        %v1340 = vmul.f32 %v1316, 1.442695
        %v1341 = vpow.pop %v1340
        %v1342 = vmul.f32 %v1317, 1.442695
        %v1343 = vpow.pop %v1342
        %v1344 = vmul.f32 %v1318, 1.442695
        %v1345 = vpow.pop %v1344
        %v1346 = vmul.f32 %v1319, 1.442695
        %v1347 = vpow.pop %v1346
        %v1348 = vmul.f32 %v1320, 1.442695
        %v1349 = vpow.pop %v1348
        %v1350 = vmul.f32 %v1321, 1.442695
        %v1351 = vpow.pop %v1350
        %v1352 = vmul.f32 %v1322, 1.442695
        %v1353 = vpow.pop %v1352
        %v1354 = vmul.f32 %v1323, 1.442695
        %v1355 = vpow.pop %v1354
        %v1356 = vsel %vm1259, %v1325, 0.0
        %1357 = vadd.xlane.f32.xlu0 %v1356
        %v1358 = vpop.xlane.xlu0 %1357
        %v1359 = vsel %vm1259, %v1327, 0.0
        %1360 = vadd.xlane.f32.xlu0 %v1359
        %v1361 = vpop.xlane.xlu0 %1360
        %v1362 = vsel %vm1259, %v1329, 0.0
        %1363 = vadd.xlane.f32.xlu0 %v1362
        %v1364 = vpop.xlane.xlu0 %1363
        %v1365 = vsel %vm1259, %v1331, 0.0
        %1366 = vadd.xlane.f32.xlu0 %v1365
        %v1367 = vpop.xlane.xlu0 %1366
        %v1368 = vsel %vm1259, %v1333, 0.0
        %1369 = vadd.xlane.f32.xlu0 %v1368
        %v1370 = vpop.xlane.xlu0 %1369
        %v1371 = vsel %vm1259, %v1335, 0.0
        %1372 = vadd.xlane.f32.xlu0 %v1371
        %v1373 = vpop.xlane.xlu0 %1372
        %v1374 = vsel %vm1259, %v1337, 0.0
        %1375 = vadd.xlane.f32.xlu0 %v1374
        %v1376 = vpop.xlane.xlu0 %1375
        %v1377 = vsel %vm1259, %v1339, 0.0
        %1378 = vadd.xlane.f32.xlu0 %v1377
        %v1379 = vpop.xlane.xlu0 %1378
        %v1380 = vsel %vm1259, %v1341, 0.0
        %1381 = vadd.xlane.f32.xlu0 %v1380
        %v1382 = vpop.xlane.xlu0 %1381
        %v1383 = vsel %vm1259, %v1343, 0.0
        %1384 = vadd.xlane.f32.xlu0 %v1383
        %v1385 = vpop.xlane.xlu0 %1384
        %v1386 = vsel %vm1259, %v1345, 0.0
        %1387 = vadd.xlane.f32.xlu0 %v1386
        %v1388 = vpop.xlane.xlu0 %1387
        %v1389 = vsel %vm1259, %v1347, 0.0
        %1390 = vadd.xlane.f32.xlu0 %v1389
        %v1391 = vpop.xlane.xlu0 %1390
        %v1392 = vsel %vm1259, %v1349, 0.0
        %1393 = vadd.xlane.f32.xlu0 %v1392
        %v1394 = vpop.xlane.xlu0 %1393
        %v1395 = vsel %vm1259, %v1351, 0.0
        %1396 = vadd.xlane.f32.xlu0 %v1395
        %v1397 = vpop.xlane.xlu0 %1396
        %v1398 = vsel %vm1259, %v1353, 0.0
        %1399 = vadd.xlane.f32.xlu0 %v1398
        %v1400 = vpop.xlane.xlu0 %1399
        %v1401 = vsel %vm1259, %v1355, 0.0
        %1402 = vadd.xlane.f32.xlu0 %v1401
        %v1403 = vpop.xlane.xlu0 %1402
        %v1404 = vrcp.pop %v1358
        %v1405 = vrcp.pop %v1361
        %v1406 = vrcp.pop %v1364
        %v1407 = vrcp.pop %v1367
        %v1408 = vrcp.pop %v1370
        %v1409 = vrcp.pop %v1373
        %v1410 = vrcp.pop %v1376
        %v1411 = vrcp.pop %v1379
        %v1412 = vrcp.pop %v1382
        %v1413 = vrcp.pop %v1385
        %v1414 = vrcp.pop %v1388
        %v1415 = vrcp.pop %v1391
        %v1416 = vrcp.pop %v1394
        %v1417 = vrcp.pop %v1397
        %v1418 = vrcp.pop %v1400
        %v1419 = vrcp.pop %v1403
        %v1420 = vmul.f32 %v1325, %v1404
        %v1421 = vmul.f32 %v1327, %v1405
        %v1422 = vmul.f32 %v1329, %v1406
        %v1423 = vmul.f32 %v1331, %v1407
        %v1424 = vmul.f32 %v1333, %v1408
        %v1425 = vmul.f32 %v1335, %v1409
        %v1426 = vmul.f32 %v1337, %v1410
        %v1427 = vmul.f32 %v1339, %v1411
        %v1428 = vmul.f32 %v1341, %v1412
        %v1429 = vmul.f32 %v1343, %v1413
        %v1430 = vmul.f32 %v1345, %v1414
        %v1431 = vmul.f32 %v1347, %v1415
        %v1432 = vmul.f32 %v1349, %v1416
        %v1433 = vmul.f32 %v1351, %v1417
        %v1434 = vmul.f32 %v1353, %v1418
        %v1435 = vmul.f32 %v1355, %v1419
        %1436 = vrot.lane.b32.xlu0 %v460, 64
        %v1437 = vpop.permute.xlu0 %1436
        %1438 = vrot.lane.b32.xlu0 %v465, 64
        %v1439 = vpop.permute.xlu0 %1438
        %v1443 = vsel %vm1259, %v1420, 0
        %v1446 = vsel %vm1259, %v1421, 0
        %1448 = vmatprep.subr.mxu0 0.0
        %1449 = vmatpush1.msra.mxu0 0.0
        %1450 = vmatprep.subr.mxu0 0.0
        %1451 = vmatpush1.msra.mxu0 0.0
        %1452 = vmatprep.subr.mxu0 0.0
        %1453 = vmatpush1.msra.mxu0 0.0
        %1454 = vmatprep.subr.mxu0 0.0
        %1455 = vmatpush1.msra.mxu0 0.0
        %1456 = vmatprep.subr.mxu0 0.0
        %1457 = vmatpush1.msra.mxu0 0.0
        %1458 = vmatprep.subr.mxu0 0.0
        %1459 = vmatpush1.msra.mxu0 0.0
        %1460 = vmatprep.subr.mxu0 0.0
        %1461 = vmatpush1.msra.mxu0 0.0
        %1462 = vmatprep.subr.mxu0 0.0
        %1463 = vmatpush1.msra.mxu0 0.0
        %1464 = vmatprep.subr.mxu0 0.0
        %1465 = vmatpush1.msra.mxu0 0.0
        %1466 = vmatprep.subr.mxu0 0.0
        %1467 = vmatpush1.msra.mxu0 0.0
        %1468 = vmatprep.subr.mxu0 0.0
        %1469 = vmatpush1.msra.mxu0 0.0
        %1470 = vmatprep.subr.mxu0 0.0
        %1471 = vmatpush1.msra.mxu0 0.0
        %1472 = vmatprep.subr.mxu0 0.0
        %1473 = vmatpush1.msra.mxu0 0.0
        %1474 = vmatprep.subr.mxu0 0.0
        %1475 = vmatpush1.msra.mxu0 0.0
        %1476 = vmatprep.subr.mxu0 0.0
        %1477 = vmatpush1.msra.mxu0 %v1439
        %1478 = vmatprep.subr.mxu0 0.0
        %1479 = vmatpush1.msra.mxu0 %v1437
        %1480 = vmatprep.subr.mxu0 0.0
        %1481 = vmatpush2.msra.mxu0 0.0
        %1482 = vmatprep.subr.mxu0 0.0
        %1483 = vmatpush2.msra.mxu0 0.0
        %1484 = vmatprep.subr.mxu0 0.0
        %1485 = vmatpush2.msra.mxu0 0.0
        %1486 = vmatprep.subr.mxu0 0.0
        %1487 = vmatpush2.msra.mxu0 0.0
        %1488 = vmatprep.subr.mxu0 0.0
        %1489 = vmatpush2.msra.mxu0 0.0
        %1490 = vmatprep.subr.mxu0 0.0
        %1491 = vmatpush2.msra.mxu0 0.0
        %1492 = vmatprep.subr.mxu0 0.0
        %1493 = vmatpush2.msra.mxu0 0.0
        %1494 = vmatprep.subr.mxu0 0.0
        %1495 = vmatpush2.msra.mxu0 0.0
        %1496 = vmatprep.subr.mxu0 0.0
        %1497 = vmatpush2.msra.mxu0 0.0
        %1498 = vmatprep.subr.mxu0 0.0
        %1499 = vmatpush2.msra.mxu0 0.0
        %1500 = vmatprep.subr.mxu0 0.0
        %1501 = vmatpush2.msra.mxu0 0.0
        %1502 = vmatprep.subr.mxu0 0.0
        %1503 = vmatpush2.msra.mxu0 0.0
        %1504 = vmatprep.subr.mxu0 0.0
        %1505 = vmatpush2.msra.mxu0 0.0
        %1506 = vmatprep.subr.mxu0 0.0
        %1507 = vmatpush2.msra.mxu0 0.0
        %1508 = vmatprep.subr.mxu0 0.0
        %1509 = vmatpush2.msra.mxu0 0.0
        %1510 = vmatprep.subr.mxu0 0.0
        %1511 = vmatpush2.msra.mxu0 0.0
        %1512 = vmatprep.mubr.f32.mxu0 0.0
        %1513 = vmatmul.mubr.f32.gmra.mxu0 %v1443
        %v1514 = vpop.f32.mrf.mxu0
        %v1515 = vadd.f32 0.0, %v1514
        %v1516 = vpop.f32.mrf.mxu0
        %1517 = vmatprep.mubr.f32.mxu0 0.0
        %1518 = vmatmul.mubr.f32.gmra.mxu0 %v1446
        %v1519 = vpop.f32.mrf.mxu0
        %v1520 = vadd.f32 0.0, %v1519
        %v1521 = vpop.f32.mrf.mxu0
        %1522 = vdwg.mxu0
        %1523 = vrot.lane.b32.xlu0 %v470, 64
        %v1524 = vpop.permute.xlu0 %1523
        %1525 = vrot.lane.b32.xlu0 %v475, 64
        %v1526 = vpop.permute.xlu0 %1525
        %v1530 = vsel %vm1259, %v1422, 0
        %v1533 = vsel %vm1259, %v1423, 0
        %1535 = vmatprep.subr.mxu0 0.0
        %1536 = vmatpush1.msra.mxu0 0.0
        %1537 = vmatprep.subr.mxu0 0.0
        %1538 = vmatpush1.msra.mxu0 0.0
        %1539 = vmatprep.subr.mxu0 0.0
        %1540 = vmatpush1.msra.mxu0 0.0
        %1541 = vmatprep.subr.mxu0 0.0
        %1542 = vmatpush1.msra.mxu0 0.0
        %1543 = vmatprep.subr.mxu0 0.0
        %1544 = vmatpush1.msra.mxu0 0.0
        %1545 = vmatprep.subr.mxu0 0.0
        %1546 = vmatpush1.msra.mxu0 0.0
        %1547 = vmatprep.subr.mxu0 0.0
        %1548 = vmatpush1.msra.mxu0 0.0
        %1549 = vmatprep.subr.mxu0 0.0
        %1550 = vmatpush1.msra.mxu0 0.0
        %1551 = vmatprep.subr.mxu0 0.0
        %1552 = vmatpush1.msra.mxu0 0.0
        %1553 = vmatprep.subr.mxu0 0.0
        %1554 = vmatpush1.msra.mxu0 0.0
        %1555 = vmatprep.subr.mxu0 0.0
        %1556 = vmatpush1.msra.mxu0 0.0
        %1557 = vmatprep.subr.mxu0 0.0
        %1558 = vmatpush1.msra.mxu0 0.0
        %1559 = vmatprep.subr.mxu0 0.0
        %1560 = vmatpush1.msra.mxu0 0.0
        %1561 = vmatprep.subr.mxu0 0.0
        %1562 = vmatpush1.msra.mxu0 0.0
        %1563 = vmatprep.subr.mxu0 0.0
        %1564 = vmatpush1.msra.mxu0 %v1526
        %1565 = vmatprep.subr.mxu0 0.0
        %1566 = vmatpush1.msra.mxu0 %v1524
        %1567 = vmatprep.subr.mxu0 0.0
        %1568 = vmatpush2.msra.mxu0 0.0
        %1569 = vmatprep.subr.mxu0 0.0
        %1570 = vmatpush2.msra.mxu0 0.0
        %1571 = vmatprep.subr.mxu0 0.0
        %1572 = vmatpush2.msra.mxu0 0.0
        %1573 = vmatprep.subr.mxu0 0.0
        %1574 = vmatpush2.msra.mxu0 0.0
        %1575 = vmatprep.subr.mxu0 0.0
        %1576 = vmatpush2.msra.mxu0 0.0
        %1577 = vmatprep.subr.mxu0 0.0
        %1578 = vmatpush2.msra.mxu0 0.0
        %1579 = vmatprep.subr.mxu0 0.0
        %1580 = vmatpush2.msra.mxu0 0.0
        %1581 = vmatprep.subr.mxu0 0.0
        %1582 = vmatpush2.msra.mxu0 0.0
        %1583 = vmatprep.subr.mxu0 0.0
        %1584 = vmatpush2.msra.mxu0 0.0
        %1585 = vmatprep.subr.mxu0 0.0
        %1586 = vmatpush2.msra.mxu0 0.0
        %1587 = vmatprep.subr.mxu0 0.0
        %1588 = vmatpush2.msra.mxu0 0.0
        %1589 = vmatprep.subr.mxu0 0.0
        %1590 = vmatpush2.msra.mxu0 0.0
        %1591 = vmatprep.subr.mxu0 0.0
        %1592 = vmatpush2.msra.mxu0 0.0
        %1593 = vmatprep.subr.mxu0 0.0
        %1594 = vmatpush2.msra.mxu0 0.0
        %1595 = vmatprep.subr.mxu0 0.0
        %1596 = vmatpush2.msra.mxu0 0.0
        %1597 = vmatprep.subr.mxu0 0.0
        %1598 = vmatpush2.msra.mxu0 0.0
        %1599 = vmatprep.mubr.f32.mxu0 0.0
        %1600 = vmatmul.mubr.f32.gmra.mxu0 %v1530
        %v1601 = vpop.f32.mrf.mxu0
        %v1602 = vadd.f32 0.0, %v1601
        %v1603 = vpop.f32.mrf.mxu0
        %1604 = vmatprep.mubr.f32.mxu0 0.0
        %1605 = vmatmul.mubr.f32.gmra.mxu0 %v1533
        %v1606 = vpop.f32.mrf.mxu0
        %v1607 = vadd.f32 0.0, %v1606
        %v1608 = vpop.f32.mrf.mxu0
        %1609 = vdwg.mxu0
        %1610 = vrot.lane.b32.xlu0 %v480, 64
        %v1611 = vpop.permute.xlu0 %1610
        %1612 = vrot.lane.b32.xlu0 %v485, 64
        %v1613 = vpop.permute.xlu0 %1612
        %v1617 = vsel %vm1259, %v1424, 0
        %v1620 = vsel %vm1259, %v1425, 0
        %1622 = vmatprep.subr.mxu0 0.0
        %1623 = vmatpush1.msra.mxu0 0.0
        %1624 = vmatprep.subr.mxu0 0.0
        %1625 = vmatpush1.msra.mxu0 0.0
        %1626 = vmatprep.subr.mxu0 0.0
        %1627 = vmatpush1.msra.mxu0 0.0
        %1628 = vmatprep.subr.mxu0 0.0
        %1629 = vmatpush1.msra.mxu0 0.0
        %1630 = vmatprep.subr.mxu0 0.0
        %1631 = vmatpush1.msra.mxu0 0.0
        %1632 = vmatprep.subr.mxu0 0.0
        %1633 = vmatpush1.msra.mxu0 0.0
        %1634 = vmatprep.subr.mxu0 0.0
        %1635 = vmatpush1.msra.mxu0 0.0
        %1636 = vmatprep.subr.mxu0 0.0
        %1637 = vmatpush1.msra.mxu0 0.0
        %1638 = vmatprep.subr.mxu0 0.0
        %1639 = vmatpush1.msra.mxu0 0.0
        %1640 = vmatprep.subr.mxu0 0.0
        %1641 = vmatpush1.msra.mxu0 0.0
        %1642 = vmatprep.subr.mxu0 0.0
        %1643 = vmatpush1.msra.mxu0 0.0
        %1644 = vmatprep.subr.mxu0 0.0
        %1645 = vmatpush1.msra.mxu0 0.0
        %1646 = vmatprep.subr.mxu0 0.0
        %1647 = vmatpush1.msra.mxu0 0.0
        %1648 = vmatprep.subr.mxu0 0.0
        %1649 = vmatpush1.msra.mxu0 0.0
        %1650 = vmatprep.subr.mxu0 0.0
        %1651 = vmatpush1.msra.mxu0 %v1613
        %1652 = vmatprep.subr.mxu0 0.0
        %1653 = vmatpush1.msra.mxu0 %v1611
        %1654 = vmatprep.subr.mxu0 0.0
        %1655 = vmatpush2.msra.mxu0 0.0
        %1656 = vmatprep.subr.mxu0 0.0
        %1657 = vmatpush2.msra.mxu0 0.0
        %1658 = vmatprep.subr.mxu0 0.0
        %1659 = vmatpush2.msra.mxu0 0.0
        %1660 = vmatprep.subr.mxu0 0.0
        %1661 = vmatpush2.msra.mxu0 0.0
        %1662 = vmatprep.subr.mxu0 0.0
        %1663 = vmatpush2.msra.mxu0 0.0
        %1664 = vmatprep.subr.mxu0 0.0
        %1665 = vmatpush2.msra.mxu0 0.0
        %1666 = vmatprep.subr.mxu0 0.0
        %1667 = vmatpush2.msra.mxu0 0.0
        %1668 = vmatprep.subr.mxu0 0.0
        %1669 = vmatpush2.msra.mxu0 0.0
        %1670 = vmatprep.subr.mxu0 0.0
        %1671 = vmatpush2.msra.mxu0 0.0
        %1672 = vmatprep.subr.mxu0 0.0
        %1673 = vmatpush2.msra.mxu0 0.0
        %1674 = vmatprep.subr.mxu0 0.0
        %1675 = vmatpush2.msra.mxu0 0.0
        %1676 = vmatprep.subr.mxu0 0.0
        %1677 = vmatpush2.msra.mxu0 0.0
        %1678 = vmatprep.subr.mxu0 0.0
        %1679 = vmatpush2.msra.mxu0 0.0
        %1680 = vmatprep.subr.mxu0 0.0
        %1681 = vmatpush2.msra.mxu0 0.0
        %1682 = vmatprep.subr.mxu0 0.0
        %1683 = vmatpush2.msra.mxu0 0.0
        %1684 = vmatprep.subr.mxu0 0.0
        %1685 = vmatpush2.msra.mxu0 0.0
        %1686 = vmatprep.mubr.f32.mxu0 0.0
        %1687 = vmatmul.mubr.f32.gmra.mxu0 %v1617
        %v1688 = vpop.f32.mrf.mxu0
        %v1689 = vadd.f32 0.0, %v1688
        %v1690 = vpop.f32.mrf.mxu0
        %1691 = vmatprep.mubr.f32.mxu0 0.0
        %1692 = vmatmul.mubr.f32.gmra.mxu0 %v1620
        %v1693 = vpop.f32.mrf.mxu0
        %v1694 = vadd.f32 0.0, %v1693
        %v1695 = vpop.f32.mrf.mxu0
        %1696 = vdwg.mxu0
        %1697 = vrot.lane.b32.xlu0 %v490, 64
        %v1698 = vpop.permute.xlu0 %1697
        %1699 = vrot.lane.b32.xlu0 %v495, 64
        %v1700 = vpop.permute.xlu0 %1699
        %v1704 = vsel %vm1259, %v1426, 0
        %v1707 = vsel %vm1259, %v1427, 0
        %1709 = vmatprep.subr.mxu0 0.0
        %1710 = vmatpush1.msra.mxu0 0.0
        %1711 = vmatprep.subr.mxu0 0.0
        %1712 = vmatpush1.msra.mxu0 0.0
        %1713 = vmatprep.subr.mxu0 0.0
        %1714 = vmatpush1.msra.mxu0 0.0
        %1715 = vmatprep.subr.mxu0 0.0
        %1716 = vmatpush1.msra.mxu0 0.0
        %1717 = vmatprep.subr.mxu0 0.0
        %1718 = vmatpush1.msra.mxu0 0.0
        %1719 = vmatprep.subr.mxu0 0.0
        %1720 = vmatpush1.msra.mxu0 0.0
        %1721 = vmatprep.subr.mxu0 0.0
        %1722 = vmatpush1.msra.mxu0 0.0
        %1723 = vmatprep.subr.mxu0 0.0
        %1724 = vmatpush1.msra.mxu0 0.0
        %1725 = vmatprep.subr.mxu0 0.0
        %1726 = vmatpush1.msra.mxu0 0.0
        %1727 = vmatprep.subr.mxu0 0.0
        %1728 = vmatpush1.msra.mxu0 0.0
        %1729 = vmatprep.subr.mxu0 0.0
        %1730 = vmatpush1.msra.mxu0 0.0
        %1731 = vmatprep.subr.mxu0 0.0
        %1732 = vmatpush1.msra.mxu0 0.0
        %1733 = vmatprep.subr.mxu0 0.0
        %1734 = vmatpush1.msra.mxu0 0.0
        %1735 = vmatprep.subr.mxu0 0.0
        %1736 = vmatpush1.msra.mxu0 0.0
        %1737 = vmatprep.subr.mxu0 0.0
        %1738 = vmatpush1.msra.mxu0 %v1700
        %1739 = vmatprep.subr.mxu0 0.0
        %1740 = vmatpush1.msra.mxu0 %v1698
        %1741 = vmatprep.subr.mxu0 0.0
        %1742 = vmatpush2.msra.mxu0 0.0
        %1743 = vmatprep.subr.mxu0 0.0
        %1744 = vmatpush2.msra.mxu0 0.0
        %1745 = vmatprep.subr.mxu0 0.0
        %1746 = vmatpush2.msra.mxu0 0.0
        %1747 = vmatprep.subr.mxu0 0.0
        %1748 = vmatpush2.msra.mxu0 0.0
        %1749 = vmatprep.subr.mxu0 0.0
        %1750 = vmatpush2.msra.mxu0 0.0
        %1751 = vmatprep.subr.mxu0 0.0
        %1752 = vmatpush2.msra.mxu0 0.0
        %1753 = vmatprep.subr.mxu0 0.0
        %1754 = vmatpush2.msra.mxu0 0.0
        %1755 = vmatprep.subr.mxu0 0.0
        %1756 = vmatpush2.msra.mxu0 0.0
        %1757 = vmatprep.subr.mxu0 0.0
        %1758 = vmatpush2.msra.mxu0 0.0
        %1759 = vmatprep.subr.mxu0 0.0
        %1760 = vmatpush2.msra.mxu0 0.0
        %1761 = vmatprep.subr.mxu0 0.0
        %1762 = vmatpush2.msra.mxu0 0.0
        %1763 = vmatprep.subr.mxu0 0.0
        %1764 = vmatpush2.msra.mxu0 0.0
        %1765 = vmatprep.subr.mxu0 0.0
        %1766 = vmatpush2.msra.mxu0 0.0
        %1767 = vmatprep.subr.mxu0 0.0
        %1768 = vmatpush2.msra.mxu0 0.0
        %1769 = vmatprep.subr.mxu0 0.0
        %1770 = vmatpush2.msra.mxu0 0.0
        %1771 = vmatprep.subr.mxu0 0.0
        %1772 = vmatpush2.msra.mxu0 0.0
        %1773 = vmatprep.mubr.f32.mxu0 0.0
        %1774 = vmatmul.mubr.f32.gmra.mxu0 %v1704
        %v1775 = vpop.f32.mrf.mxu0
        %v1776 = vadd.f32 0.0, %v1775
        %v1777 = vpop.f32.mrf.mxu0
        %1778 = vmatprep.mubr.f32.mxu0 0.0
        %1779 = vmatmul.mubr.f32.gmra.mxu0 %v1707
        %v1780 = vpop.f32.mrf.mxu0
        %v1781 = vadd.f32 0.0, %v1780
        %v1782 = vpop.f32.mrf.mxu0
        %1783 = vdwg.mxu0
        %1784 = vrot.lane.b32.xlu0 %v500, 64
        %v1785 = vpop.permute.xlu0 %1784
        %1786 = vrot.lane.b32.xlu0 %v505, 64
        %v1787 = vpop.permute.xlu0 %1786
        %v1791 = vsel %vm1259, %v1428, 0
        %v1794 = vsel %vm1259, %v1429, 0
        %1796 = vmatprep.subr.mxu0 0.0
        %1797 = vmatpush1.msra.mxu0 0.0
        %1798 = vmatprep.subr.mxu0 0.0
        %1799 = vmatpush1.msra.mxu0 0.0
        %1800 = vmatprep.subr.mxu0 0.0
        %1801 = vmatpush1.msra.mxu0 0.0
        %1802 = vmatprep.subr.mxu0 0.0
        %1803 = vmatpush1.msra.mxu0 0.0
        %1804 = vmatprep.subr.mxu0 0.0
        %1805 = vmatpush1.msra.mxu0 0.0
        %1806 = vmatprep.subr.mxu0 0.0
        %1807 = vmatpush1.msra.mxu0 0.0
        %1808 = vmatprep.subr.mxu0 0.0
        %1809 = vmatpush1.msra.mxu0 0.0
        %1810 = vmatprep.subr.mxu0 0.0
        %1811 = vmatpush1.msra.mxu0 0.0
        %1812 = vmatprep.subr.mxu0 0.0
        %1813 = vmatpush1.msra.mxu0 0.0
        %1814 = vmatprep.subr.mxu0 0.0
        %1815 = vmatpush1.msra.mxu0 0.0
        %1816 = vmatprep.subr.mxu0 0.0
        %1817 = vmatpush1.msra.mxu0 0.0
        %1818 = vmatprep.subr.mxu0 0.0
        %1819 = vmatpush1.msra.mxu0 0.0
        %1820 = vmatprep.subr.mxu0 0.0
        %1821 = vmatpush1.msra.mxu0 0.0
        %1822 = vmatprep.subr.mxu0 0.0
        %1823 = vmatpush1.msra.mxu0 0.0
        %1824 = vmatprep.subr.mxu0 0.0
        %1825 = vmatpush1.msra.mxu0 %v1787
        %1826 = vmatprep.subr.mxu0 0.0
        %1827 = vmatpush1.msra.mxu0 %v1785
        %1828 = vmatprep.subr.mxu0 0.0
        %1829 = vmatpush2.msra.mxu0 0.0
        %1830 = vmatprep.subr.mxu0 0.0
        %1831 = vmatpush2.msra.mxu0 0.0
        %1832 = vmatprep.subr.mxu0 0.0
        %1833 = vmatpush2.msra.mxu0 0.0
        %1834 = vmatprep.subr.mxu0 0.0
        %1835 = vmatpush2.msra.mxu0 0.0
        %1836 = vmatprep.subr.mxu0 0.0
        %1837 = vmatpush2.msra.mxu0 0.0
        %1838 = vmatprep.subr.mxu0 0.0
        %1839 = vmatpush2.msra.mxu0 0.0
        %1840 = vmatprep.subr.mxu0 0.0
        %1841 = vmatpush2.msra.mxu0 0.0
        %1842 = vmatprep.subr.mxu0 0.0
        %1843 = vmatpush2.msra.mxu0 0.0
        %1844 = vmatprep.subr.mxu0 0.0
        %1845 = vmatpush2.msra.mxu0 0.0
        %1846 = vmatprep.subr.mxu0 0.0
        %1847 = vmatpush2.msra.mxu0 0.0
        %1848 = vmatprep.subr.mxu0 0.0
        %1849 = vmatpush2.msra.mxu0 0.0
        %1850 = vmatprep.subr.mxu0 0.0
        %1851 = vmatpush2.msra.mxu0 0.0
        %1852 = vmatprep.subr.mxu0 0.0
        %1853 = vmatpush2.msra.mxu0 0.0
        %1854 = vmatprep.subr.mxu0 0.0
        %1855 = vmatpush2.msra.mxu0 0.0
        %1856 = vmatprep.subr.mxu0 0.0
        %1857 = vmatpush2.msra.mxu0 0.0
        %1858 = vmatprep.subr.mxu0 0.0
        %1859 = vmatpush2.msra.mxu0 0.0
        %1860 = vmatprep.mubr.f32.mxu0 0.0
        %1861 = vmatmul.mubr.f32.gmra.mxu0 %v1791
        %v1862 = vpop.f32.mrf.mxu0
        %v1863 = vadd.f32 0.0, %v1862
        %v1864 = vpop.f32.mrf.mxu0
        %1865 = vmatprep.mubr.f32.mxu0 0.0
        %1866 = vmatmul.mubr.f32.gmra.mxu0 %v1794
        %v1867 = vpop.f32.mrf.mxu0
        %v1868 = vadd.f32 0.0, %v1867
        %v1869 = vpop.f32.mrf.mxu0
        %1870 = vdwg.mxu0
        %1871 = vrot.lane.b32.xlu0 %v510, 64
        %v1872 = vpop.permute.xlu0 %1871
        %1873 = vrot.lane.b32.xlu0 %v515, 64
        %v1874 = vpop.permute.xlu0 %1873
        %v1878 = vsel %vm1259, %v1430, 0
        %v1881 = vsel %vm1259, %v1431, 0
        %1883 = vmatprep.subr.mxu0 0.0
        %1884 = vmatpush1.msra.mxu0 0.0
        %1885 = vmatprep.subr.mxu0 0.0
        %1886 = vmatpush1.msra.mxu0 0.0
        %1887 = vmatprep.subr.mxu0 0.0
        %1888 = vmatpush1.msra.mxu0 0.0
        %1889 = vmatprep.subr.mxu0 0.0
        %1890 = vmatpush1.msra.mxu0 0.0
        %1891 = vmatprep.subr.mxu0 0.0
        %1892 = vmatpush1.msra.mxu0 0.0
        %1893 = vmatprep.subr.mxu0 0.0
        %1894 = vmatpush1.msra.mxu0 0.0
        %1895 = vmatprep.subr.mxu0 0.0
        %1896 = vmatpush1.msra.mxu0 0.0
        %1897 = vmatprep.subr.mxu0 0.0
        %1898 = vmatpush1.msra.mxu0 0.0
        %1899 = vmatprep.subr.mxu0 0.0
        %1900 = vmatpush1.msra.mxu0 0.0
        %1901 = vmatprep.subr.mxu0 0.0
        %1902 = vmatpush1.msra.mxu0 0.0
        %1903 = vmatprep.subr.mxu0 0.0
        %1904 = vmatpush1.msra.mxu0 0.0
        %1905 = vmatprep.subr.mxu0 0.0
        %1906 = vmatpush1.msra.mxu0 0.0
        %1907 = vmatprep.subr.mxu0 0.0
        %1908 = vmatpush1.msra.mxu0 0.0
        %1909 = vmatprep.subr.mxu0 0.0
        %1910 = vmatpush1.msra.mxu0 0.0
        %1911 = vmatprep.subr.mxu0 0.0
        %1912 = vmatpush1.msra.mxu0 %v1874
        %1913 = vmatprep.subr.mxu0 0.0
        %1914 = vmatpush1.msra.mxu0 %v1872
        %1915 = vmatprep.subr.mxu0 0.0
        %1916 = vmatpush2.msra.mxu0 0.0
        %1917 = vmatprep.subr.mxu0 0.0
        %1918 = vmatpush2.msra.mxu0 0.0
        %1919 = vmatprep.subr.mxu0 0.0
        %1920 = vmatpush2.msra.mxu0 0.0
        %1921 = vmatprep.subr.mxu0 0.0
        %1922 = vmatpush2.msra.mxu0 0.0
        %1923 = vmatprep.subr.mxu0 0.0
        %1924 = vmatpush2.msra.mxu0 0.0
        %1925 = vmatprep.subr.mxu0 0.0
        %1926 = vmatpush2.msra.mxu0 0.0
        %1927 = vmatprep.subr.mxu0 0.0
        %1928 = vmatpush2.msra.mxu0 0.0
        %1929 = vmatprep.subr.mxu0 0.0
        %1930 = vmatpush2.msra.mxu0 0.0
        %1931 = vmatprep.subr.mxu0 0.0
        %1932 = vmatpush2.msra.mxu0 0.0
        %1933 = vmatprep.subr.mxu0 0.0
        %1934 = vmatpush2.msra.mxu0 0.0
        %1935 = vmatprep.subr.mxu0 0.0
        %1936 = vmatpush2.msra.mxu0 0.0
        %1937 = vmatprep.subr.mxu0 0.0
        %1938 = vmatpush2.msra.mxu0 0.0
        %1939 = vmatprep.subr.mxu0 0.0
        %1940 = vmatpush2.msra.mxu0 0.0
        %1941 = vmatprep.subr.mxu0 0.0
        %1942 = vmatpush2.msra.mxu0 0.0
        %1943 = vmatprep.subr.mxu0 0.0
        %1944 = vmatpush2.msra.mxu0 0.0
        %1945 = vmatprep.subr.mxu0 0.0
        %1946 = vmatpush2.msra.mxu0 0.0
        %1947 = vmatprep.mubr.f32.mxu0 0.0
        %1948 = vmatmul.mubr.f32.gmra.mxu0 %v1878
        %v1949 = vpop.f32.mrf.mxu0
        %v1950 = vadd.f32 0.0, %v1949
        %v1951 = vpop.f32.mrf.mxu0
        %1952 = vmatprep.mubr.f32.mxu0 0.0
        %1953 = vmatmul.mubr.f32.gmra.mxu0 %v1881
        %v1954 = vpop.f32.mrf.mxu0
        %v1955 = vadd.f32 0.0, %v1954
        %v1956 = vpop.f32.mrf.mxu0
        %1957 = vdwg.mxu0
        %1958 = vrot.lane.b32.xlu0 %v520, 64
        %v1959 = vpop.permute.xlu0 %1958
        %1960 = vrot.lane.b32.xlu0 %v525, 64
        %v1961 = vpop.permute.xlu0 %1960
        %v1965 = vsel %vm1259, %v1432, 0
        %v1968 = vsel %vm1259, %v1433, 0
        %1970 = vmatprep.subr.mxu0 0.0
        %1971 = vmatpush1.msra.mxu0 0.0
        %1972 = vmatprep.subr.mxu0 0.0
        %1973 = vmatpush1.msra.mxu0 0.0
        %1974 = vmatprep.subr.mxu0 0.0
        %1975 = vmatpush1.msra.mxu0 0.0
        %1976 = vmatprep.subr.mxu0 0.0
        %1977 = vmatpush1.msra.mxu0 0.0
        %1978 = vmatprep.subr.mxu0 0.0
        %1979 = vmatpush1.msra.mxu0 0.0
        %1980 = vmatprep.subr.mxu0 0.0
        %1981 = vmatpush1.msra.mxu0 0.0
        %1982 = vmatprep.subr.mxu0 0.0
        %1983 = vmatpush1.msra.mxu0 0.0
        %1984 = vmatprep.subr.mxu0 0.0
        %1985 = vmatpush1.msra.mxu0 0.0
        %1986 = vmatprep.subr.mxu0 0.0
        %1987 = vmatpush1.msra.mxu0 0.0
        %1988 = vmatprep.subr.mxu0 0.0
        %1989 = vmatpush1.msra.mxu0 0.0
        %1990 = vmatprep.subr.mxu0 0.0
        %1991 = vmatpush1.msra.mxu0 0.0
        %1992 = vmatprep.subr.mxu0 0.0
        %1993 = vmatpush1.msra.mxu0 0.0
        %1994 = vmatprep.subr.mxu0 0.0
        %1995 = vmatpush1.msra.mxu0 0.0
        %1996 = vmatprep.subr.mxu0 0.0
        %1997 = vmatpush1.msra.mxu0 0.0
        %1998 = vmatprep.subr.mxu0 0.0
        %1999 = vmatpush1.msra.mxu0 %v1961
        %2000 = vmatprep.subr.mxu0 0.0
        %2001 = vmatpush1.msra.mxu0 %v1959
        %2002 = vmatprep.subr.mxu0 0.0
        %2003 = vmatpush2.msra.mxu0 0.0
        %2004 = vmatprep.subr.mxu0 0.0
        %2005 = vmatpush2.msra.mxu0 0.0
        %2006 = vmatprep.subr.mxu0 0.0
        %2007 = vmatpush2.msra.mxu0 0.0
        %2008 = vmatprep.subr.mxu0 0.0
        %2009 = vmatpush2.msra.mxu0 0.0
        %2010 = vmatprep.subr.mxu0 0.0
        %2011 = vmatpush2.msra.mxu0 0.0
        %2012 = vmatprep.subr.mxu0 0.0
        %2013 = vmatpush2.msra.mxu0 0.0
        %2014 = vmatprep.subr.mxu0 0.0
        %2015 = vmatpush2.msra.mxu0 0.0
        %2016 = vmatprep.subr.mxu0 0.0
        %2017 = vmatpush2.msra.mxu0 0.0
        %2018 = vmatprep.subr.mxu0 0.0
        %2019 = vmatpush2.msra.mxu0 0.0
        %2020 = vmatprep.subr.mxu0 0.0
        %2021 = vmatpush2.msra.mxu0 0.0
        %2022 = vmatprep.subr.mxu0 0.0
        %2023 = vmatpush2.msra.mxu0 0.0
        %2024 = vmatprep.subr.mxu0 0.0
        %2025 = vmatpush2.msra.mxu0 0.0
        %2026 = vmatprep.subr.mxu0 0.0
        %2027 = vmatpush2.msra.mxu0 0.0
        %2028 = vmatprep.subr.mxu0 0.0
        %2029 = vmatpush2.msra.mxu0 0.0
        %2030 = vmatprep.subr.mxu0 0.0
        %2031 = vmatpush2.msra.mxu0 0.0
        %2032 = vmatprep.subr.mxu0 0.0
        %2033 = vmatpush2.msra.mxu0 0.0
        %2034 = vmatprep.mubr.f32.mxu0 0.0
        %2035 = vmatmul.mubr.f32.gmra.mxu0 %v1965
        %v2036 = vpop.f32.mrf.mxu0
        %v2037 = vadd.f32 0.0, %v2036
        %v2038 = vpop.f32.mrf.mxu0
        %2039 = vmatprep.mubr.f32.mxu0 0.0
        %2040 = vmatmul.mubr.f32.gmra.mxu0 %v1968
        %v2041 = vpop.f32.mrf.mxu0
        %v2042 = vadd.f32 0.0, %v2041
        %v2043 = vpop.f32.mrf.mxu0
        %2044 = vdwg.mxu0
        %2045 = vrot.lane.b32.xlu0 %v530, 64
        %v2046 = vpop.permute.xlu0 %2045
        %2047 = vrot.lane.b32.xlu0 %v535, 64
        %v2048 = vpop.permute.xlu0 %2047
        %v2052 = vsel %vm1259, %v1434, 0
        %v2055 = vsel %vm1259, %v1435, 0
        %2057 = vmatprep.subr.mxu0 0.0
        %2058 = vmatpush1.msra.mxu0 0.0
        %2059 = vmatprep.subr.mxu0 0.0
        %2060 = vmatpush1.msra.mxu0 0.0
        %2061 = vmatprep.subr.mxu0 0.0
        %2062 = vmatpush1.msra.mxu0 0.0
        %2063 = vmatprep.subr.mxu0 0.0
        %2064 = vmatpush1.msra.mxu0 0.0
        %2065 = vmatprep.subr.mxu0 0.0
        %2066 = vmatpush1.msra.mxu0 0.0
        %2067 = vmatprep.subr.mxu0 0.0
        %2068 = vmatpush1.msra.mxu0 0.0
        %2069 = vmatprep.subr.mxu0 0.0
        %2070 = vmatpush1.msra.mxu0 0.0
        %2071 = vmatprep.subr.mxu0 0.0
        %2072 = vmatpush1.msra.mxu0 0.0
        %2073 = vmatprep.subr.mxu0 0.0
        %2074 = vmatpush1.msra.mxu0 0.0
        %2075 = vmatprep.subr.mxu0 0.0
        %2076 = vmatpush1.msra.mxu0 0.0
        %2077 = vmatprep.subr.mxu0 0.0
        %2078 = vmatpush1.msra.mxu0 0.0
        %2079 = vmatprep.subr.mxu0 0.0
        %2080 = vmatpush1.msra.mxu0 0.0
        %2081 = vmatprep.subr.mxu0 0.0
        %2082 = vmatpush1.msra.mxu0 0.0
        %2083 = vmatprep.subr.mxu0 0.0
        %2084 = vmatpush1.msra.mxu0 0.0
        %2085 = vmatprep.subr.mxu0 0.0
        %2086 = vmatpush1.msra.mxu0 %v2048
        %2087 = vmatprep.subr.mxu0 0.0
        %2088 = vmatpush1.msra.mxu0 %v2046
        %2089 = vmatprep.subr.mxu0 0.0
        %2090 = vmatpush2.msra.mxu0 0.0
        %2091 = vmatprep.subr.mxu0 0.0
        %2092 = vmatpush2.msra.mxu0 0.0
        %2093 = vmatprep.subr.mxu0 0.0
        %2094 = vmatpush2.msra.mxu0 0.0
        %2095 = vmatprep.subr.mxu0 0.0
        %2096 = vmatpush2.msra.mxu0 0.0
        %2097 = vmatprep.subr.mxu0 0.0
        %2098 = vmatpush2.msra.mxu0 0.0
        %2099 = vmatprep.subr.mxu0 0.0
        %2100 = vmatpush2.msra.mxu0 0.0
        %2101 = vmatprep.subr.mxu0 0.0
        %2102 = vmatpush2.msra.mxu0 0.0
        %2103 = vmatprep.subr.mxu0 0.0
        %2104 = vmatpush2.msra.mxu0 0.0
        %2105 = vmatprep.subr.mxu0 0.0
        %2106 = vmatpush2.msra.mxu0 0.0
        %2107 = vmatprep.subr.mxu0 0.0
        %2108 = vmatpush2.msra.mxu0 0.0
        %2109 = vmatprep.subr.mxu0 0.0
        %2110 = vmatpush2.msra.mxu0 0.0
        %2111 = vmatprep.subr.mxu0 0.0
        %2112 = vmatpush2.msra.mxu0 0.0
        %2113 = vmatprep.subr.mxu0 0.0
        %2114 = vmatpush2.msra.mxu0 0.0
        %2115 = vmatprep.subr.mxu0 0.0
        %2116 = vmatpush2.msra.mxu0 0.0
        %2117 = vmatprep.subr.mxu0 0.0
        %2118 = vmatpush2.msra.mxu0 0.0
        %2119 = vmatprep.subr.mxu0 0.0
        %2120 = vmatpush2.msra.mxu0 0.0
        %2121 = vmatprep.mubr.f32.mxu0 0.0
        %2122 = vmatmul.mubr.f32.gmra.mxu0 %v2052
        %v2123 = vpop.f32.mrf.mxu0
        %v2124 = vadd.f32 0.0, %v2123
        %v2125 = vpop.f32.mrf.mxu0
        %2126 = vmatprep.mubr.f32.mxu0 0.0
        %2127 = vmatmul.mubr.f32.gmra.mxu0 %v2055
        %v2128 = vpop.f32.mrf.mxu0
        %v2129 = vadd.f32 0.0, %v2128
        %v2130 = vpop.f32.mrf.mxu0
        %2131 = vdwg.mxu0
        %v2132 = vld [vmem:[#allocation8] sm:$0xff]
        %2133 = vrot.lane.b32.xlu0 %v460, 120
        %v2134 = vpop.permute.xlu0 %2133
        %2135 = vrot.lane.b32.xlu0 %v465, 120
        %v2136 = vpop.permute.xlu0 %2135
        %2137 = vrot.lane.b32.xlu0 %v460, 88
        %v2138 = vpop.permute.xlu0 %2137
        %2139 = vrot.lane.b32.xlu0 %v465, 88
        %v2140 = vpop.permute.xlu0 %2139
        %v2141 = vsel %vm552, %v2134, 0
        %v2143 = vsel %vm552, %v2136, 0
        %v2145 = vsel %vm552, %v2138, 0
        %v2147 = vsel %vm552, %v2140, 0
        %2149 = vmatprep.subr.mxu0 0.0
        %2150 = vmatpush1.xpose.msra.mxu0 0.0
        %2151 = vmatprep.subr.mxu0 0.0
        %2152 = vmatpush1.xpose.msra.mxu0 0.0
        %2153 = vmatprep.subr.mxu0 0.0
        %2154 = vmatpush1.xpose.msra.mxu0 0.0
        %2155 = vmatprep.subr.mxu0 0.0
        %2156 = vmatpush1.xpose.msra.mxu0 0.0
        %2157 = vmatprep.subr.mxu0 0.0
        %2158 = vmatpush1.xpose.msra.mxu0 0.0
        %2159 = vmatprep.subr.mxu0 0.0
        %2160 = vmatpush1.xpose.msra.mxu0 0.0
        %2161 = vmatprep.subr.mxu0 0.0
        %2162 = vmatpush1.xpose.msra.mxu0 0.0
        %2163 = vmatprep.subr.mxu0 0.0
        %2164 = vmatpush1.xpose.msra.mxu0 0.0
        %2165 = vmatprep.subr.mxu0 0.0
        %2166 = vmatpush1.xpose.msra.mxu0 0.0
        %2167 = vmatprep.subr.mxu0 0.0
        %2168 = vmatpush1.xpose.msra.mxu0 0.0
        %2169 = vmatprep.subr.mxu0 0.0
        %2170 = vmatpush1.xpose.msra.mxu0 0.0
        %2171 = vmatprep.subr.mxu0 0.0
        %2172 = vmatpush1.xpose.msra.mxu0 0.0
        %2173 = vmatprep.subr.mxu0 0.0
        %2174 = vmatpush1.xpose.msra.mxu0 0.0
        %2175 = vmatprep.subr.mxu0 0.0
        %2176 = vmatpush1.xpose.msra.mxu0 0.0
        %2177 = vmatprep.subr.mxu0 0.0
        %2178 = vmatpush1.xpose.msra.mxu0 %v2147
        %2179 = vmatprep.subr.mxu0 0.0
        %2180 = vmatpush1.xpose.msra.mxu0 %v2145
        %2181 = vmatprep.subr.mxu0 0.0
        %2182 = vmatpush2.xpose.msra.mxu0 0.0
        %2183 = vmatprep.subr.mxu0 0.0
        %2184 = vmatpush2.xpose.msra.mxu0 0.0
        %2185 = vmatprep.subr.mxu0 0.0
        %2186 = vmatpush2.xpose.msra.mxu0 0.0
        %2187 = vmatprep.subr.mxu0 0.0
        %2188 = vmatpush2.xpose.msra.mxu0 0.0
        %2189 = vmatprep.subr.mxu0 0.0
        %2190 = vmatpush2.xpose.msra.mxu0 0.0
        %2191 = vmatprep.subr.mxu0 0.0
        %2192 = vmatpush2.xpose.msra.mxu0 0.0
        %2193 = vmatprep.subr.mxu0 0.0
        %2194 = vmatpush2.xpose.msra.mxu0 0.0
        %2195 = vmatprep.subr.mxu0 0.0
        %2196 = vmatpush2.xpose.msra.mxu0 0.0
        %2197 = vmatprep.subr.mxu0 0.0
        %2198 = vmatpush2.xpose.msra.mxu0 0.0
        %2199 = vmatprep.subr.mxu0 0.0
        %2200 = vmatpush2.xpose.msra.mxu0 0.0
        %2201 = vmatprep.subr.mxu0 0.0
        %2202 = vmatpush2.xpose.msra.mxu0 0.0
        %2203 = vmatprep.subr.mxu0 0.0
        %2204 = vmatpush2.xpose.msra.mxu0 0.0
        %2205 = vmatprep.subr.mxu0 0.0
        %2206 = vmatpush2.xpose.msra.mxu0 0.0
        %2207 = vmatprep.subr.mxu0 0.0
        %2208 = vmatpush2.xpose.msra.mxu0 0.0
        %2209 = vmatprep.subr.mxu0 0.0
        %2210 = vmatpush2.xpose.msra.mxu0 0.0
        %2211 = vmatprep.subr.mxu0 0.0
        %2212 = vmatpush2.xpose.msra.mxu0 0.0
        %2213 = vmatprep.mubr.f32.mxu0 0.0
        %2214 = vmatmul.mubr.f32.gmra.mxu0 %v2141
        %v2215 = vpop.f32.mrf.mxu0
        %v2216 = vadd.f32 %v540, %v2215
        %v2217 = vpop.f32.mrf.mxu0
        %2218 = vmatprep.mubr.f32.mxu0 0.0
        %2219 = vmatmul.mubr.f32.gmra.mxu0 %v2143
        %v2220 = vpop.f32.mrf.mxu0
        %v2221 = vadd.f32 %v541, %v2220
        %v2222 = vpop.f32.mrf.mxu0
        %2223 = vdwg.mxu0
        %2224 = vrot.lane.b32.xlu0 %v470, 120
        %v2225 = vpop.permute.xlu0 %2224
        %2226 = vrot.lane.b32.xlu0 %v475, 120
        %v2227 = vpop.permute.xlu0 %2226
        %2228 = vrot.lane.b32.xlu0 %v470, 88
        %v2229 = vpop.permute.xlu0 %2228
        %2230 = vrot.lane.b32.xlu0 %v475, 88
        %v2231 = vpop.permute.xlu0 %2230
        %v2232 = vsel %vm552, %v2225, 0
        %v2234 = vsel %vm552, %v2227, 0
        %v2236 = vsel %vm552, %v2229, 0
        %v2238 = vsel %vm552, %v2231, 0
        %2240 = vmatprep.subr.mxu0 0.0
        %2241 = vmatpush1.xpose.msra.mxu0 0.0
        %2242 = vmatprep.subr.mxu0 0.0
        %2243 = vmatpush1.xpose.msra.mxu0 0.0
        %2244 = vmatprep.subr.mxu0 0.0
        %2245 = vmatpush1.xpose.msra.mxu0 0.0
        %2246 = vmatprep.subr.mxu0 0.0
        %2247 = vmatpush1.xpose.msra.mxu0 0.0
        %2248 = vmatprep.subr.mxu0 0.0
        %2249 = vmatpush1.xpose.msra.mxu0 0.0
        %2250 = vmatprep.subr.mxu0 0.0
        %2251 = vmatpush1.xpose.msra.mxu0 0.0
        %2252 = vmatprep.subr.mxu0 0.0
        %2253 = vmatpush1.xpose.msra.mxu0 0.0
        %2254 = vmatprep.subr.mxu0 0.0
        %2255 = vmatpush1.xpose.msra.mxu0 0.0
        %2256 = vmatprep.subr.mxu0 0.0
        %2257 = vmatpush1.xpose.msra.mxu0 0.0
        %2258 = vmatprep.subr.mxu0 0.0
        %2259 = vmatpush1.xpose.msra.mxu0 0.0
        %2260 = vmatprep.subr.mxu0 0.0
        %2261 = vmatpush1.xpose.msra.mxu0 0.0
        %2262 = vmatprep.subr.mxu0 0.0
        %2263 = vmatpush1.xpose.msra.mxu0 0.0
        %2264 = vmatprep.subr.mxu0 0.0
        %2265 = vmatpush1.xpose.msra.mxu0 0.0
        %2266 = vmatprep.subr.mxu0 0.0
        %2267 = vmatpush1.xpose.msra.mxu0 0.0
        %2268 = vmatprep.subr.mxu0 0.0
        %2269 = vmatpush1.xpose.msra.mxu0 %v2238
        %2270 = vmatprep.subr.mxu0 0.0
        %2271 = vmatpush1.xpose.msra.mxu0 %v2236
        %2272 = vmatprep.subr.mxu0 0.0
        %2273 = vmatpush2.xpose.msra.mxu0 0.0
        %2274 = vmatprep.subr.mxu0 0.0
        %2275 = vmatpush2.xpose.msra.mxu0 0.0
        %2276 = vmatprep.subr.mxu0 0.0
        %2277 = vmatpush2.xpose.msra.mxu0 0.0
        %2278 = vmatprep.subr.mxu0 0.0
        %2279 = vmatpush2.xpose.msra.mxu0 0.0
        %2280 = vmatprep.subr.mxu0 0.0
        %2281 = vmatpush2.xpose.msra.mxu0 0.0
        %2282 = vmatprep.subr.mxu0 0.0
        %2283 = vmatpush2.xpose.msra.mxu0 0.0
        %2284 = vmatprep.subr.mxu0 0.0
        %2285 = vmatpush2.xpose.msra.mxu0 0.0
        %2286 = vmatprep.subr.mxu0 0.0
        %2287 = vmatpush2.xpose.msra.mxu0 0.0
        %2288 = vmatprep.subr.mxu0 0.0
        %2289 = vmatpush2.xpose.msra.mxu0 0.0
        %2290 = vmatprep.subr.mxu0 0.0
        %2291 = vmatpush2.xpose.msra.mxu0 0.0
        %2292 = vmatprep.subr.mxu0 0.0
        %2293 = vmatpush2.xpose.msra.mxu0 0.0
        %2294 = vmatprep.subr.mxu0 0.0
        %2295 = vmatpush2.xpose.msra.mxu0 0.0
        %2296 = vmatprep.subr.mxu0 0.0
        %2297 = vmatpush2.xpose.msra.mxu0 0.0
        %2298 = vmatprep.subr.mxu0 0.0
        %2299 = vmatpush2.xpose.msra.mxu0 0.0
        %2300 = vmatprep.subr.mxu0 0.0
        %2301 = vmatpush2.xpose.msra.mxu0 0.0
        %2302 = vmatprep.subr.mxu0 0.0
        %2303 = vmatpush2.xpose.msra.mxu0 0.0
        %2304 = vmatprep.mubr.f32.mxu0 0.0
        %2305 = vmatmul.mubr.f32.gmra.mxu0 %v2232
        %v2306 = vpop.f32.mrf.mxu0
        %v2307 = vadd.f32 %v540, %v2306
        %v2308 = vpop.f32.mrf.mxu0
        %2309 = vmatprep.mubr.f32.mxu0 0.0
        %2310 = vmatmul.mubr.f32.gmra.mxu0 %v2234
        %v2311 = vpop.f32.mrf.mxu0
        %v2312 = vadd.f32 %v541, %v2311
        %v2313 = vpop.f32.mrf.mxu0
        %2314 = vdwg.mxu0
        %2315 = vrot.lane.b32.xlu0 %v480, 120
        %v2316 = vpop.permute.xlu0 %2315
        %2317 = vrot.lane.b32.xlu0 %v485, 120
        %v2318 = vpop.permute.xlu0 %2317
        %2319 = vrot.lane.b32.xlu0 %v480, 88
        %v2320 = vpop.permute.xlu0 %2319
        %2321 = vrot.lane.b32.xlu0 %v485, 88
        %v2322 = vpop.permute.xlu0 %2321
        %v2323 = vsel %vm552, %v2316, 0
        %v2325 = vsel %vm552, %v2318, 0
        %v2327 = vsel %vm552, %v2320, 0
        %v2329 = vsel %vm552, %v2322, 0
        %2331 = vmatprep.subr.mxu0 0.0
        %2332 = vmatpush1.xpose.msra.mxu0 0.0
        %2333 = vmatprep.subr.mxu0 0.0
        %2334 = vmatpush1.xpose.msra.mxu0 0.0
        %2335 = vmatprep.subr.mxu0 0.0
        %2336 = vmatpush1.xpose.msra.mxu0 0.0
        %2337 = vmatprep.subr.mxu0 0.0
        %2338 = vmatpush1.xpose.msra.mxu0 0.0
        %2339 = vmatprep.subr.mxu0 0.0
        %2340 = vmatpush1.xpose.msra.mxu0 0.0
        %2341 = vmatprep.subr.mxu0 0.0
        %2342 = vmatpush1.xpose.msra.mxu0 0.0
        %2343 = vmatprep.subr.mxu0 0.0
        %2344 = vmatpush1.xpose.msra.mxu0 0.0
        %2345 = vmatprep.subr.mxu0 0.0
        %2346 = vmatpush1.xpose.msra.mxu0 0.0
        %2347 = vmatprep.subr.mxu0 0.0
        %2348 = vmatpush1.xpose.msra.mxu0 0.0
        %2349 = vmatprep.subr.mxu0 0.0
        %2350 = vmatpush1.xpose.msra.mxu0 0.0
        %2351 = vmatprep.subr.mxu0 0.0
        %2352 = vmatpush1.xpose.msra.mxu0 0.0
        %2353 = vmatprep.subr.mxu0 0.0
        %2354 = vmatpush1.xpose.msra.mxu0 0.0
        %2355 = vmatprep.subr.mxu0 0.0
        %2356 = vmatpush1.xpose.msra.mxu0 0.0
        %2357 = vmatprep.subr.mxu0 0.0
        %2358 = vmatpush1.xpose.msra.mxu0 0.0
        %2359 = vmatprep.subr.mxu0 0.0
        %2360 = vmatpush1.xpose.msra.mxu0 %v2329
        %2361 = vmatprep.subr.mxu0 0.0
        %2362 = vmatpush1.xpose.msra.mxu0 %v2327
        %2363 = vmatprep.subr.mxu0 0.0
        %2364 = vmatpush2.xpose.msra.mxu0 0.0
        %2365 = vmatprep.subr.mxu0 0.0
        %2366 = vmatpush2.xpose.msra.mxu0 0.0
        %2367 = vmatprep.subr.mxu0 0.0
        %2368 = vmatpush2.xpose.msra.mxu0 0.0
        %2369 = vmatprep.subr.mxu0 0.0
        %2370 = vmatpush2.xpose.msra.mxu0 0.0
        %2371 = vmatprep.subr.mxu0 0.0
        %2372 = vmatpush2.xpose.msra.mxu0 0.0
        %2373 = vmatprep.subr.mxu0 0.0
        %2374 = vmatpush2.xpose.msra.mxu0 0.0
        %2375 = vmatprep.subr.mxu0 0.0
        %2376 = vmatpush2.xpose.msra.mxu0 0.0
        %2377 = vmatprep.subr.mxu0 0.0
        %2378 = vmatpush2.xpose.msra.mxu0 0.0
        %2379 = vmatprep.subr.mxu0 0.0
        %2380 = vmatpush2.xpose.msra.mxu0 0.0
        %2381 = vmatprep.subr.mxu0 0.0
        %2382 = vmatpush2.xpose.msra.mxu0 0.0
        %2383 = vmatprep.subr.mxu0 0.0
        %2384 = vmatpush2.xpose.msra.mxu0 0.0
        %2385 = vmatprep.subr.mxu0 0.0
        %2386 = vmatpush2.xpose.msra.mxu0 0.0
        %2387 = vmatprep.subr.mxu0 0.0
        %2388 = vmatpush2.xpose.msra.mxu0 0.0
        %2389 = vmatprep.subr.mxu0 0.0
        %2390 = vmatpush2.xpose.msra.mxu0 0.0
        %2391 = vmatprep.subr.mxu0 0.0
        %2392 = vmatpush2.xpose.msra.mxu0 0.0
        %2393 = vmatprep.subr.mxu0 0.0
        %2394 = vmatpush2.xpose.msra.mxu0 0.0
        %2395 = vmatprep.mubr.f32.mxu0 0.0
        %2396 = vmatmul.mubr.f32.gmra.mxu0 %v2323
        %v2397 = vpop.f32.mrf.mxu0
        %v2398 = vadd.f32 %v540, %v2397
        %v2399 = vpop.f32.mrf.mxu0
        %2400 = vmatprep.mubr.f32.mxu0 0.0
        %2401 = vmatmul.mubr.f32.gmra.mxu0 %v2325
        %v2402 = vpop.f32.mrf.mxu0
        %v2403 = vadd.f32 %v541, %v2402
        %v2404 = vpop.f32.mrf.mxu0
        %2405 = vdwg.mxu0
        %2406 = vrot.lane.b32.xlu0 %v490, 120
        %v2407 = vpop.permute.xlu0 %2406
        %2408 = vrot.lane.b32.xlu0 %v495, 120
        %v2409 = vpop.permute.xlu0 %2408
        %2410 = vrot.lane.b32.xlu0 %v490, 88
        %v2411 = vpop.permute.xlu0 %2410
        %2412 = vrot.lane.b32.xlu0 %v495, 88
        %v2413 = vpop.permute.xlu0 %2412
        %v2414 = vsel %vm552, %v2407, 0
        %v2416 = vsel %vm552, %v2409, 0
        %v2418 = vsel %vm552, %v2411, 0
        %v2420 = vsel %vm552, %v2413, 0
        %2422 = vmatprep.subr.mxu0 0.0
        %2423 = vmatpush1.xpose.msra.mxu0 0.0
        %2424 = vmatprep.subr.mxu0 0.0
        %2425 = vmatpush1.xpose.msra.mxu0 0.0
        %2426 = vmatprep.subr.mxu0 0.0
        %2427 = vmatpush1.xpose.msra.mxu0 0.0
        %2428 = vmatprep.subr.mxu0 0.0
        %2429 = vmatpush1.xpose.msra.mxu0 0.0
        %2430 = vmatprep.subr.mxu0 0.0
        %2431 = vmatpush1.xpose.msra.mxu0 0.0
        %2432 = vmatprep.subr.mxu0 0.0
        %2433 = vmatpush1.xpose.msra.mxu0 0.0
        %2434 = vmatprep.subr.mxu0 0.0
        %2435 = vmatpush1.xpose.msra.mxu0 0.0
        %2436 = vmatprep.subr.mxu0 0.0
        %2437 = vmatpush1.xpose.msra.mxu0 0.0
        %2438 = vmatprep.subr.mxu0 0.0
        %2439 = vmatpush1.xpose.msra.mxu0 0.0
        %2440 = vmatprep.subr.mxu0 0.0
        %2441 = vmatpush1.xpose.msra.mxu0 0.0
        %2442 = vmatprep.subr.mxu0 0.0
        %2443 = vmatpush1.xpose.msra.mxu0 0.0
        %2444 = vmatprep.subr.mxu0 0.0
        %2445 = vmatpush1.xpose.msra.mxu0 0.0
        %2446 = vmatprep.subr.mxu0 0.0
        %2447 = vmatpush1.xpose.msra.mxu0 0.0
        %2448 = vmatprep.subr.mxu0 0.0
        %2449 = vmatpush1.xpose.msra.mxu0 0.0
        %2450 = vmatprep.subr.mxu0 0.0
        %2451 = vmatpush1.xpose.msra.mxu0 %v2420
        %2452 = vmatprep.subr.mxu0 0.0
        %2453 = vmatpush1.xpose.msra.mxu0 %v2418
        %2454 = vmatprep.subr.mxu0 0.0
        %2455 = vmatpush2.xpose.msra.mxu0 0.0
        %2456 = vmatprep.subr.mxu0 0.0
        %2457 = vmatpush2.xpose.msra.mxu0 0.0
        %2458 = vmatprep.subr.mxu0 0.0
        %2459 = vmatpush2.xpose.msra.mxu0 0.0
        %2460 = vmatprep.subr.mxu0 0.0
        %2461 = vmatpush2.xpose.msra.mxu0 0.0
        %2462 = vmatprep.subr.mxu0 0.0
        %2463 = vmatpush2.xpose.msra.mxu0 0.0
        %2464 = vmatprep.subr.mxu0 0.0
        %2465 = vmatpush2.xpose.msra.mxu0 0.0
        %2466 = vmatprep.subr.mxu0 0.0
        %2467 = vmatpush2.xpose.msra.mxu0 0.0
        %2468 = vmatprep.subr.mxu0 0.0
        %2469 = vmatpush2.xpose.msra.mxu0 0.0
        %2470 = vmatprep.subr.mxu0 0.0
        %2471 = vmatpush2.xpose.msra.mxu0 0.0
        %2472 = vmatprep.subr.mxu0 0.0
        %2473 = vmatpush2.xpose.msra.mxu0 0.0
        %2474 = vmatprep.subr.mxu0 0.0
        %2475 = vmatpush2.xpose.msra.mxu0 0.0
        %2476 = vmatprep.subr.mxu0 0.0
        %2477 = vmatpush2.xpose.msra.mxu0 0.0
        %2478 = vmatprep.subr.mxu0 0.0
        %2479 = vmatpush2.xpose.msra.mxu0 0.0
        %2480 = vmatprep.subr.mxu0 0.0
        %2481 = vmatpush2.xpose.msra.mxu0 0.0
        %2482 = vmatprep.subr.mxu0 0.0
        %2483 = vmatpush2.xpose.msra.mxu0 0.0
        %2484 = vmatprep.subr.mxu0 0.0
        %2485 = vmatpush2.xpose.msra.mxu0 0.0
        %2486 = vmatprep.mubr.f32.mxu0 0.0
        %2487 = vmatmul.mubr.f32.gmra.mxu0 %v2414
        %v2488 = vpop.f32.mrf.mxu0
        %v2489 = vadd.f32 %v540, %v2488
        %v2490 = vpop.f32.mrf.mxu0
        %2491 = vmatprep.mubr.f32.mxu0 0.0
        %2492 = vmatmul.mubr.f32.gmra.mxu0 %v2416
        %v2493 = vpop.f32.mrf.mxu0
        %v2494 = vadd.f32 %v541, %v2493
        %v2495 = vpop.f32.mrf.mxu0
        %2496 = vdwg.mxu0
        %2497 = vrot.lane.b32.xlu0 %v500, 120
        %v2498 = vpop.permute.xlu0 %2497
        %2499 = vrot.lane.b32.xlu0 %v505, 120
        %v2500 = vpop.permute.xlu0 %2499
        %2501 = vrot.lane.b32.xlu0 %v500, 88
        %v2502 = vpop.permute.xlu0 %2501
        %2503 = vrot.lane.b32.xlu0 %v505, 88
        %v2504 = vpop.permute.xlu0 %2503
        %v2505 = vsel %vm552, %v2498, 0
        %v2507 = vsel %vm552, %v2500, 0
        %v2509 = vsel %vm552, %v2502, 0
        %v2511 = vsel %vm552, %v2504, 0
        %2513 = vmatprep.subr.mxu0 0.0
        %2514 = vmatpush1.xpose.msra.mxu0 0.0
        %2515 = vmatprep.subr.mxu0 0.0
        %2516 = vmatpush1.xpose.msra.mxu0 0.0
        %2517 = vmatprep.subr.mxu0 0.0
        %2518 = vmatpush1.xpose.msra.mxu0 0.0
        %2519 = vmatprep.subr.mxu0 0.0
        %2520 = vmatpush1.xpose.msra.mxu0 0.0
        %2521 = vmatprep.subr.mxu0 0.0
        %2522 = vmatpush1.xpose.msra.mxu0 0.0
        %2523 = vmatprep.subr.mxu0 0.0
        %2524 = vmatpush1.xpose.msra.mxu0 0.0
        %2525 = vmatprep.subr.mxu0 0.0
        %2526 = vmatpush1.xpose.msra.mxu0 0.0
        %2527 = vmatprep.subr.mxu0 0.0
        %2528 = vmatpush1.xpose.msra.mxu0 0.0
        %2529 = vmatprep.subr.mxu0 0.0
        %2530 = vmatpush1.xpose.msra.mxu0 0.0
        %2531 = vmatprep.subr.mxu0 0.0
        %2532 = vmatpush1.xpose.msra.mxu0 0.0
        %2533 = vmatprep.subr.mxu0 0.0
        %2534 = vmatpush1.xpose.msra.mxu0 0.0
        %2535 = vmatprep.subr.mxu0 0.0
        %2536 = vmatpush1.xpose.msra.mxu0 0.0
        %2537 = vmatprep.subr.mxu0 0.0
        %2538 = vmatpush1.xpose.msra.mxu0 0.0
        %2539 = vmatprep.subr.mxu0 0.0
        %2540 = vmatpush1.xpose.msra.mxu0 0.0
        %2541 = vmatprep.subr.mxu0 0.0
        %2542 = vmatpush1.xpose.msra.mxu0 %v2511
        %2543 = vmatprep.subr.mxu0 0.0
        %2544 = vmatpush1.xpose.msra.mxu0 %v2509
        %2545 = vmatprep.subr.mxu0 0.0
        %2546 = vmatpush2.xpose.msra.mxu0 0.0
        %2547 = vmatprep.subr.mxu0 0.0
        %2548 = vmatpush2.xpose.msra.mxu0 0.0
        %2549 = vmatprep.subr.mxu0 0.0
        %2550 = vmatpush2.xpose.msra.mxu0 0.0
        %2551 = vmatprep.subr.mxu0 0.0
        %2552 = vmatpush2.xpose.msra.mxu0 0.0
        %2553 = vmatprep.subr.mxu0 0.0
        %2554 = vmatpush2.xpose.msra.mxu0 0.0
        %2555 = vmatprep.subr.mxu0 0.0
        %2556 = vmatpush2.xpose.msra.mxu0 0.0
        %2557 = vmatprep.subr.mxu0 0.0
        %2558 = vmatpush2.xpose.msra.mxu0 0.0
        %2559 = vmatprep.subr.mxu0 0.0
        %2560 = vmatpush2.xpose.msra.mxu0 0.0
        %2561 = vmatprep.subr.mxu0 0.0
        %2562 = vmatpush2.xpose.msra.mxu0 0.0
        %2563 = vmatprep.subr.mxu0 0.0
        %2564 = vmatpush2.xpose.msra.mxu0 0.0
        %2565 = vmatprep.subr.mxu0 0.0
        %2566 = vmatpush2.xpose.msra.mxu0 0.0
        %2567 = vmatprep.subr.mxu0 0.0
        %2568 = vmatpush2.xpose.msra.mxu0 0.0
        %2569 = vmatprep.subr.mxu0 0.0
        %2570 = vmatpush2.xpose.msra.mxu0 0.0
        %2571 = vmatprep.subr.mxu0 0.0
        %2572 = vmatpush2.xpose.msra.mxu0 0.0
        %2573 = vmatprep.subr.mxu0 0.0
        %2574 = vmatpush2.xpose.msra.mxu0 0.0
        %2575 = vmatprep.subr.mxu0 0.0
        %2576 = vmatpush2.xpose.msra.mxu0 0.0
        %2577 = vmatprep.mubr.f32.mxu0 0.0
        %2578 = vmatmul.mubr.f32.gmra.mxu0 %v2505
        %v2579 = vpop.f32.mrf.mxu0
        %v2580 = vadd.f32 %v540, %v2579
        %v2581 = vpop.f32.mrf.mxu0
        %2582 = vmatprep.mubr.f32.mxu0 0.0
        %2583 = vmatmul.mubr.f32.gmra.mxu0 %v2507
        %v2584 = vpop.f32.mrf.mxu0
        %v2585 = vadd.f32 %v541, %v2584
        %v2586 = vpop.f32.mrf.mxu0
        %2587 = vdwg.mxu0
        %2588 = vrot.lane.b32.xlu0 %v510, 120
        %v2589 = vpop.permute.xlu0 %2588
        %2590 = vrot.lane.b32.xlu0 %v515, 120
        %v2591 = vpop.permute.xlu0 %2590
        %2592 = vrot.lane.b32.xlu0 %v510, 88
        %v2593 = vpop.permute.xlu0 %2592
        %2594 = vrot.lane.b32.xlu0 %v515, 88
        %v2595 = vpop.permute.xlu0 %2594
        %v2596 = vsel %vm552, %v2589, 0
        %v2598 = vsel %vm552, %v2591, 0
        %v2600 = vsel %vm552, %v2593, 0
        %v2602 = vsel %vm552, %v2595, 0
        %2604 = vmatprep.subr.mxu0 0.0
        %2605 = vmatpush1.xpose.msra.mxu0 0.0
        %2606 = vmatprep.subr.mxu0 0.0
        %2607 = vmatpush1.xpose.msra.mxu0 0.0
        %2608 = vmatprep.subr.mxu0 0.0
        %2609 = vmatpush1.xpose.msra.mxu0 0.0
        %2610 = vmatprep.subr.mxu0 0.0
        %2611 = vmatpush1.xpose.msra.mxu0 0.0
        %2612 = vmatprep.subr.mxu0 0.0
        %2613 = vmatpush1.xpose.msra.mxu0 0.0
        %2614 = vmatprep.subr.mxu0 0.0
        %2615 = vmatpush1.xpose.msra.mxu0 0.0
        %2616 = vmatprep.subr.mxu0 0.0
        %2617 = vmatpush1.xpose.msra.mxu0 0.0
        %2618 = vmatprep.subr.mxu0 0.0
        %2619 = vmatpush1.xpose.msra.mxu0 0.0
        %2620 = vmatprep.subr.mxu0 0.0
        %2621 = vmatpush1.xpose.msra.mxu0 0.0
        %2622 = vmatprep.subr.mxu0 0.0
        %2623 = vmatpush1.xpose.msra.mxu0 0.0
        %2624 = vmatprep.subr.mxu0 0.0
        %2625 = vmatpush1.xpose.msra.mxu0 0.0
        %2626 = vmatprep.subr.mxu0 0.0
        %2627 = vmatpush1.xpose.msra.mxu0 0.0
        %2628 = vmatprep.subr.mxu0 0.0
        %2629 = vmatpush1.xpose.msra.mxu0 0.0
        %2630 = vmatprep.subr.mxu0 0.0
        %2631 = vmatpush1.xpose.msra.mxu0 0.0
        %2632 = vmatprep.subr.mxu0 0.0
        %2633 = vmatpush1.xpose.msra.mxu0 %v2602
        %2634 = vmatprep.subr.mxu0 0.0
        %2635 = vmatpush1.xpose.msra.mxu0 %v2600
        %2636 = vmatprep.subr.mxu0 0.0
        %2637 = vmatpush2.xpose.msra.mxu0 0.0
        %2638 = vmatprep.subr.mxu0 0.0
        %2639 = vmatpush2.xpose.msra.mxu0 0.0
        %2640 = vmatprep.subr.mxu0 0.0
        %2641 = vmatpush2.xpose.msra.mxu0 0.0
        %2642 = vmatprep.subr.mxu0 0.0
        %2643 = vmatpush2.xpose.msra.mxu0 0.0
        %2644 = vmatprep.subr.mxu0 0.0
        %2645 = vmatpush2.xpose.msra.mxu0 0.0
        %2646 = vmatprep.subr.mxu0 0.0
        %2647 = vmatpush2.xpose.msra.mxu0 0.0
        %2648 = vmatprep.subr.mxu0 0.0
        %2649 = vmatpush2.xpose.msra.mxu0 0.0
        %2650 = vmatprep.subr.mxu0 0.0
        %2651 = vmatpush2.xpose.msra.mxu0 0.0
        %2652 = vmatprep.subr.mxu0 0.0
        %2653 = vmatpush2.xpose.msra.mxu0 0.0
        %2654 = vmatprep.subr.mxu0 0.0
        %2655 = vmatpush2.xpose.msra.mxu0 0.0
        %2656 = vmatprep.subr.mxu0 0.0
        %2657 = vmatpush2.xpose.msra.mxu0 0.0
        %2658 = vmatprep.subr.mxu0 0.0
        %2659 = vmatpush2.xpose.msra.mxu0 0.0
        %2660 = vmatprep.subr.mxu0 0.0
        %2661 = vmatpush2.xpose.msra.mxu0 0.0
        %2662 = vmatprep.subr.mxu0 0.0
        %2663 = vmatpush2.xpose.msra.mxu0 0.0
        %2664 = vmatprep.subr.mxu0 0.0
        %2665 = vmatpush2.xpose.msra.mxu0 0.0
        %2666 = vmatprep.subr.mxu0 0.0
        %2667 = vmatpush2.xpose.msra.mxu0 0.0
        %2668 = vmatprep.mubr.f32.mxu0 0.0
        %2669 = vmatmul.mubr.f32.gmra.mxu0 %v2596
        %v2670 = vpop.f32.mrf.mxu0
        %v2671 = vadd.f32 %v540, %v2670
        %v2672 = vpop.f32.mrf.mxu0
        %2673 = vmatprep.mubr.f32.mxu0 0.0
        %2674 = vmatmul.mubr.f32.gmra.mxu0 %v2598
        %v2675 = vpop.f32.mrf.mxu0
        %v2676 = vadd.f32 %v541, %v2675
        %v2677 = vpop.f32.mrf.mxu0
        %2678 = vdwg.mxu0
        %2679 = vrot.lane.b32.xlu0 %v520, 120
        %v2680 = vpop.permute.xlu0 %2679
        %2681 = vrot.lane.b32.xlu0 %v525, 120
        %v2682 = vpop.permute.xlu0 %2681
        %2683 = vrot.lane.b32.xlu0 %v520, 88
        %v2684 = vpop.permute.xlu0 %2683
        %2685 = vrot.lane.b32.xlu0 %v525, 88
        %v2686 = vpop.permute.xlu0 %2685
        %v2687 = vsel %vm552, %v2680, 0
        %v2689 = vsel %vm552, %v2682, 0
        %v2691 = vsel %vm552, %v2684, 0
        %v2693 = vsel %vm552, %v2686, 0
        %2695 = vmatprep.subr.mxu0 0.0
        %2696 = vmatpush1.xpose.msra.mxu0 0.0
        %2697 = vmatprep.subr.mxu0 0.0
        %2698 = vmatpush1.xpose.msra.mxu0 0.0
        %2699 = vmatprep.subr.mxu0 0.0
        %2700 = vmatpush1.xpose.msra.mxu0 0.0
        %2701 = vmatprep.subr.mxu0 0.0
        %2702 = vmatpush1.xpose.msra.mxu0 0.0
        %2703 = vmatprep.subr.mxu0 0.0
        %2704 = vmatpush1.xpose.msra.mxu0 0.0
        %2705 = vmatprep.subr.mxu0 0.0
        %2706 = vmatpush1.xpose.msra.mxu0 0.0
        %2707 = vmatprep.subr.mxu0 0.0
        %2708 = vmatpush1.xpose.msra.mxu0 0.0
        %2709 = vmatprep.subr.mxu0 0.0
        %2710 = vmatpush1.xpose.msra.mxu0 0.0
        %2711 = vmatprep.subr.mxu0 0.0
        %2712 = vmatpush1.xpose.msra.mxu0 0.0
        %2713 = vmatprep.subr.mxu0 0.0
        %2714 = vmatpush1.xpose.msra.mxu0 0.0
        %2715 = vmatprep.subr.mxu0 0.0
        %2716 = vmatpush1.xpose.msra.mxu0 0.0
        %2717 = vmatprep.subr.mxu0 0.0
        %2718 = vmatpush1.xpose.msra.mxu0 0.0
        %2719 = vmatprep.subr.mxu0 0.0
        %2720 = vmatpush1.xpose.msra.mxu0 0.0
        %2721 = vmatprep.subr.mxu0 0.0
        %2722 = vmatpush1.xpose.msra.mxu0 0.0
        %2723 = vmatprep.subr.mxu0 0.0
        %2724 = vmatpush1.xpose.msra.mxu0 %v2693
        %2725 = vmatprep.subr.mxu0 0.0
        %2726 = vmatpush1.xpose.msra.mxu0 %v2691
        %2727 = vmatprep.subr.mxu0 0.0
        %2728 = vmatpush2.xpose.msra.mxu0 0.0
        %2729 = vmatprep.subr.mxu0 0.0
        %2730 = vmatpush2.xpose.msra.mxu0 0.0
        %2731 = vmatprep.subr.mxu0 0.0
        %2732 = vmatpush2.xpose.msra.mxu0 0.0
        %2733 = vmatprep.subr.mxu0 0.0
        %2734 = vmatpush2.xpose.msra.mxu0 0.0
        %2735 = vmatprep.subr.mxu0 0.0
        %2736 = vmatpush2.xpose.msra.mxu0 0.0
        %2737 = vmatprep.subr.mxu0 0.0
        %2738 = vmatpush2.xpose.msra.mxu0 0.0
        %2739 = vmatprep.subr.mxu0 0.0
        %2740 = vmatpush2.xpose.msra.mxu0 0.0
        %2741 = vmatprep.subr.mxu0 0.0
        %2742 = vmatpush2.xpose.msra.mxu0 0.0
        %2743 = vmatprep.subr.mxu0 0.0
        %2744 = vmatpush2.xpose.msra.mxu0 0.0
        %2745 = vmatprep.subr.mxu0 0.0
        %2746 = vmatpush2.xpose.msra.mxu0 0.0
        %2747 = vmatprep.subr.mxu0 0.0
        %2748 = vmatpush2.xpose.msra.mxu0 0.0
        %2749 = vmatprep.subr.mxu0 0.0
        %2750 = vmatpush2.xpose.msra.mxu0 0.0
        %2751 = vmatprep.subr.mxu0 0.0
        %2752 = vmatpush2.xpose.msra.mxu0 0.0
        %2753 = vmatprep.subr.mxu0 0.0
        %2754 = vmatpush2.xpose.msra.mxu0 0.0
        %2755 = vmatprep.subr.mxu0 0.0
        %2756 = vmatpush2.xpose.msra.mxu0 0.0
        %2757 = vmatprep.subr.mxu0 0.0
        %2758 = vmatpush2.xpose.msra.mxu0 0.0
        %2759 = vmatprep.mubr.f32.mxu0 0.0
        %2760 = vmatmul.mubr.f32.gmra.mxu0 %v2687
        %v2761 = vpop.f32.mrf.mxu0
        %v2762 = vadd.f32 %v540, %v2761
        %v2763 = vpop.f32.mrf.mxu0
        %2764 = vmatprep.mubr.f32.mxu0 0.0
        %2765 = vmatmul.mubr.f32.gmra.mxu0 %v2689
        %v2766 = vpop.f32.mrf.mxu0
        %v2767 = vadd.f32 %v541, %v2766
        %v2768 = vpop.f32.mrf.mxu0
        %2769 = vdwg.mxu0
        %2770 = vrot.lane.b32.xlu0 %v530, 120
        %v2771 = vpop.permute.xlu0 %2770
        %2772 = vrot.lane.b32.xlu0 %v535, 120
        %v2773 = vpop.permute.xlu0 %2772
        %2774 = vrot.lane.b32.xlu0 %v530, 88
        %v2775 = vpop.permute.xlu0 %2774
        %2776 = vrot.lane.b32.xlu0 %v535, 88
        %v2777 = vpop.permute.xlu0 %2776
        %v2778 = vsel %vm552, %v2771, 0
        %v2780 = vsel %vm552, %v2773, 0
        %v2782 = vsel %vm552, %v2775, 0
        %v2784 = vsel %vm552, %v2777, 0
        %2786 = vmatprep.subr.mxu0 0.0
        %2787 = vmatpush1.xpose.msra.mxu0 0.0
        %2788 = vmatprep.subr.mxu0 0.0
        %2789 = vmatpush1.xpose.msra.mxu0 0.0
        %2790 = vmatprep.subr.mxu0 0.0
        %2791 = vmatpush1.xpose.msra.mxu0 0.0
        %2792 = vmatprep.subr.mxu0 0.0
        %2793 = vmatpush1.xpose.msra.mxu0 0.0
        %2794 = vmatprep.subr.mxu0 0.0
        %2795 = vmatpush1.xpose.msra.mxu0 0.0
        %2796 = vmatprep.subr.mxu0 0.0
        %2797 = vmatpush1.xpose.msra.mxu0 0.0
        %2798 = vmatprep.subr.mxu0 0.0
        %2799 = vmatpush1.xpose.msra.mxu0 0.0
        %2800 = vmatprep.subr.mxu0 0.0
        %2801 = vmatpush1.xpose.msra.mxu0 0.0
        %2802 = vmatprep.subr.mxu0 0.0
        %2803 = vmatpush1.xpose.msra.mxu0 0.0
        %2804 = vmatprep.subr.mxu0 0.0
        %2805 = vmatpush1.xpose.msra.mxu0 0.0
        %2806 = vmatprep.subr.mxu0 0.0
        %2807 = vmatpush1.xpose.msra.mxu0 0.0
        %2808 = vmatprep.subr.mxu0 0.0
        %2809 = vmatpush1.xpose.msra.mxu0 0.0
        %2810 = vmatprep.subr.mxu0 0.0
        %2811 = vmatpush1.xpose.msra.mxu0 0.0
        %2812 = vmatprep.subr.mxu0 0.0
        %2813 = vmatpush1.xpose.msra.mxu0 0.0
        %2814 = vmatprep.subr.mxu0 0.0
        %2815 = vmatpush1.xpose.msra.mxu0 %v2784
        %2816 = vmatprep.subr.mxu0 0.0
        %2817 = vmatpush1.xpose.msra.mxu0 %v2782
        %2818 = vmatprep.subr.mxu0 0.0
        %2819 = vmatpush2.xpose.msra.mxu0 0.0
        %2820 = vmatprep.subr.mxu0 0.0
        %2821 = vmatpush2.xpose.msra.mxu0 0.0
        %2822 = vmatprep.subr.mxu0 0.0
        %2823 = vmatpush2.xpose.msra.mxu0 0.0
        %2824 = vmatprep.subr.mxu0 0.0
        %2825 = vmatpush2.xpose.msra.mxu0 0.0
        %2826 = vmatprep.subr.mxu0 0.0
        %2827 = vmatpush2.xpose.msra.mxu0 0.0
        %2828 = vmatprep.subr.mxu0 0.0
        %2829 = vmatpush2.xpose.msra.mxu0 0.0
        %2830 = vmatprep.subr.mxu0 0.0
        %2831 = vmatpush2.xpose.msra.mxu0 0.0
        %2832 = vmatprep.subr.mxu0 0.0
        %2833 = vmatpush2.xpose.msra.mxu0 0.0
        %2834 = vmatprep.subr.mxu0 0.0
        %2835 = vmatpush2.xpose.msra.mxu0 0.0
        %2836 = vmatprep.subr.mxu0 0.0
        %2837 = vmatpush2.xpose.msra.mxu0 0.0
        %2838 = vmatprep.subr.mxu0 0.0
        %2839 = vmatpush2.xpose.msra.mxu0 0.0
        %2840 = vmatprep.subr.mxu0 0.0
        %2841 = vmatpush2.xpose.msra.mxu0 0.0
        %2842 = vmatprep.subr.mxu0 0.0
        %2843 = vmatpush2.xpose.msra.mxu0 0.0
        %2844 = vmatprep.subr.mxu0 0.0
        %2845 = vmatpush2.xpose.msra.mxu0 0.0
        %2846 = vmatprep.subr.mxu0 0.0
        %2847 = vmatpush2.xpose.msra.mxu0 0.0
        %2848 = vmatprep.subr.mxu0 0.0
        %2849 = vmatpush2.xpose.msra.mxu0 0.0
        %2850 = vmatprep.mubr.f32.mxu0 0.0
        %2851 = vmatmul.mubr.f32.gmra.mxu0 %v2778
        %v2852 = vpop.f32.mrf.mxu0
        %v2853 = vadd.f32 %v540, %v2852
        %v2854 = vpop.f32.mrf.mxu0
        %2855 = vmatprep.mubr.f32.mxu0 0.0
        %2856 = vmatmul.mubr.f32.gmra.mxu0 %v2780
        %v2857 = vpop.f32.mrf.mxu0
        %v2858 = vadd.f32 %v541, %v2857
        %v2859 = vpop.f32.mrf.mxu0
        %2860 = vdwg.mxu0
        %v2861 = vsel %vm1259, %v2216, -inf
        %2862 = vmax.xlane.f32.xlu0 %v2861
        %v2863 = vpop.xlane.xlu0 %2862
        %v2864 = vsel %vm1259, %v2221, -inf
        %2865 = vmax.xlane.f32.xlu0 %v2864
        %v2866 = vpop.xlane.xlu0 %2865
        %v2867 = vsel %vm1259, %v2307, -inf
        %2868 = vmax.xlane.f32.xlu0 %v2867
        %v2869 = vpop.xlane.xlu0 %2868
        %v2870 = vsel %vm1259, %v2312, -inf
        %2871 = vmax.xlane.f32.xlu0 %v2870
        %v2872 = vpop.xlane.xlu0 %2871
        %v2873 = vsel %vm1259, %v2398, -inf
        %2874 = vmax.xlane.f32.xlu0 %v2873
        %v2875 = vpop.xlane.xlu0 %2874
        %v2876 = vsel %vm1259, %v2403, -inf
        %2877 = vmax.xlane.f32.xlu0 %v2876
        %v2878 = vpop.xlane.xlu0 %2877
        %v2879 = vsel %vm1259, %v2489, -inf
        %2880 = vmax.xlane.f32.xlu0 %v2879
        %v2881 = vpop.xlane.xlu0 %2880
        %v2882 = vsel %vm1259, %v2494, -inf
        %2883 = vmax.xlane.f32.xlu0 %v2882
        %v2884 = vpop.xlane.xlu0 %2883
        %v2885 = vsel %vm1259, %v2580, -inf
        %2886 = vmax.xlane.f32.xlu0 %v2885
        %v2887 = vpop.xlane.xlu0 %2886
        %v2888 = vsel %vm1259, %v2585, -inf
        %2889 = vmax.xlane.f32.xlu0 %v2888
        %v2890 = vpop.xlane.xlu0 %2889
        %v2891 = vsel %vm1259, %v2671, -inf
        %2892 = vmax.xlane.f32.xlu0 %v2891
        %v2893 = vpop.xlane.xlu0 %2892
        %v2894 = vsel %vm1259, %v2676, -inf
        %2895 = vmax.xlane.f32.xlu0 %v2894
        %v2896 = vpop.xlane.xlu0 %2895
        %v2897 = vsel %vm1259, %v2762, -inf
        %2898 = vmax.xlane.f32.xlu0 %v2897
        %v2899 = vpop.xlane.xlu0 %2898
        %v2900 = vsel %vm1259, %v2767, -inf
        %2901 = vmax.xlane.f32.xlu0 %v2900
        %v2902 = vpop.xlane.xlu0 %2901
        %v2903 = vsel %vm1259, %v2853, -inf
        %2904 = vmax.xlane.f32.xlu0 %v2903
        %v2905 = vpop.xlane.xlu0 %2904
        %v2906 = vsel %vm1259, %v2858, -inf
        %2907 = vmax.xlane.f32.xlu0 %v2906
        %v2908 = vpop.xlane.xlu0 %2907
        %v2909 = vsub.f32 %v2216, %v2863
        %v2910 = vsub.f32 %v2221, %v2866
        %v2911 = vsub.f32 %v2307, %v2869
        %v2912 = vsub.f32 %v2312, %v2872
        %v2913 = vsub.f32 %v2398, %v2875
        %v2914 = vsub.f32 %v2403, %v2878
        %v2915 = vsub.f32 %v2489, %v2881
        %v2916 = vsub.f32 %v2494, %v2884
        %v2917 = vsub.f32 %v2580, %v2887
        %v2918 = vsub.f32 %v2585, %v2890
        %v2919 = vsub.f32 %v2671, %v2893
        %v2920 = vsub.f32 %v2676, %v2896
        %v2921 = vsub.f32 %v2762, %v2899
        %v2922 = vsub.f32 %v2767, %v2902
        %v2923 = vsub.f32 %v2853, %v2905
        %v2924 = vsub.f32 %v2858, %v2908
        %v2925 = vmul.f32 %v2909, 1.442695
        %v2926 = vpow.pop %v2925
        %v2927 = vmul.f32 %v2910, 1.442695
        %v2928 = vpow.pop %v2927
        %v2929 = vmul.f32 %v2911, 1.442695
        %v2930 = vpow.pop %v2929
        %v2931 = vmul.f32 %v2912, 1.442695
        %v2932 = vpow.pop %v2931
        %v2933 = vmul.f32 %v2913, 1.442695
        %v2934 = vpow.pop %v2933
        %v2935 = vmul.f32 %v2914, 1.442695
        %v2936 = vpow.pop %v2935
        %v2937 = vmul.f32 %v2915, 1.442695
        %v2938 = vpow.pop %v2937
        %v2939 = vmul.f32 %v2916, 1.442695
        %v2940 = vpow.pop %v2939
        %v2941 = vmul.f32 %v2917, 1.442695
        %v2942 = vpow.pop %v2941
        %v2943 = vmul.f32 %v2918, 1.442695
        %v2944 = vpow.pop %v2943
        %v2945 = vmul.f32 %v2919, 1.442695
        %v2946 = vpow.pop %v2945
        %v2947 = vmul.f32 %v2920, 1.442695
        %v2948 = vpow.pop %v2947
        %v2949 = vmul.f32 %v2921, 1.442695
        %v2950 = vpow.pop %v2949
        %v2951 = vmul.f32 %v2922, 1.442695
        %v2952 = vpow.pop %v2951
        %v2953 = vmul.f32 %v2923, 1.442695
        %v2954 = vpow.pop %v2953
        %v2955 = vmul.f32 %v2924, 1.442695
        %v2956 = vpow.pop %v2955
        %v2957 = vsel %vm1259, %v2926, 0.0
        %2958 = vadd.xlane.f32.xlu0 %v2957
        %v2959 = vpop.xlane.xlu0 %2958
        %v2960 = vsel %vm1259, %v2928, 0.0
        %2961 = vadd.xlane.f32.xlu0 %v2960
        %v2962 = vpop.xlane.xlu0 %2961
        %v2963 = vsel %vm1259, %v2930, 0.0
        %2964 = vadd.xlane.f32.xlu0 %v2963
        %v2965 = vpop.xlane.xlu0 %2964
        %v2966 = vsel %vm1259, %v2932, 0.0
        %2967 = vadd.xlane.f32.xlu0 %v2966
        %v2968 = vpop.xlane.xlu0 %2967
        %v2969 = vsel %vm1259, %v2934, 0.0
        %2970 = vadd.xlane.f32.xlu0 %v2969
        %v2971 = vpop.xlane.xlu0 %2970
        %v2972 = vsel %vm1259, %v2936, 0.0
        %2973 = vadd.xlane.f32.xlu0 %v2972
        %v2974 = vpop.xlane.xlu0 %2973
        %v2975 = vsel %vm1259, %v2938, 0.0
        %2976 = vadd.xlane.f32.xlu0 %v2975
        %v2977 = vpop.xlane.xlu0 %2976
        %v2978 = vsel %vm1259, %v2940, 0.0
        %2979 = vadd.xlane.f32.xlu0 %v2978
        %v2980 = vpop.xlane.xlu0 %2979
        %v2981 = vsel %vm1259, %v2942, 0.0
        %2982 = vadd.xlane.f32.xlu0 %v2981
        %v2983 = vpop.xlane.xlu0 %2982
        %v2984 = vsel %vm1259, %v2944, 0.0
        %2985 = vadd.xlane.f32.xlu0 %v2984
        %v2986 = vpop.xlane.xlu0 %2985
        %v2987 = vsel %vm1259, %v2946, 0.0
        %2988 = vadd.xlane.f32.xlu0 %v2987
        %v2989 = vpop.xlane.xlu0 %2988
        %v2990 = vsel %vm1259, %v2948, 0.0
        %2991 = vadd.xlane.f32.xlu0 %v2990
        %v2992 = vpop.xlane.xlu0 %2991
        %v2993 = vsel %vm1259, %v2950, 0.0
        %2994 = vadd.xlane.f32.xlu0 %v2993
        %v2995 = vpop.xlane.xlu0 %2994
        %v2996 = vsel %vm1259, %v2952, 0.0
        %2997 = vadd.xlane.f32.xlu0 %v2996
        %v2998 = vpop.xlane.xlu0 %2997
        %v2999 = vsel %vm1259, %v2954, 0.0
        %3000 = vadd.xlane.f32.xlu0 %v2999
        %v3001 = vpop.xlane.xlu0 %3000
        %v3002 = vsel %vm1259, %v2956, 0.0
        %3003 = vadd.xlane.f32.xlu0 %v3002
        %v3004 = vpop.xlane.xlu0 %3003
        %v3005 = vrcp.pop %v2959
        %v3006 = vrcp.pop %v2962
        %v3007 = vrcp.pop %v2965
        %v3008 = vrcp.pop %v2968
        %v3009 = vrcp.pop %v2971
        %v3010 = vrcp.pop %v2974
        %v3011 = vrcp.pop %v2977
        %v3012 = vrcp.pop %v2980
        %v3013 = vrcp.pop %v2983
        %v3014 = vrcp.pop %v2986
        %v3015 = vrcp.pop %v2989
        %v3016 = vrcp.pop %v2992
        %v3017 = vrcp.pop %v2995
        %v3018 = vrcp.pop %v2998
        %v3019 = vrcp.pop %v3001
        %v3020 = vrcp.pop %v3004
        %v3021 = vmul.f32 %v2926, %v3005
        %v3022 = vmul.f32 %v2928, %v3006
        %v3023 = vmul.f32 %v2930, %v3007
        %v3024 = vmul.f32 %v2932, %v3008
        %v3025 = vmul.f32 %v2934, %v3009
        %v3026 = vmul.f32 %v2936, %v3010
        %v3027 = vmul.f32 %v2938, %v3011
        %v3028 = vmul.f32 %v2940, %v3012
        %v3029 = vmul.f32 %v2942, %v3013
        %v3030 = vmul.f32 %v2944, %v3014
        %v3031 = vmul.f32 %v2946, %v3015
        %v3032 = vmul.f32 %v2948, %v3016
        %v3033 = vmul.f32 %v2950, %v3017
        %v3034 = vmul.f32 %v2952, %v3018
        %v3035 = vmul.f32 %v2954, %v3019
        %v3036 = vmul.f32 %v2956, %v3020
        %3037 = vrot.lane.b32.xlu0 %v460, 56
        %v3038 = vpop.permute.xlu0 %3037
        %3039 = vrot.lane.b32.xlu0 %v465, 56
        %v3040 = vpop.permute.xlu0 %3039
        %v3044 = vsel %vm1259, %v3021, 0
        %v3047 = vsel %vm1259, %v3022, 0
        %3049 = vmatprep.subr.mxu0 0.0
        %3050 = vmatpush1.msra.mxu0 0.0
        %3051 = vmatprep.subr.mxu0 0.0
        %3052 = vmatpush1.msra.mxu0 0.0
        %3053 = vmatprep.subr.mxu0 0.0
        %3054 = vmatpush1.msra.mxu0 0.0
        %3055 = vmatprep.subr.mxu0 0.0
        %3056 = vmatpush1.msra.mxu0 0.0
        %3057 = vmatprep.subr.mxu0 0.0
        %3058 = vmatpush1.msra.mxu0 0.0
        %3059 = vmatprep.subr.mxu0 0.0
        %3060 = vmatpush1.msra.mxu0 0.0
        %3061 = vmatprep.subr.mxu0 0.0
        %3062 = vmatpush1.msra.mxu0 0.0
        %3063 = vmatprep.subr.mxu0 0.0
        %3064 = vmatpush1.msra.mxu0 0.0
        %3065 = vmatprep.subr.mxu0 0.0
        %3066 = vmatpush1.msra.mxu0 0.0
        %3067 = vmatprep.subr.mxu0 0.0
        %3068 = vmatpush1.msra.mxu0 0.0
        %3069 = vmatprep.subr.mxu0 0.0
        %3070 = vmatpush1.msra.mxu0 0.0
        %3071 = vmatprep.subr.mxu0 0.0
        %3072 = vmatpush1.msra.mxu0 0.0
        %3073 = vmatprep.subr.mxu0 0.0
        %3074 = vmatpush1.msra.mxu0 0.0
        %3075 = vmatprep.subr.mxu0 0.0
        %3076 = vmatpush1.msra.mxu0 0.0
        %3077 = vmatprep.subr.mxu0 0.0
        %3078 = vmatpush1.msra.mxu0 %v3040
        %3079 = vmatprep.subr.mxu0 0.0
        %3080 = vmatpush1.msra.mxu0 %v3038
        %3081 = vmatprep.subr.mxu0 0.0
        %3082 = vmatpush2.msra.mxu0 0.0
        %3083 = vmatprep.subr.mxu0 0.0
        %3084 = vmatpush2.msra.mxu0 0.0
        %3085 = vmatprep.subr.mxu0 0.0
        %3086 = vmatpush2.msra.mxu0 0.0
        %3087 = vmatprep.subr.mxu0 0.0
        %3088 = vmatpush2.msra.mxu0 0.0
        %3089 = vmatprep.subr.mxu0 0.0
        %3090 = vmatpush2.msra.mxu0 0.0
        %3091 = vmatprep.subr.mxu0 0.0
        %3092 = vmatpush2.msra.mxu0 0.0
        %3093 = vmatprep.subr.mxu0 0.0
        %3094 = vmatpush2.msra.mxu0 0.0
        %3095 = vmatprep.subr.mxu0 0.0
        %3096 = vmatpush2.msra.mxu0 0.0
        %3097 = vmatprep.subr.mxu0 0.0
        %3098 = vmatpush2.msra.mxu0 0.0
        %3099 = vmatprep.subr.mxu0 0.0
        %3100 = vmatpush2.msra.mxu0 0.0
        %3101 = vmatprep.subr.mxu0 0.0
        %3102 = vmatpush2.msra.mxu0 0.0
        %3103 = vmatprep.subr.mxu0 0.0
        %3104 = vmatpush2.msra.mxu0 0.0
        %3105 = vmatprep.subr.mxu0 0.0
        %3106 = vmatpush2.msra.mxu0 0.0
        %3107 = vmatprep.subr.mxu0 0.0
        %3108 = vmatpush2.msra.mxu0 0.0
        %3109 = vmatprep.subr.mxu0 0.0
        %3110 = vmatpush2.msra.mxu0 0.0
        %3111 = vmatprep.subr.mxu0 0.0
        %3112 = vmatpush2.msra.mxu0 0.0
        %3113 = vmatprep.mubr.f32.mxu0 0.0
        %3114 = vmatmul.mubr.f32.gmra.mxu0 %v3044
        %v3115 = vpop.f32.mrf.mxu0
        %v3116 = vadd.f32 0.0, %v3115
        %v3117 = vpop.f32.mrf.mxu0
        %3118 = vmatprep.mubr.f32.mxu0 0.0
        %3119 = vmatmul.mubr.f32.gmra.mxu0 %v3047
        %v3120 = vpop.f32.mrf.mxu0
        %v3121 = vadd.f32 0.0, %v3120
        %v3122 = vpop.f32.mrf.mxu0
        %3123 = vdwg.mxu0
        %3124 = vrot.lane.b32.xlu0 %v470, 56
        %v3125 = vpop.permute.xlu0 %3124
        %3126 = vrot.lane.b32.xlu0 %v475, 56
        %v3127 = vpop.permute.xlu0 %3126
        %v3131 = vsel %vm1259, %v3023, 0
        %v3134 = vsel %vm1259, %v3024, 0
        %3136 = vmatprep.subr.mxu0 0.0
        %3137 = vmatpush1.msra.mxu0 0.0
        %3138 = vmatprep.subr.mxu0 0.0
        %3139 = vmatpush1.msra.mxu0 0.0
        %3140 = vmatprep.subr.mxu0 0.0
        %3141 = vmatpush1.msra.mxu0 0.0
        %3142 = vmatprep.subr.mxu0 0.0
        %3143 = vmatpush1.msra.mxu0 0.0
        %3144 = vmatprep.subr.mxu0 0.0
        %3145 = vmatpush1.msra.mxu0 0.0
        %3146 = vmatprep.subr.mxu0 0.0
        %3147 = vmatpush1.msra.mxu0 0.0
        %3148 = vmatprep.subr.mxu0 0.0
        %3149 = vmatpush1.msra.mxu0 0.0
        %3150 = vmatprep.subr.mxu0 0.0
        %3151 = vmatpush1.msra.mxu0 0.0
        %3152 = vmatprep.subr.mxu0 0.0
        %3153 = vmatpush1.msra.mxu0 0.0
        %3154 = vmatprep.subr.mxu0 0.0
        %3155 = vmatpush1.msra.mxu0 0.0
        %3156 = vmatprep.subr.mxu0 0.0
        %3157 = vmatpush1.msra.mxu0 0.0
        %3158 = vmatprep.subr.mxu0 0.0
        %3159 = vmatpush1.msra.mxu0 0.0
        %3160 = vmatprep.subr.mxu0 0.0
        %3161 = vmatpush1.msra.mxu0 0.0
        %3162 = vmatprep.subr.mxu0 0.0
        %3163 = vmatpush1.msra.mxu0 0.0
        %3164 = vmatprep.subr.mxu0 0.0
        %3165 = vmatpush1.msra.mxu0 %v3127
        %3166 = vmatprep.subr.mxu0 0.0
        %3167 = vmatpush1.msra.mxu0 %v3125
        %3168 = vmatprep.subr.mxu0 0.0
        %3169 = vmatpush2.msra.mxu0 0.0
        %3170 = vmatprep.subr.mxu0 0.0
        %3171 = vmatpush2.msra.mxu0 0.0
        %3172 = vmatprep.subr.mxu0 0.0
        %3173 = vmatpush2.msra.mxu0 0.0
        %3174 = vmatprep.subr.mxu0 0.0
        %3175 = vmatpush2.msra.mxu0 0.0
        %3176 = vmatprep.subr.mxu0 0.0
        %3177 = vmatpush2.msra.mxu0 0.0
        %3178 = vmatprep.subr.mxu0 0.0
        %3179 = vmatpush2.msra.mxu0 0.0
        %3180 = vmatprep.subr.mxu0 0.0
        %3181 = vmatpush2.msra.mxu0 0.0
        %3182 = vmatprep.subr.mxu0 0.0
        %3183 = vmatpush2.msra.mxu0 0.0
        %3184 = vmatprep.subr.mxu0 0.0
        %3185 = vmatpush2.msra.mxu0 0.0
        %3186 = vmatprep.subr.mxu0 0.0
        %3187 = vmatpush2.msra.mxu0 0.0
        %3188 = vmatprep.subr.mxu0 0.0
        %3189 = vmatpush2.msra.mxu0 0.0
        %3190 = vmatprep.subr.mxu0 0.0
        %3191 = vmatpush2.msra.mxu0 0.0
        %3192 = vmatprep.subr.mxu0 0.0
        %3193 = vmatpush2.msra.mxu0 0.0
        %3194 = vmatprep.subr.mxu0 0.0
        %3195 = vmatpush2.msra.mxu0 0.0
        %3196 = vmatprep.subr.mxu0 0.0
        %3197 = vmatpush2.msra.mxu0 0.0
        %3198 = vmatprep.subr.mxu0 0.0
        %3199 = vmatpush2.msra.mxu0 0.0
        %3200 = vmatprep.mubr.f32.mxu0 0.0
        %3201 = vmatmul.mubr.f32.gmra.mxu0 %v3131
        %v3202 = vpop.f32.mrf.mxu0
        %v3203 = vadd.f32 0.0, %v3202
        %v3204 = vpop.f32.mrf.mxu0
        %3205 = vmatprep.mubr.f32.mxu0 0.0
        %3206 = vmatmul.mubr.f32.gmra.mxu0 %v3134
        %v3207 = vpop.f32.mrf.mxu0
        %v3208 = vadd.f32 0.0, %v3207
        %v3209 = vpop.f32.mrf.mxu0
        %3210 = vdwg.mxu0
        %3211 = vrot.lane.b32.xlu0 %v480, 56
        %v3212 = vpop.permute.xlu0 %3211
        %3213 = vrot.lane.b32.xlu0 %v485, 56
        %v3214 = vpop.permute.xlu0 %3213
        %v3218 = vsel %vm1259, %v3025, 0
        %v3221 = vsel %vm1259, %v3026, 0
        %3223 = vmatprep.subr.mxu0 0.0
        %3224 = vmatpush1.msra.mxu0 0.0
        %3225 = vmatprep.subr.mxu0 0.0
        %3226 = vmatpush1.msra.mxu0 0.0
        %3227 = vmatprep.subr.mxu0 0.0
        %3228 = vmatpush1.msra.mxu0 0.0
        %3229 = vmatprep.subr.mxu0 0.0
        %3230 = vmatpush1.msra.mxu0 0.0
        %3231 = vmatprep.subr.mxu0 0.0
        %3232 = vmatpush1.msra.mxu0 0.0
        %3233 = vmatprep.subr.mxu0 0.0
        %3234 = vmatpush1.msra.mxu0 0.0
        %3235 = vmatprep.subr.mxu0 0.0
        %3236 = vmatpush1.msra.mxu0 0.0
        %3237 = vmatprep.subr.mxu0 0.0
        %3238 = vmatpush1.msra.mxu0 0.0
        %3239 = vmatprep.subr.mxu0 0.0
        %3240 = vmatpush1.msra.mxu0 0.0
        %3241 = vmatprep.subr.mxu0 0.0
        %3242 = vmatpush1.msra.mxu0 0.0
        %3243 = vmatprep.subr.mxu0 0.0
        %3244 = vmatpush1.msra.mxu0 0.0
        %3245 = vmatprep.subr.mxu0 0.0
        %3246 = vmatpush1.msra.mxu0 0.0
        %3247 = vmatprep.subr.mxu0 0.0
        %3248 = vmatpush1.msra.mxu0 0.0
        %3249 = vmatprep.subr.mxu0 0.0
        %3250 = vmatpush1.msra.mxu0 0.0
        %3251 = vmatprep.subr.mxu0 0.0
        %3252 = vmatpush1.msra.mxu0 %v3214
        %3253 = vmatprep.subr.mxu0 0.0
        %3254 = vmatpush1.msra.mxu0 %v3212
        %3255 = vmatprep.subr.mxu0 0.0
        %3256 = vmatpush2.msra.mxu0 0.0
        %3257 = vmatprep.subr.mxu0 0.0
        %3258 = vmatpush2.msra.mxu0 0.0
        %3259 = vmatprep.subr.mxu0 0.0
        %3260 = vmatpush2.msra.mxu0 0.0
        %3261 = vmatprep.subr.mxu0 0.0
        %3262 = vmatpush2.msra.mxu0 0.0
        %3263 = vmatprep.subr.mxu0 0.0
        %3264 = vmatpush2.msra.mxu0 0.0
        %3265 = vmatprep.subr.mxu0 0.0
        %3266 = vmatpush2.msra.mxu0 0.0
        %3267 = vmatprep.subr.mxu0 0.0
        %3268 = vmatpush2.msra.mxu0 0.0
        %3269 = vmatprep.subr.mxu0 0.0
        %3270 = vmatpush2.msra.mxu0 0.0
        %3271 = vmatprep.subr.mxu0 0.0
        %3272 = vmatpush2.msra.mxu0 0.0
        %3273 = vmatprep.subr.mxu0 0.0
        %3274 = vmatpush2.msra.mxu0 0.0
        %3275 = vmatprep.subr.mxu0 0.0
        %3276 = vmatpush2.msra.mxu0 0.0
        %3277 = vmatprep.subr.mxu0 0.0
        %3278 = vmatpush2.msra.mxu0 0.0
        %3279 = vmatprep.subr.mxu0 0.0
        %3280 = vmatpush2.msra.mxu0 0.0
        %3281 = vmatprep.subr.mxu0 0.0
        %3282 = vmatpush2.msra.mxu0 0.0
        %3283 = vmatprep.subr.mxu0 0.0
        %3284 = vmatpush2.msra.mxu0 0.0
        %3285 = vmatprep.subr.mxu0 0.0
        %3286 = vmatpush2.msra.mxu0 0.0
        %3287 = vmatprep.mubr.f32.mxu0 0.0
        %3288 = vmatmul.mubr.f32.gmra.mxu0 %v3218
        %v3289 = vpop.f32.mrf.mxu0
        %v3290 = vadd.f32 0.0, %v3289
        %v3291 = vpop.f32.mrf.mxu0
        %3292 = vmatprep.mubr.f32.mxu0 0.0
        %3293 = vmatmul.mubr.f32.gmra.mxu0 %v3221
        %v3294 = vpop.f32.mrf.mxu0
        %v3295 = vadd.f32 0.0, %v3294
        %v3296 = vpop.f32.mrf.mxu0
        %3297 = vdwg.mxu0
        %3298 = vrot.lane.b32.xlu0 %v490, 56
        %v3299 = vpop.permute.xlu0 %3298
        %3300 = vrot.lane.b32.xlu0 %v495, 56
        %v3301 = vpop.permute.xlu0 %3300
        %v3305 = vsel %vm1259, %v3027, 0
        %v3308 = vsel %vm1259, %v3028, 0
        %3310 = vmatprep.subr.mxu0 0.0
        %3311 = vmatpush1.msra.mxu0 0.0
        %3312 = vmatprep.subr.mxu0 0.0
        %3313 = vmatpush1.msra.mxu0 0.0
        %3314 = vmatprep.subr.mxu0 0.0
        %3315 = vmatpush1.msra.mxu0 0.0
        %3316 = vmatprep.subr.mxu0 0.0
        %3317 = vmatpush1.msra.mxu0 0.0
        %3318 = vmatprep.subr.mxu0 0.0
        %3319 = vmatpush1.msra.mxu0 0.0
        %3320 = vmatprep.subr.mxu0 0.0
        %3321 = vmatpush1.msra.mxu0 0.0
        %3322 = vmatprep.subr.mxu0 0.0
        %3323 = vmatpush1.msra.mxu0 0.0
        %3324 = vmatprep.subr.mxu0 0.0
        %3325 = vmatpush1.msra.mxu0 0.0
        %3326 = vmatprep.subr.mxu0 0.0
        %3327 = vmatpush1.msra.mxu0 0.0
        %3328 = vmatprep.subr.mxu0 0.0
        %3329 = vmatpush1.msra.mxu0 0.0
        %3330 = vmatprep.subr.mxu0 0.0
        %3331 = vmatpush1.msra.mxu0 0.0
        %3332 = vmatprep.subr.mxu0 0.0
        %3333 = vmatpush1.msra.mxu0 0.0
        %3334 = vmatprep.subr.mxu0 0.0
        %3335 = vmatpush1.msra.mxu0 0.0
        %3336 = vmatprep.subr.mxu0 0.0
        %3337 = vmatpush1.msra.mxu0 0.0
        %3338 = vmatprep.subr.mxu0 0.0
        %3339 = vmatpush1.msra.mxu0 %v3301
        %3340 = vmatprep.subr.mxu0 0.0
        %3341 = vmatpush1.msra.mxu0 %v3299
        %3342 = vmatprep.subr.mxu0 0.0
        %3343 = vmatpush2.msra.mxu0 0.0
        %3344 = vmatprep.subr.mxu0 0.0
        %3345 = vmatpush2.msra.mxu0 0.0
        %3346 = vmatprep.subr.mxu0 0.0
        %3347 = vmatpush2.msra.mxu0 0.0
        %3348 = vmatprep.subr.mxu0 0.0
        %3349 = vmatpush2.msra.mxu0 0.0
        %3350 = vmatprep.subr.mxu0 0.0
        %3351 = vmatpush2.msra.mxu0 0.0
        %3352 = vmatprep.subr.mxu0 0.0
        %3353 = vmatpush2.msra.mxu0 0.0
        %3354 = vmatprep.subr.mxu0 0.0
        %3355 = vmatpush2.msra.mxu0 0.0
        %3356 = vmatprep.subr.mxu0 0.0
        %3357 = vmatpush2.msra.mxu0 0.0
        %3358 = vmatprep.subr.mxu0 0.0
        %3359 = vmatpush2.msra.mxu0 0.0
        %3360 = vmatprep.subr.mxu0 0.0
        %3361 = vmatpush2.msra.mxu0 0.0
        %3362 = vmatprep.subr.mxu0 0.0
        %3363 = vmatpush2.msra.mxu0 0.0
        %3364 = vmatprep.subr.mxu0 0.0
        %3365 = vmatpush2.msra.mxu0 0.0
        %3366 = vmatprep.subr.mxu0 0.0
        %3367 = vmatpush2.msra.mxu0 0.0
        %3368 = vmatprep.subr.mxu0 0.0
        %3369 = vmatpush2.msra.mxu0 0.0
        %3370 = vmatprep.subr.mxu0 0.0
        %3371 = vmatpush2.msra.mxu0 0.0
        %3372 = vmatprep.subr.mxu0 0.0
        %3373 = vmatpush2.msra.mxu0 0.0
        %3374 = vmatprep.mubr.f32.mxu0 0.0
        %3375 = vmatmul.mubr.f32.gmra.mxu0 %v3305
        %v3376 = vpop.f32.mrf.mxu0
        %v3377 = vadd.f32 0.0, %v3376
        %v3378 = vpop.f32.mrf.mxu0
        %3379 = vmatprep.mubr.f32.mxu0 0.0
        %3380 = vmatmul.mubr.f32.gmra.mxu0 %v3308
        %v3381 = vpop.f32.mrf.mxu0
        %v3382 = vadd.f32 0.0, %v3381
        %v3383 = vpop.f32.mrf.mxu0
        %3384 = vdwg.mxu0
        %3385 = vrot.lane.b32.xlu0 %v500, 56
        %v3386 = vpop.permute.xlu0 %3385
        %3387 = vrot.lane.b32.xlu0 %v505, 56
        %v3388 = vpop.permute.xlu0 %3387
        %v3392 = vsel %vm1259, %v3029, 0
        %v3395 = vsel %vm1259, %v3030, 0
        %3397 = vmatprep.subr.mxu0 0.0
        %3398 = vmatpush1.msra.mxu0 0.0
        %3399 = vmatprep.subr.mxu0 0.0
        %3400 = vmatpush1.msra.mxu0 0.0
        %3401 = vmatprep.subr.mxu0 0.0
        %3402 = vmatpush1.msra.mxu0 0.0
        %3403 = vmatprep.subr.mxu0 0.0
        %3404 = vmatpush1.msra.mxu0 0.0
        %3405 = vmatprep.subr.mxu0 0.0
        %3406 = vmatpush1.msra.mxu0 0.0
        %3407 = vmatprep.subr.mxu0 0.0
        %3408 = vmatpush1.msra.mxu0 0.0
        %3409 = vmatprep.subr.mxu0 0.0
        %3410 = vmatpush1.msra.mxu0 0.0
        %3411 = vmatprep.subr.mxu0 0.0
        %3412 = vmatpush1.msra.mxu0 0.0
        %3413 = vmatprep.subr.mxu0 0.0
        %3414 = vmatpush1.msra.mxu0 0.0
        %3415 = vmatprep.subr.mxu0 0.0
        %3416 = vmatpush1.msra.mxu0 0.0
        %3417 = vmatprep.subr.mxu0 0.0
        %3418 = vmatpush1.msra.mxu0 0.0
        %3419 = vmatprep.subr.mxu0 0.0
        %3420 = vmatpush1.msra.mxu0 0.0
        %3421 = vmatprep.subr.mxu0 0.0
        %3422 = vmatpush1.msra.mxu0 0.0
        %3423 = vmatprep.subr.mxu0 0.0
        %3424 = vmatpush1.msra.mxu0 0.0
        %3425 = vmatprep.subr.mxu0 0.0
        %3426 = vmatpush1.msra.mxu0 %v3388
        %3427 = vmatprep.subr.mxu0 0.0
        %3428 = vmatpush1.msra.mxu0 %v3386
        %3429 = vmatprep.subr.mxu0 0.0
        %3430 = vmatpush2.msra.mxu0 0.0
        %3431 = vmatprep.subr.mxu0 0.0
        %3432 = vmatpush2.msra.mxu0 0.0
        %3433 = vmatprep.subr.mxu0 0.0
        %3434 = vmatpush2.msra.mxu0 0.0
        %3435 = vmatprep.subr.mxu0 0.0
        %3436 = vmatpush2.msra.mxu0 0.0
        %3437 = vmatprep.subr.mxu0 0.0
        %3438 = vmatpush2.msra.mxu0 0.0
        %3439 = vmatprep.subr.mxu0 0.0
        %3440 = vmatpush2.msra.mxu0 0.0
        %3441 = vmatprep.subr.mxu0 0.0
        %3442 = vmatpush2.msra.mxu0 0.0
        %3443 = vmatprep.subr.mxu0 0.0
        %3444 = vmatpush2.msra.mxu0 0.0
        %3445 = vmatprep.subr.mxu0 0.0
        %3446 = vmatpush2.msra.mxu0 0.0
        %3447 = vmatprep.subr.mxu0 0.0
        %3448 = vmatpush2.msra.mxu0 0.0
        %3449 = vmatprep.subr.mxu0 0.0
        %3450 = vmatpush2.msra.mxu0 0.0
        %3451 = vmatprep.subr.mxu0 0.0
        %3452 = vmatpush2.msra.mxu0 0.0
        %3453 = vmatprep.subr.mxu0 0.0
        %3454 = vmatpush2.msra.mxu0 0.0
        %3455 = vmatprep.subr.mxu0 0.0
        %3456 = vmatpush2.msra.mxu0 0.0
        %3457 = vmatprep.subr.mxu0 0.0
        %3458 = vmatpush2.msra.mxu0 0.0
        %3459 = vmatprep.subr.mxu0 0.0
        %3460 = vmatpush2.msra.mxu0 0.0
        %3461 = vmatprep.mubr.f32.mxu0 0.0
        %3462 = vmatmul.mubr.f32.gmra.mxu0 %v3392
        %v3463 = vpop.f32.mrf.mxu0
        %v3464 = vadd.f32 0.0, %v3463
        %v3465 = vpop.f32.mrf.mxu0
        %3466 = vmatprep.mubr.f32.mxu0 0.0
        %3467 = vmatmul.mubr.f32.gmra.mxu0 %v3395
        %v3468 = vpop.f32.mrf.mxu0
        %v3469 = vadd.f32 0.0, %v3468
        %v3470 = vpop.f32.mrf.mxu0
        %3471 = vdwg.mxu0
        %3472 = vrot.lane.b32.xlu0 %v510, 56
        %v3473 = vpop.permute.xlu0 %3472
        %3474 = vrot.lane.b32.xlu0 %v515, 56
        %v3475 = vpop.permute.xlu0 %3474
        %v3479 = vsel %vm1259, %v3031, 0
        %v3482 = vsel %vm1259, %v3032, 0
        %3484 = vmatprep.subr.mxu0 0.0
        %3485 = vmatpush1.msra.mxu0 0.0
        %3486 = vmatprep.subr.mxu0 0.0
        %3487 = vmatpush1.msra.mxu0 0.0
        %3488 = vmatprep.subr.mxu0 0.0
        %3489 = vmatpush1.msra.mxu0 0.0
        %3490 = vmatprep.subr.mxu0 0.0
        %3491 = vmatpush1.msra.mxu0 0.0
        %3492 = vmatprep.subr.mxu0 0.0
        %3493 = vmatpush1.msra.mxu0 0.0
        %3494 = vmatprep.subr.mxu0 0.0
        %3495 = vmatpush1.msra.mxu0 0.0
        %3496 = vmatprep.subr.mxu0 0.0
        %3497 = vmatpush1.msra.mxu0 0.0
        %3498 = vmatprep.subr.mxu0 0.0
        %3499 = vmatpush1.msra.mxu0 0.0
        %3500 = vmatprep.subr.mxu0 0.0
        %3501 = vmatpush1.msra.mxu0 0.0
        %3502 = vmatprep.subr.mxu0 0.0
        %3503 = vmatpush1.msra.mxu0 0.0
        %3504 = vmatprep.subr.mxu0 0.0
        %3505 = vmatpush1.msra.mxu0 0.0
        %3506 = vmatprep.subr.mxu0 0.0
        %3507 = vmatpush1.msra.mxu0 0.0
        %3508 = vmatprep.subr.mxu0 0.0
        %3509 = vmatpush1.msra.mxu0 0.0
        %3510 = vmatprep.subr.mxu0 0.0
        %3511 = vmatpush1.msra.mxu0 0.0
        %3512 = vmatprep.subr.mxu0 0.0
        %3513 = vmatpush1.msra.mxu0 %v3475
        %3514 = vmatprep.subr.mxu0 0.0
        %3515 = vmatpush1.msra.mxu0 %v3473
        %3516 = vmatprep.subr.mxu0 0.0
        %3517 = vmatpush2.msra.mxu0 0.0
        %3518 = vmatprep.subr.mxu0 0.0
        %3519 = vmatpush2.msra.mxu0 0.0
        %3520 = vmatprep.subr.mxu0 0.0
        %3521 = vmatpush2.msra.mxu0 0.0
        %3522 = vmatprep.subr.mxu0 0.0
        %3523 = vmatpush2.msra.mxu0 0.0
        %3524 = vmatprep.subr.mxu0 0.0
        %3525 = vmatpush2.msra.mxu0 0.0
        %3526 = vmatprep.subr.mxu0 0.0
        %3527 = vmatpush2.msra.mxu0 0.0
        %3528 = vmatprep.subr.mxu0 0.0
        %3529 = vmatpush2.msra.mxu0 0.0
        %3530 = vmatprep.subr.mxu0 0.0
        %3531 = vmatpush2.msra.mxu0 0.0
        %3532 = vmatprep.subr.mxu0 0.0
        %3533 = vmatpush2.msra.mxu0 0.0
        %3534 = vmatprep.subr.mxu0 0.0
        %3535 = vmatpush2.msra.mxu0 0.0
        %3536 = vmatprep.subr.mxu0 0.0
        %3537 = vmatpush2.msra.mxu0 0.0
        %3538 = vmatprep.subr.mxu0 0.0
        %3539 = vmatpush2.msra.mxu0 0.0
        %3540 = vmatprep.subr.mxu0 0.0
        %3541 = vmatpush2.msra.mxu0 0.0
        %3542 = vmatprep.subr.mxu0 0.0
        %3543 = vmatpush2.msra.mxu0 0.0
        %3544 = vmatprep.subr.mxu0 0.0
        %3545 = vmatpush2.msra.mxu0 0.0
        %3546 = vmatprep.subr.mxu0 0.0
        %3547 = vmatpush2.msra.mxu0 0.0
        %3548 = vmatprep.mubr.f32.mxu0 0.0
        %3549 = vmatmul.mubr.f32.gmra.mxu0 %v3479
        %v3550 = vpop.f32.mrf.mxu0
        %v3551 = vadd.f32 0.0, %v3550
        %v3552 = vpop.f32.mrf.mxu0
        %3553 = vmatprep.mubr.f32.mxu0 0.0
        %3554 = vmatmul.mubr.f32.gmra.mxu0 %v3482
        %v3555 = vpop.f32.mrf.mxu0
        %v3556 = vadd.f32 0.0, %v3555
        %v3557 = vpop.f32.mrf.mxu0
        %3558 = vdwg.mxu0
        %3559 = vrot.lane.b32.xlu0 %v520, 56
        %v3560 = vpop.permute.xlu0 %3559
        %3561 = vrot.lane.b32.xlu0 %v525, 56
        %v3562 = vpop.permute.xlu0 %3561
        %v3566 = vsel %vm1259, %v3033, 0
        %v3569 = vsel %vm1259, %v3034, 0
        %3571 = vmatprep.subr.mxu0 0.0
        %3572 = vmatpush1.msra.mxu0 0.0
        %3573 = vmatprep.subr.mxu0 0.0
        %3574 = vmatpush1.msra.mxu0 0.0
        %3575 = vmatprep.subr.mxu0 0.0
        %3576 = vmatpush1.msra.mxu0 0.0
        %3577 = vmatprep.subr.mxu0 0.0
        %3578 = vmatpush1.msra.mxu0 0.0
        %3579 = vmatprep.subr.mxu0 0.0
        %3580 = vmatpush1.msra.mxu0 0.0
        %3581 = vmatprep.subr.mxu0 0.0
        %3582 = vmatpush1.msra.mxu0 0.0
        %3583 = vmatprep.subr.mxu0 0.0
        %3584 = vmatpush1.msra.mxu0 0.0
        %3585 = vmatprep.subr.mxu0 0.0
        %3586 = vmatpush1.msra.mxu0 0.0
        %3587 = vmatprep.subr.mxu0 0.0
        %3588 = vmatpush1.msra.mxu0 0.0
        %3589 = vmatprep.subr.mxu0 0.0
        %3590 = vmatpush1.msra.mxu0 0.0
        %3591 = vmatprep.subr.mxu0 0.0
        %3592 = vmatpush1.msra.mxu0 0.0
        %3593 = vmatprep.subr.mxu0 0.0
        %3594 = vmatpush1.msra.mxu0 0.0
        %3595 = vmatprep.subr.mxu0 0.0
        %3596 = vmatpush1.msra.mxu0 0.0
        %3597 = vmatprep.subr.mxu0 0.0
        %3598 = vmatpush1.msra.mxu0 0.0
        %3599 = vmatprep.subr.mxu0 0.0
        %3600 = vmatpush1.msra.mxu0 %v3562
        %3601 = vmatprep.subr.mxu0 0.0
        %3602 = vmatpush1.msra.mxu0 %v3560
        %3603 = vmatprep.subr.mxu0 0.0
        %3604 = vmatpush2.msra.mxu0 0.0
        %3605 = vmatprep.subr.mxu0 0.0
        %3606 = vmatpush2.msra.mxu0 0.0
        %3607 = vmatprep.subr.mxu0 0.0
        %3608 = vmatpush2.msra.mxu0 0.0
        %3609 = vmatprep.subr.mxu0 0.0
        %3610 = vmatpush2.msra.mxu0 0.0
        %3611 = vmatprep.subr.mxu0 0.0
        %3612 = vmatpush2.msra.mxu0 0.0
        %3613 = vmatprep.subr.mxu0 0.0
        %3614 = vmatpush2.msra.mxu0 0.0
        %3615 = vmatprep.subr.mxu0 0.0
        %3616 = vmatpush2.msra.mxu0 0.0
        %3617 = vmatprep.subr.mxu0 0.0
        %3618 = vmatpush2.msra.mxu0 0.0
        %3619 = vmatprep.subr.mxu0 0.0
        %3620 = vmatpush2.msra.mxu0 0.0
        %3621 = vmatprep.subr.mxu0 0.0
        %3622 = vmatpush2.msra.mxu0 0.0
        %3623 = vmatprep.subr.mxu0 0.0
        %3624 = vmatpush2.msra.mxu0 0.0
        %3625 = vmatprep.subr.mxu0 0.0
        %3626 = vmatpush2.msra.mxu0 0.0
        %3627 = vmatprep.subr.mxu0 0.0
        %3628 = vmatpush2.msra.mxu0 0.0
        %3629 = vmatprep.subr.mxu0 0.0
        %3630 = vmatpush2.msra.mxu0 0.0
        %3631 = vmatprep.subr.mxu0 0.0
        %3632 = vmatpush2.msra.mxu0 0.0
        %3633 = vmatprep.subr.mxu0 0.0
        %3634 = vmatpush2.msra.mxu0 0.0
        %3635 = vmatprep.mubr.f32.mxu0 0.0
        %3636 = vmatmul.mubr.f32.gmra.mxu0 %v3566
        %v3637 = vpop.f32.mrf.mxu0
        %v3638 = vadd.f32 0.0, %v3637
        %v3639 = vpop.f32.mrf.mxu0
        %3640 = vmatprep.mubr.f32.mxu0 0.0
        %3641 = vmatmul.mubr.f32.gmra.mxu0 %v3569
        %v3642 = vpop.f32.mrf.mxu0
        %v3643 = vadd.f32 0.0, %v3642
        %v3644 = vpop.f32.mrf.mxu0
        %3645 = vdwg.mxu0
        %3646 = vrot.lane.b32.xlu0 %v530, 56
        %v3647 = vpop.permute.xlu0 %3646
        %3648 = vrot.lane.b32.xlu0 %v535, 56
        %v3649 = vpop.permute.xlu0 %3648
        %v3653 = vsel %vm1259, %v3035, 0
        %v3656 = vsel %vm1259, %v3036, 0
        %3658 = vmatprep.subr.mxu0 0.0
        %3659 = vmatpush1.msra.mxu0 0.0
        %3660 = vmatprep.subr.mxu0 0.0
        %3661 = vmatpush1.msra.mxu0 0.0
        %3662 = vmatprep.subr.mxu0 0.0
        %3663 = vmatpush1.msra.mxu0 0.0
        %3664 = vmatprep.subr.mxu0 0.0
        %3665 = vmatpush1.msra.mxu0 0.0
        %3666 = vmatprep.subr.mxu0 0.0
        %3667 = vmatpush1.msra.mxu0 0.0
        %3668 = vmatprep.subr.mxu0 0.0
        %3669 = vmatpush1.msra.mxu0 0.0
        %3670 = vmatprep.subr.mxu0 0.0
        %3671 = vmatpush1.msra.mxu0 0.0
        %3672 = vmatprep.subr.mxu0 0.0
        %3673 = vmatpush1.msra.mxu0 0.0
        %3674 = vmatprep.subr.mxu0 0.0
        %3675 = vmatpush1.msra.mxu0 0.0
        %3676 = vmatprep.subr.mxu0 0.0
        %3677 = vmatpush1.msra.mxu0 0.0
        %3678 = vmatprep.subr.mxu0 0.0
        %3679 = vmatpush1.msra.mxu0 0.0
        %3680 = vmatprep.subr.mxu0 0.0
        %3681 = vmatpush1.msra.mxu0 0.0
        %3682 = vmatprep.subr.mxu0 0.0
        %3683 = vmatpush1.msra.mxu0 0.0
        %3684 = vmatprep.subr.mxu0 0.0
        %3685 = vmatpush1.msra.mxu0 0.0
        %3686 = vmatprep.subr.mxu0 0.0
        %3687 = vmatpush1.msra.mxu0 %v3649
        %3688 = vmatprep.subr.mxu0 0.0
        %3689 = vmatpush1.msra.mxu0 %v3647
        %3690 = vmatprep.subr.mxu0 0.0
        %3691 = vmatpush2.msra.mxu0 0.0
        %3692 = vmatprep.subr.mxu0 0.0
        %3693 = vmatpush2.msra.mxu0 0.0
        %3694 = vmatprep.subr.mxu0 0.0
        %3695 = vmatpush2.msra.mxu0 0.0
        %3696 = vmatprep.subr.mxu0 0.0
        %3697 = vmatpush2.msra.mxu0 0.0
        %3698 = vmatprep.subr.mxu0 0.0
        %3699 = vmatpush2.msra.mxu0 0.0
        %3700 = vmatprep.subr.mxu0 0.0
        %3701 = vmatpush2.msra.mxu0 0.0
        %3702 = vmatprep.subr.mxu0 0.0
        %3703 = vmatpush2.msra.mxu0 0.0
        %3704 = vmatprep.subr.mxu0 0.0
        %3705 = vmatpush2.msra.mxu0 0.0
        %3706 = vmatprep.subr.mxu0 0.0
        %3707 = vmatpush2.msra.mxu0 0.0
        %3708 = vmatprep.subr.mxu0 0.0
        %3709 = vmatpush2.msra.mxu0 0.0
        %3710 = vmatprep.subr.mxu0 0.0
        %3711 = vmatpush2.msra.mxu0 0.0
        %3712 = vmatprep.subr.mxu0 0.0
        %3713 = vmatpush2.msra.mxu0 0.0
        %3714 = vmatprep.subr.mxu0 0.0
        %3715 = vmatpush2.msra.mxu0 0.0
        %3716 = vmatprep.subr.mxu0 0.0
        %3717 = vmatpush2.msra.mxu0 0.0
        %3718 = vmatprep.subr.mxu0 0.0
        %3719 = vmatpush2.msra.mxu0 0.0
        %3720 = vmatprep.subr.mxu0 0.0
        %3721 = vmatpush2.msra.mxu0 0.0
        %3722 = vmatprep.mubr.f32.mxu0 0.0
        %3723 = vmatmul.mubr.f32.gmra.mxu0 %v3653
        %v3724 = vpop.f32.mrf.mxu0
        %v3725 = vadd.f32 0.0, %v3724
        %v3726 = vpop.f32.mrf.mxu0
        %3727 = vmatprep.mubr.f32.mxu0 0.0
        %3728 = vmatmul.mubr.f32.gmra.mxu0 %v3656
        %v3729 = vpop.f32.mrf.mxu0
        %v3730 = vadd.f32 0.0, %v3729
        %v3731 = vpop.f32.mrf.mxu0
        %3732 = vdwg.mxu0
        %v3733 = vld [vmem:[#allocation8 + $0x8] sm:$0xff]
        %v3735 = vsel %vm552, %v3116, 0
        %v3738 = vsel %vm552, %v3121, 0
        %v3741 = vsel %vm552, %v3203, 0
        %v3744 = vsel %vm552, %v3208, 0
        %v3747 = vsel %vm552, %v3290, 0
        %v3750 = vsel %vm552, %v3295, 0
        %v3753 = vsel %vm552, %v3377, 0
        %v3756 = vsel %vm552, %v3382, 0
        %v3759 = vsel %vm552, %v3464, 0
        %v3762 = vsel %vm552, %v3469, 0
        %v3765 = vsel %vm552, %v3551, 0
        %v3768 = vsel %vm552, %v3556, 0
        %v3771 = vsel %vm552, %v3638, 0
        %v3774 = vsel %vm552, %v3643, 0
        %v3777 = vsel %vm552, %v3725, 0
        %v3780 = vsel %vm552, %v3730, 0
        %3782 = vmatprep.subr.mxu0 0.0
        %3783 = vmatpush1.msra.mxu0 0.0
        %3784 = vmatprep.subr.mxu0 0.0
        %3785 = vmatpush1.msra.mxu0 0.0
        %3786 = vmatprep.subr.mxu0 0.0
        %3787 = vmatpush1.msra.mxu0 0.0
        %3788 = vmatprep.subr.mxu0 0.0
        %3789 = vmatpush1.msra.mxu0 0.0
        %3790 = vmatprep.subr.mxu0 0.0
        %3791 = vmatpush1.msra.mxu0 0.0
        %3792 = vmatprep.subr.mxu0 0.0
        %3793 = vmatpush1.msra.mxu0 0.0
        %3794 = vmatprep.subr.mxu0 0.0
        %3795 = vmatpush1.msra.mxu0 0.0
        %3796 = vmatprep.subr.mxu0 0.0
        %3797 = vmatpush1.msra.mxu0 0.0
        %3798 = vmatprep.subr.mxu0 0.0
        %3799 = vmatpush1.msra.mxu0 0.0
        %3800 = vmatprep.subr.mxu0 0.0
        %3801 = vmatpush1.msra.mxu0 0.0
        %3802 = vmatprep.subr.mxu0 0.0
        %3803 = vmatpush1.msra.mxu0 0.0
        %3804 = vmatprep.subr.mxu0 0.0
        %3805 = vmatpush1.msra.mxu0 0.0
        %3806 = vmatprep.subr.mxu0 0.0
        %3807 = vmatpush1.msra.mxu0 0.0
        %3808 = vmatprep.subr.mxu0 0.0
        %3809 = vmatpush1.msra.mxu0 0.0
        %3810 = vmatprep.subr.mxu0 0.0
        %3811 = vmatpush1.msra.mxu0 0.0
        %3812 = vmatprep.subr.mxu0 0.0
        %3813 = vmatpush1.msra.mxu0 %v3733
        %3814 = vmatprep.subr.mxu0 0.0
        %3815 = vmatpush2.msra.mxu0 0.0
        %3816 = vmatprep.subr.mxu0 0.0
        %3817 = vmatpush2.msra.mxu0 0.0
        %3818 = vmatprep.subr.mxu0 0.0
        %3819 = vmatpush2.msra.mxu0 0.0
        %3820 = vmatprep.subr.mxu0 0.0
        %3821 = vmatpush2.msra.mxu0 0.0
        %3822 = vmatprep.subr.mxu0 0.0
        %3823 = vmatpush2.msra.mxu0 0.0
        %3824 = vmatprep.subr.mxu0 0.0
        %3825 = vmatpush2.msra.mxu0 0.0
        %3826 = vmatprep.subr.mxu0 0.0
        %3827 = vmatpush2.msra.mxu0 0.0
        %3828 = vmatprep.subr.mxu0 0.0
        %3829 = vmatpush2.msra.mxu0 0.0
        %3830 = vmatprep.subr.mxu0 0.0
        %3831 = vmatpush2.msra.mxu0 0.0
        %3832 = vmatprep.subr.mxu0 0.0
        %3833 = vmatpush2.msra.mxu0 0.0
        %3834 = vmatprep.subr.mxu0 0.0
        %3835 = vmatpush2.msra.mxu0 0.0
        %3836 = vmatprep.subr.mxu0 0.0
        %3837 = vmatpush2.msra.mxu0 0.0
        %3838 = vmatprep.subr.mxu0 0.0
        %3839 = vmatpush2.msra.mxu0 0.0
        %3840 = vmatprep.subr.mxu0 0.0
        %3841 = vmatpush2.msra.mxu0 0.0
        %3842 = vmatprep.subr.mxu0 0.0
        %3843 = vmatpush2.msra.mxu0 0.0
        %3844 = vmatprep.subr.mxu0 0.0
        %3845 = vmatpush2.msra.mxu0 0.0
        %3846 = vmatprep.mubr.f32.mxu0 0.0
        %3847 = vmatmul.mubr.f32.gmra.mxu0 %v3735
        %v3848 = vpop.f32.mrf.mxu0
        %v3849 = vadd.f32 0.0, %v3848
        %v3850 = vpop.f32.mrf.mxu0
        %3851 = vmatprep.mubr.f32.mxu0 0.0
        %3852 = vmatmul.mubr.f32.gmra.mxu0 %v3738
        %v3853 = vpop.f32.mrf.mxu0
        %v3854 = vadd.f32 0.0, %v3853
        %v3855 = vpop.f32.mrf.mxu0
        %3856 = vmatprep.mubr.f32.mxu0 0.0
        %3857 = vmatmul.mubr.f32.gmra.mxu0 %v3741
        %v3858 = vpop.f32.mrf.mxu0
        %v3859 = vadd.f32 0.0, %v3858
        %v3860 = vpop.f32.mrf.mxu0
        %3861 = vmatprep.mubr.f32.mxu0 0.0
        %3862 = vmatmul.mubr.f32.gmra.mxu0 %v3744
        %v3863 = vpop.f32.mrf.mxu0
        %v3864 = vadd.f32 0.0, %v3863
        %v3865 = vpop.f32.mrf.mxu0
        %3866 = vmatprep.mubr.f32.mxu0 0.0
        %3867 = vmatmul.mubr.f32.gmra.mxu0 %v3747
        %v3868 = vpop.f32.mrf.mxu0
        %v3869 = vadd.f32 0.0, %v3868
        %v3870 = vpop.f32.mrf.mxu0
        %3871 = vmatprep.mubr.f32.mxu0 0.0
        %3872 = vmatmul.mubr.f32.gmra.mxu0 %v3750
        %v3873 = vpop.f32.mrf.mxu0
        %v3874 = vadd.f32 0.0, %v3873
        %v3875 = vpop.f32.mrf.mxu0
        %3876 = vmatprep.mubr.f32.mxu0 0.0
        %3877 = vmatmul.mubr.f32.gmra.mxu0 %v3753
        %v3878 = vpop.f32.mrf.mxu0
        %v3879 = vadd.f32 0.0, %v3878
        %v3880 = vpop.f32.mrf.mxu0
        %3881 = vmatprep.mubr.f32.mxu0 0.0
        %3882 = vmatmul.mubr.f32.gmra.mxu0 %v3756
        %v3883 = vpop.f32.mrf.mxu0
        %v3884 = vadd.f32 0.0, %v3883
        %v3885 = vpop.f32.mrf.mxu0
        %3886 = vmatprep.mubr.f32.mxu0 0.0
        %3887 = vmatmul.mubr.f32.gmra.mxu0 %v3759
        %v3888 = vpop.f32.mrf.mxu0
        %v3889 = vadd.f32 0.0, %v3888
        %v3890 = vpop.f32.mrf.mxu0
        %3891 = vmatprep.mubr.f32.mxu0 0.0
        %3892 = vmatmul.mubr.f32.gmra.mxu0 %v3762
        %v3893 = vpop.f32.mrf.mxu0
        %v3894 = vadd.f32 0.0, %v3893
        %v3895 = vpop.f32.mrf.mxu0
        %3896 = vmatprep.mubr.f32.mxu0 0.0
        %3897 = vmatmul.mubr.f32.gmra.mxu0 %v3765
        %v3898 = vpop.f32.mrf.mxu0
        %v3899 = vadd.f32 0.0, %v3898
        %v3900 = vpop.f32.mrf.mxu0
        %3901 = vmatprep.mubr.f32.mxu0 0.0
        %3902 = vmatmul.mubr.f32.gmra.mxu0 %v3768
        %v3903 = vpop.f32.mrf.mxu0
        %v3904 = vadd.f32 0.0, %v3903
        %v3905 = vpop.f32.mrf.mxu0
        %3906 = vmatprep.mubr.f32.mxu0 0.0
        %3907 = vmatmul.mubr.f32.gmra.mxu0 %v3771
        %v3908 = vpop.f32.mrf.mxu0
        %v3909 = vadd.f32 0.0, %v3908
        %v3910 = vpop.f32.mrf.mxu0
        %3911 = vmatprep.mubr.f32.mxu0 0.0
        %3912 = vmatmul.mubr.f32.gmra.mxu0 %v3774
        %v3913 = vpop.f32.mrf.mxu0
        %v3914 = vadd.f32 0.0, %v3913
        %v3915 = vpop.f32.mrf.mxu0
        %3916 = vmatprep.mubr.f32.mxu0 0.0
        %3917 = vmatmul.mubr.f32.gmra.mxu0 %v3777
        %v3918 = vpop.f32.mrf.mxu0
        %v3919 = vadd.f32 0.0, %v3918
        %v3920 = vpop.f32.mrf.mxu0
        %3921 = vmatprep.mubr.f32.mxu0 0.0
        %3922 = vmatmul.mubr.f32.gmra.mxu0 %v3780
        %v3923 = vpop.f32.mrf.mxu0
        %v3924 = vadd.f32 0.0, %v3923
        %v3925 = vpop.f32.mrf.mxu0
        %3926 = vdwg.mxu0
        %v3928 = vsel %vm552, %v1515, 0
        %v3931 = vsel %vm552, %v1520, 0
        %v3934 = vsel %vm552, %v1602, 0
        %v3937 = vsel %vm552, %v1607, 0
        %v3940 = vsel %vm552, %v1689, 0
        %v3943 = vsel %vm552, %v1694, 0
        %v3946 = vsel %vm552, %v1776, 0
        %v3949 = vsel %vm552, %v1781, 0
        %v3952 = vsel %vm552, %v1863, 0
        %v3955 = vsel %vm552, %v1868, 0
        %v3958 = vsel %vm552, %v1950, 0
        %v3961 = vsel %vm552, %v1955, 0
        %v3964 = vsel %vm552, %v2037, 0
        %v3967 = vsel %vm552, %v2042, 0
        %v3970 = vsel %vm552, %v2124, 0
        %v3973 = vsel %vm552, %v2129, 0
        %3975 = vmatprep.subr.mxu0 0.0
        %3976 = vmatpush1.msra.mxu0 0.0
        %3977 = vmatprep.subr.mxu0 0.0
        %3978 = vmatpush1.msra.mxu0 0.0
        %3979 = vmatprep.subr.mxu0 0.0
        %3980 = vmatpush1.msra.mxu0 0.0
        %3981 = vmatprep.subr.mxu0 0.0
        %3982 = vmatpush1.msra.mxu0 0.0
        %3983 = vmatprep.subr.mxu0 0.0
        %3984 = vmatpush1.msra.mxu0 0.0
        %3985 = vmatprep.subr.mxu0 0.0
        %3986 = vmatpush1.msra.mxu0 0.0
        %3987 = vmatprep.subr.mxu0 0.0
        %3988 = vmatpush1.msra.mxu0 0.0
        %3989 = vmatprep.subr.mxu0 0.0
        %3990 = vmatpush1.msra.mxu0 0.0
        %3991 = vmatprep.subr.mxu0 0.0
        %3992 = vmatpush1.msra.mxu0 0.0
        %3993 = vmatprep.subr.mxu0 0.0
        %3994 = vmatpush1.msra.mxu0 0.0
        %3995 = vmatprep.subr.mxu0 0.0
        %3996 = vmatpush1.msra.mxu0 0.0
        %3997 = vmatprep.subr.mxu0 0.0
        %3998 = vmatpush1.msra.mxu0 0.0
        %3999 = vmatprep.subr.mxu0 0.0
        %4000 = vmatpush1.msra.mxu0 0.0
        %4001 = vmatprep.subr.mxu0 0.0
        %4002 = vmatpush1.msra.mxu0 0.0
        %4003 = vmatprep.subr.mxu0 0.0
        %4004 = vmatpush1.msra.mxu0 0.0
        %4005 = vmatprep.subr.mxu0 0.0
        %4006 = vmatpush1.msra.mxu0 %v2132
        %4007 = vmatprep.subr.mxu0 0.0
        %4008 = vmatpush2.msra.mxu0 0.0
        %4009 = vmatprep.subr.mxu0 0.0
        %4010 = vmatpush2.msra.mxu0 0.0
        %4011 = vmatprep.subr.mxu0 0.0
        %4012 = vmatpush2.msra.mxu0 0.0
        %4013 = vmatprep.subr.mxu0 0.0
        %4014 = vmatpush2.msra.mxu0 0.0
        %4015 = vmatprep.subr.mxu0 0.0
        %4016 = vmatpush2.msra.mxu0 0.0
        %4017 = vmatprep.subr.mxu0 0.0
        %4018 = vmatpush2.msra.mxu0 0.0
        %4019 = vmatprep.subr.mxu0 0.0
        %4020 = vmatpush2.msra.mxu0 0.0
        %4021 = vmatprep.subr.mxu0 0.0
        %4022 = vmatpush2.msra.mxu0 0.0
        %4023 = vmatprep.subr.mxu0 0.0
        %4024 = vmatpush2.msra.mxu0 0.0
        %4025 = vmatprep.subr.mxu0 0.0
        %4026 = vmatpush2.msra.mxu0 0.0
        %4027 = vmatprep.subr.mxu0 0.0
        %4028 = vmatpush2.msra.mxu0 0.0
        %4029 = vmatprep.subr.mxu0 0.0
        %4030 = vmatpush2.msra.mxu0 0.0
        %4031 = vmatprep.subr.mxu0 0.0
        %4032 = vmatpush2.msra.mxu0 0.0
        %4033 = vmatprep.subr.mxu0 0.0
        %4034 = vmatpush2.msra.mxu0 0.0
        %4035 = vmatprep.subr.mxu0 0.0
        %4036 = vmatpush2.msra.mxu0 0.0
        %4037 = vmatprep.subr.mxu0 0.0
        %4038 = vmatpush2.msra.mxu0 0.0
        %4039 = vmatprep.mubr.f32.mxu0 0.0
        %4040 = vmatmul.mubr.f32.gmra.mxu0 %v3928
        %v4041 = vpop.f32.mrf.mxu0
        %v4042 = vadd.f32 %v3849, %v4041
        %v4043 = vpop.f32.mrf.mxu0
        %4044 = vmatprep.mubr.f32.mxu0 0.0
        %4045 = vmatmul.mubr.f32.gmra.mxu0 %v3931
        %v4046 = vpop.f32.mrf.mxu0
        %v4047 = vadd.f32 %v3854, %v4046
        %v4048 = vpop.f32.mrf.mxu0
        %4049 = vmatprep.mubr.f32.mxu0 0.0
        %4050 = vmatmul.mubr.f32.gmra.mxu0 %v3934
        %v4051 = vpop.f32.mrf.mxu0
        %v4052 = vadd.f32 %v3859, %v4051
        %v4053 = vpop.f32.mrf.mxu0
        %4054 = vmatprep.mubr.f32.mxu0 0.0
        %4055 = vmatmul.mubr.f32.gmra.mxu0 %v3937
        %v4056 = vpop.f32.mrf.mxu0
        %v4057 = vadd.f32 %v3864, %v4056
        %v4058 = vpop.f32.mrf.mxu0
        %4059 = vmatprep.mubr.f32.mxu0 0.0
        %4060 = vmatmul.mubr.f32.gmra.mxu0 %v3940
        %v4061 = vpop.f32.mrf.mxu0
        %v4062 = vadd.f32 %v3869, %v4061
        %v4063 = vpop.f32.mrf.mxu0
        %4064 = vmatprep.mubr.f32.mxu0 0.0
        %4065 = vmatmul.mubr.f32.gmra.mxu0 %v3943
        %v4066 = vpop.f32.mrf.mxu0
        %v4067 = vadd.f32 %v3874, %v4066
        %v4068 = vpop.f32.mrf.mxu0
        %4069 = vmatprep.mubr.f32.mxu0 0.0
        %4070 = vmatmul.mubr.f32.gmra.mxu0 %v3946
        %v4071 = vpop.f32.mrf.mxu0
        %v4072 = vadd.f32 %v3879, %v4071
        %v4073 = vpop.f32.mrf.mxu0
        %4074 = vmatprep.mubr.f32.mxu0 0.0
        %4075 = vmatmul.mubr.f32.gmra.mxu0 %v3949
        %v4076 = vpop.f32.mrf.mxu0
        %v4077 = vadd.f32 %v3884, %v4076
        %v4078 = vpop.f32.mrf.mxu0
        %4079 = vmatprep.mubr.f32.mxu0 0.0
        %4080 = vmatmul.mubr.f32.gmra.mxu0 %v3952
        %v4081 = vpop.f32.mrf.mxu0
        %v4082 = vadd.f32 %v3889, %v4081
        %v4083 = vpop.f32.mrf.mxu0
        %4084 = vmatprep.mubr.f32.mxu0 0.0
        %4085 = vmatmul.mubr.f32.gmra.mxu0 %v3955
        %v4086 = vpop.f32.mrf.mxu0
        %v4087 = vadd.f32 %v3894, %v4086
        %v4088 = vpop.f32.mrf.mxu0
        %4089 = vmatprep.mubr.f32.mxu0 0.0
        %4090 = vmatmul.mubr.f32.gmra.mxu0 %v3958
        %v4091 = vpop.f32.mrf.mxu0
        %v4092 = vadd.f32 %v3899, %v4091
        %v4093 = vpop.f32.mrf.mxu0
        %4094 = vmatprep.mubr.f32.mxu0 0.0
        %4095 = vmatmul.mubr.f32.gmra.mxu0 %v3961
        %v4096 = vpop.f32.mrf.mxu0
        %v4097 = vadd.f32 %v3904, %v4096
        %v4098 = vpop.f32.mrf.mxu0
        %4099 = vmatprep.mubr.f32.mxu0 0.0
        %4100 = vmatmul.mubr.f32.gmra.mxu0 %v3964
        %v4101 = vpop.f32.mrf.mxu0
        %v4102 = vadd.f32 %v3909, %v4101
        %v4103 = vpop.f32.mrf.mxu0
        %4104 = vmatprep.mubr.f32.mxu0 0.0
        %4105 = vmatmul.mubr.f32.gmra.mxu0 %v3967
        %v4106 = vpop.f32.mrf.mxu0
        %v4107 = vadd.f32 %v3914, %v4106
        %v4108 = vpop.f32.mrf.mxu0
        %4109 = vmatprep.mubr.f32.mxu0 0.0
        %4110 = vmatmul.mubr.f32.gmra.mxu0 %v3970
        %v4111 = vpop.f32.mrf.mxu0
        %v4112 = vadd.f32 %v3919, %v4111
        %v4113 = vpop.f32.mrf.mxu0
        %4114 = vmatprep.mubr.f32.mxu0 0.0
        %4115 = vmatmul.mubr.f32.gmra.mxu0 %v3973
        %v4116 = vpop.f32.mrf.mxu0
        %v4117 = vadd.f32 %v3924, %v4116
        %v4118 = vpop.f32.mrf.mxu0
        %4119 = vdwg.mxu0
        %4120 = vrot.lane.b32.xlu0 %v460, 112
        %v4121 = vpop.permute.xlu0 %4120
        %4122 = vrot.lane.b32.xlu0 %v465, 112
        %v4123 = vpop.permute.xlu0 %4122
        %4124 = vrot.lane.b32.xlu0 %v460, 80
        %v4125 = vpop.permute.xlu0 %4124
        %4126 = vrot.lane.b32.xlu0 %v465, 80
        %v4127 = vpop.permute.xlu0 %4126
        %v4128 = vsel %vm552, %v4121, 0
        %v4130 = vsel %vm552, %v4123, 0
        %v4132 = vsel %vm552, %v4125, 0
        %v4134 = vsel %vm552, %v4127, 0
        %4136 = vmatprep.subr.mxu0 0.0
        %4137 = vmatpush1.xpose.msra.mxu0 0.0
        %4138 = vmatprep.subr.mxu0 0.0
        %4139 = vmatpush1.xpose.msra.mxu0 0.0
        %4140 = vmatprep.subr.mxu0 0.0
        %4141 = vmatpush1.xpose.msra.mxu0 0.0
        %4142 = vmatprep.subr.mxu0 0.0
        %4143 = vmatpush1.xpose.msra.mxu0 0.0
        %4144 = vmatprep.subr.mxu0 0.0
        %4145 = vmatpush1.xpose.msra.mxu0 0.0
        %4146 = vmatprep.subr.mxu0 0.0
        %4147 = vmatpush1.xpose.msra.mxu0 0.0
        %4148 = vmatprep.subr.mxu0 0.0
        %4149 = vmatpush1.xpose.msra.mxu0 0.0
        %4150 = vmatprep.subr.mxu0 0.0
        %4151 = vmatpush1.xpose.msra.mxu0 0.0
        %4152 = vmatprep.subr.mxu0 0.0
        %4153 = vmatpush1.xpose.msra.mxu0 0.0
        %4154 = vmatprep.subr.mxu0 0.0
        %4155 = vmatpush1.xpose.msra.mxu0 0.0
        %4156 = vmatprep.subr.mxu0 0.0
        %4157 = vmatpush1.xpose.msra.mxu0 0.0
        %4158 = vmatprep.subr.mxu0 0.0
        %4159 = vmatpush1.xpose.msra.mxu0 0.0
        %4160 = vmatprep.subr.mxu0 0.0
        %4161 = vmatpush1.xpose.msra.mxu0 0.0
        %4162 = vmatprep.subr.mxu0 0.0
        %4163 = vmatpush1.xpose.msra.mxu0 0.0
        %4164 = vmatprep.subr.mxu0 0.0
        %4165 = vmatpush1.xpose.msra.mxu0 %v4134
        %4166 = vmatprep.subr.mxu0 0.0
        %4167 = vmatpush1.xpose.msra.mxu0 %v4132
        %4168 = vmatprep.subr.mxu0 0.0
        %4169 = vmatpush2.xpose.msra.mxu0 0.0
        %4170 = vmatprep.subr.mxu0 0.0
        %4171 = vmatpush2.xpose.msra.mxu0 0.0
        %4172 = vmatprep.subr.mxu0 0.0
        %4173 = vmatpush2.xpose.msra.mxu0 0.0
        %4174 = vmatprep.subr.mxu0 0.0
        %4175 = vmatpush2.xpose.msra.mxu0 0.0
        %4176 = vmatprep.subr.mxu0 0.0
        %4177 = vmatpush2.xpose.msra.mxu0 0.0
        %4178 = vmatprep.subr.mxu0 0.0
        %4179 = vmatpush2.xpose.msra.mxu0 0.0
        %4180 = vmatprep.subr.mxu0 0.0
        %4181 = vmatpush2.xpose.msra.mxu0 0.0
        %4182 = vmatprep.subr.mxu0 0.0
        %4183 = vmatpush2.xpose.msra.mxu0 0.0
        %4184 = vmatprep.subr.mxu0 0.0
        %4185 = vmatpush2.xpose.msra.mxu0 0.0
        %4186 = vmatprep.subr.mxu0 0.0
        %4187 = vmatpush2.xpose.msra.mxu0 0.0
        %4188 = vmatprep.subr.mxu0 0.0
        %4189 = vmatpush2.xpose.msra.mxu0 0.0
        %4190 = vmatprep.subr.mxu0 0.0
        %4191 = vmatpush2.xpose.msra.mxu0 0.0
        %4192 = vmatprep.subr.mxu0 0.0
        %4193 = vmatpush2.xpose.msra.mxu0 0.0
        %4194 = vmatprep.subr.mxu0 0.0
        %4195 = vmatpush2.xpose.msra.mxu0 0.0
        %4196 = vmatprep.subr.mxu0 0.0
        %4197 = vmatpush2.xpose.msra.mxu0 0.0
        %4198 = vmatprep.subr.mxu0 0.0
        %4199 = vmatpush2.xpose.msra.mxu0 0.0
        %4200 = vmatprep.mubr.f32.mxu0 0.0
        %4201 = vmatmul.mubr.f32.gmra.mxu0 %v4128
        %v4202 = vpop.f32.mrf.mxu0
        %v4203 = vadd.f32 %v542, %v4202
        %v4204 = vpop.f32.mrf.mxu0
        %4205 = vmatprep.mubr.f32.mxu0 0.0
        %4206 = vmatmul.mubr.f32.gmra.mxu0 %v4130
        %v4207 = vpop.f32.mrf.mxu0
        %v4208 = vadd.f32 %v543, %v4207
        %v4209 = vpop.f32.mrf.mxu0
        %4210 = vdwg.mxu0
        %4211 = vrot.lane.b32.xlu0 %v470, 112
        %v4212 = vpop.permute.xlu0 %4211
        %4213 = vrot.lane.b32.xlu0 %v475, 112
        %v4214 = vpop.permute.xlu0 %4213
        %4215 = vrot.lane.b32.xlu0 %v470, 80
        %v4216 = vpop.permute.xlu0 %4215
        %4217 = vrot.lane.b32.xlu0 %v475, 80
        %v4218 = vpop.permute.xlu0 %4217
        %v4219 = vsel %vm552, %v4212, 0
        %v4221 = vsel %vm552, %v4214, 0
        %v4223 = vsel %vm552, %v4216, 0
        %v4225 = vsel %vm552, %v4218, 0
        %4227 = vmatprep.subr.mxu0 0.0
        %4228 = vmatpush1.xpose.msra.mxu0 0.0
        %4229 = vmatprep.subr.mxu0 0.0
        %4230 = vmatpush1.xpose.msra.mxu0 0.0
        %4231 = vmatprep.subr.mxu0 0.0
        %4232 = vmatpush1.xpose.msra.mxu0 0.0
        %4233 = vmatprep.subr.mxu0 0.0
        %4234 = vmatpush1.xpose.msra.mxu0 0.0
        %4235 = vmatprep.subr.mxu0 0.0
        %4236 = vmatpush1.xpose.msra.mxu0 0.0
        %4237 = vmatprep.subr.mxu0 0.0
        %4238 = vmatpush1.xpose.msra.mxu0 0.0
        %4239 = vmatprep.subr.mxu0 0.0
        %4240 = vmatpush1.xpose.msra.mxu0 0.0
        %4241 = vmatprep.subr.mxu0 0.0
        %4242 = vmatpush1.xpose.msra.mxu0 0.0
        %4243 = vmatprep.subr.mxu0 0.0
        %4244 = vmatpush1.xpose.msra.mxu0 0.0
        %4245 = vmatprep.subr.mxu0 0.0
        %4246 = vmatpush1.xpose.msra.mxu0 0.0
        %4247 = vmatprep.subr.mxu0 0.0
        %4248 = vmatpush1.xpose.msra.mxu0 0.0
        %4249 = vmatprep.subr.mxu0 0.0
        %4250 = vmatpush1.xpose.msra.mxu0 0.0
        %4251 = vmatprep.subr.mxu0 0.0
        %4252 = vmatpush1.xpose.msra.mxu0 0.0
        %4253 = vmatprep.subr.mxu0 0.0
        %4254 = vmatpush1.xpose.msra.mxu0 0.0
        %4255 = vmatprep.subr.mxu0 0.0
        %4256 = vmatpush1.xpose.msra.mxu0 %v4225
        %4257 = vmatprep.subr.mxu0 0.0
        %4258 = vmatpush1.xpose.msra.mxu0 %v4223
        %4259 = vmatprep.subr.mxu0 0.0
        %4260 = vmatpush2.xpose.msra.mxu0 0.0
        %4261 = vmatprep.subr.mxu0 0.0
        %4262 = vmatpush2.xpose.msra.mxu0 0.0
        %4263 = vmatprep.subr.mxu0 0.0
        %4264 = vmatpush2.xpose.msra.mxu0 0.0
        %4265 = vmatprep.subr.mxu0 0.0
        %4266 = vmatpush2.xpose.msra.mxu0 0.0
        %4267 = vmatprep.subr.mxu0 0.0
        %4268 = vmatpush2.xpose.msra.mxu0 0.0
        %4269 = vmatprep.subr.mxu0 0.0
        %4270 = vmatpush2.xpose.msra.mxu0 0.0
        %4271 = vmatprep.subr.mxu0 0.0
        %4272 = vmatpush2.xpose.msra.mxu0 0.0
        %4273 = vmatprep.subr.mxu0 0.0
        %4274 = vmatpush2.xpose.msra.mxu0 0.0
        %4275 = vmatprep.subr.mxu0 0.0
        %4276 = vmatpush2.xpose.msra.mxu0 0.0
        %4277 = vmatprep.subr.mxu0 0.0
        %4278 = vmatpush2.xpose.msra.mxu0 0.0
        %4279 = vmatprep.subr.mxu0 0.0
        %4280 = vmatpush2.xpose.msra.mxu0 0.0
        %4281 = vmatprep.subr.mxu0 0.0
        %4282 = vmatpush2.xpose.msra.mxu0 0.0
        %4283 = vmatprep.subr.mxu0 0.0
        %4284 = vmatpush2.xpose.msra.mxu0 0.0
        %4285 = vmatprep.subr.mxu0 0.0
        %4286 = vmatpush2.xpose.msra.mxu0 0.0
        %4287 = vmatprep.subr.mxu0 0.0
        %4288 = vmatpush2.xpose.msra.mxu0 0.0
        %4289 = vmatprep.subr.mxu0 0.0
        %4290 = vmatpush2.xpose.msra.mxu0 0.0
        %4291 = vmatprep.mubr.f32.mxu0 0.0
        %4292 = vmatmul.mubr.f32.gmra.mxu0 %v4219
        %v4293 = vpop.f32.mrf.mxu0
        %v4294 = vadd.f32 %v542, %v4293
        %v4295 = vpop.f32.mrf.mxu0
        %4296 = vmatprep.mubr.f32.mxu0 0.0
        %4297 = vmatmul.mubr.f32.gmra.mxu0 %v4221
        %v4298 = vpop.f32.mrf.mxu0
        %v4299 = vadd.f32 %v543, %v4298
        %v4300 = vpop.f32.mrf.mxu0
        %4301 = vdwg.mxu0
        %4302 = vrot.lane.b32.xlu0 %v480, 112
        %v4303 = vpop.permute.xlu0 %4302
        %4304 = vrot.lane.b32.xlu0 %v485, 112
        %v4305 = vpop.permute.xlu0 %4304
        %4306 = vrot.lane.b32.xlu0 %v480, 80
        %v4307 = vpop.permute.xlu0 %4306
        %4308 = vrot.lane.b32.xlu0 %v485, 80
        %v4309 = vpop.permute.xlu0 %4308
        %v4310 = vsel %vm552, %v4303, 0
        %v4312 = vsel %vm552, %v4305, 0
        %v4314 = vsel %vm552, %v4307, 0
        %v4316 = vsel %vm552, %v4309, 0
        %4318 = vmatprep.subr.mxu0 0.0
        %4319 = vmatpush1.xpose.msra.mxu0 0.0
        %4320 = vmatprep.subr.mxu0 0.0
        %4321 = vmatpush1.xpose.msra.mxu0 0.0
        %4322 = vmatprep.subr.mxu0 0.0
        %4323 = vmatpush1.xpose.msra.mxu0 0.0
        %4324 = vmatprep.subr.mxu0 0.0
        %4325 = vmatpush1.xpose.msra.mxu0 0.0
        %4326 = vmatprep.subr.mxu0 0.0
        %4327 = vmatpush1.xpose.msra.mxu0 0.0
        %4328 = vmatprep.subr.mxu0 0.0
        %4329 = vmatpush1.xpose.msra.mxu0 0.0
        %4330 = vmatprep.subr.mxu0 0.0
        %4331 = vmatpush1.xpose.msra.mxu0 0.0
        %4332 = vmatprep.subr.mxu0 0.0
        %4333 = vmatpush1.xpose.msra.mxu0 0.0
        %4334 = vmatprep.subr.mxu0 0.0
        %4335 = vmatpush1.xpose.msra.mxu0 0.0
        %4336 = vmatprep.subr.mxu0 0.0
        %4337 = vmatpush1.xpose.msra.mxu0 0.0
        %4338 = vmatprep.subr.mxu0 0.0
        %4339 = vmatpush1.xpose.msra.mxu0 0.0
        %4340 = vmatprep.subr.mxu0 0.0
        %4341 = vmatpush1.xpose.msra.mxu0 0.0
        %4342 = vmatprep.subr.mxu0 0.0
        %4343 = vmatpush1.xpose.msra.mxu0 0.0
        %4344 = vmatprep.subr.mxu0 0.0
        %4345 = vmatpush1.xpose.msra.mxu0 0.0
        %4346 = vmatprep.subr.mxu0 0.0
        %4347 = vmatpush1.xpose.msra.mxu0 %v4316
        %4348 = vmatprep.subr.mxu0 0.0
        %4349 = vmatpush1.xpose.msra.mxu0 %v4314
        %4350 = vmatprep.subr.mxu0 0.0
        %4351 = vmatpush2.xpose.msra.mxu0 0.0
        %4352 = vmatprep.subr.mxu0 0.0
        %4353 = vmatpush2.xpose.msra.mxu0 0.0
        %4354 = vmatprep.subr.mxu0 0.0
        %4355 = vmatpush2.xpose.msra.mxu0 0.0
        %4356 = vmatprep.subr.mxu0 0.0
        %4357 = vmatpush2.xpose.msra.mxu0 0.0
        %4358 = vmatprep.subr.mxu0 0.0
        %4359 = vmatpush2.xpose.msra.mxu0 0.0
        %4360 = vmatprep.subr.mxu0 0.0
        %4361 = vmatpush2.xpose.msra.mxu0 0.0
        %4362 = vmatprep.subr.mxu0 0.0
        %4363 = vmatpush2.xpose.msra.mxu0 0.0
        %4364 = vmatprep.subr.mxu0 0.0
        %4365 = vmatpush2.xpose.msra.mxu0 0.0
        %4366 = vmatprep.subr.mxu0 0.0
        %4367 = vmatpush2.xpose.msra.mxu0 0.0
        %4368 = vmatprep.subr.mxu0 0.0
        %4369 = vmatpush2.xpose.msra.mxu0 0.0
        %4370 = vmatprep.subr.mxu0 0.0
        %4371 = vmatpush2.xpose.msra.mxu0 0.0
        %4372 = vmatprep.subr.mxu0 0.0
        %4373 = vmatpush2.xpose.msra.mxu0 0.0
        %4374 = vmatprep.subr.mxu0 0.0
        %4375 = vmatpush2.xpose.msra.mxu0 0.0
        %4376 = vmatprep.subr.mxu0 0.0
        %4377 = vmatpush2.xpose.msra.mxu0 0.0
        %4378 = vmatprep.subr.mxu0 0.0
        %4379 = vmatpush2.xpose.msra.mxu0 0.0
        %4380 = vmatprep.subr.mxu0 0.0
        %4381 = vmatpush2.xpose.msra.mxu0 0.0
        %4382 = vmatprep.mubr.f32.mxu0 0.0
        %4383 = vmatmul.mubr.f32.gmra.mxu0 %v4310
        %v4384 = vpop.f32.mrf.mxu0
        %v4385 = vadd.f32 %v542, %v4384
        %v4386 = vpop.f32.mrf.mxu0
        %4387 = vmatprep.mubr.f32.mxu0 0.0
        %4388 = vmatmul.mubr.f32.gmra.mxu0 %v4312
        %v4389 = vpop.f32.mrf.mxu0
        %v4390 = vadd.f32 %v543, %v4389
        %v4391 = vpop.f32.mrf.mxu0
        %4392 = vdwg.mxu0
        %4393 = vrot.lane.b32.xlu0 %v490, 112
        %v4394 = vpop.permute.xlu0 %4393
        %4395 = vrot.lane.b32.xlu0 %v495, 112
        %v4396 = vpop.permute.xlu0 %4395
        %4397 = vrot.lane.b32.xlu0 %v490, 80
        %v4398 = vpop.permute.xlu0 %4397
        %4399 = vrot.lane.b32.xlu0 %v495, 80
        %v4400 = vpop.permute.xlu0 %4399
        %v4401 = vsel %vm552, %v4394, 0
        %v4403 = vsel %vm552, %v4396, 0
        %v4405 = vsel %vm552, %v4398, 0
        %v4407 = vsel %vm552, %v4400, 0
        %4409 = vmatprep.subr.mxu0 0.0
        %4410 = vmatpush1.xpose.msra.mxu0 0.0
        %4411 = vmatprep.subr.mxu0 0.0
        %4412 = vmatpush1.xpose.msra.mxu0 0.0
        %4413 = vmatprep.subr.mxu0 0.0
        %4414 = vmatpush1.xpose.msra.mxu0 0.0
        %4415 = vmatprep.subr.mxu0 0.0
        %4416 = vmatpush1.xpose.msra.mxu0 0.0
        %4417 = vmatprep.subr.mxu0 0.0
        %4418 = vmatpush1.xpose.msra.mxu0 0.0
        %4419 = vmatprep.subr.mxu0 0.0
        %4420 = vmatpush1.xpose.msra.mxu0 0.0
        %4421 = vmatprep.subr.mxu0 0.0
        %4422 = vmatpush1.xpose.msra.mxu0 0.0
        %4423 = vmatprep.subr.mxu0 0.0
        %4424 = vmatpush1.xpose.msra.mxu0 0.0
        %4425 = vmatprep.subr.mxu0 0.0
        %4426 = vmatpush1.xpose.msra.mxu0 0.0
        %4427 = vmatprep.subr.mxu0 0.0
        %4428 = vmatpush1.xpose.msra.mxu0 0.0
        %4429 = vmatprep.subr.mxu0 0.0
        %4430 = vmatpush1.xpose.msra.mxu0 0.0
        %4431 = vmatprep.subr.mxu0 0.0
        %4432 = vmatpush1.xpose.msra.mxu0 0.0
        %4433 = vmatprep.subr.mxu0 0.0
        %4434 = vmatpush1.xpose.msra.mxu0 0.0
        %4435 = vmatprep.subr.mxu0 0.0
        %4436 = vmatpush1.xpose.msra.mxu0 0.0
        %4437 = vmatprep.subr.mxu0 0.0
        %4438 = vmatpush1.xpose.msra.mxu0 %v4407
        %4439 = vmatprep.subr.mxu0 0.0
        %4440 = vmatpush1.xpose.msra.mxu0 %v4405
        %4441 = vmatprep.subr.mxu0 0.0
        %4442 = vmatpush2.xpose.msra.mxu0 0.0
        %4443 = vmatprep.subr.mxu0 0.0
        %4444 = vmatpush2.xpose.msra.mxu0 0.0
        %4445 = vmatprep.subr.mxu0 0.0
        %4446 = vmatpush2.xpose.msra.mxu0 0.0
        %4447 = vmatprep.subr.mxu0 0.0
        %4448 = vmatpush2.xpose.msra.mxu0 0.0
        %4449 = vmatprep.subr.mxu0 0.0
        %4450 = vmatpush2.xpose.msra.mxu0 0.0
        %4451 = vmatprep.subr.mxu0 0.0
        %4452 = vmatpush2.xpose.msra.mxu0 0.0
        %4453 = vmatprep.subr.mxu0 0.0
        %4454 = vmatpush2.xpose.msra.mxu0 0.0
        %4455 = vmatprep.subr.mxu0 0.0
        %4456 = vmatpush2.xpose.msra.mxu0 0.0
        %4457 = vmatprep.subr.mxu0 0.0
        %4458 = vmatpush2.xpose.msra.mxu0 0.0
        %4459 = vmatprep.subr.mxu0 0.0
        %4460 = vmatpush2.xpose.msra.mxu0 0.0
        %4461 = vmatprep.subr.mxu0 0.0
        %4462 = vmatpush2.xpose.msra.mxu0 0.0
        %4463 = vmatprep.subr.mxu0 0.0
        %4464 = vmatpush2.xpose.msra.mxu0 0.0
        %4465 = vmatprep.subr.mxu0 0.0
        %4466 = vmatpush2.xpose.msra.mxu0 0.0
        %4467 = vmatprep.subr.mxu0 0.0
        %4468 = vmatpush2.xpose.msra.mxu0 0.0
        %4469 = vmatprep.subr.mxu0 0.0
        %4470 = vmatpush2.xpose.msra.mxu0 0.0
        %4471 = vmatprep.subr.mxu0 0.0
        %4472 = vmatpush2.xpose.msra.mxu0 0.0
        %4473 = vmatprep.mubr.f32.mxu0 0.0
        %4474 = vmatmul.mubr.f32.gmra.mxu0 %v4401
        %v4475 = vpop.f32.mrf.mxu0
        %v4476 = vadd.f32 %v542, %v4475
        %v4477 = vpop.f32.mrf.mxu0
        %4478 = vmatprep.mubr.f32.mxu0 0.0
        %4479 = vmatmul.mubr.f32.gmra.mxu0 %v4403
        %v4480 = vpop.f32.mrf.mxu0
        %v4481 = vadd.f32 %v543, %v4480
        %v4482 = vpop.f32.mrf.mxu0
        %4483 = vdwg.mxu0
        %4484 = vrot.lane.b32.xlu0 %v500, 112
        %v4485 = vpop.permute.xlu0 %4484
        %4486 = vrot.lane.b32.xlu0 %v505, 112
        %v4487 = vpop.permute.xlu0 %4486
        %4488 = vrot.lane.b32.xlu0 %v500, 80
        %v4489 = vpop.permute.xlu0 %4488
        %4490 = vrot.lane.b32.xlu0 %v505, 80
        %v4491 = vpop.permute.xlu0 %4490
        %v4492 = vsel %vm552, %v4485, 0
        %v4494 = vsel %vm552, %v4487, 0
        %v4496 = vsel %vm552, %v4489, 0
        %v4498 = vsel %vm552, %v4491, 0
        %4500 = vmatprep.subr.mxu0 0.0
        %4501 = vmatpush1.xpose.msra.mxu0 0.0
        %4502 = vmatprep.subr.mxu0 0.0
        %4503 = vmatpush1.xpose.msra.mxu0 0.0
        %4504 = vmatprep.subr.mxu0 0.0
        %4505 = vmatpush1.xpose.msra.mxu0 0.0
        %4506 = vmatprep.subr.mxu0 0.0
        %4507 = vmatpush1.xpose.msra.mxu0 0.0
        %4508 = vmatprep.subr.mxu0 0.0
        %4509 = vmatpush1.xpose.msra.mxu0 0.0
        %4510 = vmatprep.subr.mxu0 0.0
        %4511 = vmatpush1.xpose.msra.mxu0 0.0
        %4512 = vmatprep.subr.mxu0 0.0
        %4513 = vmatpush1.xpose.msra.mxu0 0.0
        %4514 = vmatprep.subr.mxu0 0.0
        %4515 = vmatpush1.xpose.msra.mxu0 0.0
        %4516 = vmatprep.subr.mxu0 0.0
        %4517 = vmatpush1.xpose.msra.mxu0 0.0
        %4518 = vmatprep.subr.mxu0 0.0
        %4519 = vmatpush1.xpose.msra.mxu0 0.0
        %4520 = vmatprep.subr.mxu0 0.0
        %4521 = vmatpush1.xpose.msra.mxu0 0.0
        %4522 = vmatprep.subr.mxu0 0.0
        %4523 = vmatpush1.xpose.msra.mxu0 0.0
        %4524 = vmatprep.subr.mxu0 0.0
        %4525 = vmatpush1.xpose.msra.mxu0 0.0
        %4526 = vmatprep.subr.mxu0 0.0
        %4527 = vmatpush1.xpose.msra.mxu0 0.0
        %4528 = vmatprep.subr.mxu0 0.0
        %4529 = vmatpush1.xpose.msra.mxu0 %v4498
        %4530 = vmatprep.subr.mxu0 0.0
        %4531 = vmatpush1.xpose.msra.mxu0 %v4496
        %4532 = vmatprep.subr.mxu0 0.0
        %4533 = vmatpush2.xpose.msra.mxu0 0.0
        %4534 = vmatprep.subr.mxu0 0.0
        %4535 = vmatpush2.xpose.msra.mxu0 0.0
        %4536 = vmatprep.subr.mxu0 0.0
        %4537 = vmatpush2.xpose.msra.mxu0 0.0
        %4538 = vmatprep.subr.mxu0 0.0
        %4539 = vmatpush2.xpose.msra.mxu0 0.0
        %4540 = vmatprep.subr.mxu0 0.0
        %4541 = vmatpush2.xpose.msra.mxu0 0.0
        %4542 = vmatprep.subr.mxu0 0.0
        %4543 = vmatpush2.xpose.msra.mxu0 0.0
        %4544 = vmatprep.subr.mxu0 0.0
        %4545 = vmatpush2.xpose.msra.mxu0 0.0
        %4546 = vmatprep.subr.mxu0 0.0
        %4547 = vmatpush2.xpose.msra.mxu0 0.0
        %4548 = vmatprep.subr.mxu0 0.0
        %4549 = vmatpush2.xpose.msra.mxu0 0.0
        %4550 = vmatprep.subr.mxu0 0.0
        %4551 = vmatpush2.xpose.msra.mxu0 0.0
        %4552 = vmatprep.subr.mxu0 0.0
        %4553 = vmatpush2.xpose.msra.mxu0 0.0
        %4554 = vmatprep.subr.mxu0 0.0
        %4555 = vmatpush2.xpose.msra.mxu0 0.0
        %4556 = vmatprep.subr.mxu0 0.0
        %4557 = vmatpush2.xpose.msra.mxu0 0.0
        %4558 = vmatprep.subr.mxu0 0.0
        %4559 = vmatpush2.xpose.msra.mxu0 0.0
        %4560 = vmatprep.subr.mxu0 0.0
        %4561 = vmatpush2.xpose.msra.mxu0 0.0
        %4562 = vmatprep.subr.mxu0 0.0
        %4563 = vmatpush2.xpose.msra.mxu0 0.0
        %4564 = vmatprep.mubr.f32.mxu0 0.0
        %4565 = vmatmul.mubr.f32.gmra.mxu0 %v4492
        %v4566 = vpop.f32.mrf.mxu0
        %v4567 = vadd.f32 %v542, %v4566
        %v4568 = vpop.f32.mrf.mxu0
        %4569 = vmatprep.mubr.f32.mxu0 0.0
        %4570 = vmatmul.mubr.f32.gmra.mxu0 %v4494
        %v4571 = vpop.f32.mrf.mxu0
        %v4572 = vadd.f32 %v543, %v4571
        %v4573 = vpop.f32.mrf.mxu0
        %4574 = vdwg.mxu0
        %4575 = vrot.lane.b32.xlu0 %v510, 112
        %v4576 = vpop.permute.xlu0 %4575
        %4577 = vrot.lane.b32.xlu0 %v515, 112
        %v4578 = vpop.permute.xlu0 %4577
        %4579 = vrot.lane.b32.xlu0 %v510, 80
        %v4580 = vpop.permute.xlu0 %4579
        %4581 = vrot.lane.b32.xlu0 %v515, 80
        %v4582 = vpop.permute.xlu0 %4581
        %v4583 = vsel %vm552, %v4576, 0
        %v4585 = vsel %vm552, %v4578, 0
        %v4587 = vsel %vm552, %v4580, 0
        %v4589 = vsel %vm552, %v4582, 0
        %4591 = vmatprep.subr.mxu0 0.0
        %4592 = vmatpush1.xpose.msra.mxu0 0.0
        %4593 = vmatprep.subr.mxu0 0.0
        %4594 = vmatpush1.xpose.msra.mxu0 0.0
        %4595 = vmatprep.subr.mxu0 0.0
        %4596 = vmatpush1.xpose.msra.mxu0 0.0
        %4597 = vmatprep.subr.mxu0 0.0
        %4598 = vmatpush1.xpose.msra.mxu0 0.0
        %4599 = vmatprep.subr.mxu0 0.0
        %4600 = vmatpush1.xpose.msra.mxu0 0.0
        %4601 = vmatprep.subr.mxu0 0.0
        %4602 = vmatpush1.xpose.msra.mxu0 0.0
        %4603 = vmatprep.subr.mxu0 0.0
        %4604 = vmatpush1.xpose.msra.mxu0 0.0
        %4605 = vmatprep.subr.mxu0 0.0
        %4606 = vmatpush1.xpose.msra.mxu0 0.0
        %4607 = vmatprep.subr.mxu0 0.0
        %4608 = vmatpush1.xpose.msra.mxu0 0.0
        %4609 = vmatprep.subr.mxu0 0.0
        %4610 = vmatpush1.xpose.msra.mxu0 0.0
        %4611 = vmatprep.subr.mxu0 0.0
        %4612 = vmatpush1.xpose.msra.mxu0 0.0
        %4613 = vmatprep.subr.mxu0 0.0
        %4614 = vmatpush1.xpose.msra.mxu0 0.0
        %4615 = vmatprep.subr.mxu0 0.0
        %4616 = vmatpush1.xpose.msra.mxu0 0.0
        %4617 = vmatprep.subr.mxu0 0.0
        %4618 = vmatpush1.xpose.msra.mxu0 0.0
        %4619 = vmatprep.subr.mxu0 0.0
        %4620 = vmatpush1.xpose.msra.mxu0 %v4589
        %4621 = vmatprep.subr.mxu0 0.0
        %4622 = vmatpush1.xpose.msra.mxu0 %v4587
        %4623 = vmatprep.subr.mxu0 0.0
        %4624 = vmatpush2.xpose.msra.mxu0 0.0
        %4625 = vmatprep.subr.mxu0 0.0
        %4626 = vmatpush2.xpose.msra.mxu0 0.0
        %4627 = vmatprep.subr.mxu0 0.0
        %4628 = vmatpush2.xpose.msra.mxu0 0.0
        %4629 = vmatprep.subr.mxu0 0.0
        %4630 = vmatpush2.xpose.msra.mxu0 0.0
        %4631 = vmatprep.subr.mxu0 0.0
        %4632 = vmatpush2.xpose.msra.mxu0 0.0
        %4633 = vmatprep.subr.mxu0 0.0
        %4634 = vmatpush2.xpose.msra.mxu0 0.0
        %4635 = vmatprep.subr.mxu0 0.0
        %4636 = vmatpush2.xpose.msra.mxu0 0.0
        %4637 = vmatprep.subr.mxu0 0.0
        %4638 = vmatpush2.xpose.msra.mxu0 0.0
        %4639 = vmatprep.subr.mxu0 0.0
        %4640 = vmatpush2.xpose.msra.mxu0 0.0
        %4641 = vmatprep.subr.mxu0 0.0
        %4642 = vmatpush2.xpose.msra.mxu0 0.0
        %4643 = vmatprep.subr.mxu0 0.0
        %4644 = vmatpush2.xpose.msra.mxu0 0.0
        %4645 = vmatprep.subr.mxu0 0.0
        %4646 = vmatpush2.xpose.msra.mxu0 0.0
        %4647 = vmatprep.subr.mxu0 0.0
        %4648 = vmatpush2.xpose.msra.mxu0 0.0
        %4649 = vmatprep.subr.mxu0 0.0
        %4650 = vmatpush2.xpose.msra.mxu0 0.0
        %4651 = vmatprep.subr.mxu0 0.0
        %4652 = vmatpush2.xpose.msra.mxu0 0.0
        %4653 = vmatprep.subr.mxu0 0.0
        %4654 = vmatpush2.xpose.msra.mxu0 0.0
        %4655 = vmatprep.mubr.f32.mxu0 0.0
        %4656 = vmatmul.mubr.f32.gmra.mxu0 %v4583
        %v4657 = vpop.f32.mrf.mxu0
        %v4658 = vadd.f32 %v542, %v4657
        %v4659 = vpop.f32.mrf.mxu0
        %4660 = vmatprep.mubr.f32.mxu0 0.0
        %4661 = vmatmul.mubr.f32.gmra.mxu0 %v4585
        %v4662 = vpop.f32.mrf.mxu0
        %v4663 = vadd.f32 %v543, %v4662
        %v4664 = vpop.f32.mrf.mxu0
        %4665 = vdwg.mxu0
        %4666 = vrot.lane.b32.xlu0 %v520, 112
        %v4667 = vpop.permute.xlu0 %4666
        %4668 = vrot.lane.b32.xlu0 %v525, 112
        %v4669 = vpop.permute.xlu0 %4668
        %4670 = vrot.lane.b32.xlu0 %v520, 80
        %v4671 = vpop.permute.xlu0 %4670
        %4672 = vrot.lane.b32.xlu0 %v525, 80
        %v4673 = vpop.permute.xlu0 %4672
        %v4674 = vsel %vm552, %v4667, 0
        %v4676 = vsel %vm552, %v4669, 0
        %v4678 = vsel %vm552, %v4671, 0
        %v4680 = vsel %vm552, %v4673, 0
        %4682 = vmatprep.subr.mxu0 0.0
        %4683 = vmatpush1.xpose.msra.mxu0 0.0
        %4684 = vmatprep.subr.mxu0 0.0
        %4685 = vmatpush1.xpose.msra.mxu0 0.0
        %4686 = vmatprep.subr.mxu0 0.0
        %4687 = vmatpush1.xpose.msra.mxu0 0.0
        %4688 = vmatprep.subr.mxu0 0.0
        %4689 = vmatpush1.xpose.msra.mxu0 0.0
        %4690 = vmatprep.subr.mxu0 0.0
        %4691 = vmatpush1.xpose.msra.mxu0 0.0
        %4692 = vmatprep.subr.mxu0 0.0
        %4693 = vmatpush1.xpose.msra.mxu0 0.0
        %4694 = vmatprep.subr.mxu0 0.0
        %4695 = vmatpush1.xpose.msra.mxu0 0.0
        %4696 = vmatprep.subr.mxu0 0.0
        %4697 = vmatpush1.xpose.msra.mxu0 0.0
        %4698 = vmatprep.subr.mxu0 0.0
        %4699 = vmatpush1.xpose.msra.mxu0 0.0
        %4700 = vmatprep.subr.mxu0 0.0
        %4701 = vmatpush1.xpose.msra.mxu0 0.0
        %4702 = vmatprep.subr.mxu0 0.0
        %4703 = vmatpush1.xpose.msra.mxu0 0.0
        %4704 = vmatprep.subr.mxu0 0.0
        %4705 = vmatpush1.xpose.msra.mxu0 0.0
        %4706 = vmatprep.subr.mxu0 0.0
        %4707 = vmatpush1.xpose.msra.mxu0 0.0
        %4708 = vmatprep.subr.mxu0 0.0
        %4709 = vmatpush1.xpose.msra.mxu0 0.0
        %4710 = vmatprep.subr.mxu0 0.0
        %4711 = vmatpush1.xpose.msra.mxu0 %v4680
        %4712 = vmatprep.subr.mxu0 0.0
        %4713 = vmatpush1.xpose.msra.mxu0 %v4678
        %4714 = vmatprep.subr.mxu0 0.0
        %4715 = vmatpush2.xpose.msra.mxu0 0.0
        %4716 = vmatprep.subr.mxu0 0.0
        %4717 = vmatpush2.xpose.msra.mxu0 0.0
        %4718 = vmatprep.subr.mxu0 0.0
        %4719 = vmatpush2.xpose.msra.mxu0 0.0
        %4720 = vmatprep.subr.mxu0 0.0
        %4721 = vmatpush2.xpose.msra.mxu0 0.0
        %4722 = vmatprep.subr.mxu0 0.0
        %4723 = vmatpush2.xpose.msra.mxu0 0.0
        %4724 = vmatprep.subr.mxu0 0.0
        %4725 = vmatpush2.xpose.msra.mxu0 0.0
        %4726 = vmatprep.subr.mxu0 0.0
        %4727 = vmatpush2.xpose.msra.mxu0 0.0
        %4728 = vmatprep.subr.mxu0 0.0
        %4729 = vmatpush2.xpose.msra.mxu0 0.0
        %4730 = vmatprep.subr.mxu0 0.0
        %4731 = vmatpush2.xpose.msra.mxu0 0.0
        %4732 = vmatprep.subr.mxu0 0.0
        %4733 = vmatpush2.xpose.msra.mxu0 0.0
        %4734 = vmatprep.subr.mxu0 0.0
        %4735 = vmatpush2.xpose.msra.mxu0 0.0
        %4736 = vmatprep.subr.mxu0 0.0
        %4737 = vmatpush2.xpose.msra.mxu0 0.0
        %4738 = vmatprep.subr.mxu0 0.0
        %4739 = vmatpush2.xpose.msra.mxu0 0.0
        %4740 = vmatprep.subr.mxu0 0.0
        %4741 = vmatpush2.xpose.msra.mxu0 0.0
        %4742 = vmatprep.subr.mxu0 0.0
        %4743 = vmatpush2.xpose.msra.mxu0 0.0
        %4744 = vmatprep.subr.mxu0 0.0
        %4745 = vmatpush2.xpose.msra.mxu0 0.0
        %4746 = vmatprep.mubr.f32.mxu0 0.0
        %4747 = vmatmul.mubr.f32.gmra.mxu0 %v4674
        %v4748 = vpop.f32.mrf.mxu0
        %v4749 = vadd.f32 %v542, %v4748
        %v4750 = vpop.f32.mrf.mxu0
        %4751 = vmatprep.mubr.f32.mxu0 0.0
        %4752 = vmatmul.mubr.f32.gmra.mxu0 %v4676
        %v4753 = vpop.f32.mrf.mxu0
        %v4754 = vadd.f32 %v543, %v4753
        %v4755 = vpop.f32.mrf.mxu0
        %4756 = vdwg.mxu0
        %4757 = vrot.lane.b32.xlu0 %v530, 112
        %v4758 = vpop.permute.xlu0 %4757
        %4759 = vrot.lane.b32.xlu0 %v535, 112
        %v4760 = vpop.permute.xlu0 %4759
        %4761 = vrot.lane.b32.xlu0 %v530, 80
        %v4762 = vpop.permute.xlu0 %4761
        %4763 = vrot.lane.b32.xlu0 %v535, 80
        %v4764 = vpop.permute.xlu0 %4763
        %v4765 = vsel %vm552, %v4758, 0
        %v4767 = vsel %vm552, %v4760, 0
        %v4769 = vsel %vm552, %v4762, 0
        %v4771 = vsel %vm552, %v4764, 0
        %4773 = vmatprep.subr.mxu0 0.0
        %4774 = vmatpush1.xpose.msra.mxu0 0.0
        %4775 = vmatprep.subr.mxu0 0.0
        %4776 = vmatpush1.xpose.msra.mxu0 0.0
        %4777 = vmatprep.subr.mxu0 0.0
        %4778 = vmatpush1.xpose.msra.mxu0 0.0
        %4779 = vmatprep.subr.mxu0 0.0
        %4780 = vmatpush1.xpose.msra.mxu0 0.0
        %4781 = vmatprep.subr.mxu0 0.0
        %4782 = vmatpush1.xpose.msra.mxu0 0.0
        %4783 = vmatprep.subr.mxu0 0.0
        %4784 = vmatpush1.xpose.msra.mxu0 0.0
        %4785 = vmatprep.subr.mxu0 0.0
        %4786 = vmatpush1.xpose.msra.mxu0 0.0
        %4787 = vmatprep.subr.mxu0 0.0
        %4788 = vmatpush1.xpose.msra.mxu0 0.0
        %4789 = vmatprep.subr.mxu0 0.0
        %4790 = vmatpush1.xpose.msra.mxu0 0.0
        %4791 = vmatprep.subr.mxu0 0.0
        %4792 = vmatpush1.xpose.msra.mxu0 0.0
        %4793 = vmatprep.subr.mxu0 0.0
        %4794 = vmatpush1.xpose.msra.mxu0 0.0
        %4795 = vmatprep.subr.mxu0 0.0
        %4796 = vmatpush1.xpose.msra.mxu0 0.0
        %4797 = vmatprep.subr.mxu0 0.0
        %4798 = vmatpush1.xpose.msra.mxu0 0.0
        %4799 = vmatprep.subr.mxu0 0.0
        %4800 = vmatpush1.xpose.msra.mxu0 0.0
        %4801 = vmatprep.subr.mxu0 0.0
        %4802 = vmatpush1.xpose.msra.mxu0 %v4771
        %4803 = vmatprep.subr.mxu0 0.0
        %4804 = vmatpush1.xpose.msra.mxu0 %v4769
        %4805 = vmatprep.subr.mxu0 0.0
        %4806 = vmatpush2.xpose.msra.mxu0 0.0
        %4807 = vmatprep.subr.mxu0 0.0
        %4808 = vmatpush2.xpose.msra.mxu0 0.0
        %4809 = vmatprep.subr.mxu0 0.0
        %4810 = vmatpush2.xpose.msra.mxu0 0.0
        %4811 = vmatprep.subr.mxu0 0.0
        %4812 = vmatpush2.xpose.msra.mxu0 0.0
        %4813 = vmatprep.subr.mxu0 0.0
        %4814 = vmatpush2.xpose.msra.mxu0 0.0
        %4815 = vmatprep.subr.mxu0 0.0
        %4816 = vmatpush2.xpose.msra.mxu0 0.0
        %4817 = vmatprep.subr.mxu0 0.0
        %4818 = vmatpush2.xpose.msra.mxu0 0.0
        %4819 = vmatprep.subr.mxu0 0.0
        %4820 = vmatpush2.xpose.msra.mxu0 0.0
        %4821 = vmatprep.subr.mxu0 0.0
        %4822 = vmatpush2.xpose.msra.mxu0 0.0
        %4823 = vmatprep.subr.mxu0 0.0
        %4824 = vmatpush2.xpose.msra.mxu0 0.0
        %4825 = vmatprep.subr.mxu0 0.0
        %4826 = vmatpush2.xpose.msra.mxu0 0.0
        %4827 = vmatprep.subr.mxu0 0.0
        %4828 = vmatpush2.xpose.msra.mxu0 0.0
        %4829 = vmatprep.subr.mxu0 0.0
        %4830 = vmatpush2.xpose.msra.mxu0 0.0
        %4831 = vmatprep.subr.mxu0 0.0
        %4832 = vmatpush2.xpose.msra.mxu0 0.0
        %4833 = vmatprep.subr.mxu0 0.0
        %4834 = vmatpush2.xpose.msra.mxu0 0.0
        %4835 = vmatprep.subr.mxu0 0.0
        %4836 = vmatpush2.xpose.msra.mxu0 0.0
        %4837 = vmatprep.mubr.f32.mxu0 0.0
        %4838 = vmatmul.mubr.f32.gmra.mxu0 %v4765
        %v4839 = vpop.f32.mrf.mxu0
        %v4840 = vadd.f32 %v542, %v4839
        %v4841 = vpop.f32.mrf.mxu0
        %4842 = vmatprep.mubr.f32.mxu0 0.0
        %4843 = vmatmul.mubr.f32.gmra.mxu0 %v4767
        %v4844 = vpop.f32.mrf.mxu0
        %v4845 = vadd.f32 %v543, %v4844
        %v4846 = vpop.f32.mrf.mxu0
        %4847 = vdwg.mxu0
        %v4848 = vsel %vm1259, %v4203, -inf
        %4849 = vmax.xlane.f32.xlu0 %v4848
        %v4850 = vpop.xlane.xlu0 %4849
        %v4851 = vsel %vm1259, %v4208, -inf
        %4852 = vmax.xlane.f32.xlu0 %v4851
        %v4853 = vpop.xlane.xlu0 %4852
        %v4854 = vsel %vm1259, %v4294, -inf
        %4855 = vmax.xlane.f32.xlu0 %v4854
        %v4856 = vpop.xlane.xlu0 %4855
        %v4857 = vsel %vm1259, %v4299, -inf
        %4858 = vmax.xlane.f32.xlu0 %v4857
        %v4859 = vpop.xlane.xlu0 %4858
        %v4860 = vsel %vm1259, %v4385, -inf
        %4861 = vmax.xlane.f32.xlu0 %v4860
        %v4862 = vpop.xlane.xlu0 %4861
        %v4863 = vsel %vm1259, %v4390, -inf
        %4864 = vmax.xlane.f32.xlu0 %v4863
        %v4865 = vpop.xlane.xlu0 %4864
        %v4866 = vsel %vm1259, %v4476, -inf
        %4867 = vmax.xlane.f32.xlu0 %v4866
        %v4868 = vpop.xlane.xlu0 %4867
        %v4869 = vsel %vm1259, %v4481, -inf
        %4870 = vmax.xlane.f32.xlu0 %v4869
        %v4871 = vpop.xlane.xlu0 %4870
        %v4872 = vsel %vm1259, %v4567, -inf
        %4873 = vmax.xlane.f32.xlu0 %v4872
        %v4874 = vpop.xlane.xlu0 %4873
        %v4875 = vsel %vm1259, %v4572, -inf
        %4876 = vmax.xlane.f32.xlu0 %v4875
        %v4877 = vpop.xlane.xlu0 %4876
        %v4878 = vsel %vm1259, %v4658, -inf
        %4879 = vmax.xlane.f32.xlu0 %v4878
        %v4880 = vpop.xlane.xlu0 %4879
        %v4881 = vsel %vm1259, %v4663, -inf
        %4882 = vmax.xlane.f32.xlu0 %v4881
        %v4883 = vpop.xlane.xlu0 %4882
        %v4884 = vsel %vm1259, %v4749, -inf
        %4885 = vmax.xlane.f32.xlu0 %v4884
        %v4886 = vpop.xlane.xlu0 %4885
        %v4887 = vsel %vm1259, %v4754, -inf
        %4888 = vmax.xlane.f32.xlu0 %v4887
        %v4889 = vpop.xlane.xlu0 %4888
        %v4890 = vsel %vm1259, %v4840, -inf
        %4891 = vmax.xlane.f32.xlu0 %v4890
        %v4892 = vpop.xlane.xlu0 %4891
        %v4893 = vsel %vm1259, %v4845, -inf
        %4894 = vmax.xlane.f32.xlu0 %v4893
        %v4895 = vpop.xlane.xlu0 %4894
        %v4896 = vsub.f32 %v4203, %v4850
        %v4897 = vsub.f32 %v4208, %v4853
        %v4898 = vsub.f32 %v4294, %v4856
        %v4899 = vsub.f32 %v4299, %v4859
        %v4900 = vsub.f32 %v4385, %v4862
        %v4901 = vsub.f32 %v4390, %v4865
        %v4902 = vsub.f32 %v4476, %v4868
        %v4903 = vsub.f32 %v4481, %v4871
        %v4904 = vsub.f32 %v4567, %v4874
        %v4905 = vsub.f32 %v4572, %v4877
        %v4906 = vsub.f32 %v4658, %v4880
        %v4907 = vsub.f32 %v4663, %v4883
        %v4908 = vsub.f32 %v4749, %v4886
        %v4909 = vsub.f32 %v4754, %v4889
        %v4910 = vsub.f32 %v4840, %v4892
        %v4911 = vsub.f32 %v4845, %v4895
        %v4912 = vmul.f32 %v4896, 1.442695
        %v4913 = vpow.pop %v4912
        %v4914 = vmul.f32 %v4897, 1.442695
        %v4915 = vpow.pop %v4914
        %v4916 = vmul.f32 %v4898, 1.442695
        %v4917 = vpow.pop %v4916
        %v4918 = vmul.f32 %v4899, 1.442695
        %v4919 = vpow.pop %v4918
        %v4920 = vmul.f32 %v4900, 1.442695
        %v4921 = vpow.pop %v4920
        %v4922 = vmul.f32 %v4901, 1.442695
        %v4923 = vpow.pop %v4922
        %v4924 = vmul.f32 %v4902, 1.442695
        %v4925 = vpow.pop %v4924
        %v4926 = vmul.f32 %v4903, 1.442695
        %v4927 = vpow.pop %v4926
        %v4928 = vmul.f32 %v4904, 1.442695
        %v4929 = vpow.pop %v4928
        %v4930 = vmul.f32 %v4905, 1.442695
        %v4931 = vpow.pop %v4930
        %v4932 = vmul.f32 %v4906, 1.442695
        %v4933 = vpow.pop %v4932
        %v4934 = vmul.f32 %v4907, 1.442695
        %v4935 = vpow.pop %v4934
        %v4936 = vmul.f32 %v4908, 1.442695
        %v4937 = vpow.pop %v4936
        %v4938 = vmul.f32 %v4909, 1.442695
        %v4939 = vpow.pop %v4938
        %v4940 = vmul.f32 %v4910, 1.442695
        %v4941 = vpow.pop %v4940
        %v4942 = vmul.f32 %v4911, 1.442695
        %v4943 = vpow.pop %v4942
        %v4944 = vsel %vm1259, %v4913, 0.0
        %4945 = vadd.xlane.f32.xlu0 %v4944
        %v4946 = vpop.xlane.xlu0 %4945
        %v4947 = vsel %vm1259, %v4915, 0.0
        %4948 = vadd.xlane.f32.xlu0 %v4947
        %v4949 = vpop.xlane.xlu0 %4948
        %v4950 = vsel %vm1259, %v4917, 0.0
        %4951 = vadd.xlane.f32.xlu0 %v4950
        %v4952 = vpop.xlane.xlu0 %4951
        %v4953 = vsel %vm1259, %v4919, 0.0
        %4954 = vadd.xlane.f32.xlu0 %v4953
        %v4955 = vpop.xlane.xlu0 %4954
        %v4956 = vsel %vm1259, %v4921, 0.0
        %4957 = vadd.xlane.f32.xlu0 %v4956
        %v4958 = vpop.xlane.xlu0 %4957
        %v4959 = vsel %vm1259, %v4923, 0.0
        %4960 = vadd.xlane.f32.xlu0 %v4959
        %v4961 = vpop.xlane.xlu0 %4960
        %v4962 = vsel %vm1259, %v4925, 0.0
        %4963 = vadd.xlane.f32.xlu0 %v4962
        %v4964 = vpop.xlane.xlu0 %4963
        %v4965 = vsel %vm1259, %v4927, 0.0
        %4966 = vadd.xlane.f32.xlu0 %v4965
        %v4967 = vpop.xlane.xlu0 %4966
        %v4968 = vsel %vm1259, %v4929, 0.0
        %4969 = vadd.xlane.f32.xlu0 %v4968
        %v4970 = vpop.xlane.xlu0 %4969
        %v4971 = vsel %vm1259, %v4931, 0.0
        %4972 = vadd.xlane.f32.xlu0 %v4971
        %v4973 = vpop.xlane.xlu0 %4972
        %v4974 = vsel %vm1259, %v4933, 0.0
        %4975 = vadd.xlane.f32.xlu0 %v4974
        %v4976 = vpop.xlane.xlu0 %4975
        %v4977 = vsel %vm1259, %v4935, 0.0
        %4978 = vadd.xlane.f32.xlu0 %v4977
        %v4979 = vpop.xlane.xlu0 %4978
        %v4980 = vsel %vm1259, %v4937, 0.0
        %4981 = vadd.xlane.f32.xlu0 %v4980
        %v4982 = vpop.xlane.xlu0 %4981
        %v4983 = vsel %vm1259, %v4939, 0.0
        %4984 = vadd.xlane.f32.xlu0 %v4983
        %v4985 = vpop.xlane.xlu0 %4984
        %v4986 = vsel %vm1259, %v4941, 0.0
        %4987 = vadd.xlane.f32.xlu0 %v4986
        %v4988 = vpop.xlane.xlu0 %4987
        %v4989 = vsel %vm1259, %v4943, 0.0
        %4990 = vadd.xlane.f32.xlu0 %v4989
        %v4991 = vpop.xlane.xlu0 %4990
        %v4992 = vrcp.pop %v4946
        %v4993 = vrcp.pop %v4949
        %v4994 = vrcp.pop %v4952
        %v4995 = vrcp.pop %v4955
        %v4996 = vrcp.pop %v4958
        %v4997 = vrcp.pop %v4961
        %v4998 = vrcp.pop %v4964
        %v4999 = vrcp.pop %v4967
        %v5000 = vrcp.pop %v4970
        %v5001 = vrcp.pop %v4973
        %v5002 = vrcp.pop %v4976
        %v5003 = vrcp.pop %v4979
        %v5004 = vrcp.pop %v4982
        %v5005 = vrcp.pop %v4985
        %v5006 = vrcp.pop %v4988
        %v5007 = vrcp.pop %v4991
        %v5008 = vmul.f32 %v4913, %v4992
        %v5009 = vmul.f32 %v4915, %v4993
        %v5010 = vmul.f32 %v4917, %v4994
        %v5011 = vmul.f32 %v4919, %v4995
        %v5012 = vmul.f32 %v4921, %v4996
        %v5013 = vmul.f32 %v4923, %v4997
        %v5014 = vmul.f32 %v4925, %v4998
        %v5015 = vmul.f32 %v4927, %v4999
        %v5016 = vmul.f32 %v4929, %v5000
        %v5017 = vmul.f32 %v4931, %v5001
        %v5018 = vmul.f32 %v4933, %v5002
        %v5019 = vmul.f32 %v4935, %v5003
        %v5020 = vmul.f32 %v4937, %v5004
        %v5021 = vmul.f32 %v4939, %v5005
        %v5022 = vmul.f32 %v4941, %v5006
        %v5023 = vmul.f32 %v4943, %v5007
        %5024 = vrot.lane.b32.xlu0 %v460, 48
        %v5025 = vpop.permute.xlu0 %5024
        %5026 = vrot.lane.b32.xlu0 %v465, 48
        %v5027 = vpop.permute.xlu0 %5026
        %v5031 = vsel %vm1259, %v5008, 0
        %v5034 = vsel %vm1259, %v5009, 0
        %5036 = vmatprep.subr.mxu0 0.0
        %5037 = vmatpush1.msra.mxu0 0.0
        %5038 = vmatprep.subr.mxu0 0.0
        %5039 = vmatpush1.msra.mxu0 0.0
        %5040 = vmatprep.subr.mxu0 0.0
        %5041 = vmatpush1.msra.mxu0 0.0
        %5042 = vmatprep.subr.mxu0 0.0
        %5043 = vmatpush1.msra.mxu0 0.0
        %5044 = vmatprep.subr.mxu0 0.0
        %5045 = vmatpush1.msra.mxu0 0.0
        %5046 = vmatprep.subr.mxu0 0.0
        %5047 = vmatpush1.msra.mxu0 0.0
        %5048 = vmatprep.subr.mxu0 0.0
        %5049 = vmatpush1.msra.mxu0 0.0
        %5050 = vmatprep.subr.mxu0 0.0
        %5051 = vmatpush1.msra.mxu0 0.0
        %5052 = vmatprep.subr.mxu0 0.0
        %5053 = vmatpush1.msra.mxu0 0.0
        %5054 = vmatprep.subr.mxu0 0.0
        %5055 = vmatpush1.msra.mxu0 0.0
        %5056 = vmatprep.subr.mxu0 0.0
        %5057 = vmatpush1.msra.mxu0 0.0
        %5058 = vmatprep.subr.mxu0 0.0
        %5059 = vmatpush1.msra.mxu0 0.0
        %5060 = vmatprep.subr.mxu0 0.0
        %5061 = vmatpush1.msra.mxu0 0.0
        %5062 = vmatprep.subr.mxu0 0.0
        %5063 = vmatpush1.msra.mxu0 0.0
        %5064 = vmatprep.subr.mxu0 0.0
        %5065 = vmatpush1.msra.mxu0 %v5027
        %5066 = vmatprep.subr.mxu0 0.0
        %5067 = vmatpush1.msra.mxu0 %v5025
        %5068 = vmatprep.subr.mxu0 0.0
        %5069 = vmatpush2.msra.mxu0 0.0
        %5070 = vmatprep.subr.mxu0 0.0
        %5071 = vmatpush2.msra.mxu0 0.0
        %5072 = vmatprep.subr.mxu0 0.0
        %5073 = vmatpush2.msra.mxu0 0.0
        %5074 = vmatprep.subr.mxu0 0.0
        %5075 = vmatpush2.msra.mxu0 0.0
        %5076 = vmatprep.subr.mxu0 0.0
        %5077 = vmatpush2.msra.mxu0 0.0
        %5078 = vmatprep.subr.mxu0 0.0
        %5079 = vmatpush2.msra.mxu0 0.0
        %5080 = vmatprep.subr.mxu0 0.0
        %5081 = vmatpush2.msra.mxu0 0.0
        %5082 = vmatprep.subr.mxu0 0.0
        %5083 = vmatpush2.msra.mxu0 0.0
        %5084 = vmatprep.subr.mxu0 0.0
        %5085 = vmatpush2.msra.mxu0 0.0
        %5086 = vmatprep.subr.mxu0 0.0
        %5087 = vmatpush2.msra.mxu0 0.0
        %5088 = vmatprep.subr.mxu0 0.0
        %5089 = vmatpush2.msra.mxu0 0.0
        %5090 = vmatprep.subr.mxu0 0.0
        %5091 = vmatpush2.msra.mxu0 0.0
        %5092 = vmatprep.subr.mxu0 0.0
        %5093 = vmatpush2.msra.mxu0 0.0
        %5094 = vmatprep.subr.mxu0 0.0
        %5095 = vmatpush2.msra.mxu0 0.0
        %5096 = vmatprep.subr.mxu0 0.0
        %5097 = vmatpush2.msra.mxu0 0.0
        %5098 = vmatprep.subr.mxu0 0.0
        %5099 = vmatpush2.msra.mxu0 0.0
        %5100 = vmatprep.mubr.f32.mxu0 0.0
        %5101 = vmatmul.mubr.f32.gmra.mxu0 %v5031
        %v5102 = vpop.f32.mrf.mxu0
        %v5103 = vadd.f32 0.0, %v5102
        %v5104 = vpop.f32.mrf.mxu0
        %5105 = vmatprep.mubr.f32.mxu0 0.0
        %5106 = vmatmul.mubr.f32.gmra.mxu0 %v5034
        %v5107 = vpop.f32.mrf.mxu0
        %v5108 = vadd.f32 0.0, %v5107
        %v5109 = vpop.f32.mrf.mxu0
        %5110 = vdwg.mxu0
        %5111 = vrot.lane.b32.xlu0 %v470, 48
        %v5112 = vpop.permute.xlu0 %5111
        %5113 = vrot.lane.b32.xlu0 %v475, 48
        %v5114 = vpop.permute.xlu0 %5113
        %v5118 = vsel %vm1259, %v5010, 0
        %v5121 = vsel %vm1259, %v5011, 0
        %5123 = vmatprep.subr.mxu0 0.0
        %5124 = vmatpush1.msra.mxu0 0.0
        %5125 = vmatprep.subr.mxu0 0.0
        %5126 = vmatpush1.msra.mxu0 0.0
        %5127 = vmatprep.subr.mxu0 0.0
        %5128 = vmatpush1.msra.mxu0 0.0
        %5129 = vmatprep.subr.mxu0 0.0
        %5130 = vmatpush1.msra.mxu0 0.0
        %5131 = vmatprep.subr.mxu0 0.0
        %5132 = vmatpush1.msra.mxu0 0.0
        %5133 = vmatprep.subr.mxu0 0.0
        %5134 = vmatpush1.msra.mxu0 0.0
        %5135 = vmatprep.subr.mxu0 0.0
        %5136 = vmatpush1.msra.mxu0 0.0
        %5137 = vmatprep.subr.mxu0 0.0
        %5138 = vmatpush1.msra.mxu0 0.0
        %5139 = vmatprep.subr.mxu0 0.0
        %5140 = vmatpush1.msra.mxu0 0.0
        %5141 = vmatprep.subr.mxu0 0.0
        %5142 = vmatpush1.msra.mxu0 0.0
        %5143 = vmatprep.subr.mxu0 0.0
        %5144 = vmatpush1.msra.mxu0 0.0
        %5145 = vmatprep.subr.mxu0 0.0
        %5146 = vmatpush1.msra.mxu0 0.0
        %5147 = vmatprep.subr.mxu0 0.0
        %5148 = vmatpush1.msra.mxu0 0.0
        %5149 = vmatprep.subr.mxu0 0.0
        %5150 = vmatpush1.msra.mxu0 0.0
        %5151 = vmatprep.subr.mxu0 0.0
        %5152 = vmatpush1.msra.mxu0 %v5114
        %5153 = vmatprep.subr.mxu0 0.0
        %5154 = vmatpush1.msra.mxu0 %v5112
        %5155 = vmatprep.subr.mxu0 0.0
        %5156 = vmatpush2.msra.mxu0 0.0
        %5157 = vmatprep.subr.mxu0 0.0
        %5158 = vmatpush2.msra.mxu0 0.0
        %5159 = vmatprep.subr.mxu0 0.0
        %5160 = vmatpush2.msra.mxu0 0.0
        %5161 = vmatprep.subr.mxu0 0.0
        %5162 = vmatpush2.msra.mxu0 0.0
        %5163 = vmatprep.subr.mxu0 0.0
        %5164 = vmatpush2.msra.mxu0 0.0
        %5165 = vmatprep.subr.mxu0 0.0
        %5166 = vmatpush2.msra.mxu0 0.0
        %5167 = vmatprep.subr.mxu0 0.0
        %5168 = vmatpush2.msra.mxu0 0.0
        %5169 = vmatprep.subr.mxu0 0.0
        %5170 = vmatpush2.msra.mxu0 0.0
        %5171 = vmatprep.subr.mxu0 0.0
        %5172 = vmatpush2.msra.mxu0 0.0
        %5173 = vmatprep.subr.mxu0 0.0
        %5174 = vmatpush2.msra.mxu0 0.0
        %5175 = vmatprep.subr.mxu0 0.0
        %5176 = vmatpush2.msra.mxu0 0.0
        %5177 = vmatprep.subr.mxu0 0.0
        %5178 = vmatpush2.msra.mxu0 0.0
        %5179 = vmatprep.subr.mxu0 0.0
        %5180 = vmatpush2.msra.mxu0 0.0
        %5181 = vmatprep.subr.mxu0 0.0
        %5182 = vmatpush2.msra.mxu0 0.0
        %5183 = vmatprep.subr.mxu0 0.0
        %5184 = vmatpush2.msra.mxu0 0.0
        %5185 = vmatprep.subr.mxu0 0.0
        %5186 = vmatpush2.msra.mxu0 0.0
        %5187 = vmatprep.mubr.f32.mxu0 0.0
        %5188 = vmatmul.mubr.f32.gmra.mxu0 %v5118
        %v5189 = vpop.f32.mrf.mxu0
        %v5190 = vadd.f32 0.0, %v5189
        %v5191 = vpop.f32.mrf.mxu0
        %5192 = vmatprep.mubr.f32.mxu0 0.0
        %5193 = vmatmul.mubr.f32.gmra.mxu0 %v5121
        %v5194 = vpop.f32.mrf.mxu0
        %v5195 = vadd.f32 0.0, %v5194
        %v5196 = vpop.f32.mrf.mxu0
        %5197 = vdwg.mxu0
        %5198 = vrot.lane.b32.xlu0 %v480, 48
        %v5199 = vpop.permute.xlu0 %5198
        %5200 = vrot.lane.b32.xlu0 %v485, 48
        %v5201 = vpop.permute.xlu0 %5200
        %v5205 = vsel %vm1259, %v5012, 0
        %v5208 = vsel %vm1259, %v5013, 0
        %5210 = vmatprep.subr.mxu0 0.0
        %5211 = vmatpush1.msra.mxu0 0.0
        %5212 = vmatprep.subr.mxu0 0.0
        %5213 = vmatpush1.msra.mxu0 0.0
        %5214 = vmatprep.subr.mxu0 0.0
        %5215 = vmatpush1.msra.mxu0 0.0
        %5216 = vmatprep.subr.mxu0 0.0
        %5217 = vmatpush1.msra.mxu0 0.0
        %5218 = vmatprep.subr.mxu0 0.0
        %5219 = vmatpush1.msra.mxu0 0.0
        %5220 = vmatprep.subr.mxu0 0.0
        %5221 = vmatpush1.msra.mxu0 0.0
        %5222 = vmatprep.subr.mxu0 0.0
        %5223 = vmatpush1.msra.mxu0 0.0
        %5224 = vmatprep.subr.mxu0 0.0
        %5225 = vmatpush1.msra.mxu0 0.0
        %5226 = vmatprep.subr.mxu0 0.0
        %5227 = vmatpush1.msra.mxu0 0.0
        %5228 = vmatprep.subr.mxu0 0.0
        %5229 = vmatpush1.msra.mxu0 0.0
        %5230 = vmatprep.subr.mxu0 0.0
        %5231 = vmatpush1.msra.mxu0 0.0
        %5232 = vmatprep.subr.mxu0 0.0
        %5233 = vmatpush1.msra.mxu0 0.0
        %5234 = vmatprep.subr.mxu0 0.0
        %5235 = vmatpush1.msra.mxu0 0.0
        %5236 = vmatprep.subr.mxu0 0.0
        %5237 = vmatpush1.msra.mxu0 0.0
        %5238 = vmatprep.subr.mxu0 0.0
        %5239 = vmatpush1.msra.mxu0 %v5201
        %5240 = vmatprep.subr.mxu0 0.0
        %5241 = vmatpush1.msra.mxu0 %v5199
        %5242 = vmatprep.subr.mxu0 0.0
        %5243 = vmatpush2.msra.mxu0 0.0
        %5244 = vmatprep.subr.mxu0 0.0
        %5245 = vmatpush2.msra.mxu0 0.0
        %5246 = vmatprep.subr.mxu0 0.0
        %5247 = vmatpush2.msra.mxu0 0.0
        %5248 = vmatprep.subr.mxu0 0.0
        %5249 = vmatpush2.msra.mxu0 0.0
        %5250 = vmatprep.subr.mxu0 0.0
        %5251 = vmatpush2.msra.mxu0 0.0
        %5252 = vmatprep.subr.mxu0 0.0
        %5253 = vmatpush2.msra.mxu0 0.0
        %5254 = vmatprep.subr.mxu0 0.0
        %5255 = vmatpush2.msra.mxu0 0.0
        %5256 = vmatprep.subr.mxu0 0.0
        %5257 = vmatpush2.msra.mxu0 0.0
        %5258 = vmatprep.subr.mxu0 0.0
        %5259 = vmatpush2.msra.mxu0 0.0
        %5260 = vmatprep.subr.mxu0 0.0
        %5261 = vmatpush2.msra.mxu0 0.0
        %5262 = vmatprep.subr.mxu0 0.0
        %5263 = vmatpush2.msra.mxu0 0.0
        %5264 = vmatprep.subr.mxu0 0.0
        %5265 = vmatpush2.msra.mxu0 0.0
        %5266 = vmatprep.subr.mxu0 0.0
        %5267 = vmatpush2.msra.mxu0 0.0
        %5268 = vmatprep.subr.mxu0 0.0
        %5269 = vmatpush2.msra.mxu0 0.0
        %5270 = vmatprep.subr.mxu0 0.0
        %5271 = vmatpush2.msra.mxu0 0.0
        %5272 = vmatprep.subr.mxu0 0.0
        %5273 = vmatpush2.msra.mxu0 0.0
        %5274 = vmatprep.mubr.f32.mxu0 0.0
        %5275 = vmatmul.mubr.f32.gmra.mxu0 %v5205
        %v5276 = vpop.f32.mrf.mxu0
        %v5277 = vadd.f32 0.0, %v5276
        %v5278 = vpop.f32.mrf.mxu0
        %5279 = vmatprep.mubr.f32.mxu0 0.0
        %5280 = vmatmul.mubr.f32.gmra.mxu0 %v5208
        %v5281 = vpop.f32.mrf.mxu0
        %v5282 = vadd.f32 0.0, %v5281
        %v5283 = vpop.f32.mrf.mxu0
        %5284 = vdwg.mxu0
        %5285 = vrot.lane.b32.xlu0 %v490, 48
        %v5286 = vpop.permute.xlu0 %5285
        %5287 = vrot.lane.b32.xlu0 %v495, 48
        %v5288 = vpop.permute.xlu0 %5287
        %v5292 = vsel %vm1259, %v5014, 0
        %v5295 = vsel %vm1259, %v5015, 0
        %5297 = vmatprep.subr.mxu0 0.0
        %5298 = vmatpush1.msra.mxu0 0.0
        %5299 = vmatprep.subr.mxu0 0.0
        %5300 = vmatpush1.msra.mxu0 0.0
        %5301 = vmatprep.subr.mxu0 0.0
        %5302 = vmatpush1.msra.mxu0 0.0
        %5303 = vmatprep.subr.mxu0 0.0
        %5304 = vmatpush1.msra.mxu0 0.0
        %5305 = vmatprep.subr.mxu0 0.0
        %5306 = vmatpush1.msra.mxu0 0.0
        %5307 = vmatprep.subr.mxu0 0.0
        %5308 = vmatpush1.msra.mxu0 0.0
        %5309 = vmatprep.subr.mxu0 0.0
        %5310 = vmatpush1.msra.mxu0 0.0
        %5311 = vmatprep.subr.mxu0 0.0
        %5312 = vmatpush1.msra.mxu0 0.0
        %5313 = vmatprep.subr.mxu0 0.0
        %5314 = vmatpush1.msra.mxu0 0.0
        %5315 = vmatprep.subr.mxu0 0.0
        %5316 = vmatpush1.msra.mxu0 0.0
        %5317 = vmatprep.subr.mxu0 0.0
        %5318 = vmatpush1.msra.mxu0 0.0
        %5319 = vmatprep.subr.mxu0 0.0
        %5320 = vmatpush1.msra.mxu0 0.0
        %5321 = vmatprep.subr.mxu0 0.0
        %5322 = vmatpush1.msra.mxu0 0.0
        %5323 = vmatprep.subr.mxu0 0.0
        %5324 = vmatpush1.msra.mxu0 0.0
        %5325 = vmatprep.subr.mxu0 0.0
        %5326 = vmatpush1.msra.mxu0 %v5288
        %5327 = vmatprep.subr.mxu0 0.0
        %5328 = vmatpush1.msra.mxu0 %v5286
        %5329 = vmatprep.subr.mxu0 0.0
        %5330 = vmatpush2.msra.mxu0 0.0
        %5331 = vmatprep.subr.mxu0 0.0
        %5332 = vmatpush2.msra.mxu0 0.0
        %5333 = vmatprep.subr.mxu0 0.0
        %5334 = vmatpush2.msra.mxu0 0.0
        %5335 = vmatprep.subr.mxu0 0.0
        %5336 = vmatpush2.msra.mxu0 0.0
        %5337 = vmatprep.subr.mxu0 0.0
        %5338 = vmatpush2.msra.mxu0 0.0
        %5339 = vmatprep.subr.mxu0 0.0
        %5340 = vmatpush2.msra.mxu0 0.0
        %5341 = vmatprep.subr.mxu0 0.0
        %5342 = vmatpush2.msra.mxu0 0.0
        %5343 = vmatprep.subr.mxu0 0.0
        %5344 = vmatpush2.msra.mxu0 0.0
        %5345 = vmatprep.subr.mxu0 0.0
        %5346 = vmatpush2.msra.mxu0 0.0
        %5347 = vmatprep.subr.mxu0 0.0
        %5348 = vmatpush2.msra.mxu0 0.0
        %5349 = vmatprep.subr.mxu0 0.0
        %5350 = vmatpush2.msra.mxu0 0.0
        %5351 = vmatprep.subr.mxu0 0.0
        %5352 = vmatpush2.msra.mxu0 0.0
        %5353 = vmatprep.subr.mxu0 0.0
        %5354 = vmatpush2.msra.mxu0 0.0
        %5355 = vmatprep.subr.mxu0 0.0
        %5356 = vmatpush2.msra.mxu0 0.0
        %5357 = vmatprep.subr.mxu0 0.0
        %5358 = vmatpush2.msra.mxu0 0.0
        %5359 = vmatprep.subr.mxu0 0.0
        %5360 = vmatpush2.msra.mxu0 0.0
        %5361 = vmatprep.mubr.f32.mxu0 0.0
        %5362 = vmatmul.mubr.f32.gmra.mxu0 %v5292
        %v5363 = vpop.f32.mrf.mxu0
        %v5364 = vadd.f32 0.0, %v5363
        %v5365 = vpop.f32.mrf.mxu0
        %5366 = vmatprep.mubr.f32.mxu0 0.0
        %5367 = vmatmul.mubr.f32.gmra.mxu0 %v5295
        %v5368 = vpop.f32.mrf.mxu0
        %v5369 = vadd.f32 0.0, %v5368
        %v5370 = vpop.f32.mrf.mxu0
        %5371 = vdwg.mxu0
        %5372 = vrot.lane.b32.xlu0 %v500, 48
        %v5373 = vpop.permute.xlu0 %5372
        %5374 = vrot.lane.b32.xlu0 %v505, 48
        %v5375 = vpop.permute.xlu0 %5374
        %v5379 = vsel %vm1259, %v5016, 0
        %v5382 = vsel %vm1259, %v5017, 0
        %5384 = vmatprep.subr.mxu0 0.0
        %5385 = vmatpush1.msra.mxu0 0.0
        %5386 = vmatprep.subr.mxu0 0.0
        %5387 = vmatpush1.msra.mxu0 0.0
        %5388 = vmatprep.subr.mxu0 0.0
        %5389 = vmatpush1.msra.mxu0 0.0
        %5390 = vmatprep.subr.mxu0 0.0
        %5391 = vmatpush1.msra.mxu0 0.0
        %5392 = vmatprep.subr.mxu0 0.0
        %5393 = vmatpush1.msra.mxu0 0.0
        %5394 = vmatprep.subr.mxu0 0.0
        %5395 = vmatpush1.msra.mxu0 0.0
        %5396 = vmatprep.subr.mxu0 0.0
        %5397 = vmatpush1.msra.mxu0 0.0
        %5398 = vmatprep.subr.mxu0 0.0
        %5399 = vmatpush1.msra.mxu0 0.0
        %5400 = vmatprep.subr.mxu0 0.0
        %5401 = vmatpush1.msra.mxu0 0.0
        %5402 = vmatprep.subr.mxu0 0.0
        %5403 = vmatpush1.msra.mxu0 0.0
        %5404 = vmatprep.subr.mxu0 0.0
        %5405 = vmatpush1.msra.mxu0 0.0
        %5406 = vmatprep.subr.mxu0 0.0
        %5407 = vmatpush1.msra.mxu0 0.0
        %5408 = vmatprep.subr.mxu0 0.0
        %5409 = vmatpush1.msra.mxu0 0.0
        %5410 = vmatprep.subr.mxu0 0.0
        %5411 = vmatpush1.msra.mxu0 0.0
        %5412 = vmatprep.subr.mxu0 0.0
        %5413 = vmatpush1.msra.mxu0 %v5375
        %5414 = vmatprep.subr.mxu0 0.0
        %5415 = vmatpush1.msra.mxu0 %v5373
        %5416 = vmatprep.subr.mxu0 0.0
        %5417 = vmatpush2.msra.mxu0 0.0
        %5418 = vmatprep.subr.mxu0 0.0
        %5419 = vmatpush2.msra.mxu0 0.0
        %5420 = vmatprep.subr.mxu0 0.0
        %5421 = vmatpush2.msra.mxu0 0.0
        %5422 = vmatprep.subr.mxu0 0.0
        %5423 = vmatpush2.msra.mxu0 0.0
        %5424 = vmatprep.subr.mxu0 0.0
        %5425 = vmatpush2.msra.mxu0 0.0
        %5426 = vmatprep.subr.mxu0 0.0
        %5427 = vmatpush2.msra.mxu0 0.0
        %5428 = vmatprep.subr.mxu0 0.0
        %5429 = vmatpush2.msra.mxu0 0.0
        %5430 = vmatprep.subr.mxu0 0.0
        %5431 = vmatpush2.msra.mxu0 0.0
        %5432 = vmatprep.subr.mxu0 0.0
        %5433 = vmatpush2.msra.mxu0 0.0
        %5434 = vmatprep.subr.mxu0 0.0
        %5435 = vmatpush2.msra.mxu0 0.0
        %5436 = vmatprep.subr.mxu0 0.0
        %5437 = vmatpush2.msra.mxu0 0.0
        %5438 = vmatprep.subr.mxu0 0.0
        %5439 = vmatpush2.msra.mxu0 0.0
        %5440 = vmatprep.subr.mxu0 0.0
        %5441 = vmatpush2.msra.mxu0 0.0
        %5442 = vmatprep.subr.mxu0 0.0
        %5443 = vmatpush2.msra.mxu0 0.0
        %5444 = vmatprep.subr.mxu0 0.0
        %5445 = vmatpush2.msra.mxu0 0.0
        %5446 = vmatprep.subr.mxu0 0.0
        %5447 = vmatpush2.msra.mxu0 0.0
        %5448 = vmatprep.mubr.f32.mxu0 0.0
        %5449 = vmatmul.mubr.f32.gmra.mxu0 %v5379
        %v5450 = vpop.f32.mrf.mxu0
        %v5451 = vadd.f32 0.0, %v5450
        %v5452 = vpop.f32.mrf.mxu0
        %5453 = vmatprep.mubr.f32.mxu0 0.0
        %5454 = vmatmul.mubr.f32.gmra.mxu0 %v5382
        %v5455 = vpop.f32.mrf.mxu0
        %v5456 = vadd.f32 0.0, %v5455
        %v5457 = vpop.f32.mrf.mxu0
        %5458 = vdwg.mxu0
        %5459 = vrot.lane.b32.xlu0 %v510, 48
        %v5460 = vpop.permute.xlu0 %5459
        %5461 = vrot.lane.b32.xlu0 %v515, 48
        %v5462 = vpop.permute.xlu0 %5461
        %v5466 = vsel %vm1259, %v5018, 0
        %v5469 = vsel %vm1259, %v5019, 0
        %5471 = vmatprep.subr.mxu0 0.0
        %5472 = vmatpush1.msra.mxu0 0.0
        %5473 = vmatprep.subr.mxu0 0.0
        %5474 = vmatpush1.msra.mxu0 0.0
        %5475 = vmatprep.subr.mxu0 0.0
        %5476 = vmatpush1.msra.mxu0 0.0
        %5477 = vmatprep.subr.mxu0 0.0
        %5478 = vmatpush1.msra.mxu0 0.0
        %5479 = vmatprep.subr.mxu0 0.0
        %5480 = vmatpush1.msra.mxu0 0.0
        %5481 = vmatprep.subr.mxu0 0.0
        %5482 = vmatpush1.msra.mxu0 0.0
        %5483 = vmatprep.subr.mxu0 0.0
        %5484 = vmatpush1.msra.mxu0 0.0
        %5485 = vmatprep.subr.mxu0 0.0
        %5486 = vmatpush1.msra.mxu0 0.0
        %5487 = vmatprep.subr.mxu0 0.0
        %5488 = vmatpush1.msra.mxu0 0.0
        %5489 = vmatprep.subr.mxu0 0.0
        %5490 = vmatpush1.msra.mxu0 0.0
        %5491 = vmatprep.subr.mxu0 0.0
        %5492 = vmatpush1.msra.mxu0 0.0
        %5493 = vmatprep.subr.mxu0 0.0
        %5494 = vmatpush1.msra.mxu0 0.0
        %5495 = vmatprep.subr.mxu0 0.0
        %5496 = vmatpush1.msra.mxu0 0.0
        %5497 = vmatprep.subr.mxu0 0.0
        %5498 = vmatpush1.msra.mxu0 0.0
        %5499 = vmatprep.subr.mxu0 0.0
        %5500 = vmatpush1.msra.mxu0 %v5462
        %5501 = vmatprep.subr.mxu0 0.0
        %5502 = vmatpush1.msra.mxu0 %v5460
        %5503 = vmatprep.subr.mxu0 0.0
        %5504 = vmatpush2.msra.mxu0 0.0
        %5505 = vmatprep.subr.mxu0 0.0
        %5506 = vmatpush2.msra.mxu0 0.0
        %5507 = vmatprep.subr.mxu0 0.0
        %5508 = vmatpush2.msra.mxu0 0.0
        %5509 = vmatprep.subr.mxu0 0.0
        %5510 = vmatpush2.msra.mxu0 0.0
        %5511 = vmatprep.subr.mxu0 0.0
        %5512 = vmatpush2.msra.mxu0 0.0
        %5513 = vmatprep.subr.mxu0 0.0
        %5514 = vmatpush2.msra.mxu0 0.0
        %5515 = vmatprep.subr.mxu0 0.0
        %5516 = vmatpush2.msra.mxu0 0.0
        %5517 = vmatprep.subr.mxu0 0.0
        %5518 = vmatpush2.msra.mxu0 0.0
        %5519 = vmatprep.subr.mxu0 0.0
        %5520 = vmatpush2.msra.mxu0 0.0
        %5521 = vmatprep.subr.mxu0 0.0
        %5522 = vmatpush2.msra.mxu0 0.0
        %5523 = vmatprep.subr.mxu0 0.0
        %5524 = vmatpush2.msra.mxu0 0.0
        %5525 = vmatprep.subr.mxu0 0.0
        %5526 = vmatpush2.msra.mxu0 0.0
        %5527 = vmatprep.subr.mxu0 0.0
        %5528 = vmatpush2.msra.mxu0 0.0
        %5529 = vmatprep.subr.mxu0 0.0
        %5530 = vmatpush2.msra.mxu0 0.0
        %5531 = vmatprep.subr.mxu0 0.0
        %5532 = vmatpush2.msra.mxu0 0.0
        %5533 = vmatprep.subr.mxu0 0.0
        %5534 = vmatpush2.msra.mxu0 0.0
        %5535 = vmatprep.mubr.f32.mxu0 0.0
        %5536 = vmatmul.mubr.f32.gmra.mxu0 %v5466
        %v5537 = vpop.f32.mrf.mxu0
        %v5538 = vadd.f32 0.0, %v5537
        %v5539 = vpop.f32.mrf.mxu0
        %5540 = vmatprep.mubr.f32.mxu0 0.0
        %5541 = vmatmul.mubr.f32.gmra.mxu0 %v5469
        %v5542 = vpop.f32.mrf.mxu0
        %v5543 = vadd.f32 0.0, %v5542
        %v5544 = vpop.f32.mrf.mxu0
        %5545 = vdwg.mxu0
        %5546 = vrot.lane.b32.xlu0 %v520, 48
        %v5547 = vpop.permute.xlu0 %5546
        %5548 = vrot.lane.b32.xlu0 %v525, 48
        %v5549 = vpop.permute.xlu0 %5548
        %v5553 = vsel %vm1259, %v5020, 0
        %v5556 = vsel %vm1259, %v5021, 0
        %5558 = vmatprep.subr.mxu0 0.0
        %5559 = vmatpush1.msra.mxu0 0.0
        %5560 = vmatprep.subr.mxu0 0.0
        %5561 = vmatpush1.msra.mxu0 0.0
        %5562 = vmatprep.subr.mxu0 0.0
        %5563 = vmatpush1.msra.mxu0 0.0
        %5564 = vmatprep.subr.mxu0 0.0
        %5565 = vmatpush1.msra.mxu0 0.0
        %5566 = vmatprep.subr.mxu0 0.0
        %5567 = vmatpush1.msra.mxu0 0.0
        %5568 = vmatprep.subr.mxu0 0.0
        %5569 = vmatpush1.msra.mxu0 0.0
        %5570 = vmatprep.subr.mxu0 0.0
        %5571 = vmatpush1.msra.mxu0 0.0
        %5572 = vmatprep.subr.mxu0 0.0
        %5573 = vmatpush1.msra.mxu0 0.0
        %5574 = vmatprep.subr.mxu0 0.0
        %5575 = vmatpush1.msra.mxu0 0.0
        %5576 = vmatprep.subr.mxu0 0.0
        %5577 = vmatpush1.msra.mxu0 0.0
        %5578 = vmatprep.subr.mxu0 0.0
        %5579 = vmatpush1.msra.mxu0 0.0
        %5580 = vmatprep.subr.mxu0 0.0
        %5581 = vmatpush1.msra.mxu0 0.0
        %5582 = vmatprep.subr.mxu0 0.0
        %5583 = vmatpush1.msra.mxu0 0.0
        %5584 = vmatprep.subr.mxu0 0.0
        %5585 = vmatpush1.msra.mxu0 0.0
        %5586 = vmatprep.subr.mxu0 0.0
        %5587 = vmatpush1.msra.mxu0 %v5549
        %5588 = vmatprep.subr.mxu0 0.0
        %5589 = vmatpush1.msra.mxu0 %v5547
        %5590 = vmatprep.subr.mxu0 0.0
        %5591 = vmatpush2.msra.mxu0 0.0
        %5592 = vmatprep.subr.mxu0 0.0
        %5593 = vmatpush2.msra.mxu0 0.0
        %5594 = vmatprep.subr.mxu0 0.0
        %5595 = vmatpush2.msra.mxu0 0.0
        %5596 = vmatprep.subr.mxu0 0.0
        %5597 = vmatpush2.msra.mxu0 0.0
        %5598 = vmatprep.subr.mxu0 0.0
        %5599 = vmatpush2.msra.mxu0 0.0
        %5600 = vmatprep.subr.mxu0 0.0
        %5601 = vmatpush2.msra.mxu0 0.0
        %5602 = vmatprep.subr.mxu0 0.0
        %5603 = vmatpush2.msra.mxu0 0.0
        %5604 = vmatprep.subr.mxu0 0.0
        %5605 = vmatpush2.msra.mxu0 0.0
        %5606 = vmatprep.subr.mxu0 0.0
        %5607 = vmatpush2.msra.mxu0 0.0
        %5608 = vmatprep.subr.mxu0 0.0
        %5609 = vmatpush2.msra.mxu0 0.0
        %5610 = vmatprep.subr.mxu0 0.0
        %5611 = vmatpush2.msra.mxu0 0.0
        %5612 = vmatprep.subr.mxu0 0.0
        %5613 = vmatpush2.msra.mxu0 0.0
        %5614 = vmatprep.subr.mxu0 0.0
        %5615 = vmatpush2.msra.mxu0 0.0
        %5616 = vmatprep.subr.mxu0 0.0
        %5617 = vmatpush2.msra.mxu0 0.0
        %5618 = vmatprep.subr.mxu0 0.0
        %5619 = vmatpush2.msra.mxu0 0.0
        %5620 = vmatprep.subr.mxu0 0.0
        %5621 = vmatpush2.msra.mxu0 0.0
        %5622 = vmatprep.mubr.f32.mxu0 0.0
        %5623 = vmatmul.mubr.f32.gmra.mxu0 %v5553
        %v5624 = vpop.f32.mrf.mxu0
        %v5625 = vadd.f32 0.0, %v5624
        %v5626 = vpop.f32.mrf.mxu0
        %5627 = vmatprep.mubr.f32.mxu0 0.0
        %5628 = vmatmul.mubr.f32.gmra.mxu0 %v5556
        %v5629 = vpop.f32.mrf.mxu0
        %v5630 = vadd.f32 0.0, %v5629
        %v5631 = vpop.f32.mrf.mxu0
        %5632 = vdwg.mxu0
        %5633 = vrot.lane.b32.xlu0 %v530, 48
        %v5634 = vpop.permute.xlu0 %5633
        %5635 = vrot.lane.b32.xlu0 %v535, 48
        %v5636 = vpop.permute.xlu0 %5635
        %v5640 = vsel %vm1259, %v5022, 0
        %v5643 = vsel %vm1259, %v5023, 0
        %5645 = vmatprep.subr.mxu0 0.0
        %5646 = vmatpush1.msra.mxu0 0.0
        %5647 = vmatprep.subr.mxu0 0.0
        %5648 = vmatpush1.msra.mxu0 0.0
        %5649 = vmatprep.subr.mxu0 0.0
        %5650 = vmatpush1.msra.mxu0 0.0
        %5651 = vmatprep.subr.mxu0 0.0
        %5652 = vmatpush1.msra.mxu0 0.0
        %5653 = vmatprep.subr.mxu0 0.0
        %5654 = vmatpush1.msra.mxu0 0.0
        %5655 = vmatprep.subr.mxu0 0.0
        %5656 = vmatpush1.msra.mxu0 0.0
        %5657 = vmatprep.subr.mxu0 0.0
        %5658 = vmatpush1.msra.mxu0 0.0
        %5659 = vmatprep.subr.mxu0 0.0
        %5660 = vmatpush1.msra.mxu0 0.0
        %5661 = vmatprep.subr.mxu0 0.0
        %5662 = vmatpush1.msra.mxu0 0.0
        %5663 = vmatprep.subr.mxu0 0.0
        %5664 = vmatpush1.msra.mxu0 0.0
        %5665 = vmatprep.subr.mxu0 0.0
        %5666 = vmatpush1.msra.mxu0 0.0
        %5667 = vmatprep.subr.mxu0 0.0
        %5668 = vmatpush1.msra.mxu0 0.0
        %5669 = vmatprep.subr.mxu0 0.0
        %5670 = vmatpush1.msra.mxu0 0.0
        %5671 = vmatprep.subr.mxu0 0.0
        %5672 = vmatpush1.msra.mxu0 0.0
        %5673 = vmatprep.subr.mxu0 0.0
        %5674 = vmatpush1.msra.mxu0 %v5636
        %5675 = vmatprep.subr.mxu0 0.0
        %5676 = vmatpush1.msra.mxu0 %v5634
        %5677 = vmatprep.subr.mxu0 0.0
        %5678 = vmatpush2.msra.mxu0 0.0
        %5679 = vmatprep.subr.mxu0 0.0
        %5680 = vmatpush2.msra.mxu0 0.0
        %5681 = vmatprep.subr.mxu0 0.0
        %5682 = vmatpush2.msra.mxu0 0.0
        %5683 = vmatprep.subr.mxu0 0.0
        %5684 = vmatpush2.msra.mxu0 0.0
        %5685 = vmatprep.subr.mxu0 0.0
        %5686 = vmatpush2.msra.mxu0 0.0
        %5687 = vmatprep.subr.mxu0 0.0
        %5688 = vmatpush2.msra.mxu0 0.0
        %5689 = vmatprep.subr.mxu0 0.0
        %5690 = vmatpush2.msra.mxu0 0.0
        %5691 = vmatprep.subr.mxu0 0.0
        %5692 = vmatpush2.msra.mxu0 0.0
        %5693 = vmatprep.subr.mxu0 0.0
        %5694 = vmatpush2.msra.mxu0 0.0
        %5695 = vmatprep.subr.mxu0 0.0
        %5696 = vmatpush2.msra.mxu0 0.0
        %5697 = vmatprep.subr.mxu0 0.0
        %5698 = vmatpush2.msra.mxu0 0.0
        %5699 = vmatprep.subr.mxu0 0.0
        %5700 = vmatpush2.msra.mxu0 0.0
        %5701 = vmatprep.subr.mxu0 0.0
        %5702 = vmatpush2.msra.mxu0 0.0
        %5703 = vmatprep.subr.mxu0 0.0
        %5704 = vmatpush2.msra.mxu0 0.0
        %5705 = vmatprep.subr.mxu0 0.0
        %5706 = vmatpush2.msra.mxu0 0.0
        %5707 = vmatprep.subr.mxu0 0.0
        %5708 = vmatpush2.msra.mxu0 0.0
        %5709 = vmatprep.mubr.f32.mxu0 0.0
        %5710 = vmatmul.mubr.f32.gmra.mxu0 %v5640
        %v5711 = vpop.f32.mrf.mxu0
        %v5712 = vadd.f32 0.0, %v5711
        %v5713 = vpop.f32.mrf.mxu0
        %5714 = vmatprep.mubr.f32.mxu0 0.0
        %5715 = vmatmul.mubr.f32.gmra.mxu0 %v5643
        %v5716 = vpop.f32.mrf.mxu0
        %v5717 = vadd.f32 0.0, %v5716
        %v5718 = vpop.f32.mrf.mxu0
        %5719 = vdwg.mxu0
        %v5720 = vld [vmem:[#allocation8 + $0x10] sm:$0xff]
        %v5722 = vsel %vm552, %v5103, 0
        %v5725 = vsel %vm552, %v5108, 0
        %v5728 = vsel %vm552, %v5190, 0
        %v5731 = vsel %vm552, %v5195, 0
        %v5734 = vsel %vm552, %v5277, 0
        %v5737 = vsel %vm552, %v5282, 0
        %v5740 = vsel %vm552, %v5364, 0
        %v5743 = vsel %vm552, %v5369, 0
        %v5746 = vsel %vm552, %v5451, 0
        %v5749 = vsel %vm552, %v5456, 0
        %v5752 = vsel %vm552, %v5538, 0
        %v5755 = vsel %vm552, %v5543, 0
        %v5758 = vsel %vm552, %v5625, 0
        %v5761 = vsel %vm552, %v5630, 0
        %v5764 = vsel %vm552, %v5712, 0
        %v5767 = vsel %vm552, %v5717, 0
        %5769 = vmatprep.subr.mxu0 0.0
        %5770 = vmatpush1.msra.mxu0 0.0
        %5771 = vmatprep.subr.mxu0 0.0
        %5772 = vmatpush1.msra.mxu0 0.0
        %5773 = vmatprep.subr.mxu0 0.0
        %5774 = vmatpush1.msra.mxu0 0.0
        %5775 = vmatprep.subr.mxu0 0.0
        %5776 = vmatpush1.msra.mxu0 0.0
        %5777 = vmatprep.subr.mxu0 0.0
        %5778 = vmatpush1.msra.mxu0 0.0
        %5779 = vmatprep.subr.mxu0 0.0
        %5780 = vmatpush1.msra.mxu0 0.0
        %5781 = vmatprep.subr.mxu0 0.0
        %5782 = vmatpush1.msra.mxu0 0.0
        %5783 = vmatprep.subr.mxu0 0.0
        %5784 = vmatpush1.msra.mxu0 0.0
        %5785 = vmatprep.subr.mxu0 0.0
        %5786 = vmatpush1.msra.mxu0 0.0
        %5787 = vmatprep.subr.mxu0 0.0
        %5788 = vmatpush1.msra.mxu0 0.0
        %5789 = vmatprep.subr.mxu0 0.0
        %5790 = vmatpush1.msra.mxu0 0.0
        %5791 = vmatprep.subr.mxu0 0.0
        %5792 = vmatpush1.msra.mxu0 0.0
        %5793 = vmatprep.subr.mxu0 0.0
        %5794 = vmatpush1.msra.mxu0 0.0
        %5795 = vmatprep.subr.mxu0 0.0
        %5796 = vmatpush1.msra.mxu0 0.0
        %5797 = vmatprep.subr.mxu0 0.0
        %5798 = vmatpush1.msra.mxu0 0.0
        %5799 = vmatprep.subr.mxu0 0.0
        %5800 = vmatpush1.msra.mxu0 %v5720
        %5801 = vmatprep.subr.mxu0 0.0
        %5802 = vmatpush2.msra.mxu0 0.0
        %5803 = vmatprep.subr.mxu0 0.0
        %5804 = vmatpush2.msra.mxu0 0.0
        %5805 = vmatprep.subr.mxu0 0.0
        %5806 = vmatpush2.msra.mxu0 0.0
        %5807 = vmatprep.subr.mxu0 0.0
        %5808 = vmatpush2.msra.mxu0 0.0
        %5809 = vmatprep.subr.mxu0 0.0
        %5810 = vmatpush2.msra.mxu0 0.0
        %5811 = vmatprep.subr.mxu0 0.0
        %5812 = vmatpush2.msra.mxu0 0.0
        %5813 = vmatprep.subr.mxu0 0.0
        %5814 = vmatpush2.msra.mxu0 0.0
        %5815 = vmatprep.subr.mxu0 0.0
        %5816 = vmatpush2.msra.mxu0 0.0
        %5817 = vmatprep.subr.mxu0 0.0
        %5818 = vmatpush2.msra.mxu0 0.0
        %5819 = vmatprep.subr.mxu0 0.0
        %5820 = vmatpush2.msra.mxu0 0.0
        %5821 = vmatprep.subr.mxu0 0.0
        %5822 = vmatpush2.msra.mxu0 0.0
        %5823 = vmatprep.subr.mxu0 0.0
        %5824 = vmatpush2.msra.mxu0 0.0
        %5825 = vmatprep.subr.mxu0 0.0
        %5826 = vmatpush2.msra.mxu0 0.0
        %5827 = vmatprep.subr.mxu0 0.0
        %5828 = vmatpush2.msra.mxu0 0.0
        %5829 = vmatprep.subr.mxu0 0.0
        %5830 = vmatpush2.msra.mxu0 0.0
        %5831 = vmatprep.subr.mxu0 0.0
        %5832 = vmatpush2.msra.mxu0 0.0
        %5833 = vmatprep.mubr.f32.mxu0 0.0
        %5834 = vmatmul.mubr.f32.gmra.mxu0 %v5722
        %v5835 = vpop.f32.mrf.mxu0
        %v5836 = vadd.f32 0.0, %v5835
        %v5837 = vpop.f32.mrf.mxu0
        %5838 = vmatprep.mubr.f32.mxu0 0.0
        %5839 = vmatmul.mubr.f32.gmra.mxu0 %v5725
        %v5840 = vpop.f32.mrf.mxu0
        %v5841 = vadd.f32 0.0, %v5840
        %v5842 = vpop.f32.mrf.mxu0
        %5843 = vmatprep.mubr.f32.mxu0 0.0
        %5844 = vmatmul.mubr.f32.gmra.mxu0 %v5728
        %v5845 = vpop.f32.mrf.mxu0
        %v5846 = vadd.f32 0.0, %v5845
        %v5847 = vpop.f32.mrf.mxu0
        %5848 = vmatprep.mubr.f32.mxu0 0.0
        %5849 = vmatmul.mubr.f32.gmra.mxu0 %v5731
        %v5850 = vpop.f32.mrf.mxu0
        %v5851 = vadd.f32 0.0, %v5850
        %v5852 = vpop.f32.mrf.mxu0
        %5853 = vmatprep.mubr.f32.mxu0 0.0
        %5854 = vmatmul.mubr.f32.gmra.mxu0 %v5734
        %v5855 = vpop.f32.mrf.mxu0
        %v5856 = vadd.f32 0.0, %v5855
        %v5857 = vpop.f32.mrf.mxu0
        %5858 = vmatprep.mubr.f32.mxu0 0.0
        %5859 = vmatmul.mubr.f32.gmra.mxu0 %v5737
        %v5860 = vpop.f32.mrf.mxu0
        %v5861 = vadd.f32 0.0, %v5860
        %v5862 = vpop.f32.mrf.mxu0
        %5863 = vmatprep.mubr.f32.mxu0 0.0
        %5864 = vmatmul.mubr.f32.gmra.mxu0 %v5740
        %v5865 = vpop.f32.mrf.mxu0
        %v5866 = vadd.f32 0.0, %v5865
        %v5867 = vpop.f32.mrf.mxu0
        %5868 = vmatprep.mubr.f32.mxu0 0.0
        %5869 = vmatmul.mubr.f32.gmra.mxu0 %v5743
        %v5870 = vpop.f32.mrf.mxu0
        %v5871 = vadd.f32 0.0, %v5870
        %v5872 = vpop.f32.mrf.mxu0
        %5873 = vmatprep.mubr.f32.mxu0 0.0
        %5874 = vmatmul.mubr.f32.gmra.mxu0 %v5746
        %v5875 = vpop.f32.mrf.mxu0
        %v5876 = vadd.f32 0.0, %v5875
        %v5877 = vpop.f32.mrf.mxu0
        %5878 = vmatprep.mubr.f32.mxu0 0.0
        %5879 = vmatmul.mubr.f32.gmra.mxu0 %v5749
        %v5880 = vpop.f32.mrf.mxu0
        %v5881 = vadd.f32 0.0, %v5880
        %v5882 = vpop.f32.mrf.mxu0
        %5883 = vmatprep.mubr.f32.mxu0 0.0
        %5884 = vmatmul.mubr.f32.gmra.mxu0 %v5752
        %v5885 = vpop.f32.mrf.mxu0
        %v5886 = vadd.f32 0.0, %v5885
        %v5887 = vpop.f32.mrf.mxu0
        %5888 = vmatprep.mubr.f32.mxu0 0.0
        %5889 = vmatmul.mubr.f32.gmra.mxu0 %v5755
        %v5890 = vpop.f32.mrf.mxu0
        %v5891 = vadd.f32 0.0, %v5890
        %v5892 = vpop.f32.mrf.mxu0
        %5893 = vmatprep.mubr.f32.mxu0 0.0
        %5894 = vmatmul.mubr.f32.gmra.mxu0 %v5758
        %v5895 = vpop.f32.mrf.mxu0
        %v5896 = vadd.f32 0.0, %v5895
        %v5897 = vpop.f32.mrf.mxu0
        %5898 = vmatprep.mubr.f32.mxu0 0.0
        %5899 = vmatmul.mubr.f32.gmra.mxu0 %v5761
        %v5900 = vpop.f32.mrf.mxu0
        %v5901 = vadd.f32 0.0, %v5900
        %v5902 = vpop.f32.mrf.mxu0
        %5903 = vmatprep.mubr.f32.mxu0 0.0
        %5904 = vmatmul.mubr.f32.gmra.mxu0 %v5764
        %v5905 = vpop.f32.mrf.mxu0
        %v5906 = vadd.f32 0.0, %v5905
        %v5907 = vpop.f32.mrf.mxu0
        %5908 = vmatprep.mubr.f32.mxu0 0.0
        %5909 = vmatmul.mubr.f32.gmra.mxu0 %v5767
        %v5910 = vpop.f32.mrf.mxu0
        %v5911 = vadd.f32 0.0, %v5910
        %v5912 = vpop.f32.mrf.mxu0
        %5913 = vdwg.mxu0
        %v5914 = vadd.f32 %v4042, %v5836
        %v5915 = vadd.f32 %v4047, %v5841
        %v5916 = vadd.f32 %v4052, %v5846
        %v5917 = vadd.f32 %v4057, %v5851
        %v5918 = vadd.f32 %v4062, %v5856
        %v5919 = vadd.f32 %v4067, %v5861
        %v5920 = vadd.f32 %v4072, %v5866
        %v5921 = vadd.f32 %v4077, %v5871
        %v5922 = vadd.f32 %v4082, %v5876
        %v5923 = vadd.f32 %v4087, %v5881
        %v5924 = vadd.f32 %v4092, %v5886
        %v5925 = vadd.f32 %v4097, %v5891
        %v5926 = vadd.f32 %v4102, %v5896
        %v5927 = vadd.f32 %v4107, %v5901
        %v5928 = vadd.f32 %v4112, %v5906
        %v5929 = vadd.f32 %v4117, %v5911
        %5930 = vrot.lane.b32.xlu0 %v460, 104
        %v5931 = vpop.permute.xlu0 %5930
        %5932 = vrot.lane.b32.xlu0 %v465, 104
        %v5933 = vpop.permute.xlu0 %5932
        %5934 = vrot.lane.b32.xlu0 %v460, 72
        %v5935 = vpop.permute.xlu0 %5934
        %5936 = vrot.lane.b32.xlu0 %v465, 72
        %v5937 = vpop.permute.xlu0 %5936
        %v5938 = vsel %vm552, %v5931, 0
        %v5940 = vsel %vm552, %v5933, 0
        %v5942 = vsel %vm552, %v5935, 0
        %v5944 = vsel %vm552, %v5937, 0
        %5946 = vmatprep.subr.mxu0 0.0
        %5947 = vmatpush1.xpose.msra.mxu0 0.0
        %5948 = vmatprep.subr.mxu0 0.0
        %5949 = vmatpush1.xpose.msra.mxu0 0.0
        %5950 = vmatprep.subr.mxu0 0.0
        %5951 = vmatpush1.xpose.msra.mxu0 0.0
        %5952 = vmatprep.subr.mxu0 0.0
        %5953 = vmatpush1.xpose.msra.mxu0 0.0
        %5954 = vmatprep.subr.mxu0 0.0
        %5955 = vmatpush1.xpose.msra.mxu0 0.0
        %5956 = vmatprep.subr.mxu0 0.0
        %5957 = vmatpush1.xpose.msra.mxu0 0.0
        %5958 = vmatprep.subr.mxu0 0.0
        %5959 = vmatpush1.xpose.msra.mxu0 0.0
        %5960 = vmatprep.subr.mxu0 0.0
        %5961 = vmatpush1.xpose.msra.mxu0 0.0
        %5962 = vmatprep.subr.mxu0 0.0
        %5963 = vmatpush1.xpose.msra.mxu0 0.0
        %5964 = vmatprep.subr.mxu0 0.0
        %5965 = vmatpush1.xpose.msra.mxu0 0.0
        %5966 = vmatprep.subr.mxu0 0.0
        %5967 = vmatpush1.xpose.msra.mxu0 0.0
        %5968 = vmatprep.subr.mxu0 0.0
        %5969 = vmatpush1.xpose.msra.mxu0 0.0
        %5970 = vmatprep.subr.mxu0 0.0
        %5971 = vmatpush1.xpose.msra.mxu0 0.0
        %5972 = vmatprep.subr.mxu0 0.0
        %5973 = vmatpush1.xpose.msra.mxu0 0.0
        %5974 = vmatprep.subr.mxu0 0.0
        %5975 = vmatpush1.xpose.msra.mxu0 %v5944
        %5976 = vmatprep.subr.mxu0 0.0
        %5977 = vmatpush1.xpose.msra.mxu0 %v5942
        %5978 = vmatprep.subr.mxu0 0.0
        %5979 = vmatpush2.xpose.msra.mxu0 0.0
        %5980 = vmatprep.subr.mxu0 0.0
        %5981 = vmatpush2.xpose.msra.mxu0 0.0
        %5982 = vmatprep.subr.mxu0 0.0
        %5983 = vmatpush2.xpose.msra.mxu0 0.0
        %5984 = vmatprep.subr.mxu0 0.0
        %5985 = vmatpush2.xpose.msra.mxu0 0.0
        %5986 = vmatprep.subr.mxu0 0.0
        %5987 = vmatpush2.xpose.msra.mxu0 0.0
        %5988 = vmatprep.subr.mxu0 0.0
        %5989 = vmatpush2.xpose.msra.mxu0 0.0
        %5990 = vmatprep.subr.mxu0 0.0
        %5991 = vmatpush2.xpose.msra.mxu0 0.0
        %5992 = vmatprep.subr.mxu0 0.0
        %5993 = vmatpush2.xpose.msra.mxu0 0.0
        %5994 = vmatprep.subr.mxu0 0.0
        %5995 = vmatpush2.xpose.msra.mxu0 0.0
        %5996 = vmatprep.subr.mxu0 0.0
        %5997 = vmatpush2.xpose.msra.mxu0 0.0
        %5998 = vmatprep.subr.mxu0 0.0
        %5999 = vmatpush2.xpose.msra.mxu0 0.0
        %6000 = vmatprep.subr.mxu0 0.0
        %6001 = vmatpush2.xpose.msra.mxu0 0.0
        %6002 = vmatprep.subr.mxu0 0.0
        %6003 = vmatpush2.xpose.msra.mxu0 0.0
        %6004 = vmatprep.subr.mxu0 0.0
        %6005 = vmatpush2.xpose.msra.mxu0 0.0
        %6006 = vmatprep.subr.mxu0 0.0
        %6007 = vmatpush2.xpose.msra.mxu0 0.0
        %6008 = vmatprep.subr.mxu0 0.0
        %6009 = vmatpush2.xpose.msra.mxu0 0.0
        %6010 = vmatprep.mubr.f32.mxu0 0.0
        %6011 = vmatmul.mubr.f32.gmra.mxu0 %v5938
        %v6012 = vpop.f32.mrf.mxu0
        %v6013 = vadd.f32 %v544, %v6012
        %v6014 = vpop.f32.mrf.mxu0
        %6015 = vmatprep.mubr.f32.mxu0 0.0
        %6016 = vmatmul.mubr.f32.gmra.mxu0 %v5940
        %v6017 = vpop.f32.mrf.mxu0
        %v6018 = vadd.f32 %v545, %v6017
        %v6019 = vpop.f32.mrf.mxu0
        %6020 = vdwg.mxu0
        %6021 = vrot.lane.b32.xlu0 %v470, 104
        %v6022 = vpop.permute.xlu0 %6021
        %6023 = vrot.lane.b32.xlu0 %v475, 104
        %v6024 = vpop.permute.xlu0 %6023
        %6025 = vrot.lane.b32.xlu0 %v470, 72
        %v6026 = vpop.permute.xlu0 %6025
        %6027 = vrot.lane.b32.xlu0 %v475, 72
        %v6028 = vpop.permute.xlu0 %6027
        %v6029 = vsel %vm552, %v6022, 0
        %v6031 = vsel %vm552, %v6024, 0
        %v6033 = vsel %vm552, %v6026, 0
        %v6035 = vsel %vm552, %v6028, 0
        %6037 = vmatprep.subr.mxu0 0.0
        %6038 = vmatpush1.xpose.msra.mxu0 0.0
        %6039 = vmatprep.subr.mxu0 0.0
        %6040 = vmatpush1.xpose.msra.mxu0 0.0
        %6041 = vmatprep.subr.mxu0 0.0
        %6042 = vmatpush1.xpose.msra.mxu0 0.0
        %6043 = vmatprep.subr.mxu0 0.0
        %6044 = vmatpush1.xpose.msra.mxu0 0.0
        %6045 = vmatprep.subr.mxu0 0.0
        %6046 = vmatpush1.xpose.msra.mxu0 0.0
        %6047 = vmatprep.subr.mxu0 0.0
        %6048 = vmatpush1.xpose.msra.mxu0 0.0
        %6049 = vmatprep.subr.mxu0 0.0
        %6050 = vmatpush1.xpose.msra.mxu0 0.0
        %6051 = vmatprep.subr.mxu0 0.0
        %6052 = vmatpush1.xpose.msra.mxu0 0.0
        %6053 = vmatprep.subr.mxu0 0.0
        %6054 = vmatpush1.xpose.msra.mxu0 0.0
        %6055 = vmatprep.subr.mxu0 0.0
        %6056 = vmatpush1.xpose.msra.mxu0 0.0
        %6057 = vmatprep.subr.mxu0 0.0
        %6058 = vmatpush1.xpose.msra.mxu0 0.0
        %6059 = vmatprep.subr.mxu0 0.0
        %6060 = vmatpush1.xpose.msra.mxu0 0.0
        %6061 = vmatprep.subr.mxu0 0.0
        %6062 = vmatpush1.xpose.msra.mxu0 0.0
        %6063 = vmatprep.subr.mxu0 0.0
        %6064 = vmatpush1.xpose.msra.mxu0 0.0
        %6065 = vmatprep.subr.mxu0 0.0
        %6066 = vmatpush1.xpose.msra.mxu0 %v6035
        %6067 = vmatprep.subr.mxu0 0.0
        %6068 = vmatpush1.xpose.msra.mxu0 %v6033
        %6069 = vmatprep.subr.mxu0 0.0
        %6070 = vmatpush2.xpose.msra.mxu0 0.0
        %6071 = vmatprep.subr.mxu0 0.0
        %6072 = vmatpush2.xpose.msra.mxu0 0.0
        %6073 = vmatprep.subr.mxu0 0.0
        %6074 = vmatpush2.xpose.msra.mxu0 0.0
        %6075 = vmatprep.subr.mxu0 0.0
        %6076 = vmatpush2.xpose.msra.mxu0 0.0
        %6077 = vmatprep.subr.mxu0 0.0
        %6078 = vmatpush2.xpose.msra.mxu0 0.0
        %6079 = vmatprep.subr.mxu0 0.0
        %6080 = vmatpush2.xpose.msra.mxu0 0.0
        %6081 = vmatprep.subr.mxu0 0.0
        %6082 = vmatpush2.xpose.msra.mxu0 0.0
        %6083 = vmatprep.subr.mxu0 0.0
        %6084 = vmatpush2.xpose.msra.mxu0 0.0
        %6085 = vmatprep.subr.mxu0 0.0
        %6086 = vmatpush2.xpose.msra.mxu0 0.0
        %6087 = vmatprep.subr.mxu0 0.0
        %6088 = vmatpush2.xpose.msra.mxu0 0.0
        %6089 = vmatprep.subr.mxu0 0.0
        %6090 = vmatpush2.xpose.msra.mxu0 0.0
        %6091 = vmatprep.subr.mxu0 0.0
        %6092 = vmatpush2.xpose.msra.mxu0 0.0
        %6093 = vmatprep.subr.mxu0 0.0
        %6094 = vmatpush2.xpose.msra.mxu0 0.0
        %6095 = vmatprep.subr.mxu0 0.0
        %6096 = vmatpush2.xpose.msra.mxu0 0.0
        %6097 = vmatprep.subr.mxu0 0.0
        %6098 = vmatpush2.xpose.msra.mxu0 0.0
        %6099 = vmatprep.subr.mxu0 0.0
        %6100 = vmatpush2.xpose.msra.mxu0 0.0
        %6101 = vmatprep.mubr.f32.mxu0 0.0
        %6102 = vmatmul.mubr.f32.gmra.mxu0 %v6029
        %v6103 = vpop.f32.mrf.mxu0
        %v6104 = vadd.f32 %v544, %v6103
        %v6105 = vpop.f32.mrf.mxu0
        %6106 = vmatprep.mubr.f32.mxu0 0.0
        %6107 = vmatmul.mubr.f32.gmra.mxu0 %v6031
        %v6108 = vpop.f32.mrf.mxu0
        %v6109 = vadd.f32 %v545, %v6108
        %v6110 = vpop.f32.mrf.mxu0
        %6111 = vdwg.mxu0
        %6112 = vrot.lane.b32.xlu0 %v480, 104
        %v6113 = vpop.permute.xlu0 %6112
        %6114 = vrot.lane.b32.xlu0 %v485, 104
        %v6115 = vpop.permute.xlu0 %6114
        %6116 = vrot.lane.b32.xlu0 %v480, 72
        %v6117 = vpop.permute.xlu0 %6116
        %6118 = vrot.lane.b32.xlu0 %v485, 72
        %v6119 = vpop.permute.xlu0 %6118
        %v6120 = vsel %vm552, %v6113, 0
        %v6122 = vsel %vm552, %v6115, 0
        %v6124 = vsel %vm552, %v6117, 0
        %v6126 = vsel %vm552, %v6119, 0
        %6128 = vmatprep.subr.mxu0 0.0
        %6129 = vmatpush1.xpose.msra.mxu0 0.0
        %6130 = vmatprep.subr.mxu0 0.0
        %6131 = vmatpush1.xpose.msra.mxu0 0.0
        %6132 = vmatprep.subr.mxu0 0.0
        %6133 = vmatpush1.xpose.msra.mxu0 0.0
        %6134 = vmatprep.subr.mxu0 0.0
        %6135 = vmatpush1.xpose.msra.mxu0 0.0
        %6136 = vmatprep.subr.mxu0 0.0
        %6137 = vmatpush1.xpose.msra.mxu0 0.0
        %6138 = vmatprep.subr.mxu0 0.0
        %6139 = vmatpush1.xpose.msra.mxu0 0.0
        %6140 = vmatprep.subr.mxu0 0.0
        %6141 = vmatpush1.xpose.msra.mxu0 0.0
        %6142 = vmatprep.subr.mxu0 0.0
        %6143 = vmatpush1.xpose.msra.mxu0 0.0
        %6144 = vmatprep.subr.mxu0 0.0
        %6145 = vmatpush1.xpose.msra.mxu0 0.0
        %6146 = vmatprep.subr.mxu0 0.0
        %6147 = vmatpush1.xpose.msra.mxu0 0.0
        %6148 = vmatprep.subr.mxu0 0.0
        %6149 = vmatpush1.xpose.msra.mxu0 0.0
        %6150 = vmatprep.subr.mxu0 0.0
        %6151 = vmatpush1.xpose.msra.mxu0 0.0
        %6152 = vmatprep.subr.mxu0 0.0
        %6153 = vmatpush1.xpose.msra.mxu0 0.0
        %6154 = vmatprep.subr.mxu0 0.0
        %6155 = vmatpush1.xpose.msra.mxu0 0.0
        %6156 = vmatprep.subr.mxu0 0.0
        %6157 = vmatpush1.xpose.msra.mxu0 %v6126
        %6158 = vmatprep.subr.mxu0 0.0
        %6159 = vmatpush1.xpose.msra.mxu0 %v6124
        %6160 = vmatprep.subr.mxu0 0.0
        %6161 = vmatpush2.xpose.msra.mxu0 0.0
        %6162 = vmatprep.subr.mxu0 0.0
        %6163 = vmatpush2.xpose.msra.mxu0 0.0
        %6164 = vmatprep.subr.mxu0 0.0
        %6165 = vmatpush2.xpose.msra.mxu0 0.0
        %6166 = vmatprep.subr.mxu0 0.0
        %6167 = vmatpush2.xpose.msra.mxu0 0.0
        %6168 = vmatprep.subr.mxu0 0.0
        %6169 = vmatpush2.xpose.msra.mxu0 0.0
        %6170 = vmatprep.subr.mxu0 0.0
        %6171 = vmatpush2.xpose.msra.mxu0 0.0
        %6172 = vmatprep.subr.mxu0 0.0
        %6173 = vmatpush2.xpose.msra.mxu0 0.0
        %6174 = vmatprep.subr.mxu0 0.0
        %6175 = vmatpush2.xpose.msra.mxu0 0.0
        %6176 = vmatprep.subr.mxu0 0.0
        %6177 = vmatpush2.xpose.msra.mxu0 0.0
        %6178 = vmatprep.subr.mxu0 0.0
        %6179 = vmatpush2.xpose.msra.mxu0 0.0
        %6180 = vmatprep.subr.mxu0 0.0
        %6181 = vmatpush2.xpose.msra.mxu0 0.0
        %6182 = vmatprep.subr.mxu0 0.0
        %6183 = vmatpush2.xpose.msra.mxu0 0.0
        %6184 = vmatprep.subr.mxu0 0.0
        %6185 = vmatpush2.xpose.msra.mxu0 0.0
        %6186 = vmatprep.subr.mxu0 0.0
        %6187 = vmatpush2.xpose.msra.mxu0 0.0
        %6188 = vmatprep.subr.mxu0 0.0
        %6189 = vmatpush2.xpose.msra.mxu0 0.0
        %6190 = vmatprep.subr.mxu0 0.0
        %6191 = vmatpush2.xpose.msra.mxu0 0.0
        %6192 = vmatprep.mubr.f32.mxu0 0.0
        %6193 = vmatmul.mubr.f32.gmra.mxu0 %v6120
        %v6194 = vpop.f32.mrf.mxu0
        %v6195 = vadd.f32 %v544, %v6194
        %v6196 = vpop.f32.mrf.mxu0
        %6197 = vmatprep.mubr.f32.mxu0 0.0
        %6198 = vmatmul.mubr.f32.gmra.mxu0 %v6122
        %v6199 = vpop.f32.mrf.mxu0
        %v6200 = vadd.f32 %v545, %v6199
        %v6201 = vpop.f32.mrf.mxu0
        %6202 = vdwg.mxu0
        %6203 = vrot.lane.b32.xlu0 %v490, 104
        %v6204 = vpop.permute.xlu0 %6203
        %6205 = vrot.lane.b32.xlu0 %v495, 104
        %v6206 = vpop.permute.xlu0 %6205
        %6207 = vrot.lane.b32.xlu0 %v490, 72
        %v6208 = vpop.permute.xlu0 %6207
        %6209 = vrot.lane.b32.xlu0 %v495, 72
        %v6210 = vpop.permute.xlu0 %6209
        %v6211 = vsel %vm552, %v6204, 0
        %v6213 = vsel %vm552, %v6206, 0
        %v6215 = vsel %vm552, %v6208, 0
        %v6217 = vsel %vm552, %v6210, 0
        %6219 = vmatprep.subr.mxu0 0.0
        %6220 = vmatpush1.xpose.msra.mxu0 0.0
        %6221 = vmatprep.subr.mxu0 0.0
        %6222 = vmatpush1.xpose.msra.mxu0 0.0
        %6223 = vmatprep.subr.mxu0 0.0
        %6224 = vmatpush1.xpose.msra.mxu0 0.0
        %6225 = vmatprep.subr.mxu0 0.0
        %6226 = vmatpush1.xpose.msra.mxu0 0.0
        %6227 = vmatprep.subr.mxu0 0.0
        %6228 = vmatpush1.xpose.msra.mxu0 0.0
        %6229 = vmatprep.subr.mxu0 0.0
        %6230 = vmatpush1.xpose.msra.mxu0 0.0
        %6231 = vmatprep.subr.mxu0 0.0
        %6232 = vmatpush1.xpose.msra.mxu0 0.0
        %6233 = vmatprep.subr.mxu0 0.0
        %6234 = vmatpush1.xpose.msra.mxu0 0.0
        %6235 = vmatprep.subr.mxu0 0.0
        %6236 = vmatpush1.xpose.msra.mxu0 0.0
        %6237 = vmatprep.subr.mxu0 0.0
        %6238 = vmatpush1.xpose.msra.mxu0 0.0
        %6239 = vmatprep.subr.mxu0 0.0
        %6240 = vmatpush1.xpose.msra.mxu0 0.0
        %6241 = vmatprep.subr.mxu0 0.0
        %6242 = vmatpush1.xpose.msra.mxu0 0.0
        %6243 = vmatprep.subr.mxu0 0.0
        %6244 = vmatpush1.xpose.msra.mxu0 0.0
        %6245 = vmatprep.subr.mxu0 0.0
        %6246 = vmatpush1.xpose.msra.mxu0 0.0
        %6247 = vmatprep.subr.mxu0 0.0
        %6248 = vmatpush1.xpose.msra.mxu0 %v6217
        %6249 = vmatprep.subr.mxu0 0.0
        %6250 = vmatpush1.xpose.msra.mxu0 %v6215
        %6251 = vmatprep.subr.mxu0 0.0
        %6252 = vmatpush2.xpose.msra.mxu0 0.0
        %6253 = vmatprep.subr.mxu0 0.0
        %6254 = vmatpush2.xpose.msra.mxu0 0.0
        %6255 = vmatprep.subr.mxu0 0.0
        %6256 = vmatpush2.xpose.msra.mxu0 0.0
        %6257 = vmatprep.subr.mxu0 0.0
        %6258 = vmatpush2.xpose.msra.mxu0 0.0
        %6259 = vmatprep.subr.mxu0 0.0
        %6260 = vmatpush2.xpose.msra.mxu0 0.0
        %6261 = vmatprep.subr.mxu0 0.0
        %6262 = vmatpush2.xpose.msra.mxu0 0.0
        %6263 = vmatprep.subr.mxu0 0.0
        %6264 = vmatpush2.xpose.msra.mxu0 0.0
        %6265 = vmatprep.subr.mxu0 0.0
        %6266 = vmatpush2.xpose.msra.mxu0 0.0
        %6267 = vmatprep.subr.mxu0 0.0
        %6268 = vmatpush2.xpose.msra.mxu0 0.0
        %6269 = vmatprep.subr.mxu0 0.0
        %6270 = vmatpush2.xpose.msra.mxu0 0.0
        %6271 = vmatprep.subr.mxu0 0.0
        %6272 = vmatpush2.xpose.msra.mxu0 0.0
        %6273 = vmatprep.subr.mxu0 0.0
        %6274 = vmatpush2.xpose.msra.mxu0 0.0
        %6275 = vmatprep.subr.mxu0 0.0
        %6276 = vmatpush2.xpose.msra.mxu0 0.0
        %6277 = vmatprep.subr.mxu0 0.0
        %6278 = vmatpush2.xpose.msra.mxu0 0.0
        %6279 = vmatprep.subr.mxu0 0.0
        %6280 = vmatpush2.xpose.msra.mxu0 0.0
        %6281 = vmatprep.subr.mxu0 0.0
        %6282 = vmatpush2.xpose.msra.mxu0 0.0
        %6283 = vmatprep.mubr.f32.mxu0 0.0
        %6284 = vmatmul.mubr.f32.gmra.mxu0 %v6211
        %v6285 = vpop.f32.mrf.mxu0
        %v6286 = vadd.f32 %v544, %v6285
        %v6287 = vpop.f32.mrf.mxu0
        %6288 = vmatprep.mubr.f32.mxu0 0.0
        %6289 = vmatmul.mubr.f32.gmra.mxu0 %v6213
        %v6290 = vpop.f32.mrf.mxu0
        %v6291 = vadd.f32 %v545, %v6290
        %v6292 = vpop.f32.mrf.mxu0
        %6293 = vdwg.mxu0
        %6294 = vrot.lane.b32.xlu0 %v500, 104
        %v6295 = vpop.permute.xlu0 %6294
        %6296 = vrot.lane.b32.xlu0 %v505, 104
        %v6297 = vpop.permute.xlu0 %6296
        %6298 = vrot.lane.b32.xlu0 %v500, 72
        %v6299 = vpop.permute.xlu0 %6298
        %6300 = vrot.lane.b32.xlu0 %v505, 72
        %v6301 = vpop.permute.xlu0 %6300
        %v6302 = vsel %vm552, %v6295, 0
        %v6304 = vsel %vm552, %v6297, 0
        %v6306 = vsel %vm552, %v6299, 0
        %v6308 = vsel %vm552, %v6301, 0
        %6310 = vmatprep.subr.mxu0 0.0
        %6311 = vmatpush1.xpose.msra.mxu0 0.0
        %6312 = vmatprep.subr.mxu0 0.0
        %6313 = vmatpush1.xpose.msra.mxu0 0.0
        %6314 = vmatprep.subr.mxu0 0.0
        %6315 = vmatpush1.xpose.msra.mxu0 0.0
        %6316 = vmatprep.subr.mxu0 0.0
        %6317 = vmatpush1.xpose.msra.mxu0 0.0
        %6318 = vmatprep.subr.mxu0 0.0
        %6319 = vmatpush1.xpose.msra.mxu0 0.0
        %6320 = vmatprep.subr.mxu0 0.0
        %6321 = vmatpush1.xpose.msra.mxu0 0.0
        %6322 = vmatprep.subr.mxu0 0.0
        %6323 = vmatpush1.xpose.msra.mxu0 0.0
        %6324 = vmatprep.subr.mxu0 0.0
        %6325 = vmatpush1.xpose.msra.mxu0 0.0
        %6326 = vmatprep.subr.mxu0 0.0
        %6327 = vmatpush1.xpose.msra.mxu0 0.0
        %6328 = vmatprep.subr.mxu0 0.0
        %6329 = vmatpush1.xpose.msra.mxu0 0.0
        %6330 = vmatprep.subr.mxu0 0.0
        %6331 = vmatpush1.xpose.msra.mxu0 0.0
        %6332 = vmatprep.subr.mxu0 0.0
        %6333 = vmatpush1.xpose.msra.mxu0 0.0
        %6334 = vmatprep.subr.mxu0 0.0
        %6335 = vmatpush1.xpose.msra.mxu0 0.0
        %6336 = vmatprep.subr.mxu0 0.0
        %6337 = vmatpush1.xpose.msra.mxu0 0.0
        %6338 = vmatprep.subr.mxu0 0.0
        %6339 = vmatpush1.xpose.msra.mxu0 %v6308
        %6340 = vmatprep.subr.mxu0 0.0
        %6341 = vmatpush1.xpose.msra.mxu0 %v6306
        %6342 = vmatprep.subr.mxu0 0.0
        %6343 = vmatpush2.xpose.msra.mxu0 0.0
        %6344 = vmatprep.subr.mxu0 0.0
        %6345 = vmatpush2.xpose.msra.mxu0 0.0
        %6346 = vmatprep.subr.mxu0 0.0
        %6347 = vmatpush2.xpose.msra.mxu0 0.0
        %6348 = vmatprep.subr.mxu0 0.0
        %6349 = vmatpush2.xpose.msra.mxu0 0.0
        %6350 = vmatprep.subr.mxu0 0.0
        %6351 = vmatpush2.xpose.msra.mxu0 0.0
        %6352 = vmatprep.subr.mxu0 0.0
        %6353 = vmatpush2.xpose.msra.mxu0 0.0
        %6354 = vmatprep.subr.mxu0 0.0
        %6355 = vmatpush2.xpose.msra.mxu0 0.0
        %6356 = vmatprep.subr.mxu0 0.0
        %6357 = vmatpush2.xpose.msra.mxu0 0.0
        %6358 = vmatprep.subr.mxu0 0.0
        %6359 = vmatpush2.xpose.msra.mxu0 0.0
        %6360 = vmatprep.subr.mxu0 0.0
        %6361 = vmatpush2.xpose.msra.mxu0 0.0
        %6362 = vmatprep.subr.mxu0 0.0
        %6363 = vmatpush2.xpose.msra.mxu0 0.0
        %6364 = vmatprep.subr.mxu0 0.0
        %6365 = vmatpush2.xpose.msra.mxu0 0.0
        %6366 = vmatprep.subr.mxu0 0.0
        %6367 = vmatpush2.xpose.msra.mxu0 0.0
        %6368 = vmatprep.subr.mxu0 0.0
        %6369 = vmatpush2.xpose.msra.mxu0 0.0
        %6370 = vmatprep.subr.mxu0 0.0
        %6371 = vmatpush2.xpose.msra.mxu0 0.0
        %6372 = vmatprep.subr.mxu0 0.0
        %6373 = vmatpush2.xpose.msra.mxu0 0.0
        %6374 = vmatprep.mubr.f32.mxu0 0.0
        %6375 = vmatmul.mubr.f32.gmra.mxu0 %v6302
        %v6376 = vpop.f32.mrf.mxu0
        %v6377 = vadd.f32 %v544, %v6376
        %v6378 = vpop.f32.mrf.mxu0
        %6379 = vmatprep.mubr.f32.mxu0 0.0
        %6380 = vmatmul.mubr.f32.gmra.mxu0 %v6304
        %v6381 = vpop.f32.mrf.mxu0
        %v6382 = vadd.f32 %v545, %v6381
        %v6383 = vpop.f32.mrf.mxu0
        %6384 = vdwg.mxu0
        %6385 = vrot.lane.b32.xlu0 %v510, 104
        %v6386 = vpop.permute.xlu0 %6385
        %6387 = vrot.lane.b32.xlu0 %v515, 104
        %v6388 = vpop.permute.xlu0 %6387
        %6389 = vrot.lane.b32.xlu0 %v510, 72
        %v6390 = vpop.permute.xlu0 %6389
        %6391 = vrot.lane.b32.xlu0 %v515, 72
        %v6392 = vpop.permute.xlu0 %6391
        %v6393 = vsel %vm552, %v6386, 0
        %v6395 = vsel %vm552, %v6388, 0
        %v6397 = vsel %vm552, %v6390, 0
        %v6399 = vsel %vm552, %v6392, 0
        %6401 = vmatprep.subr.mxu0 0.0
        %6402 = vmatpush1.xpose.msra.mxu0 0.0
        %6403 = vmatprep.subr.mxu0 0.0
        %6404 = vmatpush1.xpose.msra.mxu0 0.0
        %6405 = vmatprep.subr.mxu0 0.0
        %6406 = vmatpush1.xpose.msra.mxu0 0.0
        %6407 = vmatprep.subr.mxu0 0.0
        %6408 = vmatpush1.xpose.msra.mxu0 0.0
        %6409 = vmatprep.subr.mxu0 0.0
        %6410 = vmatpush1.xpose.msra.mxu0 0.0
        %6411 = vmatprep.subr.mxu0 0.0
        %6412 = vmatpush1.xpose.msra.mxu0 0.0
        %6413 = vmatprep.subr.mxu0 0.0
        %6414 = vmatpush1.xpose.msra.mxu0 0.0
        %6415 = vmatprep.subr.mxu0 0.0
        %6416 = vmatpush1.xpose.msra.mxu0 0.0
        %6417 = vmatprep.subr.mxu0 0.0
        %6418 = vmatpush1.xpose.msra.mxu0 0.0
        %6419 = vmatprep.subr.mxu0 0.0
        %6420 = vmatpush1.xpose.msra.mxu0 0.0
        %6421 = vmatprep.subr.mxu0 0.0
        %6422 = vmatpush1.xpose.msra.mxu0 0.0
        %6423 = vmatprep.subr.mxu0 0.0
        %6424 = vmatpush1.xpose.msra.mxu0 0.0
        %6425 = vmatprep.subr.mxu0 0.0
        %6426 = vmatpush1.xpose.msra.mxu0 0.0
        %6427 = vmatprep.subr.mxu0 0.0
        %6428 = vmatpush1.xpose.msra.mxu0 0.0
        %6429 = vmatprep.subr.mxu0 0.0
        %6430 = vmatpush1.xpose.msra.mxu0 %v6399
        %6431 = vmatprep.subr.mxu0 0.0
        %6432 = vmatpush1.xpose.msra.mxu0 %v6397
        %6433 = vmatprep.subr.mxu0 0.0
        %6434 = vmatpush2.xpose.msra.mxu0 0.0
        %6435 = vmatprep.subr.mxu0 0.0
        %6436 = vmatpush2.xpose.msra.mxu0 0.0
        %6437 = vmatprep.subr.mxu0 0.0
        %6438 = vmatpush2.xpose.msra.mxu0 0.0
        %6439 = vmatprep.subr.mxu0 0.0
        %6440 = vmatpush2.xpose.msra.mxu0 0.0
        %6441 = vmatprep.subr.mxu0 0.0
        %6442 = vmatpush2.xpose.msra.mxu0 0.0
        %6443 = vmatprep.subr.mxu0 0.0
        %6444 = vmatpush2.xpose.msra.mxu0 0.0
        %6445 = vmatprep.subr.mxu0 0.0
        %6446 = vmatpush2.xpose.msra.mxu0 0.0
        %6447 = vmatprep.subr.mxu0 0.0
        %6448 = vmatpush2.xpose.msra.mxu0 0.0
        %6449 = vmatprep.subr.mxu0 0.0
        %6450 = vmatpush2.xpose.msra.mxu0 0.0
        %6451 = vmatprep.subr.mxu0 0.0
        %6452 = vmatpush2.xpose.msra.mxu0 0.0
        %6453 = vmatprep.subr.mxu0 0.0
        %6454 = vmatpush2.xpose.msra.mxu0 0.0
        %6455 = vmatprep.subr.mxu0 0.0
        %6456 = vmatpush2.xpose.msra.mxu0 0.0
        %6457 = vmatprep.subr.mxu0 0.0
        %6458 = vmatpush2.xpose.msra.mxu0 0.0
        %6459 = vmatprep.subr.mxu0 0.0
        %6460 = vmatpush2.xpose.msra.mxu0 0.0
        %6461 = vmatprep.subr.mxu0 0.0
        %6462 = vmatpush2.xpose.msra.mxu0 0.0
        %6463 = vmatprep.subr.mxu0 0.0
        %6464 = vmatpush2.xpose.msra.mxu0 0.0
        %6465 = vmatprep.mubr.f32.mxu0 0.0
        %6466 = vmatmul.mubr.f32.gmra.mxu0 %v6393
        %v6467 = vpop.f32.mrf.mxu0
        %v6468 = vadd.f32 %v544, %v6467
        %v6469 = vpop.f32.mrf.mxu0
        %6470 = vmatprep.mubr.f32.mxu0 0.0
        %6471 = vmatmul.mubr.f32.gmra.mxu0 %v6395
        %v6472 = vpop.f32.mrf.mxu0
        %v6473 = vadd.f32 %v545, %v6472
        %v6474 = vpop.f32.mrf.mxu0
        %6475 = vdwg.mxu0
        %6476 = vrot.lane.b32.xlu0 %v520, 104
        %v6477 = vpop.permute.xlu0 %6476
        %6478 = vrot.lane.b32.xlu0 %v525, 104
        %v6479 = vpop.permute.xlu0 %6478
        %6480 = vrot.lane.b32.xlu0 %v520, 72
        %v6481 = vpop.permute.xlu0 %6480
        %6482 = vrot.lane.b32.xlu0 %v525, 72
        %v6483 = vpop.permute.xlu0 %6482
        %v6484 = vsel %vm552, %v6477, 0
        %v6486 = vsel %vm552, %v6479, 0
        %v6488 = vsel %vm552, %v6481, 0
        %v6490 = vsel %vm552, %v6483, 0
        %6492 = vmatprep.subr.mxu0 0.0
        %6493 = vmatpush1.xpose.msra.mxu0 0.0
        %6494 = vmatprep.subr.mxu0 0.0
        %6495 = vmatpush1.xpose.msra.mxu0 0.0
        %6496 = vmatprep.subr.mxu0 0.0
        %6497 = vmatpush1.xpose.msra.mxu0 0.0
        %6498 = vmatprep.subr.mxu0 0.0
        %6499 = vmatpush1.xpose.msra.mxu0 0.0
        %6500 = vmatprep.subr.mxu0 0.0
        %6501 = vmatpush1.xpose.msra.mxu0 0.0
        %6502 = vmatprep.subr.mxu0 0.0
        %6503 = vmatpush1.xpose.msra.mxu0 0.0
        %6504 = vmatprep.subr.mxu0 0.0
        %6505 = vmatpush1.xpose.msra.mxu0 0.0
        %6506 = vmatprep.subr.mxu0 0.0
        %6507 = vmatpush1.xpose.msra.mxu0 0.0
        %6508 = vmatprep.subr.mxu0 0.0
        %6509 = vmatpush1.xpose.msra.mxu0 0.0
        %6510 = vmatprep.subr.mxu0 0.0
        %6511 = vmatpush1.xpose.msra.mxu0 0.0
        %6512 = vmatprep.subr.mxu0 0.0
        %6513 = vmatpush1.xpose.msra.mxu0 0.0
        %6514 = vmatprep.subr.mxu0 0.0
        %6515 = vmatpush1.xpose.msra.mxu0 0.0
        %6516 = vmatprep.subr.mxu0 0.0
        %6517 = vmatpush1.xpose.msra.mxu0 0.0
        %6518 = vmatprep.subr.mxu0 0.0
        %6519 = vmatpush1.xpose.msra.mxu0 0.0
        %6520 = vmatprep.subr.mxu0 0.0
        %6521 = vmatpush1.xpose.msra.mxu0 %v6490
        %6522 = vmatprep.subr.mxu0 0.0
        %6523 = vmatpush1.xpose.msra.mxu0 %v6488
        %6524 = vmatprep.subr.mxu0 0.0
        %6525 = vmatpush2.xpose.msra.mxu0 0.0
        %6526 = vmatprep.subr.mxu0 0.0
        %6527 = vmatpush2.xpose.msra.mxu0 0.0
        %6528 = vmatprep.subr.mxu0 0.0
        %6529 = vmatpush2.xpose.msra.mxu0 0.0
        %6530 = vmatprep.subr.mxu0 0.0
        %6531 = vmatpush2.xpose.msra.mxu0 0.0
        %6532 = vmatprep.subr.mxu0 0.0
        %6533 = vmatpush2.xpose.msra.mxu0 0.0
        %6534 = vmatprep.subr.mxu0 0.0
        %6535 = vmatpush2.xpose.msra.mxu0 0.0
        %6536 = vmatprep.subr.mxu0 0.0
        %6537 = vmatpush2.xpose.msra.mxu0 0.0
        %6538 = vmatprep.subr.mxu0 0.0
        %6539 = vmatpush2.xpose.msra.mxu0 0.0
        %6540 = vmatprep.subr.mxu0 0.0
        %6541 = vmatpush2.xpose.msra.mxu0 0.0
        %6542 = vmatprep.subr.mxu0 0.0
        %6543 = vmatpush2.xpose.msra.mxu0 0.0
        %6544 = vmatprep.subr.mxu0 0.0
        %6545 = vmatpush2.xpose.msra.mxu0 0.0
        %6546 = vmatprep.subr.mxu0 0.0
        %6547 = vmatpush2.xpose.msra.mxu0 0.0
        %6548 = vmatprep.subr.mxu0 0.0
        %6549 = vmatpush2.xpose.msra.mxu0 0.0
        %6550 = vmatprep.subr.mxu0 0.0
        %6551 = vmatpush2.xpose.msra.mxu0 0.0
        %6552 = vmatprep.subr.mxu0 0.0
        %6553 = vmatpush2.xpose.msra.mxu0 0.0
        %6554 = vmatprep.subr.mxu0 0.0
        %6555 = vmatpush2.xpose.msra.mxu0 0.0
        %6556 = vmatprep.mubr.f32.mxu0 0.0
        %6557 = vmatmul.mubr.f32.gmra.mxu0 %v6484
        %v6558 = vpop.f32.mrf.mxu0
        %v6559 = vadd.f32 %v544, %v6558
        %v6560 = vpop.f32.mrf.mxu0
        %6561 = vmatprep.mubr.f32.mxu0 0.0
        %6562 = vmatmul.mubr.f32.gmra.mxu0 %v6486
        %v6563 = vpop.f32.mrf.mxu0
        %v6564 = vadd.f32 %v545, %v6563
        %v6565 = vpop.f32.mrf.mxu0
        %6566 = vdwg.mxu0
        %6567 = vrot.lane.b32.xlu0 %v530, 104
        %v6568 = vpop.permute.xlu0 %6567
        %6569 = vrot.lane.b32.xlu0 %v535, 104
        %v6570 = vpop.permute.xlu0 %6569
        %6571 = vrot.lane.b32.xlu0 %v530, 72
        %v6572 = vpop.permute.xlu0 %6571
        %6573 = vrot.lane.b32.xlu0 %v535, 72
        %v6574 = vpop.permute.xlu0 %6573
        %v6575 = vsel %vm552, %v6568, 0
        %v6577 = vsel %vm552, %v6570, 0
        %v6579 = vsel %vm552, %v6572, 0
        %v6581 = vsel %vm552, %v6574, 0
        %6583 = vmatprep.subr.mxu0 0.0
        %6584 = vmatpush1.xpose.msra.mxu0 0.0
        %6585 = vmatprep.subr.mxu0 0.0
        %6586 = vmatpush1.xpose.msra.mxu0 0.0
        %6587 = vmatprep.subr.mxu0 0.0
        %6588 = vmatpush1.xpose.msra.mxu0 0.0
        %6589 = vmatprep.subr.mxu0 0.0
        %6590 = vmatpush1.xpose.msra.mxu0 0.0
        %6591 = vmatprep.subr.mxu0 0.0
        %6592 = vmatpush1.xpose.msra.mxu0 0.0
        %6593 = vmatprep.subr.mxu0 0.0
        %6594 = vmatpush1.xpose.msra.mxu0 0.0
        %6595 = vmatprep.subr.mxu0 0.0
        %6596 = vmatpush1.xpose.msra.mxu0 0.0
        %6597 = vmatprep.subr.mxu0 0.0
        %6598 = vmatpush1.xpose.msra.mxu0 0.0
        %6599 = vmatprep.subr.mxu0 0.0
        %6600 = vmatpush1.xpose.msra.mxu0 0.0
        %6601 = vmatprep.subr.mxu0 0.0
        %6602 = vmatpush1.xpose.msra.mxu0 0.0
        %6603 = vmatprep.subr.mxu0 0.0
        %6604 = vmatpush1.xpose.msra.mxu0 0.0
        %6605 = vmatprep.subr.mxu0 0.0
        %6606 = vmatpush1.xpose.msra.mxu0 0.0
        %6607 = vmatprep.subr.mxu0 0.0
        %6608 = vmatpush1.xpose.msra.mxu0 0.0
        %6609 = vmatprep.subr.mxu0 0.0
        %6610 = vmatpush1.xpose.msra.mxu0 0.0
        %6611 = vmatprep.subr.mxu0 0.0
        %6612 = vmatpush1.xpose.msra.mxu0 %v6581
        %6613 = vmatprep.subr.mxu0 0.0
        %6614 = vmatpush1.xpose.msra.mxu0 %v6579
        %6615 = vmatprep.subr.mxu0 0.0
        %6616 = vmatpush2.xpose.msra.mxu0 0.0
        %6617 = vmatprep.subr.mxu0 0.0
        %6618 = vmatpush2.xpose.msra.mxu0 0.0
        %6619 = vmatprep.subr.mxu0 0.0
        %6620 = vmatpush2.xpose.msra.mxu0 0.0
        %6621 = vmatprep.subr.mxu0 0.0
        %6622 = vmatpush2.xpose.msra.mxu0 0.0
        %6623 = vmatprep.subr.mxu0 0.0
        %6624 = vmatpush2.xpose.msra.mxu0 0.0
        %6625 = vmatprep.subr.mxu0 0.0
        %6626 = vmatpush2.xpose.msra.mxu0 0.0
        %6627 = vmatprep.subr.mxu0 0.0
        %6628 = vmatpush2.xpose.msra.mxu0 0.0
        %6629 = vmatprep.subr.mxu0 0.0
        %6630 = vmatpush2.xpose.msra.mxu0 0.0
        %6631 = vmatprep.subr.mxu0 0.0
        %6632 = vmatpush2.xpose.msra.mxu0 0.0
        %6633 = vmatprep.subr.mxu0 0.0
        %6634 = vmatpush2.xpose.msra.mxu0 0.0
        %6635 = vmatprep.subr.mxu0 0.0
        %6636 = vmatpush2.xpose.msra.mxu0 0.0
        %6637 = vmatprep.subr.mxu0 0.0
        %6638 = vmatpush2.xpose.msra.mxu0 0.0
        %6639 = vmatprep.subr.mxu0 0.0
        %6640 = vmatpush2.xpose.msra.mxu0 0.0
        %6641 = vmatprep.subr.mxu0 0.0
        %6642 = vmatpush2.xpose.msra.mxu0 0.0
        %6643 = vmatprep.subr.mxu0 0.0
        %6644 = vmatpush2.xpose.msra.mxu0 0.0
        %6645 = vmatprep.subr.mxu0 0.0
        %6646 = vmatpush2.xpose.msra.mxu0 0.0
        %6647 = vmatprep.mubr.f32.mxu0 0.0
        %6648 = vmatmul.mubr.f32.gmra.mxu0 %v6575
        %v6649 = vpop.f32.mrf.mxu0
        %v6650 = vadd.f32 %v544, %v6649
        %v6651 = vpop.f32.mrf.mxu0
        %6652 = vmatprep.mubr.f32.mxu0 0.0
        %6653 = vmatmul.mubr.f32.gmra.mxu0 %v6577
        %v6654 = vpop.f32.mrf.mxu0
        %v6655 = vadd.f32 %v545, %v6654
        %v6656 = vpop.f32.mrf.mxu0
        %6657 = vdwg.mxu0
        %v6658 = vsel %vm1259, %v6013, -inf
        %6659 = vmax.xlane.f32.xlu0 %v6658
        %v6660 = vpop.xlane.xlu0 %6659
        %v6661 = vsel %vm1259, %v6018, -inf
        %6662 = vmax.xlane.f32.xlu0 %v6661
        %v6663 = vpop.xlane.xlu0 %6662
        %v6664 = vsel %vm1259, %v6104, -inf
        %6665 = vmax.xlane.f32.xlu0 %v6664
        %v6666 = vpop.xlane.xlu0 %6665
        %v6667 = vsel %vm1259, %v6109, -inf
        %6668 = vmax.xlane.f32.xlu0 %v6667
        %v6669 = vpop.xlane.xlu0 %6668
        %v6670 = vsel %vm1259, %v6195, -inf
        %6671 = vmax.xlane.f32.xlu0 %v6670
        %v6672 = vpop.xlane.xlu0 %6671
        %v6673 = vsel %vm1259, %v6200, -inf
        %6674 = vmax.xlane.f32.xlu0 %v6673
        %v6675 = vpop.xlane.xlu0 %6674
        %v6676 = vsel %vm1259, %v6286, -inf
        %6677 = vmax.xlane.f32.xlu0 %v6676
        %v6678 = vpop.xlane.xlu0 %6677
        %v6679 = vsel %vm1259, %v6291, -inf
        %6680 = vmax.xlane.f32.xlu0 %v6679
        %v6681 = vpop.xlane.xlu0 %6680
        %v6682 = vsel %vm1259, %v6377, -inf
        %6683 = vmax.xlane.f32.xlu0 %v6682
        %v6684 = vpop.xlane.xlu0 %6683
        %v6685 = vsel %vm1259, %v6382, -inf
        %6686 = vmax.xlane.f32.xlu0 %v6685
        %v6687 = vpop.xlane.xlu0 %6686
        %v6688 = vsel %vm1259, %v6468, -inf
        %6689 = vmax.xlane.f32.xlu0 %v6688
        %v6690 = vpop.xlane.xlu0 %6689
        %v6691 = vsel %vm1259, %v6473, -inf
        %6692 = vmax.xlane.f32.xlu0 %v6691
        %v6693 = vpop.xlane.xlu0 %6692
        %v6694 = vsel %vm1259, %v6559, -inf
        %6695 = vmax.xlane.f32.xlu0 %v6694
        %v6696 = vpop.xlane.xlu0 %6695
        %v6697 = vsel %vm1259, %v6564, -inf
        %6698 = vmax.xlane.f32.xlu0 %v6697
        %v6699 = vpop.xlane.xlu0 %6698
        %v6700 = vsel %vm1259, %v6650, -inf
        %6701 = vmax.xlane.f32.xlu0 %v6700
        %v6702 = vpop.xlane.xlu0 %6701
        %v6703 = vsel %vm1259, %v6655, -inf
        %6704 = vmax.xlane.f32.xlu0 %v6703
        %v6705 = vpop.xlane.xlu0 %6704
        %v6706 = vsub.f32 %v6013, %v6660
        %v6707 = vsub.f32 %v6018, %v6663
        %v6708 = vsub.f32 %v6104, %v6666
        %v6709 = vsub.f32 %v6109, %v6669
        %v6710 = vsub.f32 %v6195, %v6672
        %v6711 = vsub.f32 %v6200, %v6675
        %v6712 = vsub.f32 %v6286, %v6678
        %v6713 = vsub.f32 %v6291, %v6681
        %v6714 = vsub.f32 %v6377, %v6684
        %v6715 = vsub.f32 %v6382, %v6687
        %v6716 = vsub.f32 %v6468, %v6690
        %v6717 = vsub.f32 %v6473, %v6693
        %v6718 = vsub.f32 %v6559, %v6696
        %v6719 = vsub.f32 %v6564, %v6699
        %v6720 = vsub.f32 %v6650, %v6702
        %v6721 = vsub.f32 %v6655, %v6705
        %v6722 = vmul.f32 %v6706, 1.442695
        %v6723 = vpow.pop %v6722
        %v6724 = vmul.f32 %v6707, 1.442695
        %v6725 = vpow.pop %v6724
        %v6726 = vmul.f32 %v6708, 1.442695
        %v6727 = vpow.pop %v6726
        %v6728 = vmul.f32 %v6709, 1.442695
        %v6729 = vpow.pop %v6728
        %v6730 = vmul.f32 %v6710, 1.442695
        %v6731 = vpow.pop %v6730
        %v6732 = vmul.f32 %v6711, 1.442695
        %v6733 = vpow.pop %v6732
        %v6734 = vmul.f32 %v6712, 1.442695
        %v6735 = vpow.pop %v6734
        %v6736 = vmul.f32 %v6713, 1.442695
        %v6737 = vpow.pop %v6736
        %v6738 = vmul.f32 %v6714, 1.442695
        %v6739 = vpow.pop %v6738
        %v6740 = vmul.f32 %v6715, 1.442695
        %v6741 = vpow.pop %v6740
        %v6742 = vmul.f32 %v6716, 1.442695
        %v6743 = vpow.pop %v6742
        %v6744 = vmul.f32 %v6717, 1.442695
        %v6745 = vpow.pop %v6744
        %v6746 = vmul.f32 %v6718, 1.442695
        %v6747 = vpow.pop %v6746
        %v6748 = vmul.f32 %v6719, 1.442695
        %v6749 = vpow.pop %v6748
        %v6750 = vmul.f32 %v6720, 1.442695
        %v6751 = vpow.pop %v6750
        %v6752 = vmul.f32 %v6721, 1.442695
        %v6753 = vpow.pop %v6752
        %v6754 = vsel %vm1259, %v6723, 0.0
        %6755 = vadd.xlane.f32.xlu0 %v6754
        %v6756 = vpop.xlane.xlu0 %6755
        %v6757 = vsel %vm1259, %v6725, 0.0
        %6758 = vadd.xlane.f32.xlu0 %v6757
        %v6759 = vpop.xlane.xlu0 %6758
        %v6760 = vsel %vm1259, %v6727, 0.0
        %6761 = vadd.xlane.f32.xlu0 %v6760
        %v6762 = vpop.xlane.xlu0 %6761
        %v6763 = vsel %vm1259, %v6729, 0.0
        %6764 = vadd.xlane.f32.xlu0 %v6763
        %v6765 = vpop.xlane.xlu0 %6764
        %v6766 = vsel %vm1259, %v6731, 0.0
        %6767 = vadd.xlane.f32.xlu0 %v6766
        %v6768 = vpop.xlane.xlu0 %6767
        %v6769 = vsel %vm1259, %v6733, 0.0
        %6770 = vadd.xlane.f32.xlu0 %v6769
        %v6771 = vpop.xlane.xlu0 %6770
        %v6772 = vsel %vm1259, %v6735, 0.0
        %6773 = vadd.xlane.f32.xlu0 %v6772
        %v6774 = vpop.xlane.xlu0 %6773
        %v6775 = vsel %vm1259, %v6737, 0.0
        %6776 = vadd.xlane.f32.xlu0 %v6775
        %v6777 = vpop.xlane.xlu0 %6776
        %v6778 = vsel %vm1259, %v6739, 0.0
        %6779 = vadd.xlane.f32.xlu0 %v6778
        %v6780 = vpop.xlane.xlu0 %6779
        %v6781 = vsel %vm1259, %v6741, 0.0
        %6782 = vadd.xlane.f32.xlu0 %v6781
        %v6783 = vpop.xlane.xlu0 %6782
        %v6784 = vsel %vm1259, %v6743, 0.0
        %6785 = vadd.xlane.f32.xlu0 %v6784
        %v6786 = vpop.xlane.xlu0 %6785
        %v6787 = vsel %vm1259, %v6745, 0.0
        %6788 = vadd.xlane.f32.xlu0 %v6787
        %v6789 = vpop.xlane.xlu0 %6788
        %v6790 = vsel %vm1259, %v6747, 0.0
        %6791 = vadd.xlane.f32.xlu0 %v6790
        %v6792 = vpop.xlane.xlu0 %6791
        %v6793 = vsel %vm1259, %v6749, 0.0
        %6794 = vadd.xlane.f32.xlu0 %v6793
        %v6795 = vpop.xlane.xlu0 %6794
        %v6796 = vsel %vm1259, %v6751, 0.0
        %6797 = vadd.xlane.f32.xlu0 %v6796
        %v6798 = vpop.xlane.xlu0 %6797
        %v6799 = vsel %vm1259, %v6753, 0.0
        %6800 = vadd.xlane.f32.xlu0 %v6799
        %v6801 = vpop.xlane.xlu0 %6800
        %v6802 = vrcp.pop %v6756
        %v6803 = vrcp.pop %v6759
        %v6804 = vrcp.pop %v6762
        %v6805 = vrcp.pop %v6765
        %v6806 = vrcp.pop %v6768
        %v6807 = vrcp.pop %v6771
        %v6808 = vrcp.pop %v6774
        %v6809 = vrcp.pop %v6777
        %v6810 = vrcp.pop %v6780
        %v6811 = vrcp.pop %v6783
        %v6812 = vrcp.pop %v6786
        %v6813 = vrcp.pop %v6789
        %v6814 = vrcp.pop %v6792
        %v6815 = vrcp.pop %v6795
        %v6816 = vrcp.pop %v6798
        %v6817 = vrcp.pop %v6801
        %v6818 = vmul.f32 %v6723, %v6802
        %v6819 = vmul.f32 %v6725, %v6803
        %v6820 = vmul.f32 %v6727, %v6804
        %v6821 = vmul.f32 %v6729, %v6805
        %v6822 = vmul.f32 %v6731, %v6806
        %v6823 = vmul.f32 %v6733, %v6807
        %v6824 = vmul.f32 %v6735, %v6808
        %v6825 = vmul.f32 %v6737, %v6809
        %v6826 = vmul.f32 %v6739, %v6810
        %v6827 = vmul.f32 %v6741, %v6811
        %v6828 = vmul.f32 %v6743, %v6812
        %v6829 = vmul.f32 %v6745, %v6813
        %v6830 = vmul.f32 %v6747, %v6814
        %v6831 = vmul.f32 %v6749, %v6815
        %v6832 = vmul.f32 %v6751, %v6816
        %v6833 = vmul.f32 %v6753, %v6817
        %6834 = vrot.lane.b32.xlu0 %v460, 40
        %v6835 = vpop.permute.xlu0 %6834
        %6836 = vrot.lane.b32.xlu0 %v465, 40
        %v6837 = vpop.permute.xlu0 %6836
        %v6841 = vsel %vm1259, %v6818, 0
        %v6844 = vsel %vm1259, %v6819, 0
        %6846 = vmatprep.subr.mxu0 0.0
        %6847 = vmatpush1.msra.mxu0 0.0
        %6848 = vmatprep.subr.mxu0 0.0
        %6849 = vmatpush1.msra.mxu0 0.0
        %6850 = vmatprep.subr.mxu0 0.0
        %6851 = vmatpush1.msra.mxu0 0.0
        %6852 = vmatprep.subr.mxu0 0.0
        %6853 = vmatpush1.msra.mxu0 0.0
        %6854 = vmatprep.subr.mxu0 0.0
        %6855 = vmatpush1.msra.mxu0 0.0
        %6856 = vmatprep.subr.mxu0 0.0
        %6857 = vmatpush1.msra.mxu0 0.0
        %6858 = vmatprep.subr.mxu0 0.0
        %6859 = vmatpush1.msra.mxu0 0.0
        %6860 = vmatprep.subr.mxu0 0.0
        %6861 = vmatpush1.msra.mxu0 0.0
        %6862 = vmatprep.subr.mxu0 0.0
        %6863 = vmatpush1.msra.mxu0 0.0
        %6864 = vmatprep.subr.mxu0 0.0
        %6865 = vmatpush1.msra.mxu0 0.0
        %6866 = vmatprep.subr.mxu0 0.0
        %6867 = vmatpush1.msra.mxu0 0.0
        %6868 = vmatprep.subr.mxu0 0.0
        %6869 = vmatpush1.msra.mxu0 0.0
        %6870 = vmatprep.subr.mxu0 0.0
        %6871 = vmatpush1.msra.mxu0 0.0
        %6872 = vmatprep.subr.mxu0 0.0
        %6873 = vmatpush1.msra.mxu0 0.0
        %6874 = vmatprep.subr.mxu0 0.0
        %6875 = vmatpush1.msra.mxu0 %v6837
        %6876 = vmatprep.subr.mxu0 0.0
        %6877 = vmatpush1.msra.mxu0 %v6835
        %6878 = vmatprep.subr.mxu0 0.0
        %6879 = vmatpush2.msra.mxu0 0.0
        %6880 = vmatprep.subr.mxu0 0.0
        %6881 = vmatpush2.msra.mxu0 0.0
        %6882 = vmatprep.subr.mxu0 0.0
        %6883 = vmatpush2.msra.mxu0 0.0
        %6884 = vmatprep.subr.mxu0 0.0
        %6885 = vmatpush2.msra.mxu0 0.0
        %6886 = vmatprep.subr.mxu0 0.0
        %6887 = vmatpush2.msra.mxu0 0.0
        %6888 = vmatprep.subr.mxu0 0.0
        %6889 = vmatpush2.msra.mxu0 0.0
        %6890 = vmatprep.subr.mxu0 0.0
        %6891 = vmatpush2.msra.mxu0 0.0
        %6892 = vmatprep.subr.mxu0 0.0
        %6893 = vmatpush2.msra.mxu0 0.0
        %6894 = vmatprep.subr.mxu0 0.0
        %6895 = vmatpush2.msra.mxu0 0.0
        %6896 = vmatprep.subr.mxu0 0.0
        %6897 = vmatpush2.msra.mxu0 0.0
        %6898 = vmatprep.subr.mxu0 0.0
        %6899 = vmatpush2.msra.mxu0 0.0
        %6900 = vmatprep.subr.mxu0 0.0
        %6901 = vmatpush2.msra.mxu0 0.0
        %6902 = vmatprep.subr.mxu0 0.0
        %6903 = vmatpush2.msra.mxu0 0.0
        %6904 = vmatprep.subr.mxu0 0.0
        %6905 = vmatpush2.msra.mxu0 0.0
        %6906 = vmatprep.subr.mxu0 0.0
        %6907 = vmatpush2.msra.mxu0 0.0
        %6908 = vmatprep.subr.mxu0 0.0
        %6909 = vmatpush2.msra.mxu0 0.0
        %6910 = vmatprep.mubr.f32.mxu0 0.0
        %6911 = vmatmul.mubr.f32.gmra.mxu0 %v6841
        %v6912 = vpop.f32.mrf.mxu0
        %v6913 = vadd.f32 0.0, %v6912
        %v6914 = vpop.f32.mrf.mxu0
        %6915 = vmatprep.mubr.f32.mxu0 0.0
        %6916 = vmatmul.mubr.f32.gmra.mxu0 %v6844
        %v6917 = vpop.f32.mrf.mxu0
        %v6918 = vadd.f32 0.0, %v6917
        %v6919 = vpop.f32.mrf.mxu0
        %6920 = vdwg.mxu0
        %6921 = vrot.lane.b32.xlu0 %v470, 40
        %v6922 = vpop.permute.xlu0 %6921
        %6923 = vrot.lane.b32.xlu0 %v475, 40
        %v6924 = vpop.permute.xlu0 %6923
        %v6928 = vsel %vm1259, %v6820, 0
        %v6931 = vsel %vm1259, %v6821, 0
        %6933 = vmatprep.subr.mxu0 0.0
        %6934 = vmatpush1.msra.mxu0 0.0
        %6935 = vmatprep.subr.mxu0 0.0
        %6936 = vmatpush1.msra.mxu0 0.0
        %6937 = vmatprep.subr.mxu0 0.0
        %6938 = vmatpush1.msra.mxu0 0.0
        %6939 = vmatprep.subr.mxu0 0.0
        %6940 = vmatpush1.msra.mxu0 0.0
        %6941 = vmatprep.subr.mxu0 0.0
        %6942 = vmatpush1.msra.mxu0 0.0
        %6943 = vmatprep.subr.mxu0 0.0
        %6944 = vmatpush1.msra.mxu0 0.0
        %6945 = vmatprep.subr.mxu0 0.0
        %6946 = vmatpush1.msra.mxu0 0.0
        %6947 = vmatprep.subr.mxu0 0.0
        %6948 = vmatpush1.msra.mxu0 0.0
        %6949 = vmatprep.subr.mxu0 0.0
        %6950 = vmatpush1.msra.mxu0 0.0
        %6951 = vmatprep.subr.mxu0 0.0
        %6952 = vmatpush1.msra.mxu0 0.0
        %6953 = vmatprep.subr.mxu0 0.0
        %6954 = vmatpush1.msra.mxu0 0.0
        %6955 = vmatprep.subr.mxu0 0.0
        %6956 = vmatpush1.msra.mxu0 0.0
        %6957 = vmatprep.subr.mxu0 0.0
        %6958 = vmatpush1.msra.mxu0 0.0
        %6959 = vmatprep.subr.mxu0 0.0
        %6960 = vmatpush1.msra.mxu0 0.0
        %6961 = vmatprep.subr.mxu0 0.0
        %6962 = vmatpush1.msra.mxu0 %v6924
        %6963 = vmatprep.subr.mxu0 0.0
        %6964 = vmatpush1.msra.mxu0 %v6922
        %6965 = vmatprep.subr.mxu0 0.0
        %6966 = vmatpush2.msra.mxu0 0.0
        %6967 = vmatprep.subr.mxu0 0.0
        %6968 = vmatpush2.msra.mxu0 0.0
        %6969 = vmatprep.subr.mxu0 0.0
        %6970 = vmatpush2.msra.mxu0 0.0
        %6971 = vmatprep.subr.mxu0 0.0
        %6972 = vmatpush2.msra.mxu0 0.0
        %6973 = vmatprep.subr.mxu0 0.0
        %6974 = vmatpush2.msra.mxu0 0.0
        %6975 = vmatprep.subr.mxu0 0.0
        %6976 = vmatpush2.msra.mxu0 0.0
        %6977 = vmatprep.subr.mxu0 0.0
        %6978 = vmatpush2.msra.mxu0 0.0
        %6979 = vmatprep.subr.mxu0 0.0
        %6980 = vmatpush2.msra.mxu0 0.0
        %6981 = vmatprep.subr.mxu0 0.0
        %6982 = vmatpush2.msra.mxu0 0.0
        %6983 = vmatprep.subr.mxu0 0.0
        %6984 = vmatpush2.msra.mxu0 0.0
        %6985 = vmatprep.subr.mxu0 0.0
        %6986 = vmatpush2.msra.mxu0 0.0
        %6987 = vmatprep.subr.mxu0 0.0
        %6988 = vmatpush2.msra.mxu0 0.0
        %6989 = vmatprep.subr.mxu0 0.0
        %6990 = vmatpush2.msra.mxu0 0.0
        %6991 = vmatprep.subr.mxu0 0.0
        %6992 = vmatpush2.msra.mxu0 0.0
        %6993 = vmatprep.subr.mxu0 0.0
        %6994 = vmatpush2.msra.mxu0 0.0
        %6995 = vmatprep.subr.mxu0 0.0
        %6996 = vmatpush2.msra.mxu0 0.0
        %6997 = vmatprep.mubr.f32.mxu0 0.0
        %6998 = vmatmul.mubr.f32.gmra.mxu0 %v6928
        %v6999 = vpop.f32.mrf.mxu0
        %v7000 = vadd.f32 0.0, %v6999
        %v7001 = vpop.f32.mrf.mxu0
        %7002 = vmatprep.mubr.f32.mxu0 0.0
        %7003 = vmatmul.mubr.f32.gmra.mxu0 %v6931
        %v7004 = vpop.f32.mrf.mxu0
        %v7005 = vadd.f32 0.0, %v7004
        %v7006 = vpop.f32.mrf.mxu0
        %7007 = vdwg.mxu0
        %7008 = vrot.lane.b32.xlu0 %v480, 40
        %v7009 = vpop.permute.xlu0 %7008
        %7010 = vrot.lane.b32.xlu0 %v485, 40
        %v7011 = vpop.permute.xlu0 %7010
        %v7015 = vsel %vm1259, %v6822, 0
        %v7018 = vsel %vm1259, %v6823, 0
        %7020 = vmatprep.subr.mxu0 0.0
        %7021 = vmatpush1.msra.mxu0 0.0
        %7022 = vmatprep.subr.mxu0 0.0
        %7023 = vmatpush1.msra.mxu0 0.0
        %7024 = vmatprep.subr.mxu0 0.0
        %7025 = vmatpush1.msra.mxu0 0.0
        %7026 = vmatprep.subr.mxu0 0.0
        %7027 = vmatpush1.msra.mxu0 0.0
        %7028 = vmatprep.subr.mxu0 0.0
        %7029 = vmatpush1.msra.mxu0 0.0
        %7030 = vmatprep.subr.mxu0 0.0
        %7031 = vmatpush1.msra.mxu0 0.0
        %7032 = vmatprep.subr.mxu0 0.0
        %7033 = vmatpush1.msra.mxu0 0.0
        %7034 = vmatprep.subr.mxu0 0.0
        %7035 = vmatpush1.msra.mxu0 0.0
        %7036 = vmatprep.subr.mxu0 0.0
        %7037 = vmatpush1.msra.mxu0 0.0
        %7038 = vmatprep.subr.mxu0 0.0
        %7039 = vmatpush1.msra.mxu0 0.0
        %7040 = vmatprep.subr.mxu0 0.0
        %7041 = vmatpush1.msra.mxu0 0.0
        %7042 = vmatprep.subr.mxu0 0.0
        %7043 = vmatpush1.msra.mxu0 0.0
        %7044 = vmatprep.subr.mxu0 0.0
        %7045 = vmatpush1.msra.mxu0 0.0
        %7046 = vmatprep.subr.mxu0 0.0
        %7047 = vmatpush1.msra.mxu0 0.0
        %7048 = vmatprep.subr.mxu0 0.0
        %7049 = vmatpush1.msra.mxu0 %v7011
        %7050 = vmatprep.subr.mxu0 0.0
        %7051 = vmatpush1.msra.mxu0 %v7009
        %7052 = vmatprep.subr.mxu0 0.0
        %7053 = vmatpush2.msra.mxu0 0.0
        %7054 = vmatprep.subr.mxu0 0.0
        %7055 = vmatpush2.msra.mxu0 0.0
        %7056 = vmatprep.subr.mxu0 0.0
        %7057 = vmatpush2.msra.mxu0 0.0
        %7058 = vmatprep.subr.mxu0 0.0
        %7059 = vmatpush2.msra.mxu0 0.0
        %7060 = vmatprep.subr.mxu0 0.0
        %7061 = vmatpush2.msra.mxu0 0.0
        %7062 = vmatprep.subr.mxu0 0.0
        %7063 = vmatpush2.msra.mxu0 0.0
        %7064 = vmatprep.subr.mxu0 0.0
        %7065 = vmatpush2.msra.mxu0 0.0
        %7066 = vmatprep.subr.mxu0 0.0
        %7067 = vmatpush2.msra.mxu0 0.0
        %7068 = vmatprep.subr.mxu0 0.0
        %7069 = vmatpush2.msra.mxu0 0.0
        %7070 = vmatprep.subr.mxu0 0.0
        %7071 = vmatpush2.msra.mxu0 0.0
        %7072 = vmatprep.subr.mxu0 0.0
        %7073 = vmatpush2.msra.mxu0 0.0
        %7074 = vmatprep.subr.mxu0 0.0
        %7075 = vmatpush2.msra.mxu0 0.0
        %7076 = vmatprep.subr.mxu0 0.0
        %7077 = vmatpush2.msra.mxu0 0.0
        %7078 = vmatprep.subr.mxu0 0.0
        %7079 = vmatpush2.msra.mxu0 0.0
        %7080 = vmatprep.subr.mxu0 0.0
        %7081 = vmatpush2.msra.mxu0 0.0
        %7082 = vmatprep.subr.mxu0 0.0
        %7083 = vmatpush2.msra.mxu0 0.0
        %7084 = vmatprep.mubr.f32.mxu0 0.0
        %7085 = vmatmul.mubr.f32.gmra.mxu0 %v7015
        %v7086 = vpop.f32.mrf.mxu0
        %v7087 = vadd.f32 0.0, %v7086
        %v7088 = vpop.f32.mrf.mxu0
        %7089 = vmatprep.mubr.f32.mxu0 0.0
        %7090 = vmatmul.mubr.f32.gmra.mxu0 %v7018
        %v7091 = vpop.f32.mrf.mxu0
        %v7092 = vadd.f32 0.0, %v7091
        %v7093 = vpop.f32.mrf.mxu0
        %7094 = vdwg.mxu0
        %7095 = vrot.lane.b32.xlu0 %v490, 40
        %v7096 = vpop.permute.xlu0 %7095
        %7097 = vrot.lane.b32.xlu0 %v495, 40
        %v7098 = vpop.permute.xlu0 %7097
        %v7102 = vsel %vm1259, %v6824, 0
        %v7105 = vsel %vm1259, %v6825, 0
        %7107 = vmatprep.subr.mxu0 0.0
        %7108 = vmatpush1.msra.mxu0 0.0
        %7109 = vmatprep.subr.mxu0 0.0
        %7110 = vmatpush1.msra.mxu0 0.0
        %7111 = vmatprep.subr.mxu0 0.0
        %7112 = vmatpush1.msra.mxu0 0.0
        %7113 = vmatprep.subr.mxu0 0.0
        %7114 = vmatpush1.msra.mxu0 0.0
        %7115 = vmatprep.subr.mxu0 0.0
        %7116 = vmatpush1.msra.mxu0 0.0
        %7117 = vmatprep.subr.mxu0 0.0
        %7118 = vmatpush1.msra.mxu0 0.0
        %7119 = vmatprep.subr.mxu0 0.0
        %7120 = vmatpush1.msra.mxu0 0.0
        %7121 = vmatprep.subr.mxu0 0.0
        %7122 = vmatpush1.msra.mxu0 0.0
        %7123 = vmatprep.subr.mxu0 0.0
        %7124 = vmatpush1.msra.mxu0 0.0
        %7125 = vmatprep.subr.mxu0 0.0
        %7126 = vmatpush1.msra.mxu0 0.0
        %7127 = vmatprep.subr.mxu0 0.0
        %7128 = vmatpush1.msra.mxu0 0.0
        %7129 = vmatprep.subr.mxu0 0.0
        %7130 = vmatpush1.msra.mxu0 0.0
        %7131 = vmatprep.subr.mxu0 0.0
        %7132 = vmatpush1.msra.mxu0 0.0
        %7133 = vmatprep.subr.mxu0 0.0
        %7134 = vmatpush1.msra.mxu0 0.0
        %7135 = vmatprep.subr.mxu0 0.0
        %7136 = vmatpush1.msra.mxu0 %v7098
        %7137 = vmatprep.subr.mxu0 0.0
        %7138 = vmatpush1.msra.mxu0 %v7096
        %7139 = vmatprep.subr.mxu0 0.0
        %7140 = vmatpush2.msra.mxu0 0.0
        %7141 = vmatprep.subr.mxu0 0.0
        %7142 = vmatpush2.msra.mxu0 0.0
        %7143 = vmatprep.subr.mxu0 0.0
        %7144 = vmatpush2.msra.mxu0 0.0
        %7145 = vmatprep.subr.mxu0 0.0
        %7146 = vmatpush2.msra.mxu0 0.0
        %7147 = vmatprep.subr.mxu0 0.0
        %7148 = vmatpush2.msra.mxu0 0.0
        %7149 = vmatprep.subr.mxu0 0.0
        %7150 = vmatpush2.msra.mxu0 0.0
        %7151 = vmatprep.subr.mxu0 0.0
        %7152 = vmatpush2.msra.mxu0 0.0
        %7153 = vmatprep.subr.mxu0 0.0
        %7154 = vmatpush2.msra.mxu0 0.0
        %7155 = vmatprep.subr.mxu0 0.0
        %7156 = vmatpush2.msra.mxu0 0.0
        %7157 = vmatprep.subr.mxu0 0.0
        %7158 = vmatpush2.msra.mxu0 0.0
        %7159 = vmatprep.subr.mxu0 0.0
        %7160 = vmatpush2.msra.mxu0 0.0
        %7161 = vmatprep.subr.mxu0 0.0
        %7162 = vmatpush2.msra.mxu0 0.0
        %7163 = vmatprep.subr.mxu0 0.0
        %7164 = vmatpush2.msra.mxu0 0.0
        %7165 = vmatprep.subr.mxu0 0.0
        %7166 = vmatpush2.msra.mxu0 0.0
        %7167 = vmatprep.subr.mxu0 0.0
        %7168 = vmatpush2.msra.mxu0 0.0
        %7169 = vmatprep.subr.mxu0 0.0
        %7170 = vmatpush2.msra.mxu0 0.0
        %7171 = vmatprep.mubr.f32.mxu0 0.0
        %7172 = vmatmul.mubr.f32.gmra.mxu0 %v7102
        %v7173 = vpop.f32.mrf.mxu0
        %v7174 = vadd.f32 0.0, %v7173
        %v7175 = vpop.f32.mrf.mxu0
        %7176 = vmatprep.mubr.f32.mxu0 0.0
        %7177 = vmatmul.mubr.f32.gmra.mxu0 %v7105
        %v7178 = vpop.f32.mrf.mxu0
        %v7179 = vadd.f32 0.0, %v7178
        %v7180 = vpop.f32.mrf.mxu0
        %7181 = vdwg.mxu0
        %7182 = vrot.lane.b32.xlu0 %v500, 40
        %v7183 = vpop.permute.xlu0 %7182
        %7184 = vrot.lane.b32.xlu0 %v505, 40
        %v7185 = vpop.permute.xlu0 %7184
        %v7189 = vsel %vm1259, %v6826, 0
        %v7192 = vsel %vm1259, %v6827, 0
        %7194 = vmatprep.subr.mxu0 0.0
        %7195 = vmatpush1.msra.mxu0 0.0
        %7196 = vmatprep.subr.mxu0 0.0
        %7197 = vmatpush1.msra.mxu0 0.0
        %7198 = vmatprep.subr.mxu0 0.0
        %7199 = vmatpush1.msra.mxu0 0.0
        %7200 = vmatprep.subr.mxu0 0.0
        %7201 = vmatpush1.msra.mxu0 0.0
        %7202 = vmatprep.subr.mxu0 0.0
        %7203 = vmatpush1.msra.mxu0 0.0
        %7204 = vmatprep.subr.mxu0 0.0
        %7205 = vmatpush1.msra.mxu0 0.0
        %7206 = vmatprep.subr.mxu0 0.0
        %7207 = vmatpush1.msra.mxu0 0.0
        %7208 = vmatprep.subr.mxu0 0.0
        %7209 = vmatpush1.msra.mxu0 0.0
        %7210 = vmatprep.subr.mxu0 0.0
        %7211 = vmatpush1.msra.mxu0 0.0
        %7212 = vmatprep.subr.mxu0 0.0
        %7213 = vmatpush1.msra.mxu0 0.0
        %7214 = vmatprep.subr.mxu0 0.0
        %7215 = vmatpush1.msra.mxu0 0.0
        %7216 = vmatprep.subr.mxu0 0.0
        %7217 = vmatpush1.msra.mxu0 0.0
        %7218 = vmatprep.subr.mxu0 0.0
        %7219 = vmatpush1.msra.mxu0 0.0
        %7220 = vmatprep.subr.mxu0 0.0
        %7221 = vmatpush1.msra.mxu0 0.0
        %7222 = vmatprep.subr.mxu0 0.0
        %7223 = vmatpush1.msra.mxu0 %v7185
        %7224 = vmatprep.subr.mxu0 0.0
        %7225 = vmatpush1.msra.mxu0 %v7183
        %7226 = vmatprep.subr.mxu0 0.0
        %7227 = vmatpush2.msra.mxu0 0.0
        %7228 = vmatprep.subr.mxu0 0.0
        %7229 = vmatpush2.msra.mxu0 0.0
        %7230 = vmatprep.subr.mxu0 0.0
        %7231 = vmatpush2.msra.mxu0 0.0
        %7232 = vmatprep.subr.mxu0 0.0
        %7233 = vmatpush2.msra.mxu0 0.0
        %7234 = vmatprep.subr.mxu0 0.0
        %7235 = vmatpush2.msra.mxu0 0.0
        %7236 = vmatprep.subr.mxu0 0.0
        %7237 = vmatpush2.msra.mxu0 0.0
        %7238 = vmatprep.subr.mxu0 0.0
        %7239 = vmatpush2.msra.mxu0 0.0
        %7240 = vmatprep.subr.mxu0 0.0
        %7241 = vmatpush2.msra.mxu0 0.0
        %7242 = vmatprep.subr.mxu0 0.0
        %7243 = vmatpush2.msra.mxu0 0.0
        %7244 = vmatprep.subr.mxu0 0.0
        %7245 = vmatpush2.msra.mxu0 0.0
        %7246 = vmatprep.subr.mxu0 0.0
        %7247 = vmatpush2.msra.mxu0 0.0
        %7248 = vmatprep.subr.mxu0 0.0
        %7249 = vmatpush2.msra.mxu0 0.0
        %7250 = vmatprep.subr.mxu0 0.0
        %7251 = vmatpush2.msra.mxu0 0.0
        %7252 = vmatprep.subr.mxu0 0.0
        %7253 = vmatpush2.msra.mxu0 0.0
        %7254 = vmatprep.subr.mxu0 0.0
        %7255 = vmatpush2.msra.mxu0 0.0
        %7256 = vmatprep.subr.mxu0 0.0
        %7257 = vmatpush2.msra.mxu0 0.0
        %7258 = vmatprep.mubr.f32.mxu0 0.0
        %7259 = vmatmul.mubr.f32.gmra.mxu0 %v7189
        %v7260 = vpop.f32.mrf.mxu0
        %v7261 = vadd.f32 0.0, %v7260
        %v7262 = vpop.f32.mrf.mxu0
        %7263 = vmatprep.mubr.f32.mxu0 0.0
        %7264 = vmatmul.mubr.f32.gmra.mxu0 %v7192
        %v7265 = vpop.f32.mrf.mxu0
        %v7266 = vadd.f32 0.0, %v7265
        %v7267 = vpop.f32.mrf.mxu0
        %7268 = vdwg.mxu0
        %7269 = vrot.lane.b32.xlu0 %v510, 40
        %v7270 = vpop.permute.xlu0 %7269
        %7271 = vrot.lane.b32.xlu0 %v515, 40
        %v7272 = vpop.permute.xlu0 %7271
        %v7276 = vsel %vm1259, %v6828, 0
        %v7279 = vsel %vm1259, %v6829, 0
        %7281 = vmatprep.subr.mxu0 0.0
        %7282 = vmatpush1.msra.mxu0 0.0
        %7283 = vmatprep.subr.mxu0 0.0
        %7284 = vmatpush1.msra.mxu0 0.0
        %7285 = vmatprep.subr.mxu0 0.0
        %7286 = vmatpush1.msra.mxu0 0.0
        %7287 = vmatprep.subr.mxu0 0.0
        %7288 = vmatpush1.msra.mxu0 0.0
        %7289 = vmatprep.subr.mxu0 0.0
        %7290 = vmatpush1.msra.mxu0 0.0
        %7291 = vmatprep.subr.mxu0 0.0
        %7292 = vmatpush1.msra.mxu0 0.0
        %7293 = vmatprep.subr.mxu0 0.0
        %7294 = vmatpush1.msra.mxu0 0.0
        %7295 = vmatprep.subr.mxu0 0.0
        %7296 = vmatpush1.msra.mxu0 0.0
        %7297 = vmatprep.subr.mxu0 0.0
        %7298 = vmatpush1.msra.mxu0 0.0
        %7299 = vmatprep.subr.mxu0 0.0
        %7300 = vmatpush1.msra.mxu0 0.0
        %7301 = vmatprep.subr.mxu0 0.0
        %7302 = vmatpush1.msra.mxu0 0.0
        %7303 = vmatprep.subr.mxu0 0.0
        %7304 = vmatpush1.msra.mxu0 0.0
        %7305 = vmatprep.subr.mxu0 0.0
        %7306 = vmatpush1.msra.mxu0 0.0
        %7307 = vmatprep.subr.mxu0 0.0
        %7308 = vmatpush1.msra.mxu0 0.0
        %7309 = vmatprep.subr.mxu0 0.0
        %7310 = vmatpush1.msra.mxu0 %v7272
        %7311 = vmatprep.subr.mxu0 0.0
        %7312 = vmatpush1.msra.mxu0 %v7270
        %7313 = vmatprep.subr.mxu0 0.0
        %7314 = vmatpush2.msra.mxu0 0.0
        %7315 = vmatprep.subr.mxu0 0.0
        %7316 = vmatpush2.msra.mxu0 0.0
        %7317 = vmatprep.subr.mxu0 0.0
        %7318 = vmatpush2.msra.mxu0 0.0
        %7319 = vmatprep.subr.mxu0 0.0
        %7320 = vmatpush2.msra.mxu0 0.0
        %7321 = vmatprep.subr.mxu0 0.0
        %7322 = vmatpush2.msra.mxu0 0.0
        %7323 = vmatprep.subr.mxu0 0.0
        %7324 = vmatpush2.msra.mxu0 0.0
        %7325 = vmatprep.subr.mxu0 0.0
        %7326 = vmatpush2.msra.mxu0 0.0
        %7327 = vmatprep.subr.mxu0 0.0
        %7328 = vmatpush2.msra.mxu0 0.0
        %7329 = vmatprep.subr.mxu0 0.0
        %7330 = vmatpush2.msra.mxu0 0.0
        %7331 = vmatprep.subr.mxu0 0.0
        %7332 = vmatpush2.msra.mxu0 0.0
        %7333 = vmatprep.subr.mxu0 0.0
        %7334 = vmatpush2.msra.mxu0 0.0
        %7335 = vmatprep.subr.mxu0 0.0
        %7336 = vmatpush2.msra.mxu0 0.0
        %7337 = vmatprep.subr.mxu0 0.0
        %7338 = vmatpush2.msra.mxu0 0.0
        %7339 = vmatprep.subr.mxu0 0.0
        %7340 = vmatpush2.msra.mxu0 0.0
        %7341 = vmatprep.subr.mxu0 0.0
        %7342 = vmatpush2.msra.mxu0 0.0
        %7343 = vmatprep.subr.mxu0 0.0
        %7344 = vmatpush2.msra.mxu0 0.0
        %7345 = vmatprep.mubr.f32.mxu0 0.0
        %7346 = vmatmul.mubr.f32.gmra.mxu0 %v7276
        %v7347 = vpop.f32.mrf.mxu0
        %v7348 = vadd.f32 0.0, %v7347
        %v7349 = vpop.f32.mrf.mxu0
        %7350 = vmatprep.mubr.f32.mxu0 0.0
        %7351 = vmatmul.mubr.f32.gmra.mxu0 %v7279
        %v7352 = vpop.f32.mrf.mxu0
        %v7353 = vadd.f32 0.0, %v7352
        %v7354 = vpop.f32.mrf.mxu0
        %7355 = vdwg.mxu0
        %7356 = vrot.lane.b32.xlu0 %v520, 40
        %v7357 = vpop.permute.xlu0 %7356
        %7358 = vrot.lane.b32.xlu0 %v525, 40
        %v7359 = vpop.permute.xlu0 %7358
        %v7363 = vsel %vm1259, %v6830, 0
        %v7366 = vsel %vm1259, %v6831, 0
        %7368 = vmatprep.subr.mxu0 0.0
        %7369 = vmatpush1.msra.mxu0 0.0
        %7370 = vmatprep.subr.mxu0 0.0
        %7371 = vmatpush1.msra.mxu0 0.0
        %7372 = vmatprep.subr.mxu0 0.0
        %7373 = vmatpush1.msra.mxu0 0.0
        %7374 = vmatprep.subr.mxu0 0.0
        %7375 = vmatpush1.msra.mxu0 0.0
        %7376 = vmatprep.subr.mxu0 0.0
        %7377 = vmatpush1.msra.mxu0 0.0
        %7378 = vmatprep.subr.mxu0 0.0
        %7379 = vmatpush1.msra.mxu0 0.0
        %7380 = vmatprep.subr.mxu0 0.0
        %7381 = vmatpush1.msra.mxu0 0.0
        %7382 = vmatprep.subr.mxu0 0.0
        %7383 = vmatpush1.msra.mxu0 0.0
        %7384 = vmatprep.subr.mxu0 0.0
        %7385 = vmatpush1.msra.mxu0 0.0
        %7386 = vmatprep.subr.mxu0 0.0
        %7387 = vmatpush1.msra.mxu0 0.0
        %7388 = vmatprep.subr.mxu0 0.0
        %7389 = vmatpush1.msra.mxu0 0.0
        %7390 = vmatprep.subr.mxu0 0.0
        %7391 = vmatpush1.msra.mxu0 0.0
        %7392 = vmatprep.subr.mxu0 0.0
        %7393 = vmatpush1.msra.mxu0 0.0
        %7394 = vmatprep.subr.mxu0 0.0
        %7395 = vmatpush1.msra.mxu0 0.0
        %7396 = vmatprep.subr.mxu0 0.0
        %7397 = vmatpush1.msra.mxu0 %v7359
        %7398 = vmatprep.subr.mxu0 0.0
        %7399 = vmatpush1.msra.mxu0 %v7357
        %7400 = vmatprep.subr.mxu0 0.0
        %7401 = vmatpush2.msra.mxu0 0.0
        %7402 = vmatprep.subr.mxu0 0.0
        %7403 = vmatpush2.msra.mxu0 0.0
        %7404 = vmatprep.subr.mxu0 0.0
        %7405 = vmatpush2.msra.mxu0 0.0
        %7406 = vmatprep.subr.mxu0 0.0
        %7407 = vmatpush2.msra.mxu0 0.0
        %7408 = vmatprep.subr.mxu0 0.0
        %7409 = vmatpush2.msra.mxu0 0.0
        %7410 = vmatprep.subr.mxu0 0.0
        %7411 = vmatpush2.msra.mxu0 0.0
        %7412 = vmatprep.subr.mxu0 0.0
        %7413 = vmatpush2.msra.mxu0 0.0
        %7414 = vmatprep.subr.mxu0 0.0
        %7415 = vmatpush2.msra.mxu0 0.0
        %7416 = vmatprep.subr.mxu0 0.0
        %7417 = vmatpush2.msra.mxu0 0.0
        %7418 = vmatprep.subr.mxu0 0.0
        %7419 = vmatpush2.msra.mxu0 0.0
        %7420 = vmatprep.subr.mxu0 0.0
        %7421 = vmatpush2.msra.mxu0 0.0
        %7422 = vmatprep.subr.mxu0 0.0
        %7423 = vmatpush2.msra.mxu0 0.0
        %7424 = vmatprep.subr.mxu0 0.0
        %7425 = vmatpush2.msra.mxu0 0.0
        %7426 = vmatprep.subr.mxu0 0.0
        %7427 = vmatpush2.msra.mxu0 0.0
        %7428 = vmatprep.subr.mxu0 0.0
        %7429 = vmatpush2.msra.mxu0 0.0
        %7430 = vmatprep.subr.mxu0 0.0
        %7431 = vmatpush2.msra.mxu0 0.0
        %7432 = vmatprep.mubr.f32.mxu0 0.0
        %7433 = vmatmul.mubr.f32.gmra.mxu0 %v7363
        %v7434 = vpop.f32.mrf.mxu0
        %v7435 = vadd.f32 0.0, %v7434
        %v7436 = vpop.f32.mrf.mxu0
        %7437 = vmatprep.mubr.f32.mxu0 0.0
        %7438 = vmatmul.mubr.f32.gmra.mxu0 %v7366
        %v7439 = vpop.f32.mrf.mxu0
        %v7440 = vadd.f32 0.0, %v7439
        %v7441 = vpop.f32.mrf.mxu0
        %7442 = vdwg.mxu0
        %7443 = vrot.lane.b32.xlu0 %v530, 40
        %v7444 = vpop.permute.xlu0 %7443
        %7445 = vrot.lane.b32.xlu0 %v535, 40
        %v7446 = vpop.permute.xlu0 %7445
        %v7450 = vsel %vm1259, %v6832, 0
        %v7453 = vsel %vm1259, %v6833, 0
        %7455 = vmatprep.subr.mxu0 0.0
        %7456 = vmatpush1.msra.mxu0 0.0
        %7457 = vmatprep.subr.mxu0 0.0
        %7458 = vmatpush1.msra.mxu0 0.0
        %7459 = vmatprep.subr.mxu0 0.0
        %7460 = vmatpush1.msra.mxu0 0.0
        %7461 = vmatprep.subr.mxu0 0.0
        %7462 = vmatpush1.msra.mxu0 0.0
        %7463 = vmatprep.subr.mxu0 0.0
        %7464 = vmatpush1.msra.mxu0 0.0
        %7465 = vmatprep.subr.mxu0 0.0
        %7466 = vmatpush1.msra.mxu0 0.0
        %7467 = vmatprep.subr.mxu0 0.0
        %7468 = vmatpush1.msra.mxu0 0.0
        %7469 = vmatprep.subr.mxu0 0.0
        %7470 = vmatpush1.msra.mxu0 0.0
        %7471 = vmatprep.subr.mxu0 0.0
        %7472 = vmatpush1.msra.mxu0 0.0
        %7473 = vmatprep.subr.mxu0 0.0
        %7474 = vmatpush1.msra.mxu0 0.0
        %7475 = vmatprep.subr.mxu0 0.0
        %7476 = vmatpush1.msra.mxu0 0.0
        %7477 = vmatprep.subr.mxu0 0.0
        %7478 = vmatpush1.msra.mxu0 0.0
        %7479 = vmatprep.subr.mxu0 0.0
        %7480 = vmatpush1.msra.mxu0 0.0
        %7481 = vmatprep.subr.mxu0 0.0
        %7482 = vmatpush1.msra.mxu0 0.0
        %7483 = vmatprep.subr.mxu0 0.0
        %7484 = vmatpush1.msra.mxu0 %v7446
        %7485 = vmatprep.subr.mxu0 0.0
        %7486 = vmatpush1.msra.mxu0 %v7444
        %7487 = vmatprep.subr.mxu0 0.0
        %7488 = vmatpush2.msra.mxu0 0.0
        %7489 = vmatprep.subr.mxu0 0.0
        %7490 = vmatpush2.msra.mxu0 0.0
        %7491 = vmatprep.subr.mxu0 0.0
        %7492 = vmatpush2.msra.mxu0 0.0
        %7493 = vmatprep.subr.mxu0 0.0
        %7494 = vmatpush2.msra.mxu0 0.0
        %7495 = vmatprep.subr.mxu0 0.0
        %7496 = vmatpush2.msra.mxu0 0.0
        %7497 = vmatprep.subr.mxu0 0.0
        %7498 = vmatpush2.msra.mxu0 0.0
        %7499 = vmatprep.subr.mxu0 0.0
        %7500 = vmatpush2.msra.mxu0 0.0
        %7501 = vmatprep.subr.mxu0 0.0
        %7502 = vmatpush2.msra.mxu0 0.0
        %7503 = vmatprep.subr.mxu0 0.0
        %7504 = vmatpush2.msra.mxu0 0.0
        %7505 = vmatprep.subr.mxu0 0.0
        %7506 = vmatpush2.msra.mxu0 0.0
        %7507 = vmatprep.subr.mxu0 0.0
        %7508 = vmatpush2.msra.mxu0 0.0
        %7509 = vmatprep.subr.mxu0 0.0
        %7510 = vmatpush2.msra.mxu0 0.0
        %7511 = vmatprep.subr.mxu0 0.0
        %7512 = vmatpush2.msra.mxu0 0.0
        %7513 = vmatprep.subr.mxu0 0.0
        %7514 = vmatpush2.msra.mxu0 0.0
        %7515 = vmatprep.subr.mxu0 0.0
        %7516 = vmatpush2.msra.mxu0 0.0
        %7517 = vmatprep.subr.mxu0 0.0
        %7518 = vmatpush2.msra.mxu0 0.0
        %7519 = vmatprep.mubr.f32.mxu0 0.0
        %7520 = vmatmul.mubr.f32.gmra.mxu0 %v7450
        %v7521 = vpop.f32.mrf.mxu0
        %v7522 = vadd.f32 0.0, %v7521
        %v7523 = vpop.f32.mrf.mxu0
        %7524 = vmatprep.mubr.f32.mxu0 0.0
        %7525 = vmatmul.mubr.f32.gmra.mxu0 %v7453
        %v7526 = vpop.f32.mrf.mxu0
        %v7527 = vadd.f32 0.0, %v7526
        %v7528 = vpop.f32.mrf.mxu0
        %7529 = vdwg.mxu0
        %v7530 = vld [vmem:[#allocation8 + $0x18] sm:$0xff]
        %v7532 = vsel %vm552, %v6913, 0
        %v7535 = vsel %vm552, %v6918, 0
        %v7538 = vsel %vm552, %v7000, 0
        %v7541 = vsel %vm552, %v7005, 0
        %v7544 = vsel %vm552, %v7087, 0
        %v7547 = vsel %vm552, %v7092, 0
        %v7550 = vsel %vm552, %v7174, 0
        %v7553 = vsel %vm552, %v7179, 0
        %v7556 = vsel %vm552, %v7261, 0
        %v7559 = vsel %vm552, %v7266, 0
        %v7562 = vsel %vm552, %v7348, 0
        %v7565 = vsel %vm552, %v7353, 0
        %v7568 = vsel %vm552, %v7435, 0
        %v7571 = vsel %vm552, %v7440, 0
        %v7574 = vsel %vm552, %v7522, 0
        %v7577 = vsel %vm552, %v7527, 0
        %7579 = vmatprep.subr.mxu0 0.0
        %7580 = vmatpush1.msra.mxu0 0.0
        %7581 = vmatprep.subr.mxu0 0.0
        %7582 = vmatpush1.msra.mxu0 0.0
        %7583 = vmatprep.subr.mxu0 0.0
        %7584 = vmatpush1.msra.mxu0 0.0
        %7585 = vmatprep.subr.mxu0 0.0
        %7586 = vmatpush1.msra.mxu0 0.0
        %7587 = vmatprep.subr.mxu0 0.0
        %7588 = vmatpush1.msra.mxu0 0.0
        %7589 = vmatprep.subr.mxu0 0.0
        %7590 = vmatpush1.msra.mxu0 0.0
        %7591 = vmatprep.subr.mxu0 0.0
        %7592 = vmatpush1.msra.mxu0 0.0
        %7593 = vmatprep.subr.mxu0 0.0
        %7594 = vmatpush1.msra.mxu0 0.0
        %7595 = vmatprep.subr.mxu0 0.0
        %7596 = vmatpush1.msra.mxu0 0.0
        %7597 = vmatprep.subr.mxu0 0.0
        %7598 = vmatpush1.msra.mxu0 0.0
        %7599 = vmatprep.subr.mxu0 0.0
        %7600 = vmatpush1.msra.mxu0 0.0
        %7601 = vmatprep.subr.mxu0 0.0
        %7602 = vmatpush1.msra.mxu0 0.0
        %7603 = vmatprep.subr.mxu0 0.0
        %7604 = vmatpush1.msra.mxu0 0.0
        %7605 = vmatprep.subr.mxu0 0.0
        %7606 = vmatpush1.msra.mxu0 0.0
        %7607 = vmatprep.subr.mxu0 0.0
        %7608 = vmatpush1.msra.mxu0 0.0
        %7609 = vmatprep.subr.mxu0 0.0
        %7610 = vmatpush1.msra.mxu0 %v7530
        %7611 = vmatprep.subr.mxu0 0.0
        %7612 = vmatpush2.msra.mxu0 0.0
        %7613 = vmatprep.subr.mxu0 0.0
        %7614 = vmatpush2.msra.mxu0 0.0
        %7615 = vmatprep.subr.mxu0 0.0
        %7616 = vmatpush2.msra.mxu0 0.0
        %7617 = vmatprep.subr.mxu0 0.0
        %7618 = vmatpush2.msra.mxu0 0.0
        %7619 = vmatprep.subr.mxu0 0.0
        %7620 = vmatpush2.msra.mxu0 0.0
        %7621 = vmatprep.subr.mxu0 0.0
        %7622 = vmatpush2.msra.mxu0 0.0
        %7623 = vmatprep.subr.mxu0 0.0
        %7624 = vmatpush2.msra.mxu0 0.0
        %7625 = vmatprep.subr.mxu0 0.0
        %7626 = vmatpush2.msra.mxu0 0.0
        %7627 = vmatprep.subr.mxu0 0.0
        %7628 = vmatpush2.msra.mxu0 0.0
        %7629 = vmatprep.subr.mxu0 0.0
        %7630 = vmatpush2.msra.mxu0 0.0
        %7631 = vmatprep.subr.mxu0 0.0
        %7632 = vmatpush2.msra.mxu0 0.0
        %7633 = vmatprep.subr.mxu0 0.0
        %7634 = vmatpush2.msra.mxu0 0.0
        %7635 = vmatprep.subr.mxu0 0.0
        %7636 = vmatpush2.msra.mxu0 0.0
        %7637 = vmatprep.subr.mxu0 0.0
        %7638 = vmatpush2.msra.mxu0 0.0
        %7639 = vmatprep.subr.mxu0 0.0
        %7640 = vmatpush2.msra.mxu0 0.0
        %7641 = vmatprep.subr.mxu0 0.0
        %7642 = vmatpush2.msra.mxu0 0.0
        %7643 = vmatprep.mubr.f32.mxu0 0.0
        %7644 = vmatmul.mubr.f32.gmra.mxu0 %v7532
        %v7645 = vpop.f32.mrf.mxu0
        %v7646 = vadd.f32 0.0, %v7645
        %v7647 = vpop.f32.mrf.mxu0
        %7648 = vmatprep.mubr.f32.mxu0 0.0
        %7649 = vmatmul.mubr.f32.gmra.mxu0 %v7535
        %v7650 = vpop.f32.mrf.mxu0
        %v7651 = vadd.f32 0.0, %v7650
        %v7652 = vpop.f32.mrf.mxu0
        %7653 = vmatprep.mubr.f32.mxu0 0.0
        %7654 = vmatmul.mubr.f32.gmra.mxu0 %v7538
        %v7655 = vpop.f32.mrf.mxu0
        %v7656 = vadd.f32 0.0, %v7655
        %v7657 = vpop.f32.mrf.mxu0
        %7658 = vmatprep.mubr.f32.mxu0 0.0
        %7659 = vmatmul.mubr.f32.gmra.mxu0 %v7541
        %v7660 = vpop.f32.mrf.mxu0
        %v7661 = vadd.f32 0.0, %v7660
        %v7662 = vpop.f32.mrf.mxu0
        %7663 = vmatprep.mubr.f32.mxu0 0.0
        %7664 = vmatmul.mubr.f32.gmra.mxu0 %v7544
        %v7665 = vpop.f32.mrf.mxu0
        %v7666 = vadd.f32 0.0, %v7665
        %v7667 = vpop.f32.mrf.mxu0
        %7668 = vmatprep.mubr.f32.mxu0 0.0
        %7669 = vmatmul.mubr.f32.gmra.mxu0 %v7547
        %v7670 = vpop.f32.mrf.mxu0
        %v7671 = vadd.f32 0.0, %v7670
        %v7672 = vpop.f32.mrf.mxu0
        %7673 = vmatprep.mubr.f32.mxu0 0.0
        %7674 = vmatmul.mubr.f32.gmra.mxu0 %v7550
        %v7675 = vpop.f32.mrf.mxu0
        %v7676 = vadd.f32 0.0, %v7675
        %v7677 = vpop.f32.mrf.mxu0
        %7678 = vmatprep.mubr.f32.mxu0 0.0
        %7679 = vmatmul.mubr.f32.gmra.mxu0 %v7553
        %v7680 = vpop.f32.mrf.mxu0
        %v7681 = vadd.f32 0.0, %v7680
        %v7682 = vpop.f32.mrf.mxu0
        %7683 = vmatprep.mubr.f32.mxu0 0.0
        %7684 = vmatmul.mubr.f32.gmra.mxu0 %v7556
        %v7685 = vpop.f32.mrf.mxu0
        %v7686 = vadd.f32 0.0, %v7685
        %v7687 = vpop.f32.mrf.mxu0
        %7688 = vmatprep.mubr.f32.mxu0 0.0
        %7689 = vmatmul.mubr.f32.gmra.mxu0 %v7559
        %v7690 = vpop.f32.mrf.mxu0
        %v7691 = vadd.f32 0.0, %v7690
        %v7692 = vpop.f32.mrf.mxu0
        %7693 = vmatprep.mubr.f32.mxu0 0.0
        %7694 = vmatmul.mubr.f32.gmra.mxu0 %v7562
        %v7695 = vpop.f32.mrf.mxu0
        %v7696 = vadd.f32 0.0, %v7695
        %v7697 = vpop.f32.mrf.mxu0
        %7698 = vmatprep.mubr.f32.mxu0 0.0
        %7699 = vmatmul.mubr.f32.gmra.mxu0 %v7565
        %v7700 = vpop.f32.mrf.mxu0
        %v7701 = vadd.f32 0.0, %v7700
        %v7702 = vpop.f32.mrf.mxu0
        %7703 = vmatprep.mubr.f32.mxu0 0.0
        %7704 = vmatmul.mubr.f32.gmra.mxu0 %v7568
        %v7705 = vpop.f32.mrf.mxu0
        %v7706 = vadd.f32 0.0, %v7705
        %v7707 = vpop.f32.mrf.mxu0
        %7708 = vmatprep.mubr.f32.mxu0 0.0
        %7709 = vmatmul.mubr.f32.gmra.mxu0 %v7571
        %v7710 = vpop.f32.mrf.mxu0
        %v7711 = vadd.f32 0.0, %v7710
        %v7712 = vpop.f32.mrf.mxu0
        %7713 = vmatprep.mubr.f32.mxu0 0.0
        %7714 = vmatmul.mubr.f32.gmra.mxu0 %v7574
        %v7715 = vpop.f32.mrf.mxu0
        %v7716 = vadd.f32 0.0, %v7715
        %v7717 = vpop.f32.mrf.mxu0
        %7718 = vmatprep.mubr.f32.mxu0 0.0
        %7719 = vmatmul.mubr.f32.gmra.mxu0 %v7577
        %v7720 = vpop.f32.mrf.mxu0
        %v7721 = vadd.f32 0.0, %v7720
        %v7722 = vpop.f32.mrf.mxu0
        %7723 = vdwg.mxu0
        %v7724 = vadd.f32 %v5914, %v7646
        %v7725 = vadd.f32 %v5915, %v7651
        %v7726 = vadd.f32 %v5916, %v7656
        %v7727 = vadd.f32 %v5917, %v7661
        %v7728 = vadd.f32 %v5918, %v7666
        %v7729 = vadd.f32 %v5919, %v7671
        %v7730 = vadd.f32 %v5920, %v7676
        %v7731 = vadd.f32 %v5921, %v7681
        %v7732 = vadd.f32 %v5922, %v7686
        %v7733 = vadd.f32 %v5923, %v7691
        %v7734 = vadd.f32 %v5924, %v7696
        %v7735 = vadd.f32 %v5925, %v7701
        %v7736 = vadd.f32 %v5926, %v7706
        %v7737 = vadd.f32 %v5927, %v7711
        %v7738 = vadd.f32 %v5928, %v7716
        %v7739 = vadd.f32 %v5929, %v7721
        %v7740 = vld [vmem:[%s5] sm:$0x1]
        %v7742 = vlaneseq
        %v7743 = vshrl.u32 %v7742, 7
        %v7744 = vsub.s32 0, %v7743
        %v7745 = vrot.slane %v7740, %v7744
        %v7747 = vadd.f32 %v7724, %v7745
        %v7748 = vadd.f32 %v7725, %v7745
        %v7749 = vadd.f32 %v7726, %v7745
        %v7750 = vadd.f32 %v7727, %v7745
        %v7751 = vadd.f32 %v7728, %v7745
        %v7752 = vadd.f32 %v7729, %v7745
        %v7753 = vadd.f32 %v7730, %v7745
        %v7754 = vadd.f32 %v7731, %v7745
        %v7755 = vadd.f32 %v7732, %v7745
        %v7756 = vadd.f32 %v7733, %v7745
        %v7757 = vadd.f32 %v7734, %v7745
        %v7758 = vadd.f32 %v7735, %v7745
        %v7759 = vadd.f32 %v7736, %v7745
        %v7760 = vadd.f32 %v7737, %v7745
        %v7761 = vadd.f32 %v7738, %v7745
        %v7762 = vadd.f32 %v7739, %v7745
        %7763 = vst.msk [vmem:[%s314] sm:$0xff] %vm344, %v7747
        %7764 = vst.msk [vmem:[%s314 + $0x8] sm:$0xff] %vm344, %v7748
        %7765 = vst.msk [vmem:[%s314 + $0x10] sm:$0xff] %vm344, %v7749
        %7766 = vst.msk [vmem:[%s314 + $0x18] sm:$0xff] %vm344, %v7750
        %7767 = vst.msk [vmem:[%s314 + $0x20] sm:$0xff] %vm344, %v7751
        %7768 = vst.msk [vmem:[%s314 + $0x28] sm:$0xff] %vm344, %v7752
        %7769 = vst.msk [vmem:[%s314 + $0x30] sm:$0xff] %vm344, %v7753
        %7770 = vst.msk [vmem:[%s314 + $0x38] sm:$0xff] %vm344, %v7754
        %7771 = vst.msk [vmem:[%s314 + $0x40] sm:$0xff] %vm344, %v7755
        %7772 = vst.msk [vmem:[%s314 + $0x48] sm:$0xff] %vm344, %v7756
        %7773 = vst.msk [vmem:[%s314 + $0x50] sm:$0xff] %vm344, %v7757
        %7774 = vst.msk [vmem:[%s314 + $0x58] sm:$0xff] %vm344, %v7758
        %7775 = vst.msk [vmem:[%s314 + $0x60] sm:$0xff] %vm344, %v7759
        %7776 = vst.msk [vmem:[%s314 + $0x68] sm:$0xff] %vm344, %v7760
        %7777 = vst.msk [vmem:[%s314 + $0x70] sm:$0xff] %vm344, %v7761
        %7778 = vst.msk [vmem:[%s314 + $0x78] sm:$0xff] %vm344, %v7762
        %s7779 = sand.u32 %s164, 1
        %s7780 = scalar_lea.sflag [#allocation4], %s7779
        %s7781 = sand.u32 %s164, 1
        %s7782 = smul.addr %s7781, 128
        %s7783 = scalar_lea.vmem [#allocation10], %s7782
        // Predicated region
        $region61: #{tpu_custom_call.1} parent=43 // pred_check
          %p7784 = pneg %p174
        $region62: #{tpu_custom_call.1} parent=43 // pred_check_branch
          %7786 = sbr.rel (%p7784) target = $region64
        $region63: #{tpu_custom_call.1} parent=43 // pred_region
          %s7787 = smul.u32 8, %s25
          %s7789 = ssub.s32 2048, 2048
          %7790 = vsyncadd %s7780, %s7789
          %s7791 = smul.addr %s7787, 2
          %s7792 = smul.addr %s7791, 128
          %s7793 = scalar_lea.hbm %s6, %s7792
          %s7794 = sshll.u32 %s7783, 4
          %s7795 = int_to_ptr.vmem [resolvable:$true] %s7794
          %7800 = dma.vmem_to_hbm [thread:$0]  %s7795, 2048, %s7793, %s7780, 128, 128, 8
        $region64: #{tpu_custom_call.1} parent=43 // pred_fallthru
          _
      $region44: #{tpu_custom_call.1} parent=5 // pred_fallthru
        _
      %p7801 = scmp.le.s32.totalorder 2, %s20
      // Predicated region
      $region65: #{tpu_custom_call.1} parent=5 // pred_check
        %p7802 = pneg %p7801
      $region66: #{tpu_custom_call.1} parent=5 // pred_check_branch
        %7804 = sbr.rel (%p7802) target = $region68
      $region67: #{tpu_custom_call.1} parent=5 // pred_region
        %s7805 = ssub.s32 %s20, 2
        // Predicated region
        $region69: #{tpu_custom_call.1} parent=67 // pred_check
          %p7806 = pneg %p180
        $region70: #{tpu_custom_call.1} parent=67 // pred_check_branch
          %7808 = sbr.rel (%p7806) target = $region72
        $region71: #{tpu_custom_call.1} parent=67 // pred_region
          %s7809 = sand.u32 %s165, 1
          %s7810 = scalar_lea.sflag [#allocation4], %s7809
          %s7811 = sand.u32 %s165, 1
          %s7812 = smul.addr %s7811, 128
          %s7813 = scalar_lea.vmem [#allocation10], %s7812
          %7814 = dma.done %s7810, 2048
        $region72: #{tpu_custom_call.1} parent=67 // pred_fallthru
          _
      $region68: #{tpu_custom_call.1} parent=5 // pred_fallthru
        _
    $region6: #{tpu_custom_call.1} parent=1 // loop_footer
      %s24 = sadd.s32 1, %s20
    $region7: #{tpu_custom_call.1} parent=1 // loop_footer_branch
      %19 = sbr.rel target = $region3
    $region8: #{tpu_custom_call.1} parent=1 // loop_exit
      _
    %7815 = vsyncpa [#allocation3], 1
    %s7816 = scalar_lea.sflag [#allocation3], 1
    %7817 = vsyncpa %s7816, 1
    %7818 = vsyncpa [#allocation6], 1
    %7819 = vsyncpa [#allocation9], 1
    %7820 = vsyncpa [#allocation4], 1
    %s7821 = scalar_lea.sflag [#allocation4], 1
    %7822 = vsyncpa %s7821, 1

</llo_original>
